<compile_context>
chip_gen: v7x
topology: tpu7x:2x2x1
jax: 0.10.0
libtpu: 0.0.40
codegen_flags: <defaults>
</compile_context>

<pallas_src>
import functools

import jax
import jax.numpy as jnp
from jax.experimental import pallas as pl
from jax.experimental.pallas import tpu as pltpu

EMB_DIM = 32     # embedding_dim
ATT_HID = 16     # AttentionLayer hidden (nn.Linear(2*emb, 16))
PRED_HID = 8     # PredictLayer hidden   (nn.Linear(3*emb, 8))
PRED_PAD = 128   # PredictLayer hidden padded to one full lane width (zeros beyond 8)
MEMBERS = 6      # max members per group (ragged groups handled via in-kernel mask)
TB = 512         # (group, item) pairs per grid step


# --------------------------------------------------------------------------- #
# In-kernel helpers
# --------------------------------------------------------------------------- #
def _stable_sigmoid(logits):
    """sigmoid(x) with the divide on the EUP (vrcp) and no exp overflow."""
    z = jnp.exp(-jnp.abs(logits))
    p = pl.reciprocal(1.0 + z, approx=True)          # = sigmoid(|x|)
    return jnp.where(logits >= 0.0, p, 1.0 - p)


def _predict_tail_t(a, item, wpe, wpa, wpi, bp1, wp2t, bp2):
    """PredictLayer + sigmoid on concat(a*item, a, item); concat folded into weights.

    Returns the scores TRANSPOSED as a lane-dense [1, rows] row so the caller can do
    an unmasked, lane-dense store.
    """
    elem = a * item                                    # torch.mul
    h = (jnp.dot(elem, wpe, preferred_element_type=jnp.float32)
         + jnp.dot(a, wpa, preferred_element_type=jnp.float32)
         + jnp.dot(item, wpi, preferred_element_type=jnp.float32))
    h = jnp.maximum(h + bp1, 0.0)                      # [rows, PRED_PAD]; Dropout(0)=id
    # logits^T = wp2^T @ h^T  — contraction on the lane axis of BOTH operands
    # (same orientation as q @ k^T), giving a lane-dense [1, rows] result.
    logits_t = jax.lax.dot_general(
        wp2t, h, dimension_numbers=(((1,), (1,)), ((), ())),
        preferred_element_type=jnp.float32) + bp2      # [1, rows]
    return _stable_sigmoid(logits_t)


# --------------------------------------------------------------------------- #
# Kernel 1 (grp_forward): attention over members + aggregation + predict, fused.
# Each grid step handles TB (group, item) pairs.
# --------------------------------------------------------------------------- #
def grp_fused_kernel(mem_ref, item_ref, size_ref,
                     w1m_ref, w1i_ref, b1_ref, w2_ref, b2_ref,
                     exp_ref, red_ref,
                     wpe_ref, wpa_ref, wpi_ref, bp1_ref, wp2t_ref, bp2_ref,
                     out_ref):
    mem = mem_ref[...]        # [TB, M*D]  member embeddings, member-major
    item = item_ref[...]      # [TB, D]    item embedding per pair

    # AttentionLayer on concat(member_m, item) for all M members at once:
    #   member side via block-diagonal [M*D, M*H] weight,
    #   item   side via output-tiled   [D,   M*H] weight.
    h = jnp.dot(mem, w1m_ref[...], preferred_element_type=jnp.float32)
    h = h + jnp.dot(item, w1i_ref[...], preferred_element_type=jnp.float32)
    h = jnp.maximum(h + b1_ref[...], 0.0)                                   # [TB, M*H]
    s = jnp.dot(h, w2_ref[...], preferred_element_type=jnp.float32) + b2_ref[...]  # [TB, M]

    # masked softmax over the M member scores  (== F.softmax(out.view(1,-1), dim=1))
    member_idx = jax.lax.broadcasted_iota(jnp.int32, s.shape, 1)            # [TB, M]
    valid = member_idx < size_ref[...]                                      # [TB, M]
    s = jnp.where(valid, s, -1e30)
    e = jnp.exp(s - jnp.max(s, axis=-1, keepdims=True)) * valid.astype(jnp.float32)
    wts = e * pl.reciprocal(jnp.sum(e, axis=-1, keepdims=True), approx=True)  # [TB, M]

    # at_wt @ members_embeds, kept as two small MXU matmuls (no lane slicing):
    #   wts_big[t, m*D+d] = wts[t, m];  g[t, d] = sum_m wts[t, m] * mem[t, m*D+d]
    wts_big = jnp.dot(wts, exp_ref[...], preferred_element_type=jnp.float32)      # [TB, M*D]
    g = jnp.dot(mem * wts_big, red_ref[...], preferred_element_type=jnp.float32)  # [TB, D]

    # PredictLayer + sigmoid on concat(g*item, g, item) — lane-dense [1, TB] result
    probs = _predict_tail_t(g, item, wpe_ref[...], wpa_ref[...], wpi_ref[...],
                            bp1_ref[...], wp2t_ref[...], bp2_ref[...])
    out_ref[...] = probs[None]                         # (1, 1, TB), unmasked lane-dense


# --------------------------------------------------------------------------- #
# Kernel 2 (usr_forward): PredictLayer + sigmoid on concat(u*i, u, i), tiled over B.
# --------------------------------------------------------------------------- #
def predict_kernel(a_ref, it_ref, wpe_ref, wpa_ref, wpi_ref, bp1_ref,
                   wp2t_ref, bp2_ref, out_ref):
    probs = _predict_tail_t(a_ref[...], it_ref[...],
                            wpe_ref[...], wpa_ref[...], wpi_ref[...],
                            bp1_ref[...], wp2t_ref[...], bp2_ref[...])
    out_ref[...] = probs[None]


# --------------------------------------------------------------------------- #
# Parameter preprocessing (done once; hoisted out of the forward wrappers)
# --------------------------------------------------------------------------- #
def prepare_params(params):
    d, m, p = EMB_DIM, MEMBERS, PRED_HID
    eye_m = jnp.eye(m, dtype=jnp.float32)
    w1 = params["att_w1"]                      # [2D, H]
    w1m, w1i = w1[:d], w1[d:]
    prepped = dict(params)
    prepped["att_w1m_bd"] = jnp.kron(eye_m, w1m)                       # [M*D, M*H]
    prepped["att_w1i_rep"] = jnp.tile(w1i, (1, m))                     # [D, M*H]
    prepped["att_b1_rep"] = jnp.tile(params["att_b1"], (1, m))         # [1, M*H]
    prepped["att_w2_bd"] = jnp.kron(eye_m, params["att_w2"])           # [M*H, M]
    prepped["att_expand"] = jnp.kron(eye_m, jnp.ones((1, d), jnp.float32))   # [M, M*D]
    prepped["att_reduce"] = jnp.kron(jnp.ones((m, 1), jnp.float32),
                                     jnp.eye(d, dtype=jnp.float32))          # [M*D, D]
    # PredictLayer weights, split per concat segment and zero-padded to 128 lanes
    wp1 = params["pred_w1"]                    # [3D, P]
    lane_pad = ((0, 0), (0, PRED_PAD - p))
    prepped["pred_wpe"] = jnp.pad(wp1[:d], lane_pad)                   # [D, 128]
    prepped["pred_wpa"] = jnp.pad(wp1[d:2 * d], lane_pad)              # [D, 128]
    prepped["pred_wpi"] = jnp.pad(wp1[2 * d:], lane_pad)               # [D, 128]
    prepped["pred_b1p"] = jnp.pad(params["pred_b1"], lane_pad)         # [1, 128]
    prepped["pred_w2t"] = jnp.pad(params["pred_w2"].T, lane_pad)       # [1, 128]
    return prepped


# --------------------------------------------------------------------------- #
# Forward wrappers (embedding lookups are XLA glue; compute is in the kernels)
# --------------------------------------------------------------------------- #
@functools.partial(jax.jit, static_argnames=("tb",))
def grp_forward(prepped, group_member_mat, group_sizes, group_inputs, item_inputs,
                tb=TB):
    d, m = EMB_DIM, MEMBERS
    bsz = group_inputs.shape[0]
    nt = pl.cdiv(bsz, tb)
    bp = nt * tb
    pad = bp - bsz
    g_in = jnp.pad(group_inputs, (0, pad))
    i_in = jnp.pad(item_inputs, (0, pad))

    item_embeds = jnp.take(prepped["itemembeds"], i_in, axis=0)          # [Bp, D]
    members = jnp.take(group_member_mat, g_in, axis=0)                   # [Bp, M]
    member_flat = jnp.take(prepped["userembeds"], members, axis=0).reshape(bp, m * d)
    sizes = jnp.take(group_sizes, g_in, axis=0).astype(jnp.int32)[:, None]   # [Bp, 1]

    row = lambda i: (i, 0)
    const = lambda i: (0, 0)
    out = pl.pallas_call(
        grp_fused_kernel,
        out_shape=jax.ShapeDtypeStruct((nt, 1, tb), jnp.float32),
        grid=(nt,),
        in_specs=[
            pl.BlockSpec((tb, m * d), row),              # member_flat
            pl.BlockSpec((tb, d), row),                  # item
            pl.BlockSpec((tb, 1), row),                  # group size per pair
            pl.BlockSpec((m * d, m * ATT_HID), const),   # att W1 member (block-diag)
            pl.BlockSpec((d, m * ATT_HID), const),       # att W1 item (tiled)
            pl.BlockSpec((1, m * ATT_HID), const),       # att b1 (tiled)
            pl.BlockSpec((m * ATT_HID, m), const),       # att W2 (block-diag)
            pl.BlockSpec((1, 1), const),                 # att b2
            pl.BlockSpec((m, m * d), const),             # expand  (wts -> per-dim)
            pl.BlockSpec((m * d, d), const),             # reduce  (sum over members)
            pl.BlockSpec((d, PRED_PAD), const),          # pred W1[:, elem]  (padded)
            pl.BlockSpec((d, PRED_PAD), const),          # pred W1[:, group] (padded)
            pl.BlockSpec((d, PRED_PAD), const),          # pred W1[:, item]  (padded)
            pl.BlockSpec((1, PRED_PAD), const),          # pred b1 (padded)
            pl.BlockSpec((1, PRED_PAD), const),          # pred W2^T (padded)
            pl.BlockSpec((1, 1), const),                 # pred b2
        ],
        # lane-dense output: each grid step stores one (1, 1, TB) row, no masked vst
        out_specs=pl.BlockSpec((1, 1, tb), lambda i: (i, 0, 0)),
        compiler_params=pltpu.CompilerParams(
            dimension_semantics=("parallel",)),          # v7x: 2 TCs split the batch
    )(member_flat, item_embeds, sizes,
      prepped["att_w1m_bd"], prepped["att_w1i_rep"], prepped["att_b1_rep"],
      prepped["att_w2_bd"], prepped["att_b2"],
      prepped["att_expand"], prepped["att_reduce"],
      prepped["pred_wpe"], prepped["pred_wpa"], prepped["pred_wpi"],
      prepped["pred_b1p"], prepped["pred_w2t"], prepped["pred_b2"])
    return out.reshape(bp, 1)[:bsz]


@functools.partial(jax.jit, static_argnames=("tb",))
def usr_forward(prepped, user_inputs, item_inputs, tb=TB):
    d = EMB_DIM
    bsz = user_inputs.shape[0]
    nt = pl.cdiv(bsz, tb)
    bp = nt * tb
    pad = bp - bsz
    u_in = jnp.pad(user_inputs, (0, pad))
    i_in = jnp.pad(item_inputs, (0, pad))
    user_embeds = jnp.take(prepped["userembeds"], u_in, axis=0)
    item_embeds = jnp.take(prepped["itemembeds"], i_in, axis=0)

    row = lambda i: (i, 0)
    const = lambda i: (0, 0)
    out = pl.pallas_call(
        predict_kernel,
        out_shape=jax.ShapeDtypeStruct((nt, 1, tb), jnp.float32),
        grid=(nt,),
        in_specs=[
            pl.BlockSpec((tb, d), row),
            pl.BlockSpec((tb, d), row),
            pl.BlockSpec((d, PRED_PAD), const),
            pl.BlockSpec((d, PRED_PAD), const),
            pl.BlockSpec((d, PRED_PAD), const),
            pl.BlockSpec((1, PRED_PAD), const),
            pl.BlockSpec((1, PRED_PAD), const),
            pl.BlockSpec((1, 1), const),
        ],
        out_specs=pl.BlockSpec((1, 1, tb), lambda i: (i, 0, 0)),
        compiler_params=pltpu.CompilerParams(
            dimension_semantics=("parallel",)),
    )(user_embeds, item_embeds,
      prepped["pred_wpe"], prepped["pred_wpa"], prepped["pred_wpi"],
      prepped["pred_b1p"], prepped["pred_w2t"], prepped["pred_b2"])
    return out.reshape(bp, 1)[:bsz]


# --------------------------------------------------------------------------- #
# Deterministic parameter construction (matches module __init__ shapes)
# --------------------------------------------------------------------------- #
def init_params(key, num_users, num_items, num_groups, d):
    ks = jax.random.split(key, 10)

    def xavier_normal(k, n, m):
        std = (2.0 / (n + m)) ** 0.5
        return std * jax.random.normal(k, (n, m), jnp.float32)

    return {
        "userembeds": xavier_normal(ks[0], num_users, d),
        "itemembeds": xavier_normal(ks[1], num_items, d),
        "groupembeds": xavier_normal(ks[2], num_groups, d),  # unused by grp_forward (per spec)
        # AttentionLayer: Linear(2D,16) -> ReLU -> Linear(16,1); nn.init.normal weights
        "att_w1": jax.random.normal(ks[3], (2 * d, ATT_HID), jnp.float32),
        "att_b1": 0.01 * jax.random.normal(ks[4], (1, ATT_HID), jnp.float32),
        "att_w2": jax.random.normal(ks[5], (ATT_HID, 1), jnp.float32),
        "att_b2": 0.01 * jax.random.normal(ks[6], (1, 1), jnp.float32),
        # PredictLayer: Linear(3D,8) -> ReLU -> Linear(8,1)
        "pred_w1": jax.random.normal(ks[7], (3 * d, PRED_HID), jnp.float32),
        "pred_b1": 0.01 * jax.random.normal(ks[8], (1, PRED_HID), jnp.float32),
        "pred_w2": jax.random.normal(ks[9], (PRED_HID, 1), jnp.float32),
        "pred_b2": jnp.zeros((1, 1), jnp.float32),
    }


# --------------------------------------------------------------------------- #
# Pure-JAX reference (mirrors the PyTorch forward) for correctness checking
# --------------------------------------------------------------------------- #
def _reference_predict(params, a, item):
    elem = a * item
    z = jnp.concatenate([elem, a, item], axis=-1)
    h = jax.nn.relu(z @ params["pred_w1"] + params["pred_b1"])
    return jax.nn.sigmoid(h @ params["pred_w2"] + params["pred_b2"])


def reference_grp(params, group_member_mat, group_sizes, group_inputs, item_inputs):
    item_embeds = jnp.take(params["itemembeds"], item_inputs, axis=0)      # [B, D]
    members = jnp.take(group_member_mat, group_inputs, axis=0)             # [B, M]
    mem = jnp.take(params["userembeds"], members, axis=0)                  # [B, M, D]
    sizes = jnp.take(group_sizes, group_inputs, axis=0)
    mask = jnp.arange(MEMBERS)[None, :] < sizes[:, None]                   # [B, M]
    item_rep = jnp.broadcast_to(item_embeds[:, None, :], mem.shape)
    x = jnp.concatenate([mem, item_rep], axis=-1)                          # [B, M, 2D]
    h = jax.nn.relu(jnp.einsum("bmi,ij->bmj", x, params["att_w1"]) + params["att_b1"])
    s = jnp.einsum("bmi,ij->bmj", h, params["att_w2"])[..., 0] + params["att_b2"][0, 0]
    s = jnp.where(mask, s, -jnp.inf)
    wts = jax.nn.softmax(s, axis=-1)                                       # [B, M]
    g = jnp.einsum("bm,bmd->bd", wts, mem)
    return _reference_predict(params, g, item_embeds)


def reference_usr(params, user_inputs, item_inputs):
    u = jnp.take(params["userembeds"], user_inputs, axis=0)
    it = jnp.take(params["itemembeds"], item_inputs, axis=0)
    return _reference_predict(params, u, it)


# --------------------------------------------------------------------------- #
if __name__ == "__main__":
    key = jax.random.PRNGKey(0)
    num_users, num_items, num_groups = 16, 12, 4
    B = 6

    k_params, k_members, k_items, k_users = jax.random.split(key, 4)
    params = init_params(k_params, num_users, num_items, num_groups, EMB_DIM)
    prepped = prepare_params(params)

    # group_member_dict as a dense [num_groups, MEMBERS] id matrix + per-group size
    group_member_mat = jax.random.randint(
        k_members, (num_groups, MEMBERS), 0, num_users, dtype=jnp.int32)
    group_sizes = jnp.array([6, 3, 4, 2], dtype=jnp.int32)   # ragged groups

    group_inputs = jnp.arange(B, dtype=jnp.int32) % num_groups
    item_inputs = jax.random.randint(k_items, (B,), 0, num_items, dtype=jnp.int32)
    user_inputs = jax.random.randint(k_users, (B,), 0, num_users, dtype=jnp.int32)

    # forward(group_inputs, None, item_inputs) -> grp_forward
    y_grp = jax.block_until_ready(
        grp_forward(prepped, group_member_mat, group_sizes, group_inputs, item_inputs))
    # forward(None, user_inputs, item_inputs) -> usr_forward
    y_usr = jax.block_until_ready(
        usr_forward(prepped, user_inputs, item_inputs))

    y_grp_ref = reference_grp(params, group_member_mat, group_sizes,
                              group_inputs, item_inputs)
    y_usr_ref = reference_usr(params, user_inputs, item_inputs)

    assert y_grp.shape == (B, 1) and y_usr.shape == (B, 1)
    assert bool(jnp.all(jnp.isfinite(y_grp))) and bool(jnp.all(jnp.isfinite(y_usr)))
    assert bool(jnp.all((y_grp >= 0) & (y_grp <= 1)))
    assert bool(jnp.all((y_usr >= 0) & (y_usr <= 1)))
    assert float(jnp.max(jnp.abs(y_grp - y_grp_ref))) < 1e-2
    assert float(jnp.max(jnp.abs(y_usr - y_usr_ref))) < 1e-2
    print("KERNEL_OK")
</pallas_src>

<mosaic_0001>
module attributes {stable_mosaic.version = 11 : i64} {
  func.func @grp_fused_kernel(%arg0: i32, %arg1: memref<512x192xf32, #tpu.memory_space<vmem>>, %arg2: memref<512x32xf32, #tpu.memory_space<vmem>>, %arg3: memref<512x1xi32, #tpu.memory_space<vmem>>, %arg4: memref<192x96xf32, #tpu.memory_space<vmem>>, %arg5: memref<32x96xf32, #tpu.memory_space<vmem>>, %arg6: memref<1x96xf32, #tpu.memory_space<vmem>>, %arg7: memref<96x6xf32, #tpu.memory_space<vmem>>, %arg8: memref<1x1xf32, #tpu.memory_space<vmem>>, %arg9: memref<6x192xf32, #tpu.memory_space<vmem>>, %arg10: memref<192x32xf32, #tpu.memory_space<vmem>>, %arg11: memref<32x128xf32, #tpu.memory_space<vmem>>, %arg12: memref<32x128xf32, #tpu.memory_space<vmem>>, %arg13: memref<32x128xf32, #tpu.memory_space<vmem>>, %arg14: memref<1x128xf32, #tpu.memory_space<vmem>>, %arg15: memref<1x128xf32, #tpu.memory_space<vmem>>, %arg16: memref<1x1xf32, #tpu.memory_space<vmem>>, %arg17: memref<1x1x512xf32, #tpu.memory_space<vmem>>) attributes {dimension_semantics = [#tpu.dimension_semantics<parallel>], iteration_bounds = array<i64: 1>, scalar_prefetch = 0 : i64, scratch_operands = 0 : i64, tpu.core_type = #tpu.core_type<tc>, window_params = [{transform_indices = @transform_0, window_bounds = array<i64: 512, 192>}, {transform_indices = @transform_1, window_bounds = array<i64: 512, 32>}, {transform_indices = @transform_2, window_bounds = array<i64: 512, 1>}, {pipeline_mode = #tpu.pipeline_mode<synchronous>, transform_indices = @transform_3, window_bounds = array<i64: 192, 96>}, {pipeline_mode = #tpu.pipeline_mode<synchronous>, transform_indices = @transform_4, window_bounds = array<i64: 32, 96>}, {pipeline_mode = #tpu.pipeline_mode<synchronous>, transform_indices = @transform_5, window_bounds = array<i64: 1, 96>}, {pipeline_mode = #tpu.pipeline_mode<synchronous>, transform_indices = @transform_6, window_bounds = array<i64: 96, 6>}, {pipeline_mode = #tpu.pipeline_mode<synchronous>, transform_indices = @transform_7, window_bounds = array<i64: 1, 1>}, {pipeline_mode = #tpu.pipeline_mode<synchronous>, transform_indices = @transform_8, window_bounds = array<i64: 6, 192>}, {pipeline_mode = #tpu.pipeline_mode<synchronous>, transform_indices = @transform_9, window_bounds = array<i64: 192, 32>}, {pipeline_mode = #tpu.pipeline_mode<synchronous>, transform_indices = @transform_10, window_bounds = array<i64: 32, 128>}, {pipeline_mode = #tpu.pipeline_mode<synchronous>, transform_indices = @transform_11, window_bounds = array<i64: 32, 128>}, {pipeline_mode = #tpu.pipeline_mode<synchronous>, transform_indices = @transform_12, window_bounds = array<i64: 32, 128>}, {pipeline_mode = #tpu.pipeline_mode<synchronous>, transform_indices = @transform_13, window_bounds = array<i64: 1, 128>}, {pipeline_mode = #tpu.pipeline_mode<synchronous>, transform_indices = @transform_14, window_bounds = array<i64: 1, 128>}, {pipeline_mode = #tpu.pipeline_mode<synchronous>, transform_indices = @transform_15, window_bounds = array<i64: 1, 1>}, {transform_indices = @transform_16, window_bounds = array<i64: 1, 1, 512>}]} {
    %c0 = arith.constant 0 : index
    %c0_0 = arith.constant 0 : index
    %0 = vector.load %arg1[%c0, %c0_0] : memref<512x192xf32, #tpu.memory_space<vmem>>, vector<512x192xf32>
    %c0_1 = arith.constant 0 : index
    %c0_2 = arith.constant 0 : index
    %1 = vector.load %arg2[%c0_1, %c0_2] : memref<512x32xf32, #tpu.memory_space<vmem>>, vector<512x32xf32>
    %c0_3 = arith.constant 0 : index
    %c0_4 = arith.constant 0 : index
    %2 = vector.load %arg4[%c0_3, %c0_4] : memref<192x96xf32, #tpu.memory_space<vmem>>, vector<192x96xf32>
    %cst = arith.constant dense<0.000000e+00> : vector<512x96xf32>
    %3 = tpu.matmul %0, %2, %cst {dimension_numbers = #tpu.dot_dimension_numbers<[1], [0], [0], [1], [0, 0, 1, 1], [], []>} : vector<512x192xf32>, vector<192x96xf32>, vector<512x96xf32> -> vector<512x96xf32>
    %c0_5 = arith.constant 0 : index
    %c0_6 = arith.constant 0 : index
    %4 = vector.load %arg5[%c0_5, %c0_6] : memref<32x96xf32, #tpu.memory_space<vmem>>, vector<32x96xf32>
    %cst_7 = arith.constant dense<0.000000e+00> : vector<512x96xf32>
    %5 = tpu.matmul %1, %4, %cst_7 {dimension_numbers = #tpu.dot_dimension_numbers<[1], [0], [0], [1], [0, 0, 1, 1], [], []>} : vector<512x32xf32>, vector<32x96xf32>, vector<512x96xf32> -> vector<512x96xf32>
    %6 = arith.addf %3, %5 : vector<512x96xf32>
    %c0_8 = arith.constant 0 : index
    %c0_9 = arith.constant 0 : index
    %7 = vector.load %arg6[%c0_8, %c0_9] : memref<1x96xf32, #tpu.memory_space<vmem>>, vector<1x96xf32>
    %8 = vector.broadcast %7 : vector<1x96xf32> to vector<512x96xf32>
    %9 = arith.addf %6, %8 : vector<512x96xf32>
    %cst_10 = arith.constant 0.000000e+00 : f32
    %10 = vector.broadcast %cst_10 : f32 to vector<512x96xf32>
    %11 = arith.maximumf %9, %10 : vector<512x96xf32>
    %c0_11 = arith.constant 0 : index
    %c0_12 = arith.constant 0 : index
    %12 = vector.load %arg7[%c0_11, %c0_12] : memref<96x6xf32, #tpu.memory_space<vmem>>, vector<96x6xf32>
    %cst_13 = arith.constant dense<0.000000e+00> : vector<512x6xf32>
    %13 = tpu.matmul %11, %12, %cst_13 {dimension_numbers = #tpu.dot_dimension_numbers<[1], [0], [0], [1], [0, 0, 1, 1], [], []>} : vector<512x96xf32>, vector<96x6xf32>, vector<512x6xf32> -> vector<512x6xf32>
    %c0_14 = arith.constant 0 : index
    %c0_15 = arith.constant 0 : index
    %14 = vector.load %arg8[%c0_14, %c0_15] : memref<1x1xf32, #tpu.memory_space<vmem>>, vector<1x1xf32>
    %15 = vector.broadcast %14 : vector<1x1xf32> to vector<512x6xf32>
    %16 = arith.addf %13, %15 : vector<512x6xf32>
    %17 = tpu.iota {dimensions = array<i32: 1>} : vector<512x6xi32>
    %c0_16 = arith.constant 0 : index
    %c0_17 = arith.constant 0 : index
    %18 = vector.load %arg3[%c0_16, %c0_17] : memref<512x1xi32, #tpu.memory_space<vmem>>, vector<512x1xi32>
    %19 = vector.broadcast %18 : vector<512x1xi32> to vector<512x6xi32>
    %20 = arith.cmpi slt, %17, %19 : vector<512x6xi32>
    %cst_18 = arith.constant -1.000000e+30 : f32
    %21 = vector.broadcast %cst_18 : f32 to vector<512x6xf32>
    %22 = arith.select %20, %16, %21 : vector<512x6xi1>, vector<512x6xf32>
    %cst_19 = arith.constant dense<0xFF800000> : vector<512xf32>
    %23 = vector.multi_reduction <maximumf>, %22, %cst_19 [1] : vector<512x6xf32> to vector<512xf32>
    %24 = vector.shape_cast %23 : vector<512xf32> to vector<512x1xf32>
    %25 = vector.broadcast %24 : vector<512x1xf32> to vector<512x6xf32>
    %26 = arith.subf %22, %25 : vector<512x6xf32>
    %27 = math.exp %26 : vector<512x6xf32>
    %28 = arith.extui %20 : vector<512x6xi1> to vector<512x6xi32>
    %29 = arith.sitofp %28 : vector<512x6xi32> to vector<512x6xf32>
    %30 = arith.mulf %27, %29 : vector<512x6xf32>
    %cst_20 = arith.constant dense<0.000000e+00> : vector<512xf32>
    %31 = vector.multi_reduction <add>, %30, %cst_20 [1] : vector<512x6xf32> to vector<512xf32>
    %32 = vector.shape_cast %31 : vector<512xf32> to vector<512x1xf32>
    %33 = tpu.reciprocal %32 {approx = true} : vector<512x1xf32> -> vector<512x1xf32>
    %34 = vector.broadcast %33 : vector<512x1xf32> to vector<512x6xf32>
    %35 = arith.mulf %30, %34 : vector<512x6xf32>
    %c0_21 = arith.constant 0 : index
    %c0_22 = arith.constant 0 : index
    %36 = vector.load %arg9[%c0_21, %c0_22] : memref<6x192xf32, #tpu.memory_space<vmem>>, vector<6x192xf32>
    %cst_23 = arith.constant dense<0.000000e+00> : vector<512x192xf32>
    %37 = tpu.matmul %35, %36, %cst_23 {dimension_numbers = #tpu.dot_dimension_numbers<[1], [0], [0], [1], [0, 0, 1, 1], [], []>} : vector<512x6xf32>, vector<6x192xf32>, vector<512x192xf32> -> vector<512x192xf32>
    %38 = arith.mulf %0, %37 : vector<512x192xf32>
    %c0_24 = arith.constant 0 : index
    %c0_25 = arith.constant 0 : index
    %39 = vector.load %arg10[%c0_24, %c0_25] : memref<192x32xf32, #tpu.memory_space<vmem>>, vector<192x32xf32>
    %cst_26 = arith.constant dense<0.000000e+00> : vector<512x32xf32>
    %40 = tpu.matmul %38, %39, %cst_26 {dimension_numbers = #tpu.dot_dimension_numbers<[1], [0], [0], [1], [0, 0, 1, 1], [], []>} : vector<512x192xf32>, vector<192x32xf32>, vector<512x32xf32> -> vector<512x32xf32>
    %c0_27 = arith.constant 0 : index
    %c0_28 = arith.constant 0 : index
    %41 = vector.load %arg11[%c0_27, %c0_28] : memref<32x128xf32, #tpu.memory_space<vmem>>, vector<32x128xf32>
    %c0_29 = arith.constant 0 : index
    %c0_30 = arith.constant 0 : index
    %42 = vector.load %arg12[%c0_29, %c0_30] : memref<32x128xf32, #tpu.memory_space<vmem>>, vector<32x128xf32>
    %c0_31 = arith.constant 0 : index
    %c0_32 = arith.constant 0 : index
    %43 = vector.load %arg13[%c0_31, %c0_32] : memref<32x128xf32, #tpu.memory_space<vmem>>, vector<32x128xf32>
    %c0_33 = arith.constant 0 : index
    %c0_34 = arith.constant 0 : index
    %44 = vector.load %arg14[%c0_33, %c0_34] : memref<1x128xf32, #tpu.memory_space<vmem>>, vector<1x128xf32>
    %c0_35 = arith.constant 0 : index
    %c0_36 = arith.constant 0 : index
    %45 = vector.load %arg15[%c0_35, %c0_36] : memref<1x128xf32, #tpu.memory_space<vmem>>, vector<1x128xf32>
    %c0_37 = arith.constant 0 : index
    %c0_38 = arith.constant 0 : index
    %46 = vector.load %arg16[%c0_37, %c0_38] : memref<1x1xf32, #tpu.memory_space<vmem>>, vector<1x1xf32>
    %47 = arith.mulf %40, %1 : vector<512x32xf32>
    %cst_39 = arith.constant dense<0.000000e+00> : vector<512x128xf32>
    %48 = tpu.matmul %47, %41, %cst_39 {dimension_numbers = #tpu.dot_dimension_numbers<[1], [0], [0], [1], [0, 0, 1, 1], [], []>} : vector<512x32xf32>, vector<32x128xf32>, vector<512x128xf32> -> vector<512x128xf32>
    %cst_40 = arith.constant dense<0.000000e+00> : vector<512x128xf32>
    %49 = tpu.matmul %40, %42, %cst_40 {dimension_numbers = #tpu.dot_dimension_numbers<[1], [0], [0], [1], [0, 0, 1, 1], [], []>} : vector<512x32xf32>, vector<32x128xf32>, vector<512x128xf32> -> vector<512x128xf32>
    %50 = arith.addf %48, %49 : vector<512x128xf32>
    %cst_41 = arith.constant dense<0.000000e+00> : vector<512x128xf32>
    %51 = tpu.matmul %1, %43, %cst_41 {dimension_numbers = #tpu.dot_dimension_numbers<[1], [0], [0], [1], [0, 0, 1, 1], [], []>} : vector<512x32xf32>, vector<32x128xf32>, vector<512x128xf32> -> vector<512x128xf32>
    %52 = arith.addf %50, %51 : vector<512x128xf32>
    %53 = vector.broadcast %44 : vector<1x128xf32> to vector<512x128xf32>
    %54 = arith.addf %52, %53 : vector<512x128xf32>
    %cst_42 = arith.constant 0.000000e+00 : f32
    %55 = vector.broadcast %cst_42 : f32 to vector<512x128xf32>
    %56 = arith.maximumf %54, %55 : vector<512x128xf32>
    %cst_43 = arith.constant dense<0.000000e+00> : vector<1x512xf32>
    %57 = tpu.matmul %45, %56, %cst_43 {dimension_numbers = #tpu.dot_dimension_numbers<[1], [1], [0], [0], [0, 0, 1, 0], [], []>} : vector<1x128xf32>, vector<512x128xf32>, vector<1x512xf32> -> vector<1x512xf32>
    %58 = vector.broadcast %46 : vector<1x1xf32> to vector<1x512xf32>
    %59 = arith.addf %57, %58 : vector<1x512xf32>
    %60 = math.absf %59 : vector<1x512xf32>
    %cst_44 = arith.constant 0.000000e+00 : f32
    %61 = vector.broadcast %cst_44 : f32 to vector<1x512xf32>
    %62 = arith.subf %61, %60 : vector<1x512xf32>
    %63 = math.exp %62 : vector<1x512xf32>
    %cst_45 = arith.constant 1.000000e+00 : f32
    %64 = vector.broadcast %cst_45 : f32 to vector<1x512xf32>
    %65 = arith.addf %64, %63 : vector<1x512xf32>
    %66 = tpu.reciprocal %65 {approx = true} : vector<1x512xf32> -> vector<1x512xf32>
    %cst_46 = arith.constant 0.000000e+00 : f32
    %67 = vector.broadcast %cst_46 : f32 to vector<1x512xf32>
    %68 = arith.cmpf oge, %59, %67 : vector<1x512xf32>
    %cst_47 = arith.constant 1.000000e+00 : f32
    %69 = vector.broadcast %cst_47 : f32 to vector<1x512xf32>
    %70 = arith.subf %69, %66 : vector<1x512xf32>
    %71 = arith.select %68, %66, %70 : vector<1x512xi1>, vector<1x512xf32>
    %72 = vector.shape_cast %71 : vector<1x512xf32> to vector<1x1x512xf32>
    %c0_48 = arith.constant 0 : index
    %c0_49 = arith.constant 0 : index
    %c0_50 = arith.constant 0 : index
    %73 = vector.load %arg17[%c0_48, %c0_49, %c0_50] : memref<1x1x512xf32, #tpu.memory_space<vmem>>, vector<1x1x512xf32>
    tpu.vector_store %arg17[%c0_48, %c0_49, %c0_50], %72 {strides = array<i32>} : memref<1x1x512xf32, #tpu.memory_space<vmem>>, vector<1x1x512xf32>,
    return
  }
  func.func @transform_0(%arg0: i32) -> (i32, i32) {
    %c0_i32 = arith.constant 0 : i32
    %c0_i32_0 = arith.constant 0 : i32
    return %arg0, %c0_i32 : i32, i32
  }
  func.func @transform_1(%arg0: i32) -> (i32, i32) {
    %c0_i32 = arith.constant 0 : i32
    %c0_i32_0 = arith.constant 0 : i32
    return %arg0, %c0_i32 : i32, i32
  }
  func.func @transform_2(%arg0: i32) -> (i32, i32) {
    %c0_i32 = arith.constant 0 : i32
    %c0_i32_0 = arith.constant 0 : i32
    return %arg0, %c0_i32 : i32, i32
  }
  func.func @transform_3(%arg0: i32) -> (i32, i32) {
    %c0_i32 = arith.constant 0 : i32
    %c0_i32_0 = arith.constant 0 : i32
    %c0_i32_1 = arith.constant 0 : i32
    return %c0_i32, %c0_i32_0 : i32, i32
  }
  func.func @transform_4(%arg0: i32) -> (i32, i32) {
    %c0_i32 = arith.constant 0 : i32
    %c0_i32_0 = arith.constant 0 : i32
    %c0_i32_1 = arith.constant 0 : i32
    return %c0_i32, %c0_i32_0 : i32, i32
  }
  func.func @transform_5(%arg0: i32) -> (i32, i32) {
    %c0_i32 = arith.constant 0 : i32
    %c0_i32_0 = arith.constant 0 : i32
    %c0_i32_1 = arith.constant 0 : i32
    return %c0_i32, %c0_i32_0 : i32, i32
  }
  func.func @transform_6(%arg0: i32) -> (i32, i32) {
    %c0_i32 = arith.constant 0 : i32
    %c0_i32_0 = arith.constant 0 : i32
    %c0_i32_1 = arith.constant 0 : i32
    return %c0_i32, %c0_i32_0 : i32, i32
  }
  func.func @transform_7(%arg0: i32) -> (i32, i32) {
    %c0_i32 = arith.constant 0 : i32
    %c0_i32_0 = arith.constant 0 : i32
    %c0_i32_1 = arith.constant 0 : i32
    return %c0_i32, %c0_i32_0 : i32, i32
  }
  func.func @transform_8(%arg0: i32) -> (i32, i32) {
    %c0_i32 = arith.constant 0 : i32
    %c0_i32_0 = arith.constant 0 : i32
    %c0_i32_1 = arith.constant 0 : i32
    return %c0_i32, %c0_i32_0 : i32, i32
  }
  func.func @transform_9(%arg0: i32) -> (i32, i32) {
    %c0_i32 = arith.constant 0 : i32
    %c0_i32_0 = arith.constant 0 : i32
    %c0_i32_1 = arith.constant 0 : i32
    return %c0_i32, %c0_i32_0 : i32, i32
  }
  func.func @transform_10(%arg0: i32) -> (i32, i32) {
    %c0_i32 = arith.constant 0 : i32
    %c0_i32_0 = arith.constant 0 : i32
    %c0_i32_1 = arith.constant 0 : i32
    return %c0_i32, %c0_i32_0 : i32, i32
  }
  func.func @transform_11(%arg0: i32) -> (i32, i32) {
    %c0_i32 = arith.constant 0 : i32
    %c0_i32_0 = arith.constant 0 : i32
    %c0_i32_1 = arith.constant 0 : i32
    return %c0_i32, %c0_i32_0 : i32, i32
  }
  func.func @transform_12(%arg0: i32) -> (i32, i32) {
    %c0_i32 = arith.constant 0 : i32
    %c0_i32_0 = arith.constant 0 : i32
    %c0_i32_1 = arith.constant 0 : i32
    return %c0_i32, %c0_i32_0 : i32, i32
  }
  func.func @transform_13(%arg0: i32) -> (i32, i32) {
    %c0_i32 = arith.constant 0 : i32
    %c0_i32_0 = arith.constant 0 : i32
    %c0_i32_1 = arith.constant 0 : i32
    return %c0_i32, %c0_i32_0 : i32, i32
  }
  func.func @transform_14(%arg0: i32) -> (i32, i32) {
    %c0_i32 = arith.constant 0 : i32
    %c0_i32_0 = arith.constant 0 : i32
    %c0_i32_1 = arith.constant 0 : i32
    return %c0_i32, %c0_i32_0 : i32, i32
  }
  func.func @transform_15(%arg0: i32) -> (i32, i32) {
    %c0_i32 = arith.constant 0 : i32
    %c0_i32_0 = arith.constant 0 : i32
    %c0_i32_1 = arith.constant 0 : i32
    return %c0_i32, %c0_i32_0 : i32, i32
  }
  func.func @transform_16(%arg0: i32) -> (i32, i32, i32) {
    %c0_i32 = arith.constant 0 : i32
    %c0_i32_0 = arith.constant 0 : i32
    %c0_i32_1 = arith.constant 0 : i32
    return %arg0, %c0_i32, %c0_i32_0 : i32, i32, i32
  }
}

</mosaic_0001>

<llo_original>
// kernel: grp_forward.1
$region0: #{grp_forward.1}
  #allocation0 [shape = 'u32[]', space=smem, size = 0x4, offset = 0x4, fixed_abs, tag = 'smem constant byte address 0x4 - core index']
  #allocation1 [shape = 'u32[144,128]{1,0:T(1,128)}', space=vmem, size = 0x12000, scoped, tag = 'internal scratch']
  #allocation2 [shape = 'f32[1,1]{1,0:T(1,128)S(1)}', space=vmem, size = 0x200, scoped, tag = 'scoped memory for grp_forward.1']
  #allocation3 [shape = 'f32[1,1]{1,0:T(1,128)S(1)}', space=vmem, size = 0x200, scoped, tag = 'scoped memory for grp_forward.1']
  %s0 = inlined_call_operand.vmem [shape: f32[512,192], index: 0, kind: input, shape index: {}]
  %s1 = inlined_call_operand.vmem [shape: f32[512,32], index: 1, kind: input, shape index: {}]
  %s2 = inlined_call_operand.vmem [shape: s32[512,1], index: 2, kind: input, shape index: {}]
  %s3 = inlined_call_operand.vmem [shape: f32[192,96], index: 3, kind: input, shape index: {}]
  %s4 = inlined_call_operand.vmem [shape: f32[32,96], index: 4, kind: input, shape index: {}]
  %s5 = inlined_call_operand.vmem [shape: f32[1,96], index: 5, kind: input, shape index: {}]
  %s6 = inlined_call_operand.vmem [shape: f32[96,6], index: 6, kind: input, shape index: {}]
  %s7 = inlined_call_operand.<no memory space> [shape: f32[1,1], index: 7, kind: input, shape index: {}]
  %s8 = inlined_call_operand.vmem [shape: f32[6,192], index: 8, kind: input, shape index: {}]
  %s9 = inlined_call_operand.vmem [shape: f32[192,32], index: 9, kind: input, shape index: {}]
  %s10 = inlined_call_operand.vmem [shape: f32[32,128], index: 10, kind: input, shape index: {}]
  %s11 = inlined_call_operand.vmem [shape: f32[32,128], index: 11, kind: input, shape index: {}]
  %s12 = inlined_call_operand.vmem [shape: f32[32,128], index: 12, kind: input, shape index: {}]
  %s13 = inlined_call_operand.vmem [shape: f32[1,128], index: 13, kind: input, shape index: {}]
  %s14 = inlined_call_operand.vmem [shape: f32[1,128], index: 14, kind: input, shape index: {}]
  %s15 = inlined_call_operand.<no memory space> [shape: f32[1,1], index: 15, kind: input, shape index: {}]
  %s16 = inlined_call_operand.vmem [shape: f32[1,1,512], index: 16, kind: output, shape index: {}]
  %s17 = sld [smem:[#allocation0]]
  $region74: #{grp_forward.1} parent=0
    _
  %s19 = ssub.s32 1, %s17
  %s20 = scalar_select 0, %s19, %s17
  %v21 = vstv %s7
  %22 = vst [vmem:[#allocation2] sm:$0x1] %v21
  %v23 = vstv %s15
  %24 = vst [vmem:[#allocation3] sm:$0x1] %v23
  // Predicated region
  $region2: #{grp_forward.1} parent=0 // pred_check
    _
  $region3: #{grp_forward.1} parent=0 // pred_check_branch
    %26 = sbr.rel (0) target = $region5
  $region4: #{grp_forward.1} parent=0 // pred_region
    _
  $region5: #{grp_forward.1} parent=0 // pred_fallthru
    _
  // Predicated region
  $region6: #{grp_forward.1} parent=0 // pred_check
    _
  $region7: #{grp_forward.1} parent=0 // pred_check_branch
    %28 = sbr.rel (0) target = $region9
  $region8: #{grp_forward.1} parent=0 // pred_region
    _
  $region9: #{grp_forward.1} parent=0 // pred_fallthru
    _
  // Predicated region
  $region10: #{grp_forward.1} parent=0 // pred_check
    _
  $region11: #{grp_forward.1} parent=0 // pred_check_branch
    %30 = sbr.rel (0) target = $region13
  $region12: #{grp_forward.1} parent=0 // pred_region
    _
  $region13: #{grp_forward.1} parent=0 // pred_fallthru
    _
  // Predicated region
  $region14: #{grp_forward.1} parent=0 // pred_check
    _
  $region15: #{grp_forward.1} parent=0 // pred_check_branch
    %32 = sbr.rel (0) target = $region17
  $region16: #{grp_forward.1} parent=0 // pred_region
    _
  $region17: #{grp_forward.1} parent=0 // pred_fallthru
    _
  // Predicated region
  $region18: #{grp_forward.1} parent=0 // pred_check
    _
  $region19: #{grp_forward.1} parent=0 // pred_check_branch
    %34 = sbr.rel (0) target = $region21
  $region20: #{grp_forward.1} parent=0 // pred_region
    _
  $region21: #{grp_forward.1} parent=0 // pred_fallthru
    _
  // Predicated region
  $region22: #{grp_forward.1} parent=0 // pred_check
    _
  $region23: #{grp_forward.1} parent=0 // pred_check_branch
    %36 = sbr.rel (0) target = $region25
  $region24: #{grp_forward.1} parent=0 // pred_region
    _
  $region25: #{grp_forward.1} parent=0 // pred_fallthru
    _
  // Predicated region
  $region26: #{grp_forward.1} parent=0 // pred_check
    _
  $region27: #{grp_forward.1} parent=0 // pred_check_branch
    %38 = sbr.rel (0) target = $region29
  $region28: #{grp_forward.1} parent=0 // pred_region
    _
  $region29: #{grp_forward.1} parent=0 // pred_fallthru
    _
  // Predicated region
  $region30: #{grp_forward.1} parent=0 // pred_check
    _
  $region31: #{grp_forward.1} parent=0 // pred_check_branch
    %40 = sbr.rel (0) target = $region33
  $region32: #{grp_forward.1} parent=0 // pred_region
    _
  $region33: #{grp_forward.1} parent=0 // pred_fallthru
    _
  // Predicated region
  $region34: #{grp_forward.1} parent=0 // pred_check
    _
  $region35: #{grp_forward.1} parent=0 // pred_check_branch
    %42 = sbr.rel (0) target = $region37
  $region36: #{grp_forward.1} parent=0 // pred_region
    _
  $region37: #{grp_forward.1} parent=0 // pred_fallthru
    _
  // Predicated region
  $region38: #{grp_forward.1} parent=0 // pred_check
    _
  $region39: #{grp_forward.1} parent=0 // pred_check_branch
    %44 = sbr.rel (0) target = $region41
  $region40: #{grp_forward.1} parent=0 // pred_region
    _
  $region41: #{grp_forward.1} parent=0 // pred_fallthru
    _
  // Predicated region
  $region42: #{grp_forward.1} parent=0 // pred_check
    _
  $region43: #{grp_forward.1} parent=0 // pred_check_branch
    %46 = sbr.rel (0) target = $region45
  $region44: #{grp_forward.1} parent=0 // pred_region
    _
  $region45: #{grp_forward.1} parent=0 // pred_fallthru
    _
  // Predicated region
  $region46: #{grp_forward.1} parent=0 // pred_check
    _
  $region47: #{grp_forward.1} parent=0 // pred_check_branch
    %48 = sbr.rel (0) target = $region49
  $region48: #{grp_forward.1} parent=0 // pred_region
    _
  $region49: #{grp_forward.1} parent=0 // pred_fallthru
    _
  // Predicated region
  $region50: #{grp_forward.1} parent=0 // pred_check
    _
  $region51: #{grp_forward.1} parent=0 // pred_check_branch
    %50 = sbr.rel (0) target = $region53
  $region52: #{grp_forward.1} parent=0 // pred_region
    _
  $region53: #{grp_forward.1} parent=0 // pred_fallthru
    _
  // Predicated region
  $region54: #{grp_forward.1} parent=0 // pred_check
    _
  $region55: #{grp_forward.1} parent=0 // pred_check_branch
    %52 = sbr.rel (0) target = $region57
  $region56: #{grp_forward.1} parent=0 // pred_region
    _
  $region57: #{grp_forward.1} parent=0 // pred_fallthru
    _
  // Predicated region
  $region58: #{grp_forward.1} parent=0 // pred_check
    _
  $region59: #{grp_forward.1} parent=0 // pred_check_branch
    %54 = sbr.rel (0) target = $region61
  $region60: #{grp_forward.1} parent=0 // pred_region
    _
  $region61: #{grp_forward.1} parent=0 // pred_fallthru
    _
  // Predicated region
  $region62: #{grp_forward.1} parent=0 // pred_check
    _
  $region63: #{grp_forward.1} parent=0 // pred_check_branch
    %56 = sbr.rel (0) target = $region65
  $region64: #{grp_forward.1} parent=0 // pred_region
    _
  $region65: #{grp_forward.1} parent=0 // pred_fallthru
    _
  %v57 = vld [vmem:[%s0] sm:$0xff]
  %v58 = vld [vmem:[%s0 + $0x8] sm:$0xff]
  %v59 = vld [vmem:[%s0 + $0x10] sm:$0xff]
  %v60 = vld [vmem:[%s0 + $0x18] sm:$0xff]
  %v61 = vld [vmem:[%s0 + $0x20] sm:$0xff]
  %v62 = vld [vmem:[%s0 + $0x28] sm:$0xff]
  %v63 = vld [vmem:[%s0 + $0x30] sm:$0xff]
  %v64 = vld [vmem:[%s0 + $0x38] sm:$0xff]
  %v65 = vld [vmem:[%s0 + $0x40] sm:$0xff]
  %v66 = vld [vmem:[%s0 + $0x48] sm:$0xff]
  %v67 = vld [vmem:[%s0 + $0x50] sm:$0xff]
  %v68 = vld [vmem:[%s0 + $0x58] sm:$0xff]
  %v69 = vld [vmem:[%s0 + $0x60] sm:$0xff]
  %v70 = vld [vmem:[%s0 + $0x68] sm:$0xff]
  %v71 = vld [vmem:[%s0 + $0x70] sm:$0xff]
  %v72 = vld [vmem:[%s0 + $0x78] sm:$0xff]
  %v73 = vld [vmem:[%s0 + $0x80] sm:$0xff]
  %v74 = vld [vmem:[%s0 + $0x88] sm:$0xff]
  %v75 = vld [vmem:[%s0 + $0x90] sm:$0xff]
  %v76 = vld [vmem:[%s0 + $0x98] sm:$0xff]
  %v77 = vld [vmem:[%s0 + $0xa0] sm:$0xff]
  %v78 = vld [vmem:[%s0 + $0xa8] sm:$0xff]
  %v79 = vld [vmem:[%s0 + $0xb0] sm:$0xff]
  %v80 = vld [vmem:[%s0 + $0xb8] sm:$0xff]
  %v81 = vld [vmem:[%s0 + $0xc0] sm:$0xff]
  %v82 = vld [vmem:[%s0 + $0xc8] sm:$0xff]
  %v83 = vld [vmem:[%s0 + $0xd0] sm:$0xff]
  %v84 = vld [vmem:[%s0 + $0xd8] sm:$0xff]
  %v85 = vld [vmem:[%s0 + $0xe0] sm:$0xff]
  %v86 = vld [vmem:[%s0 + $0xe8] sm:$0xff]
  %v87 = vld [vmem:[%s0 + $0xf0] sm:$0xff]
  %v88 = vld [vmem:[%s0 + $0xf8] sm:$0xff]
  %v89 = vld [vmem:[%s0 + $0x100] sm:$0xff]
  %v90 = vld [vmem:[%s0 + $0x108] sm:$0xff]
  %v91 = vld [vmem:[%s0 + $0x110] sm:$0xff]
  %v92 = vld [vmem:[%s0 + $0x118] sm:$0xff]
  %v93 = vld [vmem:[%s0 + $0x120] sm:$0xff]
  %v94 = vld [vmem:[%s0 + $0x128] sm:$0xff]
  %v95 = vld [vmem:[%s0 + $0x130] sm:$0xff]
  %v96 = vld [vmem:[%s0 + $0x138] sm:$0xff]
  %v97 = vld [vmem:[%s0 + $0x140] sm:$0xff]
  %v98 = vld [vmem:[%s0 + $0x148] sm:$0xff]
  %v99 = vld [vmem:[%s0 + $0x150] sm:$0xff]
  %v100 = vld [vmem:[%s0 + $0x158] sm:$0xff]
  %v101 = vld [vmem:[%s0 + $0x160] sm:$0xff]
  %v102 = vld [vmem:[%s0 + $0x168] sm:$0xff]
  %v103 = vld [vmem:[%s0 + $0x170] sm:$0xff]
  %v104 = vld [vmem:[%s0 + $0x178] sm:$0xff]
  %v105 = vld [vmem:[%s0 + $0x180] sm:$0xff]
  %v106 = vld [vmem:[%s0 + $0x188] sm:$0xff]
  %v107 = vld [vmem:[%s0 + $0x190] sm:$0xff]
  %v108 = vld [vmem:[%s0 + $0x198] sm:$0xff]
  %v109 = vld [vmem:[%s0 + $0x1a0] sm:$0xff]
  %v110 = vld [vmem:[%s0 + $0x1a8] sm:$0xff]
  %v111 = vld [vmem:[%s0 + $0x1b0] sm:$0xff]
  %v112 = vld [vmem:[%s0 + $0x1b8] sm:$0xff]
  %v113 = vld [vmem:[%s0 + $0x1c0] sm:$0xff]
  %v114 = vld [vmem:[%s0 + $0x1c8] sm:$0xff]
  %v115 = vld [vmem:[%s0 + $0x1d0] sm:$0xff]
  %v116 = vld [vmem:[%s0 + $0x1d8] sm:$0xff]
  %v117 = vld [vmem:[%s0 + $0x1e0] sm:$0xff]
  %v118 = vld [vmem:[%s0 + $0x1e8] sm:$0xff]
  %v119 = vld [vmem:[%s0 + $0x1f0] sm:$0xff]
  %v120 = vld [vmem:[%s0 + $0x1f8] sm:$0xff]
  %v121 = vld [vmem:[%s0 + $0x200] sm:$0xff]
  %v122 = vld [vmem:[%s0 + $0x208] sm:$0xff]
  %v123 = vld [vmem:[%s0 + $0x210] sm:$0xff]
  %v124 = vld [vmem:[%s0 + $0x218] sm:$0xff]
  %v125 = vld [vmem:[%s0 + $0x220] sm:$0xff]
  %v126 = vld [vmem:[%s0 + $0x228] sm:$0xff]
  %v127 = vld [vmem:[%s0 + $0x230] sm:$0xff]
  %v128 = vld [vmem:[%s0 + $0x238] sm:$0xff]
  %v129 = vld [vmem:[%s0 + $0x240] sm:$0xff]
  %v130 = vld [vmem:[%s0 + $0x248] sm:$0xff]
  %v131 = vld [vmem:[%s0 + $0x250] sm:$0xff]
  %v132 = vld [vmem:[%s0 + $0x258] sm:$0xff]
  %v133 = vld [vmem:[%s0 + $0x260] sm:$0xff]
  %v134 = vld [vmem:[%s0 + $0x268] sm:$0xff]
  %v135 = vld [vmem:[%s0 + $0x270] sm:$0xff]
  %v136 = vld [vmem:[%s0 + $0x278] sm:$0xff]
  %v137 = vld [vmem:[%s0 + $0x280] sm:$0xff]
  %v138 = vld [vmem:[%s0 + $0x288] sm:$0xff]
  %v139 = vld [vmem:[%s0 + $0x290] sm:$0xff]
  %v140 = vld [vmem:[%s0 + $0x298] sm:$0xff]
  %v141 = vld [vmem:[%s0 + $0x2a0] sm:$0xff]
  %v142 = vld [vmem:[%s0 + $0x2a8] sm:$0xff]
  %v143 = vld [vmem:[%s0 + $0x2b0] sm:$0xff]
  %v144 = vld [vmem:[%s0 + $0x2b8] sm:$0xff]
  %v145 = vld [vmem:[%s0 + $0x2c0] sm:$0xff]
  %v146 = vld [vmem:[%s0 + $0x2c8] sm:$0xff]
  %v147 = vld [vmem:[%s0 + $0x2d0] sm:$0xff]
  %v148 = vld [vmem:[%s0 + $0x2d8] sm:$0xff]
  %v149 = vld [vmem:[%s0 + $0x2e0] sm:$0xff]
  %v150 = vld [vmem:[%s0 + $0x2e8] sm:$0xff]
  %v151 = vld [vmem:[%s0 + $0x2f0] sm:$0xff]
  %v152 = vld [vmem:[%s0 + $0x2f8] sm:$0xff]
  %v153 = vld [vmem:[%s0 + $0x300] sm:$0xff]
  %v154 = vld [vmem:[%s0 + $0x308] sm:$0xff]
  %v155 = vld [vmem:[%s0 + $0x310] sm:$0xff]
  %v156 = vld [vmem:[%s0 + $0x318] sm:$0xff]
  %v157 = vld [vmem:[%s0 + $0x320] sm:$0xff]
  %v158 = vld [vmem:[%s0 + $0x328] sm:$0xff]
  %v159 = vld [vmem:[%s0 + $0x330] sm:$0xff]
  %v160 = vld [vmem:[%s0 + $0x338] sm:$0xff]
  %v161 = vld [vmem:[%s0 + $0x340] sm:$0xff]
  %v162 = vld [vmem:[%s0 + $0x348] sm:$0xff]
  %v163 = vld [vmem:[%s0 + $0x350] sm:$0xff]
  %v164 = vld [vmem:[%s0 + $0x358] sm:$0xff]
  %v165 = vld [vmem:[%s0 + $0x360] sm:$0xff]
  %v166 = vld [vmem:[%s0 + $0x368] sm:$0xff]
  %v167 = vld [vmem:[%s0 + $0x370] sm:$0xff]
  %v168 = vld [vmem:[%s0 + $0x378] sm:$0xff]
  %v169 = vld [vmem:[%s0 + $0x380] sm:$0xff]
  %v170 = vld [vmem:[%s0 + $0x388] sm:$0xff]
  %v171 = vld [vmem:[%s0 + $0x390] sm:$0xff]
  %v172 = vld [vmem:[%s0 + $0x398] sm:$0xff]
  %v173 = vld [vmem:[%s0 + $0x3a0] sm:$0xff]
  %v174 = vld [vmem:[%s0 + $0x3a8] sm:$0xff]
  %v175 = vld [vmem:[%s0 + $0x3b0] sm:$0xff]
  %v176 = vld [vmem:[%s0 + $0x3b8] sm:$0xff]
  %v177 = vld [vmem:[%s0 + $0x3c0] sm:$0xff]
  %v178 = vld [vmem:[%s0 + $0x3c8] sm:$0xff]
  %v179 = vld [vmem:[%s0 + $0x3d0] sm:$0xff]
  %v180 = vld [vmem:[%s0 + $0x3d8] sm:$0xff]
  %v181 = vld [vmem:[%s0 + $0x3e0] sm:$0xff]
  %v182 = vld [vmem:[%s0 + $0x3e8] sm:$0xff]
  %v183 = vld [vmem:[%s0 + $0x3f0] sm:$0xff]
  %v184 = vld [vmem:[%s0 + $0x3f8] sm:$0xff]
  %v185 = vld [vmem:[%s1] sm:$0xff]
  %v186 = vld [vmem:[%s1 + $0x8] sm:$0xff]
  %v187 = vld [vmem:[%s1 + $0x10] sm:$0xff]
  %v188 = vld [vmem:[%s1 + $0x18] sm:$0xff]
  %v189 = vld [vmem:[%s1 + $0x20] sm:$0xff]
  %v190 = vld [vmem:[%s1 + $0x28] sm:$0xff]
  %v191 = vld [vmem:[%s1 + $0x30] sm:$0xff]
  %v192 = vld [vmem:[%s1 + $0x38] sm:$0xff]
  %v193 = vld [vmem:[%s1 + $0x40] sm:$0xff]
  %v194 = vld [vmem:[%s1 + $0x48] sm:$0xff]
  %v195 = vld [vmem:[%s1 + $0x50] sm:$0xff]
  %v196 = vld [vmem:[%s1 + $0x58] sm:$0xff]
  %v197 = vld [vmem:[%s1 + $0x60] sm:$0xff]
  %v198 = vld [vmem:[%s1 + $0x68] sm:$0xff]
  %v199 = vld [vmem:[%s1 + $0x70] sm:$0xff]
  %v200 = vld [vmem:[%s1 + $0x78] sm:$0xff]
  %v201 = vld [vmem:[%s1 + $0x80] sm:$0xff]
  %v202 = vld [vmem:[%s1 + $0x88] sm:$0xff]
  %v203 = vld [vmem:[%s1 + $0x90] sm:$0xff]
  %v204 = vld [vmem:[%s1 + $0x98] sm:$0xff]
  %v205 = vld [vmem:[%s1 + $0xa0] sm:$0xff]
  %v206 = vld [vmem:[%s1 + $0xa8] sm:$0xff]
  %v207 = vld [vmem:[%s1 + $0xb0] sm:$0xff]
  %v208 = vld [vmem:[%s1 + $0xb8] sm:$0xff]
  %v209 = vld [vmem:[%s1 + $0xc0] sm:$0xff]
  %v210 = vld [vmem:[%s1 + $0xc8] sm:$0xff]
  %v211 = vld [vmem:[%s1 + $0xd0] sm:$0xff]
  %v212 = vld [vmem:[%s1 + $0xd8] sm:$0xff]
  %v213 = vld [vmem:[%s1 + $0xe0] sm:$0xff]
  %v214 = vld [vmem:[%s1 + $0xe8] sm:$0xff]
  %v215 = vld [vmem:[%s1 + $0xf0] sm:$0xff]
  %v216 = vld [vmem:[%s1 + $0xf8] sm:$0xff]
  %v217 = vld [vmem:[%s1 + $0x100] sm:$0xff]
  %v218 = vld [vmem:[%s1 + $0x108] sm:$0xff]
  %v219 = vld [vmem:[%s1 + $0x110] sm:$0xff]
  %v220 = vld [vmem:[%s1 + $0x118] sm:$0xff]
  %v221 = vld [vmem:[%s1 + $0x120] sm:$0xff]
  %v222 = vld [vmem:[%s1 + $0x128] sm:$0xff]
  %v223 = vld [vmem:[%s1 + $0x130] sm:$0xff]
  %v224 = vld [vmem:[%s1 + $0x138] sm:$0xff]
  %v225 = vld [vmem:[%s1 + $0x140] sm:$0xff]
  %v226 = vld [vmem:[%s1 + $0x148] sm:$0xff]
  %v227 = vld [vmem:[%s1 + $0x150] sm:$0xff]
  %v228 = vld [vmem:[%s1 + $0x158] sm:$0xff]
  %v229 = vld [vmem:[%s1 + $0x160] sm:$0xff]
  %v230 = vld [vmem:[%s1 + $0x168] sm:$0xff]
  %v231 = vld [vmem:[%s1 + $0x170] sm:$0xff]
  %v232 = vld [vmem:[%s1 + $0x178] sm:$0xff]
  %v233 = vld [vmem:[%s1 + $0x180] sm:$0xff]
  %v234 = vld [vmem:[%s1 + $0x188] sm:$0xff]
  %v235 = vld [vmem:[%s1 + $0x190] sm:$0xff]
  %v236 = vld [vmem:[%s1 + $0x198] sm:$0xff]
  %v237 = vld [vmem:[%s1 + $0x1a0] sm:$0xff]
  %v238 = vld [vmem:[%s1 + $0x1a8] sm:$0xff]
  %v239 = vld [vmem:[%s1 + $0x1b0] sm:$0xff]
  %v240 = vld [vmem:[%s1 + $0x1b8] sm:$0xff]
  %v241 = vld [vmem:[%s1 + $0x1c0] sm:$0xff]
  %v242 = vld [vmem:[%s1 + $0x1c8] sm:$0xff]
  %v243 = vld [vmem:[%s1 + $0x1d0] sm:$0xff]
  %v244 = vld [vmem:[%s1 + $0x1d8] sm:$0xff]
  %v245 = vld [vmem:[%s1 + $0x1e0] sm:$0xff]
  %v246 = vld [vmem:[%s1 + $0x1e8] sm:$0xff]
  %v247 = vld [vmem:[%s1 + $0x1f0] sm:$0xff]
  %v248 = vld [vmem:[%s1 + $0x1f8] sm:$0xff]
  %v249 = vld [vmem:[%s3] sm:$0xff]
  %v250 = vld [vmem:[%s3 + $0x8] sm:$0xff]
  %v251 = vld [vmem:[%s3 + $0x10] sm:$0xff]
  %v252 = vld [vmem:[%s3 + $0x18] sm:$0xff]
  %v253 = vld [vmem:[%s3 + $0x20] sm:$0xff]
  %v254 = vld [vmem:[%s3 + $0x28] sm:$0xff]
  %v255 = vld [vmem:[%s3 + $0x30] sm:$0xff]
  %v256 = vld [vmem:[%s3 + $0x38] sm:$0xff]
  %v257 = vld [vmem:[%s3 + $0x40] sm:$0xff]
  %v258 = vld [vmem:[%s3 + $0x48] sm:$0xff]
  %v259 = vld [vmem:[%s3 + $0x50] sm:$0xff]
  %v260 = vld [vmem:[%s3 + $0x58] sm:$0xff]
  %v261 = vld [vmem:[%s3 + $0x60] sm:$0xff]
  %v262 = vld [vmem:[%s3 + $0x68] sm:$0xff]
  %v263 = vld [vmem:[%s3 + $0x70] sm:$0xff]
  %v264 = vld [vmem:[%s3 + $0x78] sm:$0xff]
  %v265 = vld [vmem:[%s3 + $0x80] sm:$0xff]
  %v266 = vld [vmem:[%s3 + $0x88] sm:$0xff]
  %v267 = vld [vmem:[%s3 + $0x90] sm:$0xff]
  %v268 = vld [vmem:[%s3 + $0x98] sm:$0xff]
  %v269 = vld [vmem:[%s3 + $0xa0] sm:$0xff]
  %v270 = vld [vmem:[%s3 + $0xa8] sm:$0xff]
  %v271 = vld [vmem:[%s3 + $0xb0] sm:$0xff]
  %v272 = vld [vmem:[%s3 + $0xb8] sm:$0xff]
  %v273 = vld [vmem:[%s4] sm:$0xff]
  %v274 = vld [vmem:[%s4 + $0x8] sm:$0xff]
  %v275 = vld [vmem:[%s4 + $0x10] sm:$0xff]
  %v276 = vld [vmem:[%s4 + $0x18] sm:$0xff]
  %vm277 = vcmask 261120
  %v279 = vsel %vm277, %v185, 0
  %v282 = vsel %vm277, %v186, 0
  %v285 = vsel %vm277, %v187, 0
  %v288 = vsel %vm277, %v188, 0
  %v291 = vsel %vm277, %v189, 0
  %v294 = vsel %vm277, %v190, 0
  %v297 = vsel %vm277, %v191, 0
  %v300 = vsel %vm277, %v192, 0
  %v303 = vsel %vm277, %v193, 0
  %v306 = vsel %vm277, %v194, 0
  %v309 = vsel %vm277, %v195, 0
  %v312 = vsel %vm277, %v196, 0
  %v315 = vsel %vm277, %v197, 0
  %v318 = vsel %vm277, %v198, 0
  %v321 = vsel %vm277, %v199, 0
  %v324 = vsel %vm277, %v200, 0
  %v327 = vsel %vm277, %v201, 0
  %v330 = vsel %vm277, %v202, 0
  %v333 = vsel %vm277, %v203, 0
  %v336 = vsel %vm277, %v204, 0
  %v339 = vsel %vm277, %v205, 0
  %v342 = vsel %vm277, %v206, 0
  %v345 = vsel %vm277, %v207, 0
  %v348 = vsel %vm277, %v208, 0
  %v351 = vsel %vm277, %v209, 0
  %v354 = vsel %vm277, %v210, 0
  %v357 = vsel %vm277, %v211, 0
  %v360 = vsel %vm277, %v212, 0
  %v363 = vsel %vm277, %v213, 0
  %v366 = vsel %vm277, %v214, 0
  %v369 = vsel %vm277, %v215, 0
  %v372 = vsel %vm277, %v216, 0
  %v375 = vsel %vm277, %v217, 0
  %v378 = vsel %vm277, %v218, 0
  %v381 = vsel %vm277, %v219, 0
  %v384 = vsel %vm277, %v220, 0
  %v387 = vsel %vm277, %v221, 0
  %v390 = vsel %vm277, %v222, 0
  %v393 = vsel %vm277, %v223, 0
  %v396 = vsel %vm277, %v224, 0
  %v399 = vsel %vm277, %v225, 0
  %v402 = vsel %vm277, %v226, 0
  %v405 = vsel %vm277, %v227, 0
  %v408 = vsel %vm277, %v228, 0
  %v411 = vsel %vm277, %v229, 0
  %v414 = vsel %vm277, %v230, 0
  %v417 = vsel %vm277, %v231, 0
  %v420 = vsel %vm277, %v232, 0
  %v423 = vsel %vm277, %v233, 0
  %v426 = vsel %vm277, %v234, 0
  %v429 = vsel %vm277, %v235, 0
  %v432 = vsel %vm277, %v236, 0
  %v435 = vsel %vm277, %v237, 0
  %v438 = vsel %vm277, %v238, 0
  %v441 = vsel %vm277, %v239, 0
  %v444 = vsel %vm277, %v240, 0
  %v447 = vsel %vm277, %v241, 0
  %v450 = vsel %vm277, %v242, 0
  %v453 = vsel %vm277, %v243, 0
  %v456 = vsel %vm277, %v244, 0
  %v459 = vsel %vm277, %v245, 0
  %v462 = vsel %vm277, %v246, 0
  %v465 = vsel %vm277, %v247, 0
  %v468 = vsel %vm277, %v248, 0
  %470 = vmatprep.subr.mxu0 0.0
  %471 = vmatpush1.msra.mxu0 %v273
  %472 = vmatprep.subr.mxu0 0.0
  %473 = vmatpush1.msra.mxu0 %v274
  %474 = vmatprep.subr.mxu0 0.0
  %475 = vmatpush1.msra.mxu0 %v275
  %476 = vmatprep.subr.mxu0 0.0
  %477 = vmatpush1.msra.mxu0 %v276
  %478 = vmatprep.subr.mxu0 0.0
  %479 = vmatpush1.msra.mxu0 0.0
  %480 = vmatprep.subr.mxu0 0.0
  %481 = vmatpush1.msra.mxu0 0.0
  %482 = vmatprep.subr.mxu0 0.0
  %483 = vmatpush1.msra.mxu0 0.0
  %484 = vmatprep.subr.mxu0 0.0
  %485 = vmatpush1.msra.mxu0 0.0
  %486 = vmatprep.subr.mxu0 0.0
  %487 = vmatpush1.msra.mxu0 0.0
  %488 = vmatprep.subr.mxu0 0.0
  %489 = vmatpush1.msra.mxu0 0.0
  %490 = vmatprep.subr.mxu0 0.0
  %491 = vmatpush1.msra.mxu0 0.0
  %492 = vmatprep.subr.mxu0 0.0
  %493 = vmatpush1.msra.mxu0 0.0
  %494 = vmatprep.subr.mxu0 0.0
  %495 = vmatpush1.msra.mxu0 0.0
  %496 = vmatprep.subr.mxu0 0.0
  %497 = vmatpush1.msra.mxu0 0.0
  %498 = vmatprep.subr.mxu0 0.0
  %499 = vmatpush1.msra.mxu0 0.0
  %500 = vmatprep.subr.mxu0 0.0
  %501 = vmatpush1.msra.mxu0 0.0
  %502 = vmatprep.subr.mxu0 0.0
  %503 = vmatpush1.msra.mxu0 0.0
  %504 = vmatprep.subr.mxu0 0.0
  %505 = vmatpush1.msra.mxu0 0.0
  %506 = vmatprep.subr.mxu0 0.0
  %507 = vmatpush1.msra.mxu0 0.0
  %508 = vmatprep.subr.mxu0 0.0
  %509 = vmatpush1.msra.mxu0 0.0
  %510 = vmatprep.subr.mxu0 0.0
  %511 = vmatpush1.msra.mxu0 0.0
  %512 = vmatprep.subr.mxu0 0.0
  %513 = vmatpush1.msra.mxu0 0.0
  %514 = vmatprep.subr.mxu0 0.0
  %515 = vmatpush1.msra.mxu0 0.0
  %516 = vmatprep.subr.mxu0 0.0
  %517 = vmatpush1.msra.mxu0 0.0
  %518 = vmatprep.subr.mxu0 0.0
  %519 = vmatpush1.msra.mxu0 0.0
  %520 = vmatprep.subr.mxu0 0.0
  %521 = vmatpush1.msra.mxu0 0.0
  %522 = vmatprep.subr.mxu0 0.0
  %523 = vmatpush1.msra.mxu0 0.0
  %524 = vmatprep.subr.mxu0 0.0
  %525 = vmatpush1.msra.mxu0 0.0
  %526 = vmatprep.subr.mxu0 0.0
  %527 = vmatpush1.msra.mxu0 0.0
  %528 = vmatprep.subr.mxu0 0.0
  %529 = vmatpush1.msra.mxu0 0.0
  %530 = vmatprep.subr.mxu0 0.0
  %531 = vmatpush1.msra.mxu0 0.0
  %532 = vmatprep.subr.mxu0 0.0
  %533 = vmatpush1.msra.mxu0 0.0
  %534 = vmatprep.mubr.f32.mxu0 0.0
  %535 = vmatmul.mubr.f32.gmra.mrb[0].mxu0 %v279
  %v536 = vpop.f32.mrb[0].mxu0
  %v537 = vadd.f32 0.0, %v536
  %v538 = vpop.f32.mrb[0].mxu0
  %539 = vmatprep.mubr.f32.mxu0 0.0
  %540 = vmatmul.mubr.f32.gmra.mrb[0].mxu0 %v282
  %v541 = vpop.f32.mrb[0].mxu0
  %v542 = vadd.f32 0.0, %v541
  %v543 = vpop.f32.mrb[0].mxu0
  %544 = vmatprep.mubr.f32.mxu0 0.0
  %545 = vmatmul.mubr.f32.gmra.mrb[0].mxu0 %v285
  %v546 = vpop.f32.mrb[0].mxu0
  %v547 = vadd.f32 0.0, %v546
  %v548 = vpop.f32.mrb[0].mxu0
  %549 = vmatprep.mubr.f32.mxu0 0.0
  %550 = vmatmul.mubr.f32.gmra.mrb[0].mxu0 %v288
  %v551 = vpop.f32.mrb[0].mxu0
  %v552 = vadd.f32 0.0, %v551
  %v553 = vpop.f32.mrb[0].mxu0
  %554 = vmatprep.mubr.f32.mxu0 0.0
  %555 = vmatmul.mubr.f32.gmra.mrb[0].mxu0 %v291
  %v556 = vpop.f32.mrb[0].mxu0
  %v557 = vadd.f32 0.0, %v556
  %v558 = vpop.f32.mrb[0].mxu0
  %559 = vmatprep.mubr.f32.mxu0 0.0
  %560 = vmatmul.mubr.f32.gmra.mrb[0].mxu0 %v294
  %v561 = vpop.f32.mrb[0].mxu0
  %v562 = vadd.f32 0.0, %v561
  %v563 = vpop.f32.mrb[0].mxu0
  %564 = vmatprep.mubr.f32.mxu0 0.0
  %565 = vmatmul.mubr.f32.gmra.mrb[0].mxu0 %v297
  %v566 = vpop.f32.mrb[0].mxu0
  %v567 = vadd.f32 0.0, %v566
  %v568 = vpop.f32.mrb[0].mxu0
  %569 = vmatprep.mubr.f32.mxu0 0.0
  %570 = vmatmul.mubr.f32.gmra.mrb[0].mxu0 %v300
  %v571 = vpop.f32.mrb[0].mxu0
  %v572 = vadd.f32 0.0, %v571
  %v573 = vpop.f32.mrb[0].mxu0
  %574 = vmatprep.mubr.f32.mxu0 0.0
  %575 = vmatmul.mubr.f32.gmra.mrb[0].mxu0 %v303
  %v576 = vpop.f32.mrb[0].mxu0
  %v577 = vadd.f32 0.0, %v576
  %v578 = vpop.f32.mrb[0].mxu0
  %579 = vmatprep.mubr.f32.mxu0 0.0
  %580 = vmatmul.mubr.f32.gmra.mrb[0].mxu0 %v306
  %v581 = vpop.f32.mrb[0].mxu0
  %v582 = vadd.f32 0.0, %v581
  %v583 = vpop.f32.mrb[0].mxu0
  %584 = vmatprep.mubr.f32.mxu0 0.0
  %585 = vmatmul.mubr.f32.gmra.mrb[0].mxu0 %v309
  %v586 = vpop.f32.mrb[0].mxu0
  %v587 = vadd.f32 0.0, %v586
  %v588 = vpop.f32.mrb[0].mxu0
  %589 = vmatprep.mubr.f32.mxu0 0.0
  %590 = vmatmul.mubr.f32.gmra.mrb[0].mxu0 %v312
  %v591 = vpop.f32.mrb[0].mxu0
  %v592 = vadd.f32 0.0, %v591
  %v593 = vpop.f32.mrb[0].mxu0
  %594 = vmatprep.mubr.f32.mxu0 0.0
  %595 = vmatmul.mubr.f32.gmra.mrb[0].mxu0 %v315
  %v596 = vpop.f32.mrb[0].mxu0
  %v597 = vadd.f32 0.0, %v596
  %v598 = vpop.f32.mrb[0].mxu0
  %599 = vmatprep.mubr.f32.mxu0 0.0
  %600 = vmatmul.mubr.f32.gmra.mrb[0].mxu0 %v318
  %v601 = vpop.f32.mrb[0].mxu0
  %v602 = vadd.f32 0.0, %v601
  %v603 = vpop.f32.mrb[0].mxu0
  %604 = vmatprep.mubr.f32.mxu0 0.0
  %605 = vmatmul.mubr.f32.gmra.mrb[0].mxu0 %v321
  %v606 = vpop.f32.mrb[0].mxu0
  %v607 = vadd.f32 0.0, %v606
  %v608 = vpop.f32.mrb[0].mxu0
  %609 = vmatprep.mubr.f32.mxu0 0.0
  %610 = vmatmul.mubr.f32.gmra.mrb[0].mxu0 %v324
  %v611 = vpop.f32.mrb[0].mxu0
  %v612 = vadd.f32 0.0, %v611
  %v613 = vpop.f32.mrb[0].mxu0
  %614 = vmatprep.mubr.f32.mxu0 0.0
  %615 = vmatmul.mubr.f32.gmra.mrb[0].mxu0 %v327
  %v616 = vpop.f32.mrb[0].mxu0
  %v617 = vadd.f32 0.0, %v616
  %v618 = vpop.f32.mrb[0].mxu0
  %619 = vmatprep.mubr.f32.mxu0 0.0
  %620 = vmatmul.mubr.f32.gmra.mrb[0].mxu0 %v330
  %v621 = vpop.f32.mrb[0].mxu0
  %v622 = vadd.f32 0.0, %v621
  %v623 = vpop.f32.mrb[0].mxu0
  %624 = vmatprep.mubr.f32.mxu0 0.0
  %625 = vmatmul.mubr.f32.gmra.mrb[0].mxu0 %v333
  %v626 = vpop.f32.mrb[0].mxu0
  %v627 = vadd.f32 0.0, %v626
  %v628 = vpop.f32.mrb[0].mxu0
  %629 = vmatprep.mubr.f32.mxu0 0.0
  %630 = vmatmul.mubr.f32.gmra.mrb[0].mxu0 %v336
  %v631 = vpop.f32.mrb[0].mxu0
  %v632 = vadd.f32 0.0, %v631
  %v633 = vpop.f32.mrb[0].mxu0
  %634 = vmatprep.mubr.f32.mxu0 0.0
  %635 = vmatmul.mubr.f32.gmra.mrb[0].mxu0 %v339
  %v636 = vpop.f32.mrb[0].mxu0
  %v637 = vadd.f32 0.0, %v636
  %v638 = vpop.f32.mrb[0].mxu0
  %639 = vmatprep.mubr.f32.mxu0 0.0
  %640 = vmatmul.mubr.f32.gmra.mrb[0].mxu0 %v342
  %v641 = vpop.f32.mrb[0].mxu0
  %v642 = vadd.f32 0.0, %v641
  %v643 = vpop.f32.mrb[0].mxu0
  %644 = vmatprep.mubr.f32.mxu0 0.0
  %645 = vmatmul.mubr.f32.gmra.mrb[0].mxu0 %v345
  %v646 = vpop.f32.mrb[0].mxu0
  %v647 = vadd.f32 0.0, %v646
  %v648 = vpop.f32.mrb[0].mxu0
  %649 = vmatprep.mubr.f32.mxu0 0.0
  %650 = vmatmul.mubr.f32.gmra.mrb[0].mxu0 %v348
  %v651 = vpop.f32.mrb[0].mxu0
  %v652 = vadd.f32 0.0, %v651
  %v653 = vpop.f32.mrb[0].mxu0
  %654 = vmatprep.mubr.f32.mxu0 0.0
  %655 = vmatmul.mubr.f32.gmra.mrb[0].mxu0 %v351
  %v656 = vpop.f32.mrb[0].mxu0
  %v657 = vadd.f32 0.0, %v656
  %v658 = vpop.f32.mrb[0].mxu0
  %659 = vmatprep.mubr.f32.mxu0 0.0
  %660 = vmatmul.mubr.f32.gmra.mrb[0].mxu0 %v354
  %v661 = vpop.f32.mrb[0].mxu0
  %v662 = vadd.f32 0.0, %v661
  %v663 = vpop.f32.mrb[0].mxu0
  %664 = vmatprep.mubr.f32.mxu0 0.0
  %665 = vmatmul.mubr.f32.gmra.mrb[0].mxu0 %v357
  %v666 = vpop.f32.mrb[0].mxu0
  %v667 = vadd.f32 0.0, %v666
  %v668 = vpop.f32.mrb[0].mxu0
  %669 = vmatprep.mubr.f32.mxu0 0.0
  %670 = vmatmul.mubr.f32.gmra.mrb[0].mxu0 %v360
  %v671 = vpop.f32.mrb[0].mxu0
  %v672 = vadd.f32 0.0, %v671
  %v673 = vpop.f32.mrb[0].mxu0
  %674 = vmatprep.mubr.f32.mxu0 0.0
  %675 = vmatmul.mubr.f32.gmra.mrb[0].mxu0 %v363
  %v676 = vpop.f32.mrb[0].mxu0
  %v677 = vadd.f32 0.0, %v676
  %v678 = vpop.f32.mrb[0].mxu0
  %679 = vmatprep.mubr.f32.mxu0 0.0
  %680 = vmatmul.mubr.f32.gmra.mrb[0].mxu0 %v366
  %v681 = vpop.f32.mrb[0].mxu0
  %v682 = vadd.f32 0.0, %v681
  %v683 = vpop.f32.mrb[0].mxu0
  %684 = vmatprep.mubr.f32.mxu0 0.0
  %685 = vmatmul.mubr.f32.gmra.mrb[0].mxu0 %v369
  %v686 = vpop.f32.mrb[0].mxu0
  %v687 = vadd.f32 0.0, %v686
  %v688 = vpop.f32.mrb[0].mxu0
  %689 = vmatprep.mubr.f32.mxu0 0.0
  %690 = vmatmul.mubr.f32.gmra.mrb[0].mxu0 %v372
  %v691 = vpop.f32.mrb[0].mxu0
  %v692 = vadd.f32 0.0, %v691
  %v693 = vpop.f32.mrb[0].mxu0
  %694 = vmatprep.mubr.f32.mxu0 0.0
  %695 = vmatmul.mubr.f32.gmra.mrb[0].mxu0 %v375
  %v696 = vpop.f32.mrb[0].mxu0
  %v697 = vadd.f32 0.0, %v696
  %v698 = vpop.f32.mrb[0].mxu0
  %699 = vmatprep.mubr.f32.mxu0 0.0
  %700 = vmatmul.mubr.f32.gmra.mrb[0].mxu0 %v378
  %v701 = vpop.f32.mrb[0].mxu0
  %v702 = vadd.f32 0.0, %v701
  %v703 = vpop.f32.mrb[0].mxu0
  %704 = vmatprep.mubr.f32.mxu0 0.0
  %705 = vmatmul.mubr.f32.gmra.mrb[0].mxu0 %v381
  %v706 = vpop.f32.mrb[0].mxu0
  %v707 = vadd.f32 0.0, %v706
  %v708 = vpop.f32.mrb[0].mxu0
  %709 = vmatprep.mubr.f32.mxu0 0.0
  %710 = vmatmul.mubr.f32.gmra.mrb[0].mxu0 %v384
  %v711 = vpop.f32.mrb[0].mxu0
  %v712 = vadd.f32 0.0, %v711
  %v713 = vpop.f32.mrb[0].mxu0
  %714 = vmatprep.mubr.f32.mxu0 0.0
  %715 = vmatmul.mubr.f32.gmra.mrb[0].mxu0 %v387
  %v716 = vpop.f32.mrb[0].mxu0
  %v717 = vadd.f32 0.0, %v716
  %v718 = vpop.f32.mrb[0].mxu0
  %719 = vmatprep.mubr.f32.mxu0 0.0
  %720 = vmatmul.mubr.f32.gmra.mrb[0].mxu0 %v390
  %v721 = vpop.f32.mrb[0].mxu0
  %v722 = vadd.f32 0.0, %v721
  %v723 = vpop.f32.mrb[0].mxu0
  %724 = vmatprep.mubr.f32.mxu0 0.0
  %725 = vmatmul.mubr.f32.gmra.mrb[0].mxu0 %v393
  %v726 = vpop.f32.mrb[0].mxu0
  %v727 = vadd.f32 0.0, %v726
  %v728 = vpop.f32.mrb[0].mxu0
  %729 = vmatprep.mubr.f32.mxu0 0.0
  %730 = vmatmul.mubr.f32.gmra.mrb[0].mxu0 %v396
  %v731 = vpop.f32.mrb[0].mxu0
  %v732 = vadd.f32 0.0, %v731
  %v733 = vpop.f32.mrb[0].mxu0
  %734 = vmatprep.mubr.f32.mxu0 0.0
  %735 = vmatmul.mubr.f32.gmra.mrb[0].mxu0 %v399
  %v736 = vpop.f32.mrb[0].mxu0
  %v737 = vadd.f32 0.0, %v736
  %v738 = vpop.f32.mrb[0].mxu0
  %739 = vmatprep.mubr.f32.mxu0 0.0
  %740 = vmatmul.mubr.f32.gmra.mrb[0].mxu0 %v402
  %v741 = vpop.f32.mrb[0].mxu0
  %v742 = vadd.f32 0.0, %v741
  %v743 = vpop.f32.mrb[0].mxu0
  %744 = vmatprep.mubr.f32.mxu0 0.0
  %745 = vmatmul.mubr.f32.gmra.mrb[0].mxu0 %v405
  %v746 = vpop.f32.mrb[0].mxu0
  %v747 = vadd.f32 0.0, %v746
  %v748 = vpop.f32.mrb[0].mxu0
  %749 = vmatprep.mubr.f32.mxu0 0.0
  %750 = vmatmul.mubr.f32.gmra.mrb[0].mxu0 %v408
  %v751 = vpop.f32.mrb[0].mxu0
  %v752 = vadd.f32 0.0, %v751
  %v753 = vpop.f32.mrb[0].mxu0
  %754 = vmatprep.mubr.f32.mxu0 0.0
  %755 = vmatmul.mubr.f32.gmra.mrb[0].mxu0 %v411
  %v756 = vpop.f32.mrb[0].mxu0
  %v757 = vadd.f32 0.0, %v756
  %v758 = vpop.f32.mrb[0].mxu0
  %759 = vmatprep.mubr.f32.mxu0 0.0
  %760 = vmatmul.mubr.f32.gmra.mrb[0].mxu0 %v414
  %v761 = vpop.f32.mrb[0].mxu0
  %v762 = vadd.f32 0.0, %v761
  %v763 = vpop.f32.mrb[0].mxu0
  %764 = vmatprep.mubr.f32.mxu0 0.0
  %765 = vmatmul.mubr.f32.gmra.mrb[0].mxu0 %v417
  %v766 = vpop.f32.mrb[0].mxu0
  %v767 = vadd.f32 0.0, %v766
  %v768 = vpop.f32.mrb[0].mxu0
  %769 = vmatprep.mubr.f32.mxu0 0.0
  %770 = vmatmul.mubr.f32.gmra.mrb[0].mxu0 %v420
  %v771 = vpop.f32.mrb[0].mxu0
  %v772 = vadd.f32 0.0, %v771
  %v773 = vpop.f32.mrb[0].mxu0
  %774 = vmatprep.mubr.f32.mxu0 0.0
  %775 = vmatmul.mubr.f32.gmra.mrb[0].mxu0 %v423
  %v776 = vpop.f32.mrb[0].mxu0
  %v777 = vadd.f32 0.0, %v776
  %v778 = vpop.f32.mrb[0].mxu0
  %779 = vmatprep.mubr.f32.mxu0 0.0
  %780 = vmatmul.mubr.f32.gmra.mrb[0].mxu0 %v426
  %v781 = vpop.f32.mrb[0].mxu0
  %v782 = vadd.f32 0.0, %v781
  %v783 = vpop.f32.mrb[0].mxu0
  %784 = vmatprep.mubr.f32.mxu0 0.0
  %785 = vmatmul.mubr.f32.gmra.mrb[0].mxu0 %v429
  %v786 = vpop.f32.mrb[0].mxu0
  %v787 = vadd.f32 0.0, %v786
  %v788 = vpop.f32.mrb[0].mxu0
  %789 = vmatprep.mubr.f32.mxu0 0.0
  %790 = vmatmul.mubr.f32.gmra.mrb[0].mxu0 %v432
  %v791 = vpop.f32.mrb[0].mxu0
  %v792 = vadd.f32 0.0, %v791
  %v793 = vpop.f32.mrb[0].mxu0
  %794 = vmatprep.mubr.f32.mxu0 0.0
  %795 = vmatmul.mubr.f32.gmra.mrb[0].mxu0 %v435
  %v796 = vpop.f32.mrb[0].mxu0
  %v797 = vadd.f32 0.0, %v796
  %v798 = vpop.f32.mrb[0].mxu0
  %799 = vmatprep.mubr.f32.mxu0 0.0
  %800 = vmatmul.mubr.f32.gmra.mrb[0].mxu0 %v438
  %v801 = vpop.f32.mrb[0].mxu0
  %v802 = vadd.f32 0.0, %v801
  %v803 = vpop.f32.mrb[0].mxu0
  %804 = vmatprep.mubr.f32.mxu0 0.0
  %805 = vmatmul.mubr.f32.gmra.mrb[0].mxu0 %v441
  %v806 = vpop.f32.mrb[0].mxu0
  %v807 = vadd.f32 0.0, %v806
  %v808 = vpop.f32.mrb[0].mxu0
  %809 = vmatprep.mubr.f32.mxu0 0.0
  %810 = vmatmul.mubr.f32.gmra.mrb[0].mxu0 %v444
  %v811 = vpop.f32.mrb[0].mxu0
  %v812 = vadd.f32 0.0, %v811
  %v813 = vpop.f32.mrb[0].mxu0
  %814 = vmatprep.mubr.f32.mxu0 0.0
  %815 = vmatmul.mubr.f32.gmra.mrb[0].mxu0 %v447
  %v816 = vpop.f32.mrb[0].mxu0
  %v817 = vadd.f32 0.0, %v816
  %v818 = vpop.f32.mrb[0].mxu0
  %819 = vmatprep.mubr.f32.mxu0 0.0
  %820 = vmatmul.mubr.f32.gmra.mrb[0].mxu0 %v450
  %v821 = vpop.f32.mrb[0].mxu0
  %v822 = vadd.f32 0.0, %v821
  %v823 = vpop.f32.mrb[0].mxu0
  %824 = vmatprep.mubr.f32.mxu0 0.0
  %825 = vmatmul.mubr.f32.gmra.mrb[0].mxu0 %v453
  %v826 = vpop.f32.mrb[0].mxu0
  %v827 = vadd.f32 0.0, %v826
  %v828 = vpop.f32.mrb[0].mxu0
  %829 = vmatprep.mubr.f32.mxu0 0.0
  %830 = vmatmul.mubr.f32.gmra.mrb[0].mxu0 %v456
  %v831 = vpop.f32.mrb[0].mxu0
  %v832 = vadd.f32 0.0, %v831
  %v833 = vpop.f32.mrb[0].mxu0
  %834 = vmatprep.mubr.f32.mxu0 0.0
  %835 = vmatmul.mubr.f32.gmra.mrb[0].mxu0 %v459
  %v836 = vpop.f32.mrb[0].mxu0
  %v837 = vadd.f32 0.0, %v836
  %v838 = vpop.f32.mrb[0].mxu0
  %839 = vmatprep.mubr.f32.mxu0 0.0
  %840 = vmatmul.mubr.f32.gmra.mrb[0].mxu0 %v462
  %v841 = vpop.f32.mrb[0].mxu0
  %v842 = vadd.f32 0.0, %v841
  %v843 = vpop.f32.mrb[0].mxu0
  %844 = vmatprep.mubr.f32.mxu0 0.0
  %845 = vmatmul.mubr.f32.gmra.mrb[0].mxu0 %v465
  %v846 = vpop.f32.mrb[0].mxu0
  %v847 = vadd.f32 0.0, %v846
  %v848 = vpop.f32.mrb[0].mxu0
  %849 = vmatprep.mubr.f32.mxu0 0.0
  %850 = vmatmul.mubr.f32.gmra.mrb[0].mxu0 %v468
  %v851 = vpop.f32.mrb[0].mxu0
  %v852 = vadd.f32 0.0, %v851
  %v853 = vpop.f32.mrb[0].mxu0
  %854 = vdwg.mxu0
  %vm855 = vcmask 523264
  %v857 = vsel %vm855, %v58, 0
  %v860 = vsel %vm855, %v60, 0
  %v863 = vsel %vm855, %v62, 0
  %v866 = vsel %vm855, %v64, 0
  %v869 = vsel %vm855, %v66, 0
  %v872 = vsel %vm855, %v68, 0
  %v875 = vsel %vm855, %v70, 0
  %v878 = vsel %vm855, %v72, 0
  %v881 = vsel %vm855, %v74, 0
  %v884 = vsel %vm855, %v76, 0
  %v887 = vsel %vm855, %v78, 0
  %v890 = vsel %vm855, %v80, 0
  %v893 = vsel %vm855, %v82, 0
  %v896 = vsel %vm855, %v84, 0
  %v899 = vsel %vm855, %v86, 0
  %v902 = vsel %vm855, %v88, 0
  %v905 = vsel %vm855, %v90, 0
  %v908 = vsel %vm855, %v92, 0
  %v911 = vsel %vm855, %v94, 0
  %v914 = vsel %vm855, %v96, 0
  %v917 = vsel %vm855, %v98, 0
  %v920 = vsel %vm855, %v100, 0
  %v923 = vsel %vm855, %v102, 0
  %v926 = vsel %vm855, %v104, 0
  %v929 = vsel %vm855, %v106, 0
  %v932 = vsel %vm855, %v108, 0
  %v935 = vsel %vm855, %v110, 0
  %v938 = vsel %vm855, %v112, 0
  %v941 = vsel %vm855, %v114, 0
  %v944 = vsel %vm855, %v116, 0
  %v947 = vsel %vm855, %v118, 0
  %v950 = vsel %vm855, %v120, 0
  %v953 = vsel %vm855, %v122, 0
  %v956 = vsel %vm855, %v124, 0
  %v959 = vsel %vm855, %v126, 0
  %v962 = vsel %vm855, %v128, 0
  %v965 = vsel %vm855, %v130, 0
  %v968 = vsel %vm855, %v132, 0
  %v971 = vsel %vm855, %v134, 0
  %v974 = vsel %vm855, %v136, 0
  %v977 = vsel %vm855, %v138, 0
  %v980 = vsel %vm855, %v140, 0
  %v983 = vsel %vm855, %v142, 0
  %v986 = vsel %vm855, %v144, 0
  %v989 = vsel %vm855, %v146, 0
  %v992 = vsel %vm855, %v148, 0
  %v995 = vsel %vm855, %v150, 0
  %v998 = vsel %vm855, %v152, 0
  %v1001 = vsel %vm855, %v154, 0
  %v1004 = vsel %vm855, %v156, 0
  %v1007 = vsel %vm855, %v158, 0
  %v1010 = vsel %vm855, %v160, 0
  %v1013 = vsel %vm855, %v162, 0
  %v1016 = vsel %vm855, %v164, 0
  %v1019 = vsel %vm855, %v166, 0
  %v1022 = vsel %vm855, %v168, 0
  %v1025 = vsel %vm855, %v170, 0
  %v1028 = vsel %vm855, %v172, 0
  %v1031 = vsel %vm855, %v174, 0
  %v1034 = vsel %vm855, %v176, 0
  %v1037 = vsel %vm855, %v178, 0
  %v1040 = vsel %vm855, %v180, 0
  %v1043 = vsel %vm855, %v182, 0
  %v1046 = vsel %vm855, %v184, 0
  %1048 = vmatprep.subr.mxu0 0.0
  %1049 = vmatpush1.msra.mxu0 %v249
  %1050 = vmatprep.subr.mxu0 0.0
  %1051 = vmatpush1.msra.mxu0 %v250
  %1052 = vmatprep.subr.mxu0 0.0
  %1053 = vmatpush1.msra.mxu0 %v251
  %1054 = vmatprep.subr.mxu0 0.0
  %1055 = vmatpush1.msra.mxu0 %v252
  %1056 = vmatprep.subr.mxu0 0.0
  %1057 = vmatpush1.msra.mxu0 %v253
  %1058 = vmatprep.subr.mxu0 0.0
  %1059 = vmatpush1.msra.mxu0 %v254
  %1060 = vmatprep.subr.mxu0 0.0
  %1061 = vmatpush1.msra.mxu0 %v255
  %1062 = vmatprep.subr.mxu0 0.0
  %1063 = vmatpush1.msra.mxu0 %v256
  %1064 = vmatprep.subr.mxu0 0.0
  %1065 = vmatpush1.msra.mxu0 %v257
  %1066 = vmatprep.subr.mxu0 0.0
  %1067 = vmatpush1.msra.mxu0 %v258
  %1068 = vmatprep.subr.mxu0 0.0
  %1069 = vmatpush1.msra.mxu0 %v259
  %1070 = vmatprep.subr.mxu0 0.0
  %1071 = vmatpush1.msra.mxu0 %v260
  %1072 = vmatprep.subr.mxu0 0.0
  %1073 = vmatpush1.msra.mxu0 %v261
  %1074 = vmatprep.subr.mxu0 0.0
  %1075 = vmatpush1.msra.mxu0 %v262
  %1076 = vmatprep.subr.mxu0 0.0
  %1077 = vmatpush1.msra.mxu0 %v263
  %1078 = vmatprep.subr.mxu0 0.0
  %1079 = vmatpush1.msra.mxu0 %v264
  %1080 = vmatprep.subr.mxu0 0.0
  %1081 = vmatpush1.msra.mxu0 %v265
  %1082 = vmatprep.subr.mxu0 0.0
  %1083 = vmatpush1.msra.mxu0 %v266
  %1084 = vmatprep.subr.mxu0 0.0
  %1085 = vmatpush1.msra.mxu0 %v267
  %1086 = vmatprep.subr.mxu0 0.0
  %1087 = vmatpush1.msra.mxu0 %v268
  %1088 = vmatprep.subr.mxu0 0.0
  %1089 = vmatpush1.msra.mxu0 %v269
  %1090 = vmatprep.subr.mxu0 0.0
  %1091 = vmatpush1.msra.mxu0 %v270
  %1092 = vmatprep.subr.mxu0 0.0
  %1093 = vmatpush1.msra.mxu0 %v271
  %1094 = vmatprep.subr.mxu0 0.0
  %1095 = vmatpush1.msra.mxu0 %v272
  %1096 = vmatprep.subr.mxu0 0.0
  %1097 = vmatpush1.msra.mxu0 0.0
  %1098 = vmatprep.subr.mxu0 0.0
  %1099 = vmatpush1.msra.mxu0 0.0
  %1100 = vmatprep.subr.mxu0 0.0
  %1101 = vmatpush1.msra.mxu0 0.0
  %1102 = vmatprep.subr.mxu0 0.0
  %1103 = vmatpush1.msra.mxu0 0.0
  %1104 = vmatprep.subr.mxu0 0.0
  %1105 = vmatpush1.msra.mxu0 0.0
  %1106 = vmatprep.subr.mxu0 0.0
  %1107 = vmatpush1.msra.mxu0 0.0
  %1108 = vmatprep.subr.mxu0 0.0
  %1109 = vmatpush1.msra.mxu0 0.0
  %1110 = vmatprep.subr.mxu0 0.0
  %1111 = vmatpush1.msra.mxu0 0.0
  %1112 = vmatprep.mubr.f32.mxu0 %v857
  %1113 = vmatmul.mubr.f32.gmra.mrb[0].mxu0 %v57
  %v1114 = vpop.f32.mrb[0].mxu0
  %v1115 = vadd.f32 %v537, %v1114
  %v1116 = vpop.f32.mrb[0].mxu0
  %1117 = vmatprep.mubr.f32.mxu0 %v860
  %1118 = vmatmul.mubr.f32.gmra.mrb[0].mxu0 %v59
  %v1119 = vpop.f32.mrb[0].mxu0
  %v1120 = vadd.f32 %v542, %v1119
  %v1121 = vpop.f32.mrb[0].mxu0
  %1122 = vmatprep.mubr.f32.mxu0 %v863
  %1123 = vmatmul.mubr.f32.gmra.mrb[0].mxu0 %v61
  %v1124 = vpop.f32.mrb[0].mxu0
  %v1125 = vadd.f32 %v547, %v1124
  %v1126 = vpop.f32.mrb[0].mxu0
  %1127 = vmatprep.mubr.f32.mxu0 %v866
  %1128 = vmatmul.mubr.f32.gmra.mrb[0].mxu0 %v63
  %v1129 = vpop.f32.mrb[0].mxu0
  %v1130 = vadd.f32 %v552, %v1129
  %v1131 = vpop.f32.mrb[0].mxu0
  %1132 = vmatprep.mubr.f32.mxu0 %v869
  %1133 = vmatmul.mubr.f32.gmra.mrb[0].mxu0 %v65
  %v1134 = vpop.f32.mrb[0].mxu0
  %v1135 = vadd.f32 %v557, %v1134
  %v1136 = vpop.f32.mrb[0].mxu0
  %1137 = vmatprep.mubr.f32.mxu0 %v872
  %1138 = vmatmul.mubr.f32.gmra.mrb[0].mxu0 %v67
  %v1139 = vpop.f32.mrb[0].mxu0
  %v1140 = vadd.f32 %v562, %v1139
  %v1141 = vpop.f32.mrb[0].mxu0
  %1142 = vmatprep.mubr.f32.mxu0 %v875
  %1143 = vmatmul.mubr.f32.gmra.mrb[0].mxu0 %v69
  %v1144 = vpop.f32.mrb[0].mxu0
  %v1145 = vadd.f32 %v567, %v1144
  %v1146 = vpop.f32.mrb[0].mxu0
  %1147 = vmatprep.mubr.f32.mxu0 %v878
  %1148 = vmatmul.mubr.f32.gmra.mrb[0].mxu0 %v71
  %v1149 = vpop.f32.mrb[0].mxu0
  %v1150 = vadd.f32 %v572, %v1149
  %v1151 = vpop.f32.mrb[0].mxu0
  %1152 = vmatprep.mubr.f32.mxu0 %v881
  %1153 = vmatmul.mubr.f32.gmra.mrb[0].mxu0 %v73
  %v1154 = vpop.f32.mrb[0].mxu0
  %v1155 = vadd.f32 %v577, %v1154
  %v1156 = vpop.f32.mrb[0].mxu0
  %1157 = vmatprep.mubr.f32.mxu0 %v884
  %1158 = vmatmul.mubr.f32.gmra.mrb[0].mxu0 %v75
  %v1159 = vpop.f32.mrb[0].mxu0
  %v1160 = vadd.f32 %v582, %v1159
  %v1161 = vpop.f32.mrb[0].mxu0
  %1162 = vmatprep.mubr.f32.mxu0 %v887
  %1163 = vmatmul.mubr.f32.gmra.mrb[0].mxu0 %v77
  %v1164 = vpop.f32.mrb[0].mxu0
  %v1165 = vadd.f32 %v587, %v1164
  %v1166 = vpop.f32.mrb[0].mxu0
  %1167 = vmatprep.mubr.f32.mxu0 %v890
  %1168 = vmatmul.mubr.f32.gmra.mrb[0].mxu0 %v79
  %v1169 = vpop.f32.mrb[0].mxu0
  %v1170 = vadd.f32 %v592, %v1169
  %v1171 = vpop.f32.mrb[0].mxu0
  %1172 = vmatprep.mubr.f32.mxu0 %v893
  %1173 = vmatmul.mubr.f32.gmra.mrb[0].mxu0 %v81
  %v1174 = vpop.f32.mrb[0].mxu0
  %v1175 = vadd.f32 %v597, %v1174
  %v1176 = vpop.f32.mrb[0].mxu0
  %1177 = vmatprep.mubr.f32.mxu0 %v896
  %1178 = vmatmul.mubr.f32.gmra.mrb[0].mxu0 %v83
  %v1179 = vpop.f32.mrb[0].mxu0
  %v1180 = vadd.f32 %v602, %v1179
  %v1181 = vpop.f32.mrb[0].mxu0
  %1182 = vmatprep.mubr.f32.mxu0 %v899
  %1183 = vmatmul.mubr.f32.gmra.mrb[0].mxu0 %v85
  %v1184 = vpop.f32.mrb[0].mxu0
  %v1185 = vadd.f32 %v607, %v1184
  %v1186 = vpop.f32.mrb[0].mxu0
  %1187 = vmatprep.mubr.f32.mxu0 %v902
  %1188 = vmatmul.mubr.f32.gmra.mrb[0].mxu0 %v87
  %v1189 = vpop.f32.mrb[0].mxu0
  %v1190 = vadd.f32 %v612, %v1189
  %v1191 = vpop.f32.mrb[0].mxu0
  %1192 = vmatprep.mubr.f32.mxu0 %v905
  %1193 = vmatmul.mubr.f32.gmra.mrb[0].mxu0 %v89
  %v1194 = vpop.f32.mrb[0].mxu0
  %v1195 = vadd.f32 %v617, %v1194
  %v1196 = vpop.f32.mrb[0].mxu0
  %1197 = vmatprep.mubr.f32.mxu0 %v908
  %1198 = vmatmul.mubr.f32.gmra.mrb[0].mxu0 %v91
  %v1199 = vpop.f32.mrb[0].mxu0
  %v1200 = vadd.f32 %v622, %v1199
  %v1201 = vpop.f32.mrb[0].mxu0
  %1202 = vmatprep.mubr.f32.mxu0 %v911
  %1203 = vmatmul.mubr.f32.gmra.mrb[0].mxu0 %v93
  %v1204 = vpop.f32.mrb[0].mxu0
  %v1205 = vadd.f32 %v627, %v1204
  %v1206 = vpop.f32.mrb[0].mxu0
  %1207 = vmatprep.mubr.f32.mxu0 %v914
  %1208 = vmatmul.mubr.f32.gmra.mrb[0].mxu0 %v95
  %v1209 = vpop.f32.mrb[0].mxu0
  %v1210 = vadd.f32 %v632, %v1209
  %v1211 = vpop.f32.mrb[0].mxu0
  %1212 = vmatprep.mubr.f32.mxu0 %v917
  %1213 = vmatmul.mubr.f32.gmra.mrb[0].mxu0 %v97
  %v1214 = vpop.f32.mrb[0].mxu0
  %v1215 = vadd.f32 %v637, %v1214
  %v1216 = vpop.f32.mrb[0].mxu0
  %1217 = vmatprep.mubr.f32.mxu0 %v920
  %1218 = vmatmul.mubr.f32.gmra.mrb[0].mxu0 %v99
  %v1219 = vpop.f32.mrb[0].mxu0
  %v1220 = vadd.f32 %v642, %v1219
  %v1221 = vpop.f32.mrb[0].mxu0
  %1222 = vmatprep.mubr.f32.mxu0 %v923
  %1223 = vmatmul.mubr.f32.gmra.mrb[0].mxu0 %v101
  %v1224 = vpop.f32.mrb[0].mxu0
  %v1225 = vadd.f32 %v647, %v1224
  %v1226 = vpop.f32.mrb[0].mxu0
  %1227 = vmatprep.mubr.f32.mxu0 %v926
  %1228 = vmatmul.mubr.f32.gmra.mrb[0].mxu0 %v103
  %v1229 = vpop.f32.mrb[0].mxu0
  %v1230 = vadd.f32 %v652, %v1229
  %v1231 = vpop.f32.mrb[0].mxu0
  %1232 = vmatprep.mubr.f32.mxu0 %v929
  %1233 = vmatmul.mubr.f32.gmra.mrb[0].mxu0 %v105
  %v1234 = vpop.f32.mrb[0].mxu0
  %v1235 = vadd.f32 %v657, %v1234
  %v1236 = vpop.f32.mrb[0].mxu0
  %1237 = vmatprep.mubr.f32.mxu0 %v932
  %1238 = vmatmul.mubr.f32.gmra.mrb[0].mxu0 %v107
  %v1239 = vpop.f32.mrb[0].mxu0
  %v1240 = vadd.f32 %v662, %v1239
  %v1241 = vpop.f32.mrb[0].mxu0
  %1242 = vmatprep.mubr.f32.mxu0 %v935
  %1243 = vmatmul.mubr.f32.gmra.mrb[0].mxu0 %v109
  %v1244 = vpop.f32.mrb[0].mxu0
  %v1245 = vadd.f32 %v667, %v1244
  %v1246 = vpop.f32.mrb[0].mxu0
  %1247 = vmatprep.mubr.f32.mxu0 %v938
  %1248 = vmatmul.mubr.f32.gmra.mrb[0].mxu0 %v111
  %v1249 = vpop.f32.mrb[0].mxu0
  %v1250 = vadd.f32 %v672, %v1249
  %v1251 = vpop.f32.mrb[0].mxu0
  %1252 = vmatprep.mubr.f32.mxu0 %v941
  %1253 = vmatmul.mubr.f32.gmra.mrb[0].mxu0 %v113
  %v1254 = vpop.f32.mrb[0].mxu0
  %v1255 = vadd.f32 %v677, %v1254
  %v1256 = vpop.f32.mrb[0].mxu0
  %1257 = vmatprep.mubr.f32.mxu0 %v944
  %1258 = vmatmul.mubr.f32.gmra.mrb[0].mxu0 %v115
  %v1259 = vpop.f32.mrb[0].mxu0
  %v1260 = vadd.f32 %v682, %v1259
  %v1261 = vpop.f32.mrb[0].mxu0
  %1262 = vmatprep.mubr.f32.mxu0 %v947
  %1263 = vmatmul.mubr.f32.gmra.mrb[0].mxu0 %v117
  %v1264 = vpop.f32.mrb[0].mxu0
  %v1265 = vadd.f32 %v687, %v1264
  %v1266 = vpop.f32.mrb[0].mxu0
  %1267 = vmatprep.mubr.f32.mxu0 %v950
  %1268 = vmatmul.mubr.f32.gmra.mrb[0].mxu0 %v119
  %v1269 = vpop.f32.mrb[0].mxu0
  %v1270 = vadd.f32 %v692, %v1269
  %v1271 = vpop.f32.mrb[0].mxu0
  %1272 = vmatprep.mubr.f32.mxu0 %v953
  %1273 = vmatmul.mubr.f32.gmra.mrb[0].mxu0 %v121
  %v1274 = vpop.f32.mrb[0].mxu0
  %v1275 = vadd.f32 %v697, %v1274
  %v1276 = vpop.f32.mrb[0].mxu0
  %1277 = vmatprep.mubr.f32.mxu0 %v956
  %1278 = vmatmul.mubr.f32.gmra.mrb[0].mxu0 %v123
  %v1279 = vpop.f32.mrb[0].mxu0
  %v1280 = vadd.f32 %v702, %v1279
  %v1281 = vpop.f32.mrb[0].mxu0
  %1282 = vmatprep.mubr.f32.mxu0 %v959
  %1283 = vmatmul.mubr.f32.gmra.mrb[0].mxu0 %v125
  %v1284 = vpop.f32.mrb[0].mxu0
  %v1285 = vadd.f32 %v707, %v1284
  %v1286 = vpop.f32.mrb[0].mxu0
  %1287 = vmatprep.mubr.f32.mxu0 %v962
  %1288 = vmatmul.mubr.f32.gmra.mrb[0].mxu0 %v127
  %v1289 = vpop.f32.mrb[0].mxu0
  %v1290 = vadd.f32 %v712, %v1289
  %v1291 = vpop.f32.mrb[0].mxu0
  %1292 = vmatprep.mubr.f32.mxu0 %v965
  %1293 = vmatmul.mubr.f32.gmra.mrb[0].mxu0 %v129
  %v1294 = vpop.f32.mrb[0].mxu0
  %v1295 = vadd.f32 %v717, %v1294
  %v1296 = vpop.f32.mrb[0].mxu0
  %1297 = vmatprep.mubr.f32.mxu0 %v968
  %1298 = vmatmul.mubr.f32.gmra.mrb[0].mxu0 %v131
  %v1299 = vpop.f32.mrb[0].mxu0
  %v1300 = vadd.f32 %v722, %v1299
  %v1301 = vpop.f32.mrb[0].mxu0
  %1302 = vmatprep.mubr.f32.mxu0 %v971
  %1303 = vmatmul.mubr.f32.gmra.mrb[0].mxu0 %v133
  %v1304 = vpop.f32.mrb[0].mxu0
  %v1305 = vadd.f32 %v727, %v1304
  %v1306 = vpop.f32.mrb[0].mxu0
  %1307 = vmatprep.mubr.f32.mxu0 %v974
  %1308 = vmatmul.mubr.f32.gmra.mrb[0].mxu0 %v135
  %v1309 = vpop.f32.mrb[0].mxu0
  %v1310 = vadd.f32 %v732, %v1309
  %v1311 = vpop.f32.mrb[0].mxu0
  %1312 = vmatprep.mubr.f32.mxu0 %v977
  %1313 = vmatmul.mubr.f32.gmra.mrb[0].mxu0 %v137
  %v1314 = vpop.f32.mrb[0].mxu0
  %v1315 = vadd.f32 %v737, %v1314
  %v1316 = vpop.f32.mrb[0].mxu0
  %1317 = vmatprep.mubr.f32.mxu0 %v980
  %1318 = vmatmul.mubr.f32.gmra.mrb[0].mxu0 %v139
  %v1319 = vpop.f32.mrb[0].mxu0
  %v1320 = vadd.f32 %v742, %v1319
  %v1321 = vpop.f32.mrb[0].mxu0
  %1322 = vmatprep.mubr.f32.mxu0 %v983
  %1323 = vmatmul.mubr.f32.gmra.mrb[0].mxu0 %v141
  %v1324 = vpop.f32.mrb[0].mxu0
  %v1325 = vadd.f32 %v747, %v1324
  %v1326 = vpop.f32.mrb[0].mxu0
  %1327 = vmatprep.mubr.f32.mxu0 %v986
  %1328 = vmatmul.mubr.f32.gmra.mrb[0].mxu0 %v143
  %v1329 = vpop.f32.mrb[0].mxu0
  %v1330 = vadd.f32 %v752, %v1329
  %v1331 = vpop.f32.mrb[0].mxu0
  %1332 = vmatprep.mubr.f32.mxu0 %v989
  %1333 = vmatmul.mubr.f32.gmra.mrb[0].mxu0 %v145
  %v1334 = vpop.f32.mrb[0].mxu0
  %v1335 = vadd.f32 %v757, %v1334
  %v1336 = vpop.f32.mrb[0].mxu0
  %1337 = vmatprep.mubr.f32.mxu0 %v992
  %1338 = vmatmul.mubr.f32.gmra.mrb[0].mxu0 %v147
  %v1339 = vpop.f32.mrb[0].mxu0
  %v1340 = vadd.f32 %v762, %v1339
  %v1341 = vpop.f32.mrb[0].mxu0
  %1342 = vmatprep.mubr.f32.mxu0 %v995
  %1343 = vmatmul.mubr.f32.gmra.mrb[0].mxu0 %v149
  %v1344 = vpop.f32.mrb[0].mxu0
  %v1345 = vadd.f32 %v767, %v1344
  %v1346 = vpop.f32.mrb[0].mxu0
  %1347 = vmatprep.mubr.f32.mxu0 %v998
  %1348 = vmatmul.mubr.f32.gmra.mrb[0].mxu0 %v151
  %v1349 = vpop.f32.mrb[0].mxu0
  %v1350 = vadd.f32 %v772, %v1349
  %v1351 = vpop.f32.mrb[0].mxu0
  %1352 = vmatprep.mubr.f32.mxu0 %v1001
  %1353 = vmatmul.mubr.f32.gmra.mrb[0].mxu0 %v153
  %v1354 = vpop.f32.mrb[0].mxu0
  %v1355 = vadd.f32 %v777, %v1354
  %v1356 = vpop.f32.mrb[0].mxu0
  %1357 = vmatprep.mubr.f32.mxu0 %v1004
  %1358 = vmatmul.mubr.f32.gmra.mrb[0].mxu0 %v155
  %v1359 = vpop.f32.mrb[0].mxu0
  %v1360 = vadd.f32 %v782, %v1359
  %v1361 = vpop.f32.mrb[0].mxu0
  %1362 = vmatprep.mubr.f32.mxu0 %v1007
  %1363 = vmatmul.mubr.f32.gmra.mrb[0].mxu0 %v157
  %v1364 = vpop.f32.mrb[0].mxu0
  %v1365 = vadd.f32 %v787, %v1364
  %v1366 = vpop.f32.mrb[0].mxu0
  %1367 = vmatprep.mubr.f32.mxu0 %v1010
  %1368 = vmatmul.mubr.f32.gmra.mrb[0].mxu0 %v159
  %v1369 = vpop.f32.mrb[0].mxu0
  %v1370 = vadd.f32 %v792, %v1369
  %v1371 = vpop.f32.mrb[0].mxu0
  %1372 = vmatprep.mubr.f32.mxu0 %v1013
  %1373 = vmatmul.mubr.f32.gmra.mrb[0].mxu0 %v161
  %v1374 = vpop.f32.mrb[0].mxu0
  %v1375 = vadd.f32 %v797, %v1374
  %v1376 = vpop.f32.mrb[0].mxu0
  %1377 = vmatprep.mubr.f32.mxu0 %v1016
  %1378 = vmatmul.mubr.f32.gmra.mrb[0].mxu0 %v163
  %v1379 = vpop.f32.mrb[0].mxu0
  %v1380 = vadd.f32 %v802, %v1379
  %v1381 = vpop.f32.mrb[0].mxu0
  %1382 = vmatprep.mubr.f32.mxu0 %v1019
  %1383 = vmatmul.mubr.f32.gmra.mrb[0].mxu0 %v165
  %v1384 = vpop.f32.mrb[0].mxu0
  %v1385 = vadd.f32 %v807, %v1384
  %v1386 = vpop.f32.mrb[0].mxu0
  %1387 = vmatprep.mubr.f32.mxu0 %v1022
  %1388 = vmatmul.mubr.f32.gmra.mrb[0].mxu0 %v167
  %v1389 = vpop.f32.mrb[0].mxu0
  %v1390 = vadd.f32 %v812, %v1389
  %v1391 = vpop.f32.mrb[0].mxu0
  %1392 = vmatprep.mubr.f32.mxu0 %v1025
  %1393 = vmatmul.mubr.f32.gmra.mrb[0].mxu0 %v169
  %v1394 = vpop.f32.mrb[0].mxu0
  %v1395 = vadd.f32 %v817, %v1394
  %v1396 = vpop.f32.mrb[0].mxu0
  %1397 = vmatprep.mubr.f32.mxu0 %v1028
  %1398 = vmatmul.mubr.f32.gmra.mrb[0].mxu0 %v171
  %v1399 = vpop.f32.mrb[0].mxu0
  %v1400 = vadd.f32 %v822, %v1399
  %v1401 = vpop.f32.mrb[0].mxu0
  %1402 = vmatprep.mubr.f32.mxu0 %v1031
  %1403 = vmatmul.mubr.f32.gmra.mrb[0].mxu0 %v173
  %v1404 = vpop.f32.mrb[0].mxu0
  %v1405 = vadd.f32 %v827, %v1404
  %v1406 = vpop.f32.mrb[0].mxu0
  %1407 = vmatprep.mubr.f32.mxu0 %v1034
  %1408 = vmatmul.mubr.f32.gmra.mrb[0].mxu0 %v175
  %v1409 = vpop.f32.mrb[0].mxu0
  %v1410 = vadd.f32 %v832, %v1409
  %v1411 = vpop.f32.mrb[0].mxu0
  %1412 = vmatprep.mubr.f32.mxu0 %v1037
  %1413 = vmatmul.mubr.f32.gmra.mrb[0].mxu0 %v177
  %v1414 = vpop.f32.mrb[0].mxu0
  %v1415 = vadd.f32 %v837, %v1414
  %v1416 = vpop.f32.mrb[0].mxu0
  %1417 = vmatprep.mubr.f32.mxu0 %v1040
  %1418 = vmatmul.mubr.f32.gmra.mrb[0].mxu0 %v179
  %v1419 = vpop.f32.mrb[0].mxu0
  %v1420 = vadd.f32 %v842, %v1419
  %v1421 = vpop.f32.mrb[0].mxu0
  %1422 = vmatprep.mubr.f32.mxu0 %v1043
  %1423 = vmatmul.mubr.f32.gmra.mrb[0].mxu0 %v181
  %v1424 = vpop.f32.mrb[0].mxu0
  %v1425 = vadd.f32 %v847, %v1424
  %v1426 = vpop.f32.mrb[0].mxu0
  %1427 = vmatprep.mubr.f32.mxu0 %v1046
  %1428 = vmatmul.mubr.f32.gmra.mrb[0].mxu0 %v183
  %v1429 = vpop.f32.mrb[0].mxu0
  %v1430 = vadd.f32 %v852, %v1429
  %v1431 = vpop.f32.mrb[0].mxu0
  %1432 = vdwg.mxu0
  %v1433 = vld [vmem:[%s5] sm:$0x1]
  %v1435 = vlaneseq
  %v1436 = vshrl.u32 %v1435, 7
  %v1437 = vsub.s32 0, %v1436
  %v1438 = vrot.slane %v1433, %v1437
  %v1440 = vadd.f32 %v1115, %v1438
  %v1441 = vadd.f32 %v1120, %v1438
  %v1442 = vadd.f32 %v1125, %v1438
  %v1443 = vadd.f32 %v1130, %v1438
  %v1444 = vadd.f32 %v1135, %v1438
  %v1445 = vadd.f32 %v1140, %v1438
  %v1446 = vadd.f32 %v1145, %v1438
  %v1447 = vadd.f32 %v1150, %v1438
  %v1448 = vadd.f32 %v1155, %v1438
  %v1449 = vadd.f32 %v1160, %v1438
  %v1450 = vadd.f32 %v1165, %v1438
  %v1451 = vadd.f32 %v1170, %v1438
  %v1452 = vadd.f32 %v1175, %v1438
  %v1453 = vadd.f32 %v1180, %v1438
  %v1454 = vadd.f32 %v1185, %v1438
  %v1455 = vadd.f32 %v1190, %v1438
  %v1456 = vadd.f32 %v1195, %v1438
  %v1457 = vadd.f32 %v1200, %v1438
  %v1458 = vadd.f32 %v1205, %v1438
  %v1459 = vadd.f32 %v1210, %v1438
  %v1460 = vadd.f32 %v1215, %v1438
  %v1461 = vadd.f32 %v1220, %v1438
  %v1462 = vadd.f32 %v1225, %v1438
  %v1463 = vadd.f32 %v1230, %v1438
  %v1464 = vadd.f32 %v1235, %v1438
  %v1465 = vadd.f32 %v1240, %v1438
  %v1466 = vadd.f32 %v1245, %v1438
  %v1467 = vadd.f32 %v1250, %v1438
  %v1468 = vadd.f32 %v1255, %v1438
  %v1469 = vadd.f32 %v1260, %v1438
  %v1470 = vadd.f32 %v1265, %v1438
  %v1471 = vadd.f32 %v1270, %v1438
  %v1472 = vadd.f32 %v1275, %v1438
  %v1473 = vadd.f32 %v1280, %v1438
  %v1474 = vadd.f32 %v1285, %v1438
  %v1475 = vadd.f32 %v1290, %v1438
  %v1476 = vadd.f32 %v1295, %v1438
  %v1477 = vadd.f32 %v1300, %v1438
  %v1478 = vadd.f32 %v1305, %v1438
  %v1479 = vadd.f32 %v1310, %v1438
  %v1480 = vadd.f32 %v1315, %v1438
  %v1481 = vadd.f32 %v1320, %v1438
  %v1482 = vadd.f32 %v1325, %v1438
  %v1483 = vadd.f32 %v1330, %v1438
  %v1484 = vadd.f32 %v1335, %v1438
  %v1485 = vadd.f32 %v1340, %v1438
  %v1486 = vadd.f32 %v1345, %v1438
  %v1487 = vadd.f32 %v1350, %v1438
  %v1488 = vadd.f32 %v1355, %v1438
  %v1489 = vadd.f32 %v1360, %v1438
  %v1490 = vadd.f32 %v1365, %v1438
  %v1491 = vadd.f32 %v1370, %v1438
  %v1492 = vadd.f32 %v1375, %v1438
  %v1493 = vadd.f32 %v1380, %v1438
  %v1494 = vadd.f32 %v1385, %v1438
  %v1495 = vadd.f32 %v1390, %v1438
  %v1496 = vadd.f32 %v1395, %v1438
  %v1497 = vadd.f32 %v1400, %v1438
  %v1498 = vadd.f32 %v1405, %v1438
  %v1499 = vadd.f32 %v1410, %v1438
  %v1500 = vadd.f32 %v1415, %v1438
  %v1501 = vadd.f32 %v1420, %v1438
  %v1502 = vadd.f32 %v1425, %v1438
  %v1503 = vadd.f32 %v1430, %v1438
  %v1504 = vmax.f32 %v1440, 0.0
  %v1505 = vmax.f32 %v1441, 0.0
  %v1506 = vmax.f32 %v1442, 0.0
  %v1507 = vmax.f32 %v1443, 0.0
  %v1508 = vmax.f32 %v1444, 0.0
  %v1509 = vmax.f32 %v1445, 0.0
  %v1510 = vmax.f32 %v1446, 0.0
  %v1511 = vmax.f32 %v1447, 0.0
  %v1512 = vmax.f32 %v1448, 0.0
  %v1513 = vmax.f32 %v1449, 0.0
  %v1514 = vmax.f32 %v1450, 0.0
  %v1515 = vmax.f32 %v1451, 0.0
  %v1516 = vmax.f32 %v1452, 0.0
  %v1517 = vmax.f32 %v1453, 0.0
  %v1518 = vmax.f32 %v1454, 0.0
  %v1519 = vmax.f32 %v1455, 0.0
  %v1520 = vmax.f32 %v1456, 0.0
  %v1521 = vmax.f32 %v1457, 0.0
  %v1522 = vmax.f32 %v1458, 0.0
  %v1523 = vmax.f32 %v1459, 0.0
  %v1524 = vmax.f32 %v1460, 0.0
  %v1525 = vmax.f32 %v1461, 0.0
  %v1526 = vmax.f32 %v1462, 0.0
  %v1527 = vmax.f32 %v1463, 0.0
  %v1528 = vmax.f32 %v1464, 0.0
  %v1529 = vmax.f32 %v1465, 0.0
  %v1530 = vmax.f32 %v1466, 0.0
  %v1531 = vmax.f32 %v1467, 0.0
  %v1532 = vmax.f32 %v1468, 0.0
  %v1533 = vmax.f32 %v1469, 0.0
  %v1534 = vmax.f32 %v1470, 0.0
  %v1535 = vmax.f32 %v1471, 0.0
  %v1536 = vmax.f32 %v1472, 0.0
  %v1537 = vmax.f32 %v1473, 0.0
  %v1538 = vmax.f32 %v1474, 0.0
  %v1539 = vmax.f32 %v1475, 0.0
  %v1540 = vmax.f32 %v1476, 0.0
  %v1541 = vmax.f32 %v1477, 0.0
  %v1542 = vmax.f32 %v1478, 0.0
  %v1543 = vmax.f32 %v1479, 0.0
  %v1544 = vmax.f32 %v1480, 0.0
  %v1545 = vmax.f32 %v1481, 0.0
  %v1546 = vmax.f32 %v1482, 0.0
  %v1547 = vmax.f32 %v1483, 0.0
  %v1548 = vmax.f32 %v1484, 0.0
  %v1549 = vmax.f32 %v1485, 0.0
  %v1550 = vmax.f32 %v1486, 0.0
  %v1551 = vmax.f32 %v1487, 0.0
  %v1552 = vmax.f32 %v1488, 0.0
  %v1553 = vmax.f32 %v1489, 0.0
  %v1554 = vmax.f32 %v1490, 0.0
  %v1555 = vmax.f32 %v1491, 0.0
  %v1556 = vmax.f32 %v1492, 0.0
  %v1557 = vmax.f32 %v1493, 0.0
  %v1558 = vmax.f32 %v1494, 0.0
  %v1559 = vmax.f32 %v1495, 0.0
  %v1560 = vmax.f32 %v1496, 0.0
  %v1561 = vmax.f32 %v1497, 0.0
  %v1562 = vmax.f32 %v1498, 0.0
  %v1563 = vmax.f32 %v1499, 0.0
  %v1564 = vmax.f32 %v1500, 0.0
  %v1565 = vmax.f32 %v1501, 0.0
  %v1566 = vmax.f32 %v1502, 0.0
  %v1567 = vmax.f32 %v1503, 0.0
  %v1568 = vld [vmem:[%s6] sm:$0xff]
  %v1569 = vld [vmem:[%s6 + $0x8] sm:$0xff]
  %v1570 = vld [vmem:[%s6 + $0x10] sm:$0xff]
  %v1571 = vld [vmem:[%s6 + $0x18] sm:$0xff]
  %v1572 = vld [vmem:[%s6 + $0x20] sm:$0xff]
  %v1573 = vld [vmem:[%s6 + $0x28] sm:$0xff]
  %v1574 = vld [vmem:[%s6 + $0x30] sm:$0xff]
  %v1575 = vld [vmem:[%s6 + $0x38] sm:$0xff]
  %v1576 = vld [vmem:[%s6 + $0x40] sm:$0xff]
  %v1577 = vld [vmem:[%s6 + $0x48] sm:$0xff]
  %v1578 = vld [vmem:[%s6 + $0x50] sm:$0xff]
  %v1579 = vld [vmem:[%s6 + $0x58] sm:$0xff]
  %v1580 = vld [vmem:[#allocation2] sm:$0x1]
  %v1582 = vlaneseq
  %v1583 = vshrl.u32 %v1582, 7
  %v1584 = vsub.s32 0, %v1583
  %v1585 = vrot.slane %v1580, %v1584
  %1586 = vset.pattern.permute.xlu0 0
  %1587 = vperm.xlu0 %1586, %v1585
  %v1588 = vpop.permute.xlu0 %1587
  %vm1590 = vcmask 785408
  %v1592 = vsel %vm1590, %v1504, 0
  %v1595 = vsel %vm1590, %v1505, 0
  %v1598 = vsel %vm1590, %v1506, 0
  %v1601 = vsel %vm1590, %v1507, 0
  %v1604 = vsel %vm1590, %v1508, 0
  %v1607 = vsel %vm1590, %v1509, 0
  %v1610 = vsel %vm1590, %v1510, 0
  %v1613 = vsel %vm1590, %v1511, 0
  %v1616 = vsel %vm1590, %v1512, 0
  %v1619 = vsel %vm1590, %v1513, 0
  %v1622 = vsel %vm1590, %v1514, 0
  %v1625 = vsel %vm1590, %v1515, 0
  %v1628 = vsel %vm1590, %v1516, 0
  %v1631 = vsel %vm1590, %v1517, 0
  %v1634 = vsel %vm1590, %v1518, 0
  %v1637 = vsel %vm1590, %v1519, 0
  %v1640 = vsel %vm1590, %v1520, 0
  %v1643 = vsel %vm1590, %v1521, 0
  %v1646 = vsel %vm1590, %v1522, 0
  %v1649 = vsel %vm1590, %v1523, 0
  %v1652 = vsel %vm1590, %v1524, 0
  %v1655 = vsel %vm1590, %v1525, 0
  %v1658 = vsel %vm1590, %v1526, 0
  %v1661 = vsel %vm1590, %v1527, 0
  %v1664 = vsel %vm1590, %v1528, 0
  %v1667 = vsel %vm1590, %v1529, 0
  %v1670 = vsel %vm1590, %v1530, 0
  %v1673 = vsel %vm1590, %v1531, 0
  %v1676 = vsel %vm1590, %v1532, 0
  %v1679 = vsel %vm1590, %v1533, 0
  %v1682 = vsel %vm1590, %v1534, 0
  %v1685 = vsel %vm1590, %v1535, 0
  %v1688 = vsel %vm1590, %v1536, 0
  %v1691 = vsel %vm1590, %v1537, 0
  %v1694 = vsel %vm1590, %v1538, 0
  %v1697 = vsel %vm1590, %v1539, 0
  %v1700 = vsel %vm1590, %v1540, 0
  %v1703 = vsel %vm1590, %v1541, 0
  %v1706 = vsel %vm1590, %v1542, 0
  %v1709 = vsel %vm1590, %v1543, 0
  %v1712 = vsel %vm1590, %v1544, 0
  %v1715 = vsel %vm1590, %v1545, 0
  %v1718 = vsel %vm1590, %v1546, 0
  %v1721 = vsel %vm1590, %v1547, 0
  %v1724 = vsel %vm1590, %v1548, 0
  %v1727 = vsel %vm1590, %v1549, 0
  %v1730 = vsel %vm1590, %v1550, 0
  %v1733 = vsel %vm1590, %v1551, 0
  %v1736 = vsel %vm1590, %v1552, 0
  %v1739 = vsel %vm1590, %v1553, 0
  %v1742 = vsel %vm1590, %v1554, 0
  %v1745 = vsel %vm1590, %v1555, 0
  %v1748 = vsel %vm1590, %v1556, 0
  %v1751 = vsel %vm1590, %v1557, 0
  %v1754 = vsel %vm1590, %v1558, 0
  %v1757 = vsel %vm1590, %v1559, 0
  %v1760 = vsel %vm1590, %v1560, 0
  %v1763 = vsel %vm1590, %v1561, 0
  %v1766 = vsel %vm1590, %v1562, 0
  %v1769 = vsel %vm1590, %v1563, 0
  %v1772 = vsel %vm1590, %v1564, 0
  %v1775 = vsel %vm1590, %v1565, 0
  %v1778 = vsel %vm1590, %v1566, 0
  %v1781 = vsel %vm1590, %v1567, 0
  %1783 = vmatprep.subr.mxu0 0.0
  %1784 = vmatpush1.msra.mxu0 %v1568
  %1785 = vmatprep.subr.mxu0 0.0
  %1786 = vmatpush1.msra.mxu0 %v1569
  %1787 = vmatprep.subr.mxu0 0.0
  %1788 = vmatpush1.msra.mxu0 %v1570
  %1789 = vmatprep.subr.mxu0 0.0
  %1790 = vmatpush1.msra.mxu0 %v1571
  %1791 = vmatprep.subr.mxu0 0.0
  %1792 = vmatpush1.msra.mxu0 %v1572
  %1793 = vmatprep.subr.mxu0 0.0
  %1794 = vmatpush1.msra.mxu0 %v1573
  %1795 = vmatprep.subr.mxu0 0.0
  %1796 = vmatpush1.msra.mxu0 %v1574
  %1797 = vmatprep.subr.mxu0 0.0
  %1798 = vmatpush1.msra.mxu0 %v1575
  %1799 = vmatprep.subr.mxu0 0.0
  %1800 = vmatpush1.msra.mxu0 %v1576
  %1801 = vmatprep.subr.mxu0 0.0
  %1802 = vmatpush1.msra.mxu0 %v1577
  %1803 = vmatprep.subr.mxu0 0.0
  %1804 = vmatpush1.msra.mxu0 %v1578
  %1805 = vmatprep.subr.mxu0 0.0
  %1806 = vmatpush1.msra.mxu0 %v1579
  %1807 = vmatprep.subr.mxu0 0.0
  %1808 = vmatpush1.msra.mxu0 0.0
  %1809 = vmatprep.subr.mxu0 0.0
  %1810 = vmatpush1.msra.mxu0 0.0
  %1811 = vmatprep.subr.mxu0 0.0
  %1812 = vmatpush1.msra.mxu0 0.0
  %1813 = vmatprep.subr.mxu0 0.0
  %1814 = vmatpush1.msra.mxu0 0.0
  %1815 = vmatprep.subr.mxu0 0.0
  %1816 = vmatpush1.msra.mxu0 0.0
  %1817 = vmatprep.subr.mxu0 0.0
  %1818 = vmatpush1.msra.mxu0 0.0
  %1819 = vmatprep.subr.mxu0 0.0
  %1820 = vmatpush1.msra.mxu0 0.0
  %1821 = vmatprep.subr.mxu0 0.0
  %1822 = vmatpush1.msra.mxu0 0.0
  %1823 = vmatprep.subr.mxu0 0.0
  %1824 = vmatpush1.msra.mxu0 0.0
  %1825 = vmatprep.subr.mxu0 0.0
  %1826 = vmatpush1.msra.mxu0 0.0
  %1827 = vmatprep.subr.mxu0 0.0
  %1828 = vmatpush1.msra.mxu0 0.0
  %1829 = vmatprep.subr.mxu0 0.0
  %1830 = vmatpush1.msra.mxu0 0.0
  %1831 = vmatprep.subr.mxu0 0.0
  %1832 = vmatpush1.msra.mxu0 0.0
  %1833 = vmatprep.subr.mxu0 0.0
  %1834 = vmatpush1.msra.mxu0 0.0
  %1835 = vmatprep.subr.mxu0 0.0
  %1836 = vmatpush1.msra.mxu0 0.0
  %1837 = vmatprep.subr.mxu0 0.0
  %1838 = vmatpush1.msra.mxu0 0.0
  %1839 = vmatprep.subr.mxu0 0.0
  %1840 = vmatpush1.msra.mxu0 0.0
  %1841 = vmatprep.subr.mxu0 0.0
  %1842 = vmatpush1.msra.mxu0 0.0
  %1843 = vmatprep.subr.mxu0 0.0
  %1844 = vmatpush1.msra.mxu0 0.0
  %1845 = vmatprep.subr.mxu0 0.0
  %1846 = vmatpush1.msra.mxu0 0.0
  %1847 = vmatprep.mubr.f32.mxu0 0.0
  %1848 = vmatmul.mubr.f32.gmra.mrb[0].mxu0 %v1592
  %v1849 = vpop.f32.mrb[0].mxu0
  %v1850 = vadd.f32 %v1588, %v1849
  %v1851 = vpop.f32.mrb[0].mxu0
  %1852 = vmatprep.mubr.f32.mxu0 0.0
  %1853 = vmatmul.mubr.f32.gmra.mrb[0].mxu0 %v1595
  %v1854 = vpop.f32.mrb[0].mxu0
  %v1855 = vadd.f32 %v1588, %v1854
  %v1856 = vpop.f32.mrb[0].mxu0
  %1857 = vmatprep.mubr.f32.mxu0 0.0
  %1858 = vmatmul.mubr.f32.gmra.mrb[0].mxu0 %v1598
  %v1859 = vpop.f32.mrb[0].mxu0
  %v1860 = vadd.f32 %v1588, %v1859
  %v1861 = vpop.f32.mrb[0].mxu0
  %1862 = vmatprep.mubr.f32.mxu0 0.0
  %1863 = vmatmul.mubr.f32.gmra.mrb[0].mxu0 %v1601
  %v1864 = vpop.f32.mrb[0].mxu0
  %v1865 = vadd.f32 %v1588, %v1864
  %v1866 = vpop.f32.mrb[0].mxu0
  %1867 = vmatprep.mubr.f32.mxu0 0.0
  %1868 = vmatmul.mubr.f32.gmra.mrb[0].mxu0 %v1604
  %v1869 = vpop.f32.mrb[0].mxu0
  %v1870 = vadd.f32 %v1588, %v1869
  %v1871 = vpop.f32.mrb[0].mxu0
  %1872 = vmatprep.mubr.f32.mxu0 0.0
  %1873 = vmatmul.mubr.f32.gmra.mrb[0].mxu0 %v1607
  %v1874 = vpop.f32.mrb[0].mxu0
  %v1875 = vadd.f32 %v1588, %v1874
  %v1876 = vpop.f32.mrb[0].mxu0
  %1877 = vmatprep.mubr.f32.mxu0 0.0
  %1878 = vmatmul.mubr.f32.gmra.mrb[0].mxu0 %v1610
  %v1879 = vpop.f32.mrb[0].mxu0
  %v1880 = vadd.f32 %v1588, %v1879
  %v1881 = vpop.f32.mrb[0].mxu0
  %1882 = vmatprep.mubr.f32.mxu0 0.0
  %1883 = vmatmul.mubr.f32.gmra.mrb[0].mxu0 %v1613
  %v1884 = vpop.f32.mrb[0].mxu0
  %v1885 = vadd.f32 %v1588, %v1884
  %v1886 = vpop.f32.mrb[0].mxu0
  %1887 = vmatprep.mubr.f32.mxu0 0.0
  %1888 = vmatmul.mubr.f32.gmra.mrb[0].mxu0 %v1616
  %v1889 = vpop.f32.mrb[0].mxu0
  %v1890 = vadd.f32 %v1588, %v1889
  %v1891 = vpop.f32.mrb[0].mxu0
  %1892 = vmatprep.mubr.f32.mxu0 0.0
  %1893 = vmatmul.mubr.f32.gmra.mrb[0].mxu0 %v1619
  %v1894 = vpop.f32.mrb[0].mxu0
  %v1895 = vadd.f32 %v1588, %v1894
  %v1896 = vpop.f32.mrb[0].mxu0
  %1897 = vmatprep.mubr.f32.mxu0 0.0
  %1898 = vmatmul.mubr.f32.gmra.mrb[0].mxu0 %v1622
  %v1899 = vpop.f32.mrb[0].mxu0
  %v1900 = vadd.f32 %v1588, %v1899
  %v1901 = vpop.f32.mrb[0].mxu0
  %1902 = vmatprep.mubr.f32.mxu0 0.0
  %1903 = vmatmul.mubr.f32.gmra.mrb[0].mxu0 %v1625
  %v1904 = vpop.f32.mrb[0].mxu0
  %v1905 = vadd.f32 %v1588, %v1904
  %v1906 = vpop.f32.mrb[0].mxu0
  %1907 = vmatprep.mubr.f32.mxu0 0.0
  %1908 = vmatmul.mubr.f32.gmra.mrb[0].mxu0 %v1628
  %v1909 = vpop.f32.mrb[0].mxu0
  %v1910 = vadd.f32 %v1588, %v1909
  %v1911 = vpop.f32.mrb[0].mxu0
  %1912 = vmatprep.mubr.f32.mxu0 0.0
  %1913 = vmatmul.mubr.f32.gmra.mrb[0].mxu0 %v1631
  %v1914 = vpop.f32.mrb[0].mxu0
  %v1915 = vadd.f32 %v1588, %v1914
  %v1916 = vpop.f32.mrb[0].mxu0
  %1917 = vmatprep.mubr.f32.mxu0 0.0
  %1918 = vmatmul.mubr.f32.gmra.mrb[0].mxu0 %v1634
  %v1919 = vpop.f32.mrb[0].mxu0
  %v1920 = vadd.f32 %v1588, %v1919
  %v1921 = vpop.f32.mrb[0].mxu0
  %1922 = vmatprep.mubr.f32.mxu0 0.0
  %1923 = vmatmul.mubr.f32.gmra.mrb[0].mxu0 %v1637
  %v1924 = vpop.f32.mrb[0].mxu0
  %v1925 = vadd.f32 %v1588, %v1924
  %v1926 = vpop.f32.mrb[0].mxu0
  %1927 = vmatprep.mubr.f32.mxu0 0.0
  %1928 = vmatmul.mubr.f32.gmra.mrb[0].mxu0 %v1640
  %v1929 = vpop.f32.mrb[0].mxu0
  %v1930 = vadd.f32 %v1588, %v1929
  %v1931 = vpop.f32.mrb[0].mxu0
  %1932 = vmatprep.mubr.f32.mxu0 0.0
  %1933 = vmatmul.mubr.f32.gmra.mrb[0].mxu0 %v1643
  %v1934 = vpop.f32.mrb[0].mxu0
  %v1935 = vadd.f32 %v1588, %v1934
  %v1936 = vpop.f32.mrb[0].mxu0
  %1937 = vmatprep.mubr.f32.mxu0 0.0
  %1938 = vmatmul.mubr.f32.gmra.mrb[0].mxu0 %v1646
  %v1939 = vpop.f32.mrb[0].mxu0
  %v1940 = vadd.f32 %v1588, %v1939
  %v1941 = vpop.f32.mrb[0].mxu0
  %1942 = vmatprep.mubr.f32.mxu0 0.0
  %1943 = vmatmul.mubr.f32.gmra.mrb[0].mxu0 %v1649
  %v1944 = vpop.f32.mrb[0].mxu0
  %v1945 = vadd.f32 %v1588, %v1944
  %v1946 = vpop.f32.mrb[0].mxu0
  %1947 = vmatprep.mubr.f32.mxu0 0.0
  %1948 = vmatmul.mubr.f32.gmra.mrb[0].mxu0 %v1652
  %v1949 = vpop.f32.mrb[0].mxu0
  %v1950 = vadd.f32 %v1588, %v1949
  %v1951 = vpop.f32.mrb[0].mxu0
  %1952 = vmatprep.mubr.f32.mxu0 0.0
  %1953 = vmatmul.mubr.f32.gmra.mrb[0].mxu0 %v1655
  %v1954 = vpop.f32.mrb[0].mxu0
  %v1955 = vadd.f32 %v1588, %v1954
  %v1956 = vpop.f32.mrb[0].mxu0
  %1957 = vmatprep.mubr.f32.mxu0 0.0
  %1958 = vmatmul.mubr.f32.gmra.mrb[0].mxu0 %v1658
  %v1959 = vpop.f32.mrb[0].mxu0
  %v1960 = vadd.f32 %v1588, %v1959
  %v1961 = vpop.f32.mrb[0].mxu0
  %1962 = vmatprep.mubr.f32.mxu0 0.0
  %1963 = vmatmul.mubr.f32.gmra.mrb[0].mxu0 %v1661
  %v1964 = vpop.f32.mrb[0].mxu0
  %v1965 = vadd.f32 %v1588, %v1964
  %v1966 = vpop.f32.mrb[0].mxu0
  %1967 = vmatprep.mubr.f32.mxu0 0.0
  %1968 = vmatmul.mubr.f32.gmra.mrb[0].mxu0 %v1664
  %v1969 = vpop.f32.mrb[0].mxu0
  %v1970 = vadd.f32 %v1588, %v1969
  %v1971 = vpop.f32.mrb[0].mxu0
  %1972 = vmatprep.mubr.f32.mxu0 0.0
  %1973 = vmatmul.mubr.f32.gmra.mrb[0].mxu0 %v1667
  %v1974 = vpop.f32.mrb[0].mxu0
  %v1975 = vadd.f32 %v1588, %v1974
  %v1976 = vpop.f32.mrb[0].mxu0
  %1977 = vmatprep.mubr.f32.mxu0 0.0
  %1978 = vmatmul.mubr.f32.gmra.mrb[0].mxu0 %v1670
  %v1979 = vpop.f32.mrb[0].mxu0
  %v1980 = vadd.f32 %v1588, %v1979
  %v1981 = vpop.f32.mrb[0].mxu0
  %1982 = vmatprep.mubr.f32.mxu0 0.0
  %1983 = vmatmul.mubr.f32.gmra.mrb[0].mxu0 %v1673
  %v1984 = vpop.f32.mrb[0].mxu0
  %v1985 = vadd.f32 %v1588, %v1984
  %v1986 = vpop.f32.mrb[0].mxu0
  %1987 = vmatprep.mubr.f32.mxu0 0.0
  %1988 = vmatmul.mubr.f32.gmra.mrb[0].mxu0 %v1676
  %v1989 = vpop.f32.mrb[0].mxu0
  %v1990 = vadd.f32 %v1588, %v1989
  %v1991 = vpop.f32.mrb[0].mxu0
  %1992 = vmatprep.mubr.f32.mxu0 0.0
  %1993 = vmatmul.mubr.f32.gmra.mrb[0].mxu0 %v1679
  %v1994 = vpop.f32.mrb[0].mxu0
  %v1995 = vadd.f32 %v1588, %v1994
  %v1996 = vpop.f32.mrb[0].mxu0
  %1997 = vmatprep.mubr.f32.mxu0 0.0
  %1998 = vmatmul.mubr.f32.gmra.mrb[0].mxu0 %v1682
  %v1999 = vpop.f32.mrb[0].mxu0
  %v2000 = vadd.f32 %v1588, %v1999
  %v2001 = vpop.f32.mrb[0].mxu0
  %2002 = vmatprep.mubr.f32.mxu0 0.0
  %2003 = vmatmul.mubr.f32.gmra.mrb[0].mxu0 %v1685
  %v2004 = vpop.f32.mrb[0].mxu0
  %v2005 = vadd.f32 %v1588, %v2004
  %v2006 = vpop.f32.mrb[0].mxu0
  %2007 = vmatprep.mubr.f32.mxu0 0.0
  %2008 = vmatmul.mubr.f32.gmra.mrb[0].mxu0 %v1688
  %v2009 = vpop.f32.mrb[0].mxu0
  %v2010 = vadd.f32 %v1588, %v2009
  %v2011 = vpop.f32.mrb[0].mxu0
  %2012 = vmatprep.mubr.f32.mxu0 0.0
  %2013 = vmatmul.mubr.f32.gmra.mrb[0].mxu0 %v1691
  %v2014 = vpop.f32.mrb[0].mxu0
  %v2015 = vadd.f32 %v1588, %v2014
  %v2016 = vpop.f32.mrb[0].mxu0
  %2017 = vmatprep.mubr.f32.mxu0 0.0
  %2018 = vmatmul.mubr.f32.gmra.mrb[0].mxu0 %v1694
  %v2019 = vpop.f32.mrb[0].mxu0
  %v2020 = vadd.f32 %v1588, %v2019
  %v2021 = vpop.f32.mrb[0].mxu0
  %2022 = vmatprep.mubr.f32.mxu0 0.0
  %2023 = vmatmul.mubr.f32.gmra.mrb[0].mxu0 %v1697
  %v2024 = vpop.f32.mrb[0].mxu0
  %v2025 = vadd.f32 %v1588, %v2024
  %v2026 = vpop.f32.mrb[0].mxu0
  %2027 = vmatprep.mubr.f32.mxu0 0.0
  %2028 = vmatmul.mubr.f32.gmra.mrb[0].mxu0 %v1700
  %v2029 = vpop.f32.mrb[0].mxu0
  %v2030 = vadd.f32 %v1588, %v2029
  %v2031 = vpop.f32.mrb[0].mxu0
  %2032 = vmatprep.mubr.f32.mxu0 0.0
  %2033 = vmatmul.mubr.f32.gmra.mrb[0].mxu0 %v1703
  %v2034 = vpop.f32.mrb[0].mxu0
  %v2035 = vadd.f32 %v1588, %v2034
  %v2036 = vpop.f32.mrb[0].mxu0
  %2037 = vmatprep.mubr.f32.mxu0 0.0
  %2038 = vmatmul.mubr.f32.gmra.mrb[0].mxu0 %v1706
  %v2039 = vpop.f32.mrb[0].mxu0
  %v2040 = vadd.f32 %v1588, %v2039
  %v2041 = vpop.f32.mrb[0].mxu0
  %2042 = vmatprep.mubr.f32.mxu0 0.0
  %2043 = vmatmul.mubr.f32.gmra.mrb[0].mxu0 %v1709
  %v2044 = vpop.f32.mrb[0].mxu0
  %v2045 = vadd.f32 %v1588, %v2044
  %v2046 = vpop.f32.mrb[0].mxu0
  %2047 = vmatprep.mubr.f32.mxu0 0.0
  %2048 = vmatmul.mubr.f32.gmra.mrb[0].mxu0 %v1712
  %v2049 = vpop.f32.mrb[0].mxu0
  %v2050 = vadd.f32 %v1588, %v2049
  %v2051 = vpop.f32.mrb[0].mxu0
  %2052 = vmatprep.mubr.f32.mxu0 0.0
  %2053 = vmatmul.mubr.f32.gmra.mrb[0].mxu0 %v1715
  %v2054 = vpop.f32.mrb[0].mxu0
  %v2055 = vadd.f32 %v1588, %v2054
  %v2056 = vpop.f32.mrb[0].mxu0
  %2057 = vmatprep.mubr.f32.mxu0 0.0
  %2058 = vmatmul.mubr.f32.gmra.mrb[0].mxu0 %v1718
  %v2059 = vpop.f32.mrb[0].mxu0
  %v2060 = vadd.f32 %v1588, %v2059
  %v2061 = vpop.f32.mrb[0].mxu0
  %2062 = vmatprep.mubr.f32.mxu0 0.0
  %2063 = vmatmul.mubr.f32.gmra.mrb[0].mxu0 %v1721
  %v2064 = vpop.f32.mrb[0].mxu0
  %v2065 = vadd.f32 %v1588, %v2064
  %v2066 = vpop.f32.mrb[0].mxu0
  %2067 = vmatprep.mubr.f32.mxu0 0.0
  %2068 = vmatmul.mubr.f32.gmra.mrb[0].mxu0 %v1724
  %v2069 = vpop.f32.mrb[0].mxu0
  %v2070 = vadd.f32 %v1588, %v2069
  %v2071 = vpop.f32.mrb[0].mxu0
  %2072 = vmatprep.mubr.f32.mxu0 0.0
  %2073 = vmatmul.mubr.f32.gmra.mrb[0].mxu0 %v1727
  %v2074 = vpop.f32.mrb[0].mxu0
  %v2075 = vadd.f32 %v1588, %v2074
  %v2076 = vpop.f32.mrb[0].mxu0
  %2077 = vmatprep.mubr.f32.mxu0 0.0
  %2078 = vmatmul.mubr.f32.gmra.mrb[0].mxu0 %v1730
  %v2079 = vpop.f32.mrb[0].mxu0
  %v2080 = vadd.f32 %v1588, %v2079
  %v2081 = vpop.f32.mrb[0].mxu0
  %2082 = vmatprep.mubr.f32.mxu0 0.0
  %2083 = vmatmul.mubr.f32.gmra.mrb[0].mxu0 %v1733
  %v2084 = vpop.f32.mrb[0].mxu0
  %v2085 = vadd.f32 %v1588, %v2084
  %v2086 = vpop.f32.mrb[0].mxu0
  %2087 = vmatprep.mubr.f32.mxu0 0.0
  %2088 = vmatmul.mubr.f32.gmra.mrb[0].mxu0 %v1736
  %v2089 = vpop.f32.mrb[0].mxu0
  %v2090 = vadd.f32 %v1588, %v2089
  %v2091 = vpop.f32.mrb[0].mxu0
  %2092 = vmatprep.mubr.f32.mxu0 0.0
  %2093 = vmatmul.mubr.f32.gmra.mrb[0].mxu0 %v1739
  %v2094 = vpop.f32.mrb[0].mxu0
  %v2095 = vadd.f32 %v1588, %v2094
  %v2096 = vpop.f32.mrb[0].mxu0
  %2097 = vmatprep.mubr.f32.mxu0 0.0
  %2098 = vmatmul.mubr.f32.gmra.mrb[0].mxu0 %v1742
  %v2099 = vpop.f32.mrb[0].mxu0
  %v2100 = vadd.f32 %v1588, %v2099
  %v2101 = vpop.f32.mrb[0].mxu0
  %2102 = vmatprep.mubr.f32.mxu0 0.0
  %2103 = vmatmul.mubr.f32.gmra.mrb[0].mxu0 %v1745
  %v2104 = vpop.f32.mrb[0].mxu0
  %v2105 = vadd.f32 %v1588, %v2104
  %v2106 = vpop.f32.mrb[0].mxu0
  %2107 = vmatprep.mubr.f32.mxu0 0.0
  %2108 = vmatmul.mubr.f32.gmra.mrb[0].mxu0 %v1748
  %v2109 = vpop.f32.mrb[0].mxu0
  %v2110 = vadd.f32 %v1588, %v2109
  %v2111 = vpop.f32.mrb[0].mxu0
  %2112 = vmatprep.mubr.f32.mxu0 0.0
  %2113 = vmatmul.mubr.f32.gmra.mrb[0].mxu0 %v1751
  %v2114 = vpop.f32.mrb[0].mxu0
  %v2115 = vadd.f32 %v1588, %v2114
  %v2116 = vpop.f32.mrb[0].mxu0
  %2117 = vmatprep.mubr.f32.mxu0 0.0
  %2118 = vmatmul.mubr.f32.gmra.mrb[0].mxu0 %v1754
  %v2119 = vpop.f32.mrb[0].mxu0
  %v2120 = vadd.f32 %v1588, %v2119
  %v2121 = vpop.f32.mrb[0].mxu0
  %2122 = vmatprep.mubr.f32.mxu0 0.0
  %2123 = vmatmul.mubr.f32.gmra.mrb[0].mxu0 %v1757
  %v2124 = vpop.f32.mrb[0].mxu0
  %v2125 = vadd.f32 %v1588, %v2124
  %v2126 = vpop.f32.mrb[0].mxu0
  %2127 = vmatprep.mubr.f32.mxu0 0.0
  %2128 = vmatmul.mubr.f32.gmra.mrb[0].mxu0 %v1760
  %v2129 = vpop.f32.mrb[0].mxu0
  %v2130 = vadd.f32 %v1588, %v2129
  %v2131 = vpop.f32.mrb[0].mxu0
  %2132 = vmatprep.mubr.f32.mxu0 0.0
  %2133 = vmatmul.mubr.f32.gmra.mrb[0].mxu0 %v1763
  %v2134 = vpop.f32.mrb[0].mxu0
  %v2135 = vadd.f32 %v1588, %v2134
  %v2136 = vpop.f32.mrb[0].mxu0
  %2137 = vmatprep.mubr.f32.mxu0 0.0
  %2138 = vmatmul.mubr.f32.gmra.mrb[0].mxu0 %v1766
  %v2139 = vpop.f32.mrb[0].mxu0
  %v2140 = vadd.f32 %v1588, %v2139
  %v2141 = vpop.f32.mrb[0].mxu0
  %2142 = vmatprep.mubr.f32.mxu0 0.0
  %2143 = vmatmul.mubr.f32.gmra.mrb[0].mxu0 %v1769
  %v2144 = vpop.f32.mrb[0].mxu0
  %v2145 = vadd.f32 %v1588, %v2144
  %v2146 = vpop.f32.mrb[0].mxu0
  %2147 = vmatprep.mubr.f32.mxu0 0.0
  %2148 = vmatmul.mubr.f32.gmra.mrb[0].mxu0 %v1772
  %v2149 = vpop.f32.mrb[0].mxu0
  %v2150 = vadd.f32 %v1588, %v2149
  %v2151 = vpop.f32.mrb[0].mxu0
  %2152 = vmatprep.mubr.f32.mxu0 0.0
  %2153 = vmatmul.mubr.f32.gmra.mrb[0].mxu0 %v1775
  %v2154 = vpop.f32.mrb[0].mxu0
  %v2155 = vadd.f32 %v1588, %v2154
  %v2156 = vpop.f32.mrb[0].mxu0
  %2157 = vmatprep.mubr.f32.mxu0 0.0
  %2158 = vmatmul.mubr.f32.gmra.mrb[0].mxu0 %v1778
  %v2159 = vpop.f32.mrb[0].mxu0
  %v2160 = vadd.f32 %v1588, %v2159
  %v2161 = vpop.f32.mrb[0].mxu0
  %2162 = vmatprep.mubr.f32.mxu0 0.0
  %2163 = vmatmul.mubr.f32.gmra.mrb[0].mxu0 %v1781
  %v2164 = vpop.f32.mrb[0].mxu0
  %v2165 = vadd.f32 %v1588, %v2164
  %v2166 = vpop.f32.mrb[0].mxu0
  %2167 = vdwg.mxu0
  %v2168 = vlaneseq
  %v2169 = vand.u32 %v2168, 127
  %v2170 = vld [vmem:[%s2] sm:$0xff]
  %v2171 = vld [vmem:[%s2 + $0x8] sm:$0xff]
  %v2172 = vld [vmem:[%s2 + $0x10] sm:$0xff]
  %v2173 = vld [vmem:[%s2 + $0x18] sm:$0xff]
  %v2174 = vld [vmem:[%s2 + $0x20] sm:$0xff]
  %v2175 = vld [vmem:[%s2 + $0x28] sm:$0xff]
  %v2176 = vld [vmem:[%s2 + $0x30] sm:$0xff]
  %v2177 = vld [vmem:[%s2 + $0x38] sm:$0xff]
  %v2178 = vld [vmem:[%s2 + $0x40] sm:$0xff]
  %v2179 = vld [vmem:[%s2 + $0x48] sm:$0xff]
  %v2180 = vld [vmem:[%s2 + $0x50] sm:$0xff]
  %v2181 = vld [vmem:[%s2 + $0x58] sm:$0xff]
  %v2182 = vld [vmem:[%s2 + $0x60] sm:$0xff]
  %v2183 = vld [vmem:[%s2 + $0x68] sm:$0xff]
  %v2184 = vld [vmem:[%s2 + $0x70] sm:$0xff]
  %v2185 = vld [vmem:[%s2 + $0x78] sm:$0xff]
  %v2186 = vld [vmem:[%s2 + $0x80] sm:$0xff]
  %v2187 = vld [vmem:[%s2 + $0x88] sm:$0xff]
  %v2188 = vld [vmem:[%s2 + $0x90] sm:$0xff]
  %v2189 = vld [vmem:[%s2 + $0x98] sm:$0xff]
  %v2190 = vld [vmem:[%s2 + $0xa0] sm:$0xff]
  %v2191 = vld [vmem:[%s2 + $0xa8] sm:$0xff]
  %v2192 = vld [vmem:[%s2 + $0xb0] sm:$0xff]
  %v2193 = vld [vmem:[%s2 + $0xb8] sm:$0xff]
  %v2194 = vld [vmem:[%s2 + $0xc0] sm:$0xff]
  %v2195 = vld [vmem:[%s2 + $0xc8] sm:$0xff]
  %v2196 = vld [vmem:[%s2 + $0xd0] sm:$0xff]
  %v2197 = vld [vmem:[%s2 + $0xd8] sm:$0xff]
  %v2198 = vld [vmem:[%s2 + $0xe0] sm:$0xff]
  %v2199 = vld [vmem:[%s2 + $0xe8] sm:$0xff]
  %v2200 = vld [vmem:[%s2 + $0xf0] sm:$0xff]
  %v2201 = vld [vmem:[%s2 + $0xf8] sm:$0xff]
  %v2202 = vld [vmem:[%s2 + $0x100] sm:$0xff]
  %v2203 = vld [vmem:[%s2 + $0x108] sm:$0xff]
  %v2204 = vld [vmem:[%s2 + $0x110] sm:$0xff]
  %v2205 = vld [vmem:[%s2 + $0x118] sm:$0xff]
  %v2206 = vld [vmem:[%s2 + $0x120] sm:$0xff]
  %v2207 = vld [vmem:[%s2 + $0x128] sm:$0xff]
  %v2208 = vld [vmem:[%s2 + $0x130] sm:$0xff]
  %v2209 = vld [vmem:[%s2 + $0x138] sm:$0xff]
  %v2210 = vld [vmem:[%s2 + $0x140] sm:$0xff]
  %v2211 = vld [vmem:[%s2 + $0x148] sm:$0xff]
  %v2212 = vld [vmem:[%s2 + $0x150] sm:$0xff]
  %v2213 = vld [vmem:[%s2 + $0x158] sm:$0xff]
  %v2214 = vld [vmem:[%s2 + $0x160] sm:$0xff]
  %v2215 = vld [vmem:[%s2 + $0x168] sm:$0xff]
  %v2216 = vld [vmem:[%s2 + $0x170] sm:$0xff]
  %v2217 = vld [vmem:[%s2 + $0x178] sm:$0xff]
  %v2218 = vld [vmem:[%s2 + $0x180] sm:$0xff]
  %v2219 = vld [vmem:[%s2 + $0x188] sm:$0xff]
  %v2220 = vld [vmem:[%s2 + $0x190] sm:$0xff]
  %v2221 = vld [vmem:[%s2 + $0x198] sm:$0xff]
  %v2222 = vld [vmem:[%s2 + $0x1a0] sm:$0xff]
  %v2223 = vld [vmem:[%s2 + $0x1a8] sm:$0xff]
  %v2224 = vld [vmem:[%s2 + $0x1b0] sm:$0xff]
  %v2225 = vld [vmem:[%s2 + $0x1b8] sm:$0xff]
  %v2226 = vld [vmem:[%s2 + $0x1c0] sm:$0xff]
  %v2227 = vld [vmem:[%s2 + $0x1c8] sm:$0xff]
  %v2228 = vld [vmem:[%s2 + $0x1d0] sm:$0xff]
  %v2229 = vld [vmem:[%s2 + $0x1d8] sm:$0xff]
  %v2230 = vld [vmem:[%s2 + $0x1e0] sm:$0xff]
  %v2231 = vld [vmem:[%s2 + $0x1e8] sm:$0xff]
  %v2232 = vld [vmem:[%s2 + $0x1f0] sm:$0xff]
  %v2233 = vld [vmem:[%s2 + $0x1f8] sm:$0xff]
  %2234 = vset.pattern.permute.xlu0 0
  %2235 = vperm.xlu0 %2234, %v2170
  %v2236 = vpop.permute.xlu0 %2235
  %2237 = vset.pattern.permute.xlu0 0
  %2238 = vperm.xlu0 %2237, %v2171
  %v2239 = vpop.permute.xlu0 %2238
  %2240 = vset.pattern.permute.xlu0 0
  %2241 = vperm.xlu0 %2240, %v2172
  %v2242 = vpop.permute.xlu0 %2241
  %2243 = vset.pattern.permute.xlu0 0
  %2244 = vperm.xlu0 %2243, %v2173
  %v2245 = vpop.permute.xlu0 %2244
  %2246 = vset.pattern.permute.xlu0 0
  %2247 = vperm.xlu0 %2246, %v2174
  %v2248 = vpop.permute.xlu0 %2247
  %2249 = vset.pattern.permute.xlu0 0
  %2250 = vperm.xlu0 %2249, %v2175
  %v2251 = vpop.permute.xlu0 %2250
  %2252 = vset.pattern.permute.xlu0 0
  %2253 = vperm.xlu0 %2252, %v2176
  %v2254 = vpop.permute.xlu0 %2253
  %2255 = vset.pattern.permute.xlu0 0
  %2256 = vperm.xlu0 %2255, %v2177
  %v2257 = vpop.permute.xlu0 %2256
  %2258 = vset.pattern.permute.xlu0 0
  %2259 = vperm.xlu0 %2258, %v2178
  %v2260 = vpop.permute.xlu0 %2259
  %2261 = vset.pattern.permute.xlu0 0
  %2262 = vperm.xlu0 %2261, %v2179
  %v2263 = vpop.permute.xlu0 %2262
  %2264 = vset.pattern.permute.xlu0 0
  %2265 = vperm.xlu0 %2264, %v2180
  %v2266 = vpop.permute.xlu0 %2265
  %2267 = vset.pattern.permute.xlu0 0
  %2268 = vperm.xlu0 %2267, %v2181
  %v2269 = vpop.permute.xlu0 %2268
  %2270 = vset.pattern.permute.xlu0 0
  %2271 = vperm.xlu0 %2270, %v2182
  %v2272 = vpop.permute.xlu0 %2271
  %2273 = vset.pattern.permute.xlu0 0
  %2274 = vperm.xlu0 %2273, %v2183
  %v2275 = vpop.permute.xlu0 %2274
  %2276 = vset.pattern.permute.xlu0 0
  %2277 = vperm.xlu0 %2276, %v2184
  %v2278 = vpop.permute.xlu0 %2277
  %2279 = vset.pattern.permute.xlu0 0
  %2280 = vperm.xlu0 %2279, %v2185
  %v2281 = vpop.permute.xlu0 %2280
  %2282 = vset.pattern.permute.xlu0 0
  %2283 = vperm.xlu0 %2282, %v2186
  %v2284 = vpop.permute.xlu0 %2283
  %2285 = vset.pattern.permute.xlu0 0
  %2286 = vperm.xlu0 %2285, %v2187
  %v2287 = vpop.permute.xlu0 %2286
  %2288 = vset.pattern.permute.xlu0 0
  %2289 = vperm.xlu0 %2288, %v2188
  %v2290 = vpop.permute.xlu0 %2289
  %2291 = vset.pattern.permute.xlu0 0
  %2292 = vperm.xlu0 %2291, %v2189
  %v2293 = vpop.permute.xlu0 %2292
  %2294 = vset.pattern.permute.xlu0 0
  %2295 = vperm.xlu0 %2294, %v2190
  %v2296 = vpop.permute.xlu0 %2295
  %2297 = vset.pattern.permute.xlu0 0
  %2298 = vperm.xlu0 %2297, %v2191
  %v2299 = vpop.permute.xlu0 %2298
  %2300 = vset.pattern.permute.xlu0 0
  %2301 = vperm.xlu0 %2300, %v2192
  %v2302 = vpop.permute.xlu0 %2301
  %2303 = vset.pattern.permute.xlu0 0
  %2304 = vperm.xlu0 %2303, %v2193
  %v2305 = vpop.permute.xlu0 %2304
  %2306 = vset.pattern.permute.xlu0 0
  %2307 = vperm.xlu0 %2306, %v2194
  %v2308 = vpop.permute.xlu0 %2307
  %2309 = vset.pattern.permute.xlu0 0
  %2310 = vperm.xlu0 %2309, %v2195
  %v2311 = vpop.permute.xlu0 %2310
  %2312 = vset.pattern.permute.xlu0 0
  %2313 = vperm.xlu0 %2312, %v2196
  %v2314 = vpop.permute.xlu0 %2313
  %2315 = vset.pattern.permute.xlu0 0
  %2316 = vperm.xlu0 %2315, %v2197
  %v2317 = vpop.permute.xlu0 %2316
  %2318 = vset.pattern.permute.xlu0 0
  %2319 = vperm.xlu0 %2318, %v2198
  %v2320 = vpop.permute.xlu0 %2319
  %2321 = vset.pattern.permute.xlu0 0
  %2322 = vperm.xlu0 %2321, %v2199
  %v2323 = vpop.permute.xlu0 %2322
  %2324 = vset.pattern.permute.xlu0 0
  %2325 = vperm.xlu0 %2324, %v2200
  %v2326 = vpop.permute.xlu0 %2325
  %2327 = vset.pattern.permute.xlu0 0
  %2328 = vperm.xlu0 %2327, %v2201
  %v2329 = vpop.permute.xlu0 %2328
  %2330 = vset.pattern.permute.xlu0 0
  %2331 = vperm.xlu0 %2330, %v2202
  %v2332 = vpop.permute.xlu0 %2331
  %2333 = vset.pattern.permute.xlu0 0
  %2334 = vperm.xlu0 %2333, %v2203
  %v2335 = vpop.permute.xlu0 %2334
  %2336 = vset.pattern.permute.xlu0 0
  %2337 = vperm.xlu0 %2336, %v2204
  %v2338 = vpop.permute.xlu0 %2337
  %2339 = vset.pattern.permute.xlu0 0
  %2340 = vperm.xlu0 %2339, %v2205
  %v2341 = vpop.permute.xlu0 %2340
  %2342 = vset.pattern.permute.xlu0 0
  %2343 = vperm.xlu0 %2342, %v2206
  %v2344 = vpop.permute.xlu0 %2343
  %2345 = vset.pattern.permute.xlu0 0
  %2346 = vperm.xlu0 %2345, %v2207
  %v2347 = vpop.permute.xlu0 %2346
  %2348 = vset.pattern.permute.xlu0 0
  %2349 = vperm.xlu0 %2348, %v2208
  %v2350 = vpop.permute.xlu0 %2349
  %2351 = vset.pattern.permute.xlu0 0
  %2352 = vperm.xlu0 %2351, %v2209
  %v2353 = vpop.permute.xlu0 %2352
  %2354 = vset.pattern.permute.xlu0 0
  %2355 = vperm.xlu0 %2354, %v2210
  %v2356 = vpop.permute.xlu0 %2355
  %2357 = vset.pattern.permute.xlu0 0
  %2358 = vperm.xlu0 %2357, %v2211
  %v2359 = vpop.permute.xlu0 %2358
  %2360 = vset.pattern.permute.xlu0 0
  %2361 = vperm.xlu0 %2360, %v2212
  %v2362 = vpop.permute.xlu0 %2361
  %2363 = vset.pattern.permute.xlu0 0
  %2364 = vperm.xlu0 %2363, %v2213
  %v2365 = vpop.permute.xlu0 %2364
  %2366 = vset.pattern.permute.xlu0 0
  %2367 = vperm.xlu0 %2366, %v2214
  %v2368 = vpop.permute.xlu0 %2367
  %2369 = vset.pattern.permute.xlu0 0
  %2370 = vperm.xlu0 %2369, %v2215
  %v2371 = vpop.permute.xlu0 %2370
  %2372 = vset.pattern.permute.xlu0 0
  %2373 = vperm.xlu0 %2372, %v2216
  %v2374 = vpop.permute.xlu0 %2373
  %2375 = vset.pattern.permute.xlu0 0
  %2376 = vperm.xlu0 %2375, %v2217
  %v2377 = vpop.permute.xlu0 %2376
  %2378 = vset.pattern.permute.xlu0 0
  %2379 = vperm.xlu0 %2378, %v2218
  %v2380 = vpop.permute.xlu0 %2379
  %2381 = vset.pattern.permute.xlu0 0
  %2382 = vperm.xlu0 %2381, %v2219
  %v2383 = vpop.permute.xlu0 %2382
  %2384 = vset.pattern.permute.xlu0 0
  %2385 = vperm.xlu0 %2384, %v2220
  %v2386 = vpop.permute.xlu0 %2385
  %2387 = vset.pattern.permute.xlu0 0
  %2388 = vperm.xlu0 %2387, %v2221
  %v2389 = vpop.permute.xlu0 %2388
  %2390 = vset.pattern.permute.xlu0 0
  %2391 = vperm.xlu0 %2390, %v2222
  %v2392 = vpop.permute.xlu0 %2391
  %2393 = vset.pattern.permute.xlu0 0
  %2394 = vperm.xlu0 %2393, %v2223
  %v2395 = vpop.permute.xlu0 %2394
  %2396 = vset.pattern.permute.xlu0 0
  %2397 = vperm.xlu0 %2396, %v2224
  %v2398 = vpop.permute.xlu0 %2397
  %2399 = vset.pattern.permute.xlu0 0
  %2400 = vperm.xlu0 %2399, %v2225
  %v2401 = vpop.permute.xlu0 %2400
  %2402 = vset.pattern.permute.xlu0 0
  %2403 = vperm.xlu0 %2402, %v2226
  %v2404 = vpop.permute.xlu0 %2403
  %2405 = vset.pattern.permute.xlu0 0
  %2406 = vperm.xlu0 %2405, %v2227
  %v2407 = vpop.permute.xlu0 %2406
  %2408 = vset.pattern.permute.xlu0 0
  %2409 = vperm.xlu0 %2408, %v2228
  %v2410 = vpop.permute.xlu0 %2409
  %2411 = vset.pattern.permute.xlu0 0
  %2412 = vperm.xlu0 %2411, %v2229
  %v2413 = vpop.permute.xlu0 %2412
  %2414 = vset.pattern.permute.xlu0 0
  %2415 = vperm.xlu0 %2414, %v2230
  %v2416 = vpop.permute.xlu0 %2415
  %2417 = vset.pattern.permute.xlu0 0
  %2418 = vperm.xlu0 %2417, %v2231
  %v2419 = vpop.permute.xlu0 %2418
  %2420 = vset.pattern.permute.xlu0 0
  %2421 = vperm.xlu0 %2420, %v2232
  %v2422 = vpop.permute.xlu0 %2421
  %2423 = vset.pattern.permute.xlu0 0
  %2424 = vperm.xlu0 %2423, %v2233
  %v2425 = vpop.permute.xlu0 %2424
  %vm2426 = vcmp.lt.s32.totalorder %v2169, %v2236
  %vm2427 = vcmp.lt.s32.totalorder %v2169, %v2239
  %vm2428 = vcmp.lt.s32.totalorder %v2169, %v2242
  %vm2429 = vcmp.lt.s32.totalorder %v2169, %v2245
  %vm2430 = vcmp.lt.s32.totalorder %v2169, %v2248
  %vm2431 = vcmp.lt.s32.totalorder %v2169, %v2251
  %vm2432 = vcmp.lt.s32.totalorder %v2169, %v2254
  %vm2433 = vcmp.lt.s32.totalorder %v2169, %v2257
  %vm2434 = vcmp.lt.s32.totalorder %v2169, %v2260
  %vm2435 = vcmp.lt.s32.totalorder %v2169, %v2263
  %vm2436 = vcmp.lt.s32.totalorder %v2169, %v2266
  %vm2437 = vcmp.lt.s32.totalorder %v2169, %v2269
  %vm2438 = vcmp.lt.s32.totalorder %v2169, %v2272
  %vm2439 = vcmp.lt.s32.totalorder %v2169, %v2275
  %vm2440 = vcmp.lt.s32.totalorder %v2169, %v2278
  %vm2441 = vcmp.lt.s32.totalorder %v2169, %v2281
  %vm2442 = vcmp.lt.s32.totalorder %v2169, %v2284
  %vm2443 = vcmp.lt.s32.totalorder %v2169, %v2287
  %vm2444 = vcmp.lt.s32.totalorder %v2169, %v2290
  %vm2445 = vcmp.lt.s32.totalorder %v2169, %v2293
  %vm2446 = vcmp.lt.s32.totalorder %v2169, %v2296
  %vm2447 = vcmp.lt.s32.totalorder %v2169, %v2299
  %vm2448 = vcmp.lt.s32.totalorder %v2169, %v2302
  %vm2449 = vcmp.lt.s32.totalorder %v2169, %v2305
  %vm2450 = vcmp.lt.s32.totalorder %v2169, %v2308
  %vm2451 = vcmp.lt.s32.totalorder %v2169, %v2311
  %vm2452 = vcmp.lt.s32.totalorder %v2169, %v2314
  %vm2453 = vcmp.lt.s32.totalorder %v2169, %v2317
  %vm2454 = vcmp.lt.s32.totalorder %v2169, %v2320
  %vm2455 = vcmp.lt.s32.totalorder %v2169, %v2323
  %vm2456 = vcmp.lt.s32.totalorder %v2169, %v2326
  %vm2457 = vcmp.lt.s32.totalorder %v2169, %v2329
  %vm2458 = vcmp.lt.s32.totalorder %v2169, %v2332
  %vm2459 = vcmp.lt.s32.totalorder %v2169, %v2335
  %vm2460 = vcmp.lt.s32.totalorder %v2169, %v2338
  %vm2461 = vcmp.lt.s32.totalorder %v2169, %v2341
  %vm2462 = vcmp.lt.s32.totalorder %v2169, %v2344
  %vm2463 = vcmp.lt.s32.totalorder %v2169, %v2347
  %vm2464 = vcmp.lt.s32.totalorder %v2169, %v2350
  %vm2465 = vcmp.lt.s32.totalorder %v2169, %v2353
  %vm2466 = vcmp.lt.s32.totalorder %v2169, %v2356
  %vm2467 = vcmp.lt.s32.totalorder %v2169, %v2359
  %vm2468 = vcmp.lt.s32.totalorder %v2169, %v2362
  %vm2469 = vcmp.lt.s32.totalorder %v2169, %v2365
  %vm2470 = vcmp.lt.s32.totalorder %v2169, %v2368
  %vm2471 = vcmp.lt.s32.totalorder %v2169, %v2371
  %vm2472 = vcmp.lt.s32.totalorder %v2169, %v2374
  %vm2473 = vcmp.lt.s32.totalorder %v2169, %v2377
  %vm2474 = vcmp.lt.s32.totalorder %v2169, %v2380
  %vm2475 = vcmp.lt.s32.totalorder %v2169, %v2383
  %vm2476 = vcmp.lt.s32.totalorder %v2169, %v2386
  %vm2477 = vcmp.lt.s32.totalorder %v2169, %v2389
  %vm2478 = vcmp.lt.s32.totalorder %v2169, %v2392
  %vm2479 = vcmp.lt.s32.totalorder %v2169, %v2395
  %vm2480 = vcmp.lt.s32.totalorder %v2169, %v2398
  %vm2481 = vcmp.lt.s32.totalorder %v2169, %v2401
  %vm2482 = vcmp.lt.s32.totalorder %v2169, %v2404
  %vm2483 = vcmp.lt.s32.totalorder %v2169, %v2407
  %vm2484 = vcmp.lt.s32.totalorder %v2169, %v2410
  %vm2485 = vcmp.lt.s32.totalorder %v2169, %v2413
  %vm2486 = vcmp.lt.s32.totalorder %v2169, %v2416
  %vm2487 = vcmp.lt.s32.totalorder %v2169, %v2419
  %vm2488 = vcmp.lt.s32.totalorder %v2169, %v2422
  %vm2489 = vcmp.lt.s32.totalorder %v2169, %v2425
  %v2490 = vsel %vm2426, %v1850, -1e+30
  %v2491 = vsel %vm2427, %v1855, -1e+30
  %v2492 = vsel %vm2428, %v1860, -1e+30
  %v2493 = vsel %vm2429, %v1865, -1e+30
  %v2494 = vsel %vm2430, %v1870, -1e+30
  %v2495 = vsel %vm2431, %v1875, -1e+30
  %v2496 = vsel %vm2432, %v1880, -1e+30
  %v2497 = vsel %vm2433, %v1885, -1e+30
  %v2498 = vsel %vm2434, %v1890, -1e+30
  %v2499 = vsel %vm2435, %v1895, -1e+30
  %v2500 = vsel %vm2436, %v1900, -1e+30
  %v2501 = vsel %vm2437, %v1905, -1e+30
  %v2502 = vsel %vm2438, %v1910, -1e+30
  %v2503 = vsel %vm2439, %v1915, -1e+30
  %v2504 = vsel %vm2440, %v1920, -1e+30
  %v2505 = vsel %vm2441, %v1925, -1e+30
  %v2506 = vsel %vm2442, %v1930, -1e+30
  %v2507 = vsel %vm2443, %v1935, -1e+30
  %v2508 = vsel %vm2444, %v1940, -1e+30
  %v2509 = vsel %vm2445, %v1945, -1e+30
  %v2510 = vsel %vm2446, %v1950, -1e+30
  %v2511 = vsel %vm2447, %v1955, -1e+30
  %v2512 = vsel %vm2448, %v1960, -1e+30
  %v2513 = vsel %vm2449, %v1965, -1e+30
  %v2514 = vsel %vm2450, %v1970, -1e+30
  %v2515 = vsel %vm2451, %v1975, -1e+30
  %v2516 = vsel %vm2452, %v1980, -1e+30
  %v2517 = vsel %vm2453, %v1985, -1e+30
  %v2518 = vsel %vm2454, %v1990, -1e+30
  %v2519 = vsel %vm2455, %v1995, -1e+30
  %v2520 = vsel %vm2456, %v2000, -1e+30
  %v2521 = vsel %vm2457, %v2005, -1e+30
  %v2522 = vsel %vm2458, %v2010, -1e+30
  %v2523 = vsel %vm2459, %v2015, -1e+30
  %v2524 = vsel %vm2460, %v2020, -1e+30
  %v2525 = vsel %vm2461, %v2025, -1e+30
  %v2526 = vsel %vm2462, %v2030, -1e+30
  %v2527 = vsel %vm2463, %v2035, -1e+30
  %v2528 = vsel %vm2464, %v2040, -1e+30
  %v2529 = vsel %vm2465, %v2045, -1e+30
  %v2530 = vsel %vm2466, %v2050, -1e+30
  %v2531 = vsel %vm2467, %v2055, -1e+30
  %v2532 = vsel %vm2468, %v2060, -1e+30
  %v2533 = vsel %vm2469, %v2065, -1e+30
  %v2534 = vsel %vm2470, %v2070, -1e+30
  %v2535 = vsel %vm2471, %v2075, -1e+30
  %v2536 = vsel %vm2472, %v2080, -1e+30
  %v2537 = vsel %vm2473, %v2085, -1e+30
  %v2538 = vsel %vm2474, %v2090, -1e+30
  %v2539 = vsel %vm2475, %v2095, -1e+30
  %v2540 = vsel %vm2476, %v2100, -1e+30
  %v2541 = vsel %vm2477, %v2105, -1e+30
  %v2542 = vsel %vm2478, %v2110, -1e+30
  %v2543 = vsel %vm2479, %v2115, -1e+30
  %v2544 = vsel %vm2480, %v2120, -1e+30
  %v2545 = vsel %vm2481, %v2125, -1e+30
  %v2546 = vsel %vm2482, %v2130, -1e+30
  %v2547 = vsel %vm2483, %v2135, -1e+30
  %v2548 = vsel %vm2484, %v2140, -1e+30
  %v2549 = vsel %vm2485, %v2145, -1e+30
  %v2550 = vsel %vm2486, %v2150, -1e+30
  %v2551 = vsel %vm2487, %v2155, -1e+30
  %v2552 = vsel %vm2488, %v2160, -1e+30
  %v2553 = vsel %vm2489, %v2165, -1e+30
  %vm2554 = vcmask 48128
  %v2555 = vsel %vm2554, %v2490, -inf
  %2556 = vmax.xlane.f32.xlu0 %v2555
  %v2557 = vpop.xlane.xlu0 %2556
  %v2558 = vsel %vm2554, %v2491, -inf
  %2559 = vmax.xlane.f32.xlu0 %v2558
  %v2560 = vpop.xlane.xlu0 %2559
  %v2561 = vsel %vm2554, %v2492, -inf
  %2562 = vmax.xlane.f32.xlu0 %v2561
  %v2563 = vpop.xlane.xlu0 %2562
  %v2564 = vsel %vm2554, %v2493, -inf
  %2565 = vmax.xlane.f32.xlu0 %v2564
  %v2566 = vpop.xlane.xlu0 %2565
  %v2567 = vsel %vm2554, %v2494, -inf
  %2568 = vmax.xlane.f32.xlu0 %v2567
  %v2569 = vpop.xlane.xlu0 %2568
  %v2570 = vsel %vm2554, %v2495, -inf
  %2571 = vmax.xlane.f32.xlu0 %v2570
  %v2572 = vpop.xlane.xlu0 %2571
  %v2573 = vsel %vm2554, %v2496, -inf
  %2574 = vmax.xlane.f32.xlu0 %v2573
  %v2575 = vpop.xlane.xlu0 %2574
  %v2576 = vsel %vm2554, %v2497, -inf
  %2577 = vmax.xlane.f32.xlu0 %v2576
  %v2578 = vpop.xlane.xlu0 %2577
  %v2579 = vsel %vm2554, %v2498, -inf
  %2580 = vmax.xlane.f32.xlu0 %v2579
  %v2581 = vpop.xlane.xlu0 %2580
  %v2582 = vsel %vm2554, %v2499, -inf
  %2583 = vmax.xlane.f32.xlu0 %v2582
  %v2584 = vpop.xlane.xlu0 %2583
  %v2585 = vsel %vm2554, %v2500, -inf
  %2586 = vmax.xlane.f32.xlu0 %v2585
  %v2587 = vpop.xlane.xlu0 %2586
  %v2588 = vsel %vm2554, %v2501, -inf
  %2589 = vmax.xlane.f32.xlu0 %v2588
  %v2590 = vpop.xlane.xlu0 %2589
  %v2591 = vsel %vm2554, %v2502, -inf
  %2592 = vmax.xlane.f32.xlu0 %v2591
  %v2593 = vpop.xlane.xlu0 %2592
  %v2594 = vsel %vm2554, %v2503, -inf
  %2595 = vmax.xlane.f32.xlu0 %v2594
  %v2596 = vpop.xlane.xlu0 %2595
  %v2597 = vsel %vm2554, %v2504, -inf
  %2598 = vmax.xlane.f32.xlu0 %v2597
  %v2599 = vpop.xlane.xlu0 %2598
  %v2600 = vsel %vm2554, %v2505, -inf
  %2601 = vmax.xlane.f32.xlu0 %v2600
  %v2602 = vpop.xlane.xlu0 %2601
  %v2603 = vsel %vm2554, %v2506, -inf
  %2604 = vmax.xlane.f32.xlu0 %v2603
  %v2605 = vpop.xlane.xlu0 %2604
  %v2606 = vsel %vm2554, %v2507, -inf
  %2607 = vmax.xlane.f32.xlu0 %v2606
  %v2608 = vpop.xlane.xlu0 %2607
  %v2609 = vsel %vm2554, %v2508, -inf
  %2610 = vmax.xlane.f32.xlu0 %v2609
  %v2611 = vpop.xlane.xlu0 %2610
  %v2612 = vsel %vm2554, %v2509, -inf
  %2613 = vmax.xlane.f32.xlu0 %v2612
  %v2614 = vpop.xlane.xlu0 %2613
  %v2615 = vsel %vm2554, %v2510, -inf
  %2616 = vmax.xlane.f32.xlu0 %v2615
  %v2617 = vpop.xlane.xlu0 %2616
  %v2618 = vsel %vm2554, %v2511, -inf
  %2619 = vmax.xlane.f32.xlu0 %v2618
  %v2620 = vpop.xlane.xlu0 %2619
  %v2621 = vsel %vm2554, %v2512, -inf
  %2622 = vmax.xlane.f32.xlu0 %v2621
  %v2623 = vpop.xlane.xlu0 %2622
  %v2624 = vsel %vm2554, %v2513, -inf
  %2625 = vmax.xlane.f32.xlu0 %v2624
  %v2626 = vpop.xlane.xlu0 %2625
  %v2627 = vsel %vm2554, %v2514, -inf
  %2628 = vmax.xlane.f32.xlu0 %v2627
  %v2629 = vpop.xlane.xlu0 %2628
  %v2630 = vsel %vm2554, %v2515, -inf
  %2631 = vmax.xlane.f32.xlu0 %v2630
  %v2632 = vpop.xlane.xlu0 %2631
  %v2633 = vsel %vm2554, %v2516, -inf
  %2634 = vmax.xlane.f32.xlu0 %v2633
  %v2635 = vpop.xlane.xlu0 %2634
  %v2636 = vsel %vm2554, %v2517, -inf
  %2637 = vmax.xlane.f32.xlu0 %v2636
  %v2638 = vpop.xlane.xlu0 %2637
  %v2639 = vsel %vm2554, %v2518, -inf
  %2640 = vmax.xlane.f32.xlu0 %v2639
  %v2641 = vpop.xlane.xlu0 %2640
  %v2642 = vsel %vm2554, %v2519, -inf
  %2643 = vmax.xlane.f32.xlu0 %v2642
  %v2644 = vpop.xlane.xlu0 %2643
  %v2645 = vsel %vm2554, %v2520, -inf
  %2646 = vmax.xlane.f32.xlu0 %v2645
  %v2647 = vpop.xlane.xlu0 %2646
  %v2648 = vsel %vm2554, %v2521, -inf
  %2649 = vmax.xlane.f32.xlu0 %v2648
  %v2650 = vpop.xlane.xlu0 %2649
  %v2651 = vsel %vm2554, %v2522, -inf
  %2652 = vmax.xlane.f32.xlu0 %v2651
  %v2653 = vpop.xlane.xlu0 %2652
  %v2654 = vsel %vm2554, %v2523, -inf
  %2655 = vmax.xlane.f32.xlu0 %v2654
  %v2656 = vpop.xlane.xlu0 %2655
  %v2657 = vsel %vm2554, %v2524, -inf
  %2658 = vmax.xlane.f32.xlu0 %v2657
  %v2659 = vpop.xlane.xlu0 %2658
  %v2660 = vsel %vm2554, %v2525, -inf
  %2661 = vmax.xlane.f32.xlu0 %v2660
  %v2662 = vpop.xlane.xlu0 %2661
  %v2663 = vsel %vm2554, %v2526, -inf
  %2664 = vmax.xlane.f32.xlu0 %v2663
  %v2665 = vpop.xlane.xlu0 %2664
  %v2666 = vsel %vm2554, %v2527, -inf
  %2667 = vmax.xlane.f32.xlu0 %v2666
  %v2668 = vpop.xlane.xlu0 %2667
  %v2669 = vsel %vm2554, %v2528, -inf
  %2670 = vmax.xlane.f32.xlu0 %v2669
  %v2671 = vpop.xlane.xlu0 %2670
  %v2672 = vsel %vm2554, %v2529, -inf
  %2673 = vmax.xlane.f32.xlu0 %v2672
  %v2674 = vpop.xlane.xlu0 %2673
  %v2675 = vsel %vm2554, %v2530, -inf
  %2676 = vmax.xlane.f32.xlu0 %v2675
  %v2677 = vpop.xlane.xlu0 %2676
  %v2678 = vsel %vm2554, %v2531, -inf
  %2679 = vmax.xlane.f32.xlu0 %v2678
  %v2680 = vpop.xlane.xlu0 %2679
  %v2681 = vsel %vm2554, %v2532, -inf
  %2682 = vmax.xlane.f32.xlu0 %v2681
  %v2683 = vpop.xlane.xlu0 %2682
  %v2684 = vsel %vm2554, %v2533, -inf
  %2685 = vmax.xlane.f32.xlu0 %v2684
  %v2686 = vpop.xlane.xlu0 %2685
  %v2687 = vsel %vm2554, %v2534, -inf
  %2688 = vmax.xlane.f32.xlu0 %v2687
  %v2689 = vpop.xlane.xlu0 %2688
  %v2690 = vsel %vm2554, %v2535, -inf
  %2691 = vmax.xlane.f32.xlu0 %v2690
  %v2692 = vpop.xlane.xlu0 %2691
  %v2693 = vsel %vm2554, %v2536, -inf
  %2694 = vmax.xlane.f32.xlu0 %v2693
  %v2695 = vpop.xlane.xlu0 %2694
  %v2696 = vsel %vm2554, %v2537, -inf
  %2697 = vmax.xlane.f32.xlu0 %v2696
  %v2698 = vpop.xlane.xlu0 %2697
  %v2699 = vsel %vm2554, %v2538, -inf
  %2700 = vmax.xlane.f32.xlu0 %v2699
  %v2701 = vpop.xlane.xlu0 %2700
  %v2702 = vsel %vm2554, %v2539, -inf
  %2703 = vmax.xlane.f32.xlu0 %v2702
  %v2704 = vpop.xlane.xlu0 %2703
  %v2705 = vsel %vm2554, %v2540, -inf
  %2706 = vmax.xlane.f32.xlu0 %v2705
  %v2707 = vpop.xlane.xlu0 %2706
  %v2708 = vsel %vm2554, %v2541, -inf
  %2709 = vmax.xlane.f32.xlu0 %v2708
  %v2710 = vpop.xlane.xlu0 %2709
  %v2711 = vsel %vm2554, %v2542, -inf
  %2712 = vmax.xlane.f32.xlu0 %v2711
  %v2713 = vpop.xlane.xlu0 %2712
  %v2714 = vsel %vm2554, %v2543, -inf
  %2715 = vmax.xlane.f32.xlu0 %v2714
  %v2716 = vpop.xlane.xlu0 %2715
  %v2717 = vsel %vm2554, %v2544, -inf
  %2718 = vmax.xlane.f32.xlu0 %v2717
  %v2719 = vpop.xlane.xlu0 %2718
  %v2720 = vsel %vm2554, %v2545, -inf
  %2721 = vmax.xlane.f32.xlu0 %v2720
  %v2722 = vpop.xlane.xlu0 %2721
  %v2723 = vsel %vm2554, %v2546, -inf
  %2724 = vmax.xlane.f32.xlu0 %v2723
  %v2725 = vpop.xlane.xlu0 %2724
  %v2726 = vsel %vm2554, %v2547, -inf
  %2727 = vmax.xlane.f32.xlu0 %v2726
  %v2728 = vpop.xlane.xlu0 %2727
  %v2729 = vsel %vm2554, %v2548, -inf
  %2730 = vmax.xlane.f32.xlu0 %v2729
  %v2731 = vpop.xlane.xlu0 %2730
  %v2732 = vsel %vm2554, %v2549, -inf
  %2733 = vmax.xlane.f32.xlu0 %v2732
  %v2734 = vpop.xlane.xlu0 %2733
  %v2735 = vsel %vm2554, %v2550, -inf
  %2736 = vmax.xlane.f32.xlu0 %v2735
  %v2737 = vpop.xlane.xlu0 %2736
  %v2738 = vsel %vm2554, %v2551, -inf
  %2739 = vmax.xlane.f32.xlu0 %v2738
  %v2740 = vpop.xlane.xlu0 %2739
  %v2741 = vsel %vm2554, %v2552, -inf
  %2742 = vmax.xlane.f32.xlu0 %v2741
  %v2743 = vpop.xlane.xlu0 %2742
  %v2744 = vsel %vm2554, %v2553, -inf
  %2745 = vmax.xlane.f32.xlu0 %v2744
  %v2746 = vpop.xlane.xlu0 %2745
  %v2747 = vsub.f32 %v2490, %v2557
  %v2748 = vsub.f32 %v2491, %v2560
  %v2749 = vsub.f32 %v2492, %v2563
  %v2750 = vsub.f32 %v2493, %v2566
  %v2751 = vsub.f32 %v2494, %v2569
  %v2752 = vsub.f32 %v2495, %v2572
  %v2753 = vsub.f32 %v2496, %v2575
  %v2754 = vsub.f32 %v2497, %v2578
  %v2755 = vsub.f32 %v2498, %v2581
  %v2756 = vsub.f32 %v2499, %v2584
  %v2757 = vsub.f32 %v2500, %v2587
  %v2758 = vsub.f32 %v2501, %v2590
  %v2759 = vsub.f32 %v2502, %v2593
  %v2760 = vsub.f32 %v2503, %v2596
  %v2761 = vsub.f32 %v2504, %v2599
  %v2762 = vsub.f32 %v2505, %v2602
  %v2763 = vsub.f32 %v2506, %v2605
  %v2764 = vsub.f32 %v2507, %v2608
  %v2765 = vsub.f32 %v2508, %v2611
  %v2766 = vsub.f32 %v2509, %v2614
  %v2767 = vsub.f32 %v2510, %v2617
  %v2768 = vsub.f32 %v2511, %v2620
  %v2769 = vsub.f32 %v2512, %v2623
  %v2770 = vsub.f32 %v2513, %v2626
  %v2771 = vsub.f32 %v2514, %v2629
  %v2772 = vsub.f32 %v2515, %v2632
  %v2773 = vsub.f32 %v2516, %v2635
  %v2774 = vsub.f32 %v2517, %v2638
  %v2775 = vsub.f32 %v2518, %v2641
  %v2776 = vsub.f32 %v2519, %v2644
  %v2777 = vsub.f32 %v2520, %v2647
  %v2778 = vsub.f32 %v2521, %v2650
  %v2779 = vsub.f32 %v2522, %v2653
  %v2780 = vsub.f32 %v2523, %v2656
  %v2781 = vsub.f32 %v2524, %v2659
  %v2782 = vsub.f32 %v2525, %v2662
  %v2783 = vsub.f32 %v2526, %v2665
  %v2784 = vsub.f32 %v2527, %v2668
  %v2785 = vsub.f32 %v2528, %v2671
  %v2786 = vsub.f32 %v2529, %v2674
  %v2787 = vsub.f32 %v2530, %v2677
  %v2788 = vsub.f32 %v2531, %v2680
  %v2789 = vsub.f32 %v2532, %v2683
  %v2790 = vsub.f32 %v2533, %v2686
  %v2791 = vsub.f32 %v2534, %v2689
  %v2792 = vsub.f32 %v2535, %v2692
  %v2793 = vsub.f32 %v2536, %v2695
  %v2794 = vsub.f32 %v2537, %v2698
  %v2795 = vsub.f32 %v2538, %v2701
  %v2796 = vsub.f32 %v2539, %v2704
  %v2797 = vsub.f32 %v2540, %v2707
  %v2798 = vsub.f32 %v2541, %v2710
  %v2799 = vsub.f32 %v2542, %v2713
  %v2800 = vsub.f32 %v2543, %v2716
  %v2801 = vsub.f32 %v2544, %v2719
  %v2802 = vsub.f32 %v2545, %v2722
  %v2803 = vsub.f32 %v2546, %v2725
  %v2804 = vsub.f32 %v2547, %v2728
  %v2805 = vsub.f32 %v2548, %v2731
  %v2806 = vsub.f32 %v2549, %v2734
  %v2807 = vsub.f32 %v2550, %v2737
  %v2808 = vsub.f32 %v2551, %v2740
  %v2809 = vsub.f32 %v2552, %v2743
  %v2810 = vsub.f32 %v2553, %v2746
  %v2811 = vmul.f32 %v2747, 1.442695
  %v2812 = vpow.pop %v2811
  %v2813 = vmul.f32 %v2748, 1.442695
  %v2814 = vpow.pop %v2813
  %v2815 = vmul.f32 %v2749, 1.442695
  %v2816 = vpow.pop %v2815
  %v2817 = vmul.f32 %v2750, 1.442695
  %v2818 = vpow.pop %v2817
  %v2819 = vmul.f32 %v2751, 1.442695
  %v2820 = vpow.pop %v2819
  %v2821 = vmul.f32 %v2752, 1.442695
  %v2822 = vpow.pop %v2821
  %v2823 = vmul.f32 %v2753, 1.442695
  %v2824 = vpow.pop %v2823
  %v2825 = vmul.f32 %v2754, 1.442695
  %v2826 = vpow.pop %v2825
  %v2827 = vmul.f32 %v2755, 1.442695
  %v2828 = vpow.pop %v2827
  %v2829 = vmul.f32 %v2756, 1.442695
  %v2830 = vpow.pop %v2829
  %v2831 = vmul.f32 %v2757, 1.442695
  %v2832 = vpow.pop %v2831
  %v2833 = vmul.f32 %v2758, 1.442695
  %v2834 = vpow.pop %v2833
  %v2835 = vmul.f32 %v2759, 1.442695
  %v2836 = vpow.pop %v2835
  %v2837 = vmul.f32 %v2760, 1.442695
  %v2838 = vpow.pop %v2837
  %v2839 = vmul.f32 %v2761, 1.442695
  %v2840 = vpow.pop %v2839
  %v2841 = vmul.f32 %v2762, 1.442695
  %v2842 = vpow.pop %v2841
  %v2843 = vmul.f32 %v2763, 1.442695
  %v2844 = vpow.pop %v2843
  %v2845 = vmul.f32 %v2764, 1.442695
  %v2846 = vpow.pop %v2845
  %v2847 = vmul.f32 %v2765, 1.442695
  %v2848 = vpow.pop %v2847
  %v2849 = vmul.f32 %v2766, 1.442695
  %v2850 = vpow.pop %v2849
  %v2851 = vmul.f32 %v2767, 1.442695
  %v2852 = vpow.pop %v2851
  %v2853 = vmul.f32 %v2768, 1.442695
  %v2854 = vpow.pop %v2853
  %v2855 = vmul.f32 %v2769, 1.442695
  %v2856 = vpow.pop %v2855
  %v2857 = vmul.f32 %v2770, 1.442695
  %v2858 = vpow.pop %v2857
  %v2859 = vmul.f32 %v2771, 1.442695
  %v2860 = vpow.pop %v2859
  %v2861 = vmul.f32 %v2772, 1.442695
  %v2862 = vpow.pop %v2861
  %v2863 = vmul.f32 %v2773, 1.442695
  %v2864 = vpow.pop %v2863
  %v2865 = vmul.f32 %v2774, 1.442695
  %v2866 = vpow.pop %v2865
  %v2867 = vmul.f32 %v2775, 1.442695
  %v2868 = vpow.pop %v2867
  %v2869 = vmul.f32 %v2776, 1.442695
  %v2870 = vpow.pop %v2869
  %v2871 = vmul.f32 %v2777, 1.442695
  %v2872 = vpow.pop %v2871
  %v2873 = vmul.f32 %v2778, 1.442695
  %v2874 = vpow.pop %v2873
  %v2875 = vmul.f32 %v2779, 1.442695
  %v2876 = vpow.pop %v2875
  %v2877 = vmul.f32 %v2780, 1.442695
  %v2878 = vpow.pop %v2877
  %v2879 = vmul.f32 %v2781, 1.442695
  %v2880 = vpow.pop %v2879
  %v2881 = vmul.f32 %v2782, 1.442695
  %v2882 = vpow.pop %v2881
  %v2883 = vmul.f32 %v2783, 1.442695
  %v2884 = vpow.pop %v2883
  %v2885 = vmul.f32 %v2784, 1.442695
  %v2886 = vpow.pop %v2885
  %v2887 = vmul.f32 %v2785, 1.442695
  %v2888 = vpow.pop %v2887
  %v2889 = vmul.f32 %v2786, 1.442695
  %v2890 = vpow.pop %v2889
  %v2891 = vmul.f32 %v2787, 1.442695
  %v2892 = vpow.pop %v2891
  %v2893 = vmul.f32 %v2788, 1.442695
  %v2894 = vpow.pop %v2893
  %v2895 = vmul.f32 %v2789, 1.442695
  %v2896 = vpow.pop %v2895
  %v2897 = vmul.f32 %v2790, 1.442695
  %v2898 = vpow.pop %v2897
  %v2899 = vmul.f32 %v2791, 1.442695
  %v2900 = vpow.pop %v2899
  %v2901 = vmul.f32 %v2792, 1.442695
  %v2902 = vpow.pop %v2901
  %v2903 = vmul.f32 %v2793, 1.442695
  %v2904 = vpow.pop %v2903
  %v2905 = vmul.f32 %v2794, 1.442695
  %v2906 = vpow.pop %v2905
  %v2907 = vmul.f32 %v2795, 1.442695
  %v2908 = vpow.pop %v2907
  %v2909 = vmul.f32 %v2796, 1.442695
  %v2910 = vpow.pop %v2909
  %v2911 = vmul.f32 %v2797, 1.442695
  %v2912 = vpow.pop %v2911
  %v2913 = vmul.f32 %v2798, 1.442695
  %v2914 = vpow.pop %v2913
  %v2915 = vmul.f32 %v2799, 1.442695
  %v2916 = vpow.pop %v2915
  %v2917 = vmul.f32 %v2800, 1.442695
  %v2918 = vpow.pop %v2917
  %v2919 = vmul.f32 %v2801, 1.442695
  %v2920 = vpow.pop %v2919
  %v2921 = vmul.f32 %v2802, 1.442695
  %v2922 = vpow.pop %v2921
  %v2923 = vmul.f32 %v2803, 1.442695
  %v2924 = vpow.pop %v2923
  %v2925 = vmul.f32 %v2804, 1.442695
  %v2926 = vpow.pop %v2925
  %v2927 = vmul.f32 %v2805, 1.442695
  %v2928 = vpow.pop %v2927
  %v2929 = vmul.f32 %v2806, 1.442695
  %v2930 = vpow.pop %v2929
  %v2931 = vmul.f32 %v2807, 1.442695
  %v2932 = vpow.pop %v2931
  %v2933 = vmul.f32 %v2808, 1.442695
  %v2934 = vpow.pop %v2933
  %v2935 = vmul.f32 %v2809, 1.442695
  %v2936 = vpow.pop %v2935
  %v2937 = vmul.f32 %v2810, 1.442695
  %v2938 = vpow.pop %v2937
  %v2939 = vsel %vm2426, 1, 0
  %v2940 = vsel %vm2427, 1, 0
  %v2941 = vsel %vm2428, 1, 0
  %v2942 = vsel %vm2429, 1, 0
  %v2943 = vsel %vm2430, 1, 0
  %v2944 = vsel %vm2431, 1, 0
  %v2945 = vsel %vm2432, 1, 0
  %v2946 = vsel %vm2433, 1, 0
  %v2947 = vsel %vm2434, 1, 0
  %v2948 = vsel %vm2435, 1, 0
  %v2949 = vsel %vm2436, 1, 0
  %v2950 = vsel %vm2437, 1, 0
  %v2951 = vsel %vm2438, 1, 0
  %v2952 = vsel %vm2439, 1, 0
  %v2953 = vsel %vm2440, 1, 0
  %v2954 = vsel %vm2441, 1, 0
  %v2955 = vsel %vm2442, 1, 0
  %v2956 = vsel %vm2443, 1, 0
  %v2957 = vsel %vm2444, 1, 0
  %v2958 = vsel %vm2445, 1, 0
  %v2959 = vsel %vm2446, 1, 0
  %v2960 = vsel %vm2447, 1, 0
  %v2961 = vsel %vm2448, 1, 0
  %v2962 = vsel %vm2449, 1, 0
  %v2963 = vsel %vm2450, 1, 0
  %v2964 = vsel %vm2451, 1, 0
  %v2965 = vsel %vm2452, 1, 0
  %v2966 = vsel %vm2453, 1, 0
  %v2967 = vsel %vm2454, 1, 0
  %v2968 = vsel %vm2455, 1, 0
  %v2969 = vsel %vm2456, 1, 0
  %v2970 = vsel %vm2457, 1, 0
  %v2971 = vsel %vm2458, 1, 0
  %v2972 = vsel %vm2459, 1, 0
  %v2973 = vsel %vm2460, 1, 0
  %v2974 = vsel %vm2461, 1, 0
  %v2975 = vsel %vm2462, 1, 0
  %v2976 = vsel %vm2463, 1, 0
  %v2977 = vsel %vm2464, 1, 0
  %v2978 = vsel %vm2465, 1, 0
  %v2979 = vsel %vm2466, 1, 0
  %v2980 = vsel %vm2467, 1, 0
  %v2981 = vsel %vm2468, 1, 0
  %v2982 = vsel %vm2469, 1, 0
  %v2983 = vsel %vm2470, 1, 0
  %v2984 = vsel %vm2471, 1, 0
  %v2985 = vsel %vm2472, 1, 0
  %v2986 = vsel %vm2473, 1, 0
  %v2987 = vsel %vm2474, 1, 0
  %v2988 = vsel %vm2475, 1, 0
  %v2989 = vsel %vm2476, 1, 0
  %v2990 = vsel %vm2477, 1, 0
  %v2991 = vsel %vm2478, 1, 0
  %v2992 = vsel %vm2479, 1, 0
  %v2993 = vsel %vm2480, 1, 0
  %v2994 = vsel %vm2481, 1, 0
  %v2995 = vsel %vm2482, 1, 0
  %v2996 = vsel %vm2483, 1, 0
  %v2997 = vsel %vm2484, 1, 0
  %v2998 = vsel %vm2485, 1, 0
  %v2999 = vsel %vm2486, 1, 0
  %v3000 = vsel %vm2487, 1, 0
  %v3001 = vsel %vm2488, 1, 0
  %v3002 = vsel %vm2489, 1, 0
  %v3003 = vcvt.s32.f32 %v2939
  %v3004 = vcvt.s32.f32 %v2940
  %v3005 = vcvt.s32.f32 %v2941
  %v3006 = vcvt.s32.f32 %v2942
  %v3007 = vcvt.s32.f32 %v2943
  %v3008 = vcvt.s32.f32 %v2944
  %v3009 = vcvt.s32.f32 %v2945
  %v3010 = vcvt.s32.f32 %v2946
  %v3011 = vcvt.s32.f32 %v2947
  %v3012 = vcvt.s32.f32 %v2948
  %v3013 = vcvt.s32.f32 %v2949
  %v3014 = vcvt.s32.f32 %v2950
  %v3015 = vcvt.s32.f32 %v2951
  %v3016 = vcvt.s32.f32 %v2952
  %v3017 = vcvt.s32.f32 %v2953
  %v3018 = vcvt.s32.f32 %v2954
  %v3019 = vcvt.s32.f32 %v2955
  %v3020 = vcvt.s32.f32 %v2956
  %v3021 = vcvt.s32.f32 %v2957
  %v3022 = vcvt.s32.f32 %v2958
  %v3023 = vcvt.s32.f32 %v2959
  %v3024 = vcvt.s32.f32 %v2960
  %v3025 = vcvt.s32.f32 %v2961
  %v3026 = vcvt.s32.f32 %v2962
  %v3027 = vcvt.s32.f32 %v2963
  %v3028 = vcvt.s32.f32 %v2964
  %v3029 = vcvt.s32.f32 %v2965
  %v3030 = vcvt.s32.f32 %v2966
  %v3031 = vcvt.s32.f32 %v2967
  %v3032 = vcvt.s32.f32 %v2968
  %v3033 = vcvt.s32.f32 %v2969
  %v3034 = vcvt.s32.f32 %v2970
  %v3035 = vcvt.s32.f32 %v2971
  %v3036 = vcvt.s32.f32 %v2972
  %v3037 = vcvt.s32.f32 %v2973
  %v3038 = vcvt.s32.f32 %v2974
  %v3039 = vcvt.s32.f32 %v2975
  %v3040 = vcvt.s32.f32 %v2976
  %v3041 = vcvt.s32.f32 %v2977
  %v3042 = vcvt.s32.f32 %v2978
  %v3043 = vcvt.s32.f32 %v2979
  %v3044 = vcvt.s32.f32 %v2980
  %v3045 = vcvt.s32.f32 %v2981
  %v3046 = vcvt.s32.f32 %v2982
  %v3047 = vcvt.s32.f32 %v2983
  %v3048 = vcvt.s32.f32 %v2984
  %v3049 = vcvt.s32.f32 %v2985
  %v3050 = vcvt.s32.f32 %v2986
  %v3051 = vcvt.s32.f32 %v2987
  %v3052 = vcvt.s32.f32 %v2988
  %v3053 = vcvt.s32.f32 %v2989
  %v3054 = vcvt.s32.f32 %v2990
  %v3055 = vcvt.s32.f32 %v2991
  %v3056 = vcvt.s32.f32 %v2992
  %v3057 = vcvt.s32.f32 %v2993
  %v3058 = vcvt.s32.f32 %v2994
  %v3059 = vcvt.s32.f32 %v2995
  %v3060 = vcvt.s32.f32 %v2996
  %v3061 = vcvt.s32.f32 %v2997
  %v3062 = vcvt.s32.f32 %v2998
  %v3063 = vcvt.s32.f32 %v2999
  %v3064 = vcvt.s32.f32 %v3000
  %v3065 = vcvt.s32.f32 %v3001
  %v3066 = vcvt.s32.f32 %v3002
  %v3067 = vmul.f32 %v2812, %v3003
  %v3068 = vmul.f32 %v2814, %v3004
  %v3069 = vmul.f32 %v2816, %v3005
  %v3070 = vmul.f32 %v2818, %v3006
  %v3071 = vmul.f32 %v2820, %v3007
  %v3072 = vmul.f32 %v2822, %v3008
  %v3073 = vmul.f32 %v2824, %v3009
  %v3074 = vmul.f32 %v2826, %v3010
  %v3075 = vmul.f32 %v2828, %v3011
  %v3076 = vmul.f32 %v2830, %v3012
  %v3077 = vmul.f32 %v2832, %v3013
  %v3078 = vmul.f32 %v2834, %v3014
  %v3079 = vmul.f32 %v2836, %v3015
  %v3080 = vmul.f32 %v2838, %v3016
  %v3081 = vmul.f32 %v2840, %v3017
  %v3082 = vmul.f32 %v2842, %v3018
  %v3083 = vmul.f32 %v2844, %v3019
  %v3084 = vmul.f32 %v2846, %v3020
  %v3085 = vmul.f32 %v2848, %v3021
  %v3086 = vmul.f32 %v2850, %v3022
  %v3087 = vmul.f32 %v2852, %v3023
  %v3088 = vmul.f32 %v2854, %v3024
  %v3089 = vmul.f32 %v2856, %v3025
  %v3090 = vmul.f32 %v2858, %v3026
  %v3091 = vmul.f32 %v2860, %v3027
  %v3092 = vmul.f32 %v2862, %v3028
  %v3093 = vmul.f32 %v2864, %v3029
  %v3094 = vmul.f32 %v2866, %v3030
  %v3095 = vmul.f32 %v2868, %v3031
  %v3096 = vmul.f32 %v2870, %v3032
  %v3097 = vmul.f32 %v2872, %v3033
  %v3098 = vmul.f32 %v2874, %v3034
  %v3099 = vmul.f32 %v2876, %v3035
  %v3100 = vmul.f32 %v2878, %v3036
  %v3101 = vmul.f32 %v2880, %v3037
  %v3102 = vmul.f32 %v2882, %v3038
  %v3103 = vmul.f32 %v2884, %v3039
  %v3104 = vmul.f32 %v2886, %v3040
  %v3105 = vmul.f32 %v2888, %v3041
  %v3106 = vmul.f32 %v2890, %v3042
  %v3107 = vmul.f32 %v2892, %v3043
  %v3108 = vmul.f32 %v2894, %v3044
  %v3109 = vmul.f32 %v2896, %v3045
  %v3110 = vmul.f32 %v2898, %v3046
  %v3111 = vmul.f32 %v2900, %v3047
  %v3112 = vmul.f32 %v2902, %v3048
  %v3113 = vmul.f32 %v2904, %v3049
  %v3114 = vmul.f32 %v2906, %v3050
  %v3115 = vmul.f32 %v2908, %v3051
  %v3116 = vmul.f32 %v2910, %v3052
  %v3117 = vmul.f32 %v2912, %v3053
  %v3118 = vmul.f32 %v2914, %v3054
  %v3119 = vmul.f32 %v2916, %v3055
  %v3120 = vmul.f32 %v2918, %v3056
  %v3121 = vmul.f32 %v2920, %v3057
  %v3122 = vmul.f32 %v2922, %v3058
  %v3123 = vmul.f32 %v2924, %v3059
  %v3124 = vmul.f32 %v2926, %v3060
  %v3125 = vmul.f32 %v2928, %v3061
  %v3126 = vmul.f32 %v2930, %v3062
  %v3127 = vmul.f32 %v2932, %v3063
  %v3128 = vmul.f32 %v2934, %v3064
  %v3129 = vmul.f32 %v2936, %v3065
  %v3130 = vmul.f32 %v2938, %v3066
  %v3131 = vsel %vm2554, %v3067, 0.0
  %3132 = vadd.xlane.f32.xlu0 %v3131
  %v3133 = vpop.xlane.xlu0 %3132
  %v3134 = vsel %vm2554, %v3068, 0.0
  %3135 = vadd.xlane.f32.xlu0 %v3134
  %v3136 = vpop.xlane.xlu0 %3135
  %v3137 = vsel %vm2554, %v3069, 0.0
  %3138 = vadd.xlane.f32.xlu0 %v3137
  %v3139 = vpop.xlane.xlu0 %3138
  %v3140 = vsel %vm2554, %v3070, 0.0
  %3141 = vadd.xlane.f32.xlu0 %v3140
  %v3142 = vpop.xlane.xlu0 %3141
  %v3143 = vsel %vm2554, %v3071, 0.0
  %3144 = vadd.xlane.f32.xlu0 %v3143
  %v3145 = vpop.xlane.xlu0 %3144
  %v3146 = vsel %vm2554, %v3072, 0.0
  %3147 = vadd.xlane.f32.xlu0 %v3146
  %v3148 = vpop.xlane.xlu0 %3147
  %v3149 = vsel %vm2554, %v3073, 0.0
  %3150 = vadd.xlane.f32.xlu0 %v3149
  %v3151 = vpop.xlane.xlu0 %3150
  %v3152 = vsel %vm2554, %v3074, 0.0
  %3153 = vadd.xlane.f32.xlu0 %v3152
  %v3154 = vpop.xlane.xlu0 %3153
  %v3155 = vsel %vm2554, %v3075, 0.0
  %3156 = vadd.xlane.f32.xlu0 %v3155
  %v3157 = vpop.xlane.xlu0 %3156
  %v3158 = vsel %vm2554, %v3076, 0.0
  %3159 = vadd.xlane.f32.xlu0 %v3158
  %v3160 = vpop.xlane.xlu0 %3159
  %v3161 = vsel %vm2554, %v3077, 0.0
  %3162 = vadd.xlane.f32.xlu0 %v3161
  %v3163 = vpop.xlane.xlu0 %3162
  %v3164 = vsel %vm2554, %v3078, 0.0
  %3165 = vadd.xlane.f32.xlu0 %v3164
  %v3166 = vpop.xlane.xlu0 %3165
  %v3167 = vsel %vm2554, %v3079, 0.0
  %3168 = vadd.xlane.f32.xlu0 %v3167
  %v3169 = vpop.xlane.xlu0 %3168
  %v3170 = vsel %vm2554, %v3080, 0.0
  %3171 = vadd.xlane.f32.xlu0 %v3170
  %v3172 = vpop.xlane.xlu0 %3171
  %v3173 = vsel %vm2554, %v3081, 0.0
  %3174 = vadd.xlane.f32.xlu0 %v3173
  %v3175 = vpop.xlane.xlu0 %3174
  %v3176 = vsel %vm2554, %v3082, 0.0
  %3177 = vadd.xlane.f32.xlu0 %v3176
  %v3178 = vpop.xlane.xlu0 %3177
  %v3179 = vsel %vm2554, %v3083, 0.0
  %3180 = vadd.xlane.f32.xlu0 %v3179
  %v3181 = vpop.xlane.xlu0 %3180
  %v3182 = vsel %vm2554, %v3084, 0.0
  %3183 = vadd.xlane.f32.xlu0 %v3182
  %v3184 = vpop.xlane.xlu0 %3183
  %v3185 = vsel %vm2554, %v3085, 0.0
  %3186 = vadd.xlane.f32.xlu0 %v3185
  %v3187 = vpop.xlane.xlu0 %3186
  %v3188 = vsel %vm2554, %v3086, 0.0
  %3189 = vadd.xlane.f32.xlu0 %v3188
  %v3190 = vpop.xlane.xlu0 %3189
  %v3191 = vsel %vm2554, %v3087, 0.0
  %3192 = vadd.xlane.f32.xlu0 %v3191
  %v3193 = vpop.xlane.xlu0 %3192
  %v3194 = vsel %vm2554, %v3088, 0.0
  %3195 = vadd.xlane.f32.xlu0 %v3194
  %v3196 = vpop.xlane.xlu0 %3195
  %v3197 = vsel %vm2554, %v3089, 0.0
  %3198 = vadd.xlane.f32.xlu0 %v3197
  %v3199 = vpop.xlane.xlu0 %3198
  %v3200 = vsel %vm2554, %v3090, 0.0
  %3201 = vadd.xlane.f32.xlu0 %v3200
  %v3202 = vpop.xlane.xlu0 %3201
  %v3203 = vsel %vm2554, %v3091, 0.0
  %3204 = vadd.xlane.f32.xlu0 %v3203
  %v3205 = vpop.xlane.xlu0 %3204
  %v3206 = vsel %vm2554, %v3092, 0.0
  %3207 = vadd.xlane.f32.xlu0 %v3206
  %v3208 = vpop.xlane.xlu0 %3207
  %v3209 = vsel %vm2554, %v3093, 0.0
  %3210 = vadd.xlane.f32.xlu0 %v3209
  %v3211 = vpop.xlane.xlu0 %3210
  %v3212 = vsel %vm2554, %v3094, 0.0
  %3213 = vadd.xlane.f32.xlu0 %v3212
  %v3214 = vpop.xlane.xlu0 %3213
  %v3215 = vsel %vm2554, %v3095, 0.0
  %3216 = vadd.xlane.f32.xlu0 %v3215
  %v3217 = vpop.xlane.xlu0 %3216
  %v3218 = vsel %vm2554, %v3096, 0.0
  %3219 = vadd.xlane.f32.xlu0 %v3218
  %v3220 = vpop.xlane.xlu0 %3219
  %v3221 = vsel %vm2554, %v3097, 0.0
  %3222 = vadd.xlane.f32.xlu0 %v3221
  %v3223 = vpop.xlane.xlu0 %3222
  %v3224 = vsel %vm2554, %v3098, 0.0
  %3225 = vadd.xlane.f32.xlu0 %v3224
  %v3226 = vpop.xlane.xlu0 %3225
  %v3227 = vsel %vm2554, %v3099, 0.0
  %3228 = vadd.xlane.f32.xlu0 %v3227
  %v3229 = vpop.xlane.xlu0 %3228
  %v3230 = vsel %vm2554, %v3100, 0.0
  %3231 = vadd.xlane.f32.xlu0 %v3230
  %v3232 = vpop.xlane.xlu0 %3231
  %v3233 = vsel %vm2554, %v3101, 0.0
  %3234 = vadd.xlane.f32.xlu0 %v3233
  %v3235 = vpop.xlane.xlu0 %3234
  %v3236 = vsel %vm2554, %v3102, 0.0
  %3237 = vadd.xlane.f32.xlu0 %v3236
  %v3238 = vpop.xlane.xlu0 %3237
  %v3239 = vsel %vm2554, %v3103, 0.0
  %3240 = vadd.xlane.f32.xlu0 %v3239
  %v3241 = vpop.xlane.xlu0 %3240
  %v3242 = vsel %vm2554, %v3104, 0.0
  %3243 = vadd.xlane.f32.xlu0 %v3242
  %v3244 = vpop.xlane.xlu0 %3243
  %v3245 = vsel %vm2554, %v3105, 0.0
  %3246 = vadd.xlane.f32.xlu0 %v3245
  %v3247 = vpop.xlane.xlu0 %3246
  %v3248 = vsel %vm2554, %v3106, 0.0
  %3249 = vadd.xlane.f32.xlu0 %v3248
  %v3250 = vpop.xlane.xlu0 %3249
  %v3251 = vsel %vm2554, %v3107, 0.0
  %3252 = vadd.xlane.f32.xlu0 %v3251
  %v3253 = vpop.xlane.xlu0 %3252
  %v3254 = vsel %vm2554, %v3108, 0.0
  %3255 = vadd.xlane.f32.xlu0 %v3254
  %v3256 = vpop.xlane.xlu0 %3255
  %v3257 = vsel %vm2554, %v3109, 0.0
  %3258 = vadd.xlane.f32.xlu0 %v3257
  %v3259 = vpop.xlane.xlu0 %3258
  %v3260 = vsel %vm2554, %v3110, 0.0
  %3261 = vadd.xlane.f32.xlu0 %v3260
  %v3262 = vpop.xlane.xlu0 %3261
  %v3263 = vsel %vm2554, %v3111, 0.0
  %3264 = vadd.xlane.f32.xlu0 %v3263
  %v3265 = vpop.xlane.xlu0 %3264
  %v3266 = vsel %vm2554, %v3112, 0.0
  %3267 = vadd.xlane.f32.xlu0 %v3266
  %v3268 = vpop.xlane.xlu0 %3267
  %v3269 = vsel %vm2554, %v3113, 0.0
  %3270 = vadd.xlane.f32.xlu0 %v3269
  %v3271 = vpop.xlane.xlu0 %3270
  %v3272 = vsel %vm2554, %v3114, 0.0
  %3273 = vadd.xlane.f32.xlu0 %v3272
  %v3274 = vpop.xlane.xlu0 %3273
  %v3275 = vsel %vm2554, %v3115, 0.0
  %3276 = vadd.xlane.f32.xlu0 %v3275
  %v3277 = vpop.xlane.xlu0 %3276
  %v3278 = vsel %vm2554, %v3116, 0.0
  %3279 = vadd.xlane.f32.xlu0 %v3278
  %v3280 = vpop.xlane.xlu0 %3279
  %v3281 = vsel %vm2554, %v3117, 0.0
  %3282 = vadd.xlane.f32.xlu0 %v3281
  %v3283 = vpop.xlane.xlu0 %3282
  %v3284 = vsel %vm2554, %v3118, 0.0
  %3285 = vadd.xlane.f32.xlu0 %v3284
  %v3286 = vpop.xlane.xlu0 %3285
  %v3287 = vsel %vm2554, %v3119, 0.0
  %3288 = vadd.xlane.f32.xlu0 %v3287
  %v3289 = vpop.xlane.xlu0 %3288
  %v3290 = vsel %vm2554, %v3120, 0.0
  %3291 = vadd.xlane.f32.xlu0 %v3290
  %v3292 = vpop.xlane.xlu0 %3291
  %v3293 = vsel %vm2554, %v3121, 0.0
  %3294 = vadd.xlane.f32.xlu0 %v3293
  %v3295 = vpop.xlane.xlu0 %3294
  %v3296 = vsel %vm2554, %v3122, 0.0
  %3297 = vadd.xlane.f32.xlu0 %v3296
  %v3298 = vpop.xlane.xlu0 %3297
  %v3299 = vsel %vm2554, %v3123, 0.0
  %3300 = vadd.xlane.f32.xlu0 %v3299
  %v3301 = vpop.xlane.xlu0 %3300
  %v3302 = vsel %vm2554, %v3124, 0.0
  %3303 = vadd.xlane.f32.xlu0 %v3302
  %v3304 = vpop.xlane.xlu0 %3303
  %v3305 = vsel %vm2554, %v3125, 0.0
  %3306 = vadd.xlane.f32.xlu0 %v3305
  %v3307 = vpop.xlane.xlu0 %3306
  %v3308 = vsel %vm2554, %v3126, 0.0
  %3309 = vadd.xlane.f32.xlu0 %v3308
  %v3310 = vpop.xlane.xlu0 %3309
  %v3311 = vsel %vm2554, %v3127, 0.0
  %3312 = vadd.xlane.f32.xlu0 %v3311
  %v3313 = vpop.xlane.xlu0 %3312
  %v3314 = vsel %vm2554, %v3128, 0.0
  %3315 = vadd.xlane.f32.xlu0 %v3314
  %v3316 = vpop.xlane.xlu0 %3315
  %v3317 = vsel %vm2554, %v3129, 0.0
  %3318 = vadd.xlane.f32.xlu0 %v3317
  %v3319 = vpop.xlane.xlu0 %3318
  %v3320 = vsel %vm2554, %v3130, 0.0
  %3321 = vadd.xlane.f32.xlu0 %v3320
  %v3322 = vpop.xlane.xlu0 %3321
  %v3323 = vrcp.pop %v3133
  %v3324 = vrcp.pop %v3136
  %v3325 = vrcp.pop %v3139
  %v3326 = vrcp.pop %v3142
  %v3327 = vrcp.pop %v3145
  %v3328 = vrcp.pop %v3148
  %v3329 = vrcp.pop %v3151
  %v3330 = vrcp.pop %v3154
  %v3331 = vrcp.pop %v3157
  %v3332 = vrcp.pop %v3160
  %v3333 = vrcp.pop %v3163
  %v3334 = vrcp.pop %v3166
  %v3335 = vrcp.pop %v3169
  %v3336 = vrcp.pop %v3172
  %v3337 = vrcp.pop %v3175
  %v3338 = vrcp.pop %v3178
  %v3339 = vrcp.pop %v3181
  %v3340 = vrcp.pop %v3184
  %v3341 = vrcp.pop %v3187
  %v3342 = vrcp.pop %v3190
  %v3343 = vrcp.pop %v3193
  %v3344 = vrcp.pop %v3196
  %v3345 = vrcp.pop %v3199
  %v3346 = vrcp.pop %v3202
  %v3347 = vrcp.pop %v3205
  %v3348 = vrcp.pop %v3208
  %v3349 = vrcp.pop %v3211
  %v3350 = vrcp.pop %v3214
  %v3351 = vrcp.pop %v3217
  %v3352 = vrcp.pop %v3220
  %v3353 = vrcp.pop %v3223
  %v3354 = vrcp.pop %v3226
  %v3355 = vrcp.pop %v3229
  %v3356 = vrcp.pop %v3232
  %v3357 = vrcp.pop %v3235
  %v3358 = vrcp.pop %v3238
  %v3359 = vrcp.pop %v3241
  %v3360 = vrcp.pop %v3244
  %v3361 = vrcp.pop %v3247
  %v3362 = vrcp.pop %v3250
  %v3363 = vrcp.pop %v3253
  %v3364 = vrcp.pop %v3256
  %v3365 = vrcp.pop %v3259
  %v3366 = vrcp.pop %v3262
  %v3367 = vrcp.pop %v3265
  %v3368 = vrcp.pop %v3268
  %v3369 = vrcp.pop %v3271
  %v3370 = vrcp.pop %v3274
  %v3371 = vrcp.pop %v3277
  %v3372 = vrcp.pop %v3280
  %v3373 = vrcp.pop %v3283
  %v3374 = vrcp.pop %v3286
  %v3375 = vrcp.pop %v3289
  %v3376 = vrcp.pop %v3292
  %v3377 = vrcp.pop %v3295
  %v3378 = vrcp.pop %v3298
  %v3379 = vrcp.pop %v3301
  %v3380 = vrcp.pop %v3304
  %v3381 = vrcp.pop %v3307
  %v3382 = vrcp.pop %v3310
  %v3383 = vrcp.pop %v3313
  %v3384 = vrcp.pop %v3316
  %v3385 = vrcp.pop %v3319
  %v3386 = vrcp.pop %v3322
  %v3387 = vmul.f32 %v3067, %v3323
  %v3388 = vmul.f32 %v3068, %v3324
  %v3389 = vmul.f32 %v3069, %v3325
  %v3390 = vmul.f32 %v3070, %v3326
  %v3391 = vmul.f32 %v3071, %v3327
  %v3392 = vmul.f32 %v3072, %v3328
  %v3393 = vmul.f32 %v3073, %v3329
  %v3394 = vmul.f32 %v3074, %v3330
  %v3395 = vmul.f32 %v3075, %v3331
  %v3396 = vmul.f32 %v3076, %v3332
  %v3397 = vmul.f32 %v3077, %v3333
  %v3398 = vmul.f32 %v3078, %v3334
  %v3399 = vmul.f32 %v3079, %v3335
  %v3400 = vmul.f32 %v3080, %v3336
  %v3401 = vmul.f32 %v3081, %v3337
  %v3402 = vmul.f32 %v3082, %v3338
  %v3403 = vmul.f32 %v3083, %v3339
  %v3404 = vmul.f32 %v3084, %v3340
  %v3405 = vmul.f32 %v3085, %v3341
  %v3406 = vmul.f32 %v3086, %v3342
  %v3407 = vmul.f32 %v3087, %v3343
  %v3408 = vmul.f32 %v3088, %v3344
  %v3409 = vmul.f32 %v3089, %v3345
  %v3410 = vmul.f32 %v3090, %v3346
  %v3411 = vmul.f32 %v3091, %v3347
  %v3412 = vmul.f32 %v3092, %v3348
  %v3413 = vmul.f32 %v3093, %v3349
  %v3414 = vmul.f32 %v3094, %v3350
  %v3415 = vmul.f32 %v3095, %v3351
  %v3416 = vmul.f32 %v3096, %v3352
  %v3417 = vmul.f32 %v3097, %v3353
  %v3418 = vmul.f32 %v3098, %v3354
  %v3419 = vmul.f32 %v3099, %v3355
  %v3420 = vmul.f32 %v3100, %v3356
  %v3421 = vmul.f32 %v3101, %v3357
  %v3422 = vmul.f32 %v3102, %v3358
  %v3423 = vmul.f32 %v3103, %v3359
  %v3424 = vmul.f32 %v3104, %v3360
  %v3425 = vmul.f32 %v3105, %v3361
  %v3426 = vmul.f32 %v3106, %v3362
  %v3427 = vmul.f32 %v3107, %v3363
  %v3428 = vmul.f32 %v3108, %v3364
  %v3429 = vmul.f32 %v3109, %v3365
  %v3430 = vmul.f32 %v3110, %v3366
  %v3431 = vmul.f32 %v3111, %v3367
  %v3432 = vmul.f32 %v3112, %v3368
  %v3433 = vmul.f32 %v3113, %v3369
  %v3434 = vmul.f32 %v3114, %v3370
  %v3435 = vmul.f32 %v3115, %v3371
  %v3436 = vmul.f32 %v3116, %v3372
  %v3437 = vmul.f32 %v3117, %v3373
  %v3438 = vmul.f32 %v3118, %v3374
  %v3439 = vmul.f32 %v3119, %v3375
  %v3440 = vmul.f32 %v3120, %v3376
  %v3441 = vmul.f32 %v3121, %v3377
  %v3442 = vmul.f32 %v3122, %v3378
  %v3443 = vmul.f32 %v3123, %v3379
  %v3444 = vmul.f32 %v3124, %v3380
  %v3445 = vmul.f32 %v3125, %v3381
  %v3446 = vmul.f32 %v3126, %v3382
  %v3447 = vmul.f32 %v3127, %v3383
  %v3448 = vmul.f32 %v3128, %v3384
  %v3449 = vmul.f32 %v3129, %v3385
  %v3450 = vmul.f32 %v3130, %v3386
  %v3451 = vld [vmem:[%s8] sm:$0x3f]
  %v3452 = vld [vmem:[%s8 + $0x8] sm:$0x3f]
  %v3454 = vsel %vm2554, %v3387, 0
  %v3457 = vsel %vm2554, %v3388, 0
  %v3460 = vsel %vm2554, %v3389, 0
  %v3463 = vsel %vm2554, %v3390, 0
  %v3466 = vsel %vm2554, %v3391, 0
  %v3469 = vsel %vm2554, %v3392, 0
  %v3472 = vsel %vm2554, %v3393, 0
  %v3475 = vsel %vm2554, %v3394, 0
  %v3478 = vsel %vm2554, %v3395, 0
  %v3481 = vsel %vm2554, %v3396, 0
  %v3484 = vsel %vm2554, %v3397, 0
  %v3487 = vsel %vm2554, %v3398, 0
  %v3490 = vsel %vm2554, %v3399, 0
  %v3493 = vsel %vm2554, %v3400, 0
  %v3496 = vsel %vm2554, %v3401, 0
  %v3499 = vsel %vm2554, %v3402, 0
  %v3502 = vsel %vm2554, %v3403, 0
  %v3505 = vsel %vm2554, %v3404, 0
  %v3508 = vsel %vm2554, %v3405, 0
  %v3511 = vsel %vm2554, %v3406, 0
  %v3514 = vsel %vm2554, %v3407, 0
  %v3517 = vsel %vm2554, %v3408, 0
  %v3520 = vsel %vm2554, %v3409, 0
  %v3523 = vsel %vm2554, %v3410, 0
  %v3526 = vsel %vm2554, %v3411, 0
  %v3529 = vsel %vm2554, %v3412, 0
  %v3532 = vsel %vm2554, %v3413, 0
  %v3535 = vsel %vm2554, %v3414, 0
  %v3538 = vsel %vm2554, %v3415, 0
  %v3541 = vsel %vm2554, %v3416, 0
  %v3544 = vsel %vm2554, %v3417, 0
  %v3547 = vsel %vm2554, %v3418, 0
  %v3550 = vsel %vm2554, %v3419, 0
  %v3553 = vsel %vm2554, %v3420, 0
  %v3556 = vsel %vm2554, %v3421, 0
  %v3559 = vsel %vm2554, %v3422, 0
  %v3562 = vsel %vm2554, %v3423, 0
  %v3565 = vsel %vm2554, %v3424, 0
  %v3568 = vsel %vm2554, %v3425, 0
  %v3571 = vsel %vm2554, %v3426, 0
  %v3574 = vsel %vm2554, %v3427, 0
  %v3577 = vsel %vm2554, %v3428, 0
  %v3580 = vsel %vm2554, %v3429, 0
  %v3583 = vsel %vm2554, %v3430, 0
  %v3586 = vsel %vm2554, %v3431, 0
  %v3589 = vsel %vm2554, %v3432, 0
  %v3592 = vsel %vm2554, %v3433, 0
  %v3595 = vsel %vm2554, %v3434, 0
  %v3598 = vsel %vm2554, %v3435, 0
  %v3601 = vsel %vm2554, %v3436, 0
  %v3604 = vsel %vm2554, %v3437, 0
  %v3607 = vsel %vm2554, %v3438, 0
  %v3610 = vsel %vm2554, %v3439, 0
  %v3613 = vsel %vm2554, %v3440, 0
  %v3616 = vsel %vm2554, %v3441, 0
  %v3619 = vsel %vm2554, %v3442, 0
  %v3622 = vsel %vm2554, %v3443, 0
  %v3625 = vsel %vm2554, %v3444, 0
  %v3628 = vsel %vm2554, %v3445, 0
  %v3631 = vsel %vm2554, %v3446, 0
  %v3634 = vsel %vm2554, %v3447, 0
  %v3637 = vsel %vm2554, %v3448, 0
  %v3640 = vsel %vm2554, %v3449, 0
  %v3643 = vsel %vm2554, %v3450, 0
  %vm3645 = vcmask 1045504
  %v3647 = vsel %vm3645, %v3451, 0
  %v3650 = vsel %vm3645, %v3452, 0
  %3652 = vmatprep.subr.mxu0 %v3650
  %3653 = vmatpush1.msra.mxu0 %v3647
  %3654 = vmatprep.subr.mxu0 0.0
  %3655 = vmatpush1.msra.mxu0 0.0
  %3656 = vmatprep.subr.mxu0 0.0
  %3657 = vmatpush1.msra.mxu0 0.0
  %3658 = vmatprep.subr.mxu0 0.0
  %3659 = vmatpush1.msra.mxu0 0.0
  %3660 = vmatprep.subr.mxu0 0.0
  %3661 = vmatpush1.msra.mxu0 0.0
  %3662 = vmatprep.subr.mxu0 0.0
  %3663 = vmatpush1.msra.mxu0 0.0
  %3664 = vmatprep.subr.mxu0 0.0
  %3665 = vmatpush1.msra.mxu0 0.0
  %3666 = vmatprep.subr.mxu0 0.0
  %3667 = vmatpush1.msra.mxu0 0.0
  %3668 = vmatprep.subr.mxu0 0.0
  %3669 = vmatpush1.msra.mxu0 0.0
  %3670 = vmatprep.subr.mxu0 0.0
  %3671 = vmatpush1.msra.mxu0 0.0
  %3672 = vmatprep.subr.mxu0 0.0
  %3673 = vmatpush1.msra.mxu0 0.0
  %3674 = vmatprep.subr.mxu0 0.0
  %3675 = vmatpush1.msra.mxu0 0.0
  %3676 = vmatprep.subr.mxu0 0.0
  %3677 = vmatpush1.msra.mxu0 0.0
  %3678 = vmatprep.subr.mxu0 0.0
  %3679 = vmatpush1.msra.mxu0 0.0
  %3680 = vmatprep.subr.mxu0 0.0
  %3681 = vmatpush1.msra.mxu0 0.0
  %3682 = vmatprep.subr.mxu0 0.0
  %3683 = vmatpush1.msra.mxu0 0.0
  %3684 = vmatprep.subr.mxu0 0.0
  %3685 = vmatpush1.msra.mxu0 0.0
  %3686 = vmatprep.subr.mxu0 0.0
  %3687 = vmatpush1.msra.mxu0 0.0
  %3688 = vmatprep.subr.mxu0 0.0
  %3689 = vmatpush1.msra.mxu0 0.0
  %3690 = vmatprep.subr.mxu0 0.0
  %3691 = vmatpush1.msra.mxu0 0.0
  %3692 = vmatprep.subr.mxu0 0.0
  %3693 = vmatpush1.msra.mxu0 0.0
  %3694 = vmatprep.subr.mxu0 0.0
  %3695 = vmatpush1.msra.mxu0 0.0
  %3696 = vmatprep.subr.mxu0 0.0
  %3697 = vmatpush1.msra.mxu0 0.0
  %3698 = vmatprep.subr.mxu0 0.0
  %3699 = vmatpush1.msra.mxu0 0.0
  %3700 = vmatprep.subr.mxu0 0.0
  %3701 = vmatpush1.msra.mxu0 0.0
  %3702 = vmatprep.subr.mxu0 0.0
  %3703 = vmatpush1.msra.mxu0 0.0
  %3704 = vmatprep.subr.mxu0 0.0
  %3705 = vmatpush1.msra.mxu0 0.0
  %3706 = vmatprep.subr.mxu0 0.0
  %3707 = vmatpush1.msra.mxu0 0.0
  %3708 = vmatprep.subr.mxu0 0.0
  %3709 = vmatpush1.msra.mxu0 0.0
  %3710 = vmatprep.subr.mxu0 0.0
  %3711 = vmatpush1.msra.mxu0 0.0
  %3712 = vmatprep.subr.mxu0 0.0
  %3713 = vmatpush1.msra.mxu0 0.0
  %3714 = vmatprep.subr.mxu0 0.0
  %3715 = vmatpush1.msra.mxu0 0.0
  %3716 = vmatprep.mubr.f32.mxu0 0.0
  %3717 = vmatmul.mubr.f32.gmra.mrb[0].mxu0 %v3454
  %v3718 = vpop.f32.mrb[0].mxu0
  %v3719 = vadd.f32 0.0, %v3718
  %v3720 = vpop.f32.mrb[0].mxu0
  %v3721 = vadd.f32 0.0, %v3720
  %3722 = vmatprep.mubr.f32.mxu0 0.0
  %3723 = vmatmul.mubr.f32.gmra.mrb[0].mxu0 %v3457
  %v3724 = vpop.f32.mrb[0].mxu0
  %v3725 = vadd.f32 0.0, %v3724
  %v3726 = vpop.f32.mrb[0].mxu0
  %v3727 = vadd.f32 0.0, %v3726
  %3728 = vmatprep.mubr.f32.mxu0 0.0
  %3729 = vmatmul.mubr.f32.gmra.mrb[0].mxu0 %v3460
  %v3730 = vpop.f32.mrb[0].mxu0
  %v3731 = vadd.f32 0.0, %v3730
  %v3732 = vpop.f32.mrb[0].mxu0
  %v3733 = vadd.f32 0.0, %v3732
  %3734 = vmatprep.mubr.f32.mxu0 0.0
  %3735 = vmatmul.mubr.f32.gmra.mrb[0].mxu0 %v3463
  %v3736 = vpop.f32.mrb[0].mxu0
  %v3737 = vadd.f32 0.0, %v3736
  %v3738 = vpop.f32.mrb[0].mxu0
  %v3739 = vadd.f32 0.0, %v3738
  %3740 = vmatprep.mubr.f32.mxu0 0.0
  %3741 = vmatmul.mubr.f32.gmra.mrb[0].mxu0 %v3466
  %v3742 = vpop.f32.mrb[0].mxu0
  %v3743 = vadd.f32 0.0, %v3742
  %v3744 = vpop.f32.mrb[0].mxu0
  %v3745 = vadd.f32 0.0, %v3744
  %3746 = vmatprep.mubr.f32.mxu0 0.0
  %3747 = vmatmul.mubr.f32.gmra.mrb[0].mxu0 %v3469
  %v3748 = vpop.f32.mrb[0].mxu0
  %v3749 = vadd.f32 0.0, %v3748
  %v3750 = vpop.f32.mrb[0].mxu0
  %v3751 = vadd.f32 0.0, %v3750
  %3752 = vmatprep.mubr.f32.mxu0 0.0
  %3753 = vmatmul.mubr.f32.gmra.mrb[0].mxu0 %v3472
  %v3754 = vpop.f32.mrb[0].mxu0
  %v3755 = vadd.f32 0.0, %v3754
  %v3756 = vpop.f32.mrb[0].mxu0
  %v3757 = vadd.f32 0.0, %v3756
  %3758 = vmatprep.mubr.f32.mxu0 0.0
  %3759 = vmatmul.mubr.f32.gmra.mrb[0].mxu0 %v3475
  %v3760 = vpop.f32.mrb[0].mxu0
  %v3761 = vadd.f32 0.0, %v3760
  %v3762 = vpop.f32.mrb[0].mxu0
  %v3763 = vadd.f32 0.0, %v3762
  %3764 = vmatprep.mubr.f32.mxu0 0.0
  %3765 = vmatmul.mubr.f32.gmra.mrb[0].mxu0 %v3478
  %v3766 = vpop.f32.mrb[0].mxu0
  %v3767 = vadd.f32 0.0, %v3766
  %v3768 = vpop.f32.mrb[0].mxu0
  %v3769 = vadd.f32 0.0, %v3768
  %3770 = vmatprep.mubr.f32.mxu0 0.0
  %3771 = vmatmul.mubr.f32.gmra.mrb[0].mxu0 %v3481
  %v3772 = vpop.f32.mrb[0].mxu0
  %v3773 = vadd.f32 0.0, %v3772
  %v3774 = vpop.f32.mrb[0].mxu0
  %v3775 = vadd.f32 0.0, %v3774
  %3776 = vmatprep.mubr.f32.mxu0 0.0
  %3777 = vmatmul.mubr.f32.gmra.mrb[0].mxu0 %v3484
  %v3778 = vpop.f32.mrb[0].mxu0
  %v3779 = vadd.f32 0.0, %v3778
  %v3780 = vpop.f32.mrb[0].mxu0
  %v3781 = vadd.f32 0.0, %v3780
  %3782 = vmatprep.mubr.f32.mxu0 0.0
  %3783 = vmatmul.mubr.f32.gmra.mrb[0].mxu0 %v3487
  %v3784 = vpop.f32.mrb[0].mxu0
  %v3785 = vadd.f32 0.0, %v3784
  %v3786 = vpop.f32.mrb[0].mxu0
  %v3787 = vadd.f32 0.0, %v3786
  %3788 = vmatprep.mubr.f32.mxu0 0.0
  %3789 = vmatmul.mubr.f32.gmra.mrb[0].mxu0 %v3490
  %v3790 = vpop.f32.mrb[0].mxu0
  %v3791 = vadd.f32 0.0, %v3790
  %v3792 = vpop.f32.mrb[0].mxu0
  %v3793 = vadd.f32 0.0, %v3792
  %3794 = vmatprep.mubr.f32.mxu0 0.0
  %3795 = vmatmul.mubr.f32.gmra.mrb[0].mxu0 %v3493
  %v3796 = vpop.f32.mrb[0].mxu0
  %v3797 = vadd.f32 0.0, %v3796
  %v3798 = vpop.f32.mrb[0].mxu0
  %v3799 = vadd.f32 0.0, %v3798
  %3800 = vmatprep.mubr.f32.mxu0 0.0
  %3801 = vmatmul.mubr.f32.gmra.mrb[0].mxu0 %v3496
  %v3802 = vpop.f32.mrb[0].mxu0
  %v3803 = vadd.f32 0.0, %v3802
  %v3804 = vpop.f32.mrb[0].mxu0
  %v3805 = vadd.f32 0.0, %v3804
  %3806 = vmatprep.mubr.f32.mxu0 0.0
  %3807 = vmatmul.mubr.f32.gmra.mrb[0].mxu0 %v3499
  %v3808 = vpop.f32.mrb[0].mxu0
  %v3809 = vadd.f32 0.0, %v3808
  %v3810 = vpop.f32.mrb[0].mxu0
  %v3811 = vadd.f32 0.0, %v3810
  %3812 = vmatprep.mubr.f32.mxu0 0.0
  %3813 = vmatmul.mubr.f32.gmra.mrb[0].mxu0 %v3502
  %v3814 = vpop.f32.mrb[0].mxu0
  %v3815 = vadd.f32 0.0, %v3814
  %v3816 = vpop.f32.mrb[0].mxu0
  %v3817 = vadd.f32 0.0, %v3816
  %3818 = vmatprep.mubr.f32.mxu0 0.0
  %3819 = vmatmul.mubr.f32.gmra.mrb[0].mxu0 %v3505
  %v3820 = vpop.f32.mrb[0].mxu0
  %v3821 = vadd.f32 0.0, %v3820
  %v3822 = vpop.f32.mrb[0].mxu0
  %v3823 = vadd.f32 0.0, %v3822
  %3824 = vmatprep.mubr.f32.mxu0 0.0
  %3825 = vmatmul.mubr.f32.gmra.mrb[0].mxu0 %v3508
  %v3826 = vpop.f32.mrb[0].mxu0
  %v3827 = vadd.f32 0.0, %v3826
  %v3828 = vpop.f32.mrb[0].mxu0
  %v3829 = vadd.f32 0.0, %v3828
  %3830 = vmatprep.mubr.f32.mxu0 0.0
  %3831 = vmatmul.mubr.f32.gmra.mrb[0].mxu0 %v3511
  %v3832 = vpop.f32.mrb[0].mxu0
  %v3833 = vadd.f32 0.0, %v3832
  %v3834 = vpop.f32.mrb[0].mxu0
  %v3835 = vadd.f32 0.0, %v3834
  %3836 = vmatprep.mubr.f32.mxu0 0.0
  %3837 = vmatmul.mubr.f32.gmra.mrb[0].mxu0 %v3514
  %v3838 = vpop.f32.mrb[0].mxu0
  %v3839 = vadd.f32 0.0, %v3838
  %v3840 = vpop.f32.mrb[0].mxu0
  %v3841 = vadd.f32 0.0, %v3840
  %3842 = vmatprep.mubr.f32.mxu0 0.0
  %3843 = vmatmul.mubr.f32.gmra.mrb[0].mxu0 %v3517
  %v3844 = vpop.f32.mrb[0].mxu0
  %v3845 = vadd.f32 0.0, %v3844
  %v3846 = vpop.f32.mrb[0].mxu0
  %v3847 = vadd.f32 0.0, %v3846
  %3848 = vmatprep.mubr.f32.mxu0 0.0
  %3849 = vmatmul.mubr.f32.gmra.mrb[0].mxu0 %v3520
  %v3850 = vpop.f32.mrb[0].mxu0
  %v3851 = vadd.f32 0.0, %v3850
  %v3852 = vpop.f32.mrb[0].mxu0
  %v3853 = vadd.f32 0.0, %v3852
  %3854 = vmatprep.mubr.f32.mxu0 0.0
  %3855 = vmatmul.mubr.f32.gmra.mrb[0].mxu0 %v3523
  %v3856 = vpop.f32.mrb[0].mxu0
  %v3857 = vadd.f32 0.0, %v3856
  %v3858 = vpop.f32.mrb[0].mxu0
  %v3859 = vadd.f32 0.0, %v3858
  %3860 = vmatprep.mubr.f32.mxu0 0.0
  %3861 = vmatmul.mubr.f32.gmra.mrb[0].mxu0 %v3526
  %v3862 = vpop.f32.mrb[0].mxu0
  %v3863 = vadd.f32 0.0, %v3862
  %v3864 = vpop.f32.mrb[0].mxu0
  %v3865 = vadd.f32 0.0, %v3864
  %3866 = vmatprep.mubr.f32.mxu0 0.0
  %3867 = vmatmul.mubr.f32.gmra.mrb[0].mxu0 %v3529
  %v3868 = vpop.f32.mrb[0].mxu0
  %v3869 = vadd.f32 0.0, %v3868
  %v3870 = vpop.f32.mrb[0].mxu0
  %v3871 = vadd.f32 0.0, %v3870
  %3872 = vmatprep.mubr.f32.mxu0 0.0
  %3873 = vmatmul.mubr.f32.gmra.mrb[0].mxu0 %v3532
  %v3874 = vpop.f32.mrb[0].mxu0
  %v3875 = vadd.f32 0.0, %v3874
  %v3876 = vpop.f32.mrb[0].mxu0
  %v3877 = vadd.f32 0.0, %v3876
  %3878 = vmatprep.mubr.f32.mxu0 0.0
  %3879 = vmatmul.mubr.f32.gmra.mrb[0].mxu0 %v3535
  %v3880 = vpop.f32.mrb[0].mxu0
  %v3881 = vadd.f32 0.0, %v3880
  %v3882 = vpop.f32.mrb[0].mxu0
  %v3883 = vadd.f32 0.0, %v3882
  %3884 = vmatprep.mubr.f32.mxu0 0.0
  %3885 = vmatmul.mubr.f32.gmra.mrb[0].mxu0 %v3538
  %v3886 = vpop.f32.mrb[0].mxu0
  %v3887 = vadd.f32 0.0, %v3886
  %v3888 = vpop.f32.mrb[0].mxu0
  %v3889 = vadd.f32 0.0, %v3888
  %3890 = vmatprep.mubr.f32.mxu0 0.0
  %3891 = vmatmul.mubr.f32.gmra.mrb[0].mxu0 %v3541
  %v3892 = vpop.f32.mrb[0].mxu0
  %v3893 = vadd.f32 0.0, %v3892
  %v3894 = vpop.f32.mrb[0].mxu0
  %v3895 = vadd.f32 0.0, %v3894
  %3896 = vmatprep.mubr.f32.mxu0 0.0
  %3897 = vmatmul.mubr.f32.gmra.mrb[0].mxu0 %v3544
  %v3898 = vpop.f32.mrb[0].mxu0
  %v3899 = vadd.f32 0.0, %v3898
  %v3900 = vpop.f32.mrb[0].mxu0
  %v3901 = vadd.f32 0.0, %v3900
  %3902 = vmatprep.mubr.f32.mxu0 0.0
  %3903 = vmatmul.mubr.f32.gmra.mrb[0].mxu0 %v3547
  %v3904 = vpop.f32.mrb[0].mxu0
  %v3905 = vadd.f32 0.0, %v3904
  %v3906 = vpop.f32.mrb[0].mxu0
  %v3907 = vadd.f32 0.0, %v3906
  %3908 = vmatprep.mubr.f32.mxu0 0.0
  %3909 = vmatmul.mubr.f32.gmra.mrb[0].mxu0 %v3550
  %v3910 = vpop.f32.mrb[0].mxu0
  %v3911 = vadd.f32 0.0, %v3910
  %v3912 = vpop.f32.mrb[0].mxu0
  %v3913 = vadd.f32 0.0, %v3912
  %3914 = vmatprep.mubr.f32.mxu0 0.0
  %3915 = vmatmul.mubr.f32.gmra.mrb[0].mxu0 %v3553
  %v3916 = vpop.f32.mrb[0].mxu0
  %v3917 = vadd.f32 0.0, %v3916
  %v3918 = vpop.f32.mrb[0].mxu0
  %v3919 = vadd.f32 0.0, %v3918
  %3920 = vmatprep.mubr.f32.mxu0 0.0
  %3921 = vmatmul.mubr.f32.gmra.mrb[0].mxu0 %v3556
  %v3922 = vpop.f32.mrb[0].mxu0
  %v3923 = vadd.f32 0.0, %v3922
  %v3924 = vpop.f32.mrb[0].mxu0
  %v3925 = vadd.f32 0.0, %v3924
  %3926 = vmatprep.mubr.f32.mxu0 0.0
  %3927 = vmatmul.mubr.f32.gmra.mrb[0].mxu0 %v3559
  %v3928 = vpop.f32.mrb[0].mxu0
  %v3929 = vadd.f32 0.0, %v3928
  %v3930 = vpop.f32.mrb[0].mxu0
  %v3931 = vadd.f32 0.0, %v3930
  %3932 = vmatprep.mubr.f32.mxu0 0.0
  %3933 = vmatmul.mubr.f32.gmra.mrb[0].mxu0 %v3562
  %v3934 = vpop.f32.mrb[0].mxu0
  %v3935 = vadd.f32 0.0, %v3934
  %v3936 = vpop.f32.mrb[0].mxu0
  %v3937 = vadd.f32 0.0, %v3936
  %3938 = vmatprep.mubr.f32.mxu0 0.0
  %3939 = vmatmul.mubr.f32.gmra.mrb[0].mxu0 %v3565
  %v3940 = vpop.f32.mrb[0].mxu0
  %v3941 = vadd.f32 0.0, %v3940
  %v3942 = vpop.f32.mrb[0].mxu0
  %v3943 = vadd.f32 0.0, %v3942
  %3944 = vmatprep.mubr.f32.mxu0 0.0
  %3945 = vmatmul.mubr.f32.gmra.mrb[0].mxu0 %v3568
  %v3946 = vpop.f32.mrb[0].mxu0
  %v3947 = vadd.f32 0.0, %v3946
  %v3948 = vpop.f32.mrb[0].mxu0
  %v3949 = vadd.f32 0.0, %v3948
  %3950 = vmatprep.mubr.f32.mxu0 0.0
  %3951 = vmatmul.mubr.f32.gmra.mrb[0].mxu0 %v3571
  %v3952 = vpop.f32.mrb[0].mxu0
  %v3953 = vadd.f32 0.0, %v3952
  %v3954 = vpop.f32.mrb[0].mxu0
  %v3955 = vadd.f32 0.0, %v3954
  %3956 = vmatprep.mubr.f32.mxu0 0.0
  %3957 = vmatmul.mubr.f32.gmra.mrb[0].mxu0 %v3574
  %v3958 = vpop.f32.mrb[0].mxu0
  %v3959 = vadd.f32 0.0, %v3958
  %v3960 = vpop.f32.mrb[0].mxu0
  %v3961 = vadd.f32 0.0, %v3960
  %3962 = vmatprep.mubr.f32.mxu0 0.0
  %3963 = vmatmul.mubr.f32.gmra.mrb[0].mxu0 %v3577
  %v3964 = vpop.f32.mrb[0].mxu0
  %v3965 = vadd.f32 0.0, %v3964
  %v3966 = vpop.f32.mrb[0].mxu0
  %v3967 = vadd.f32 0.0, %v3966
  %3968 = vmatprep.mubr.f32.mxu0 0.0
  %3969 = vmatmul.mubr.f32.gmra.mrb[0].mxu0 %v3580
  %v3970 = vpop.f32.mrb[0].mxu0
  %v3971 = vadd.f32 0.0, %v3970
  %v3972 = vpop.f32.mrb[0].mxu0
  %v3973 = vadd.f32 0.0, %v3972
  %3974 = vmatprep.mubr.f32.mxu0 0.0
  %3975 = vmatmul.mubr.f32.gmra.mrb[0].mxu0 %v3583
  %v3976 = vpop.f32.mrb[0].mxu0
  %v3977 = vadd.f32 0.0, %v3976
  %v3978 = vpop.f32.mrb[0].mxu0
  %v3979 = vadd.f32 0.0, %v3978
  %3980 = vmatprep.mubr.f32.mxu0 0.0
  %3981 = vmatmul.mubr.f32.gmra.mrb[0].mxu0 %v3586
  %v3982 = vpop.f32.mrb[0].mxu0
  %v3983 = vadd.f32 0.0, %v3982
  %v3984 = vpop.f32.mrb[0].mxu0
  %v3985 = vadd.f32 0.0, %v3984
  %3986 = vmatprep.mubr.f32.mxu0 0.0
  %3987 = vmatmul.mubr.f32.gmra.mrb[0].mxu0 %v3589
  %v3988 = vpop.f32.mrb[0].mxu0
  %v3989 = vadd.f32 0.0, %v3988
  %v3990 = vpop.f32.mrb[0].mxu0
  %v3991 = vadd.f32 0.0, %v3990
  %3992 = vmatprep.mubr.f32.mxu0 0.0
  %3993 = vmatmul.mubr.f32.gmra.mrb[0].mxu0 %v3592
  %v3994 = vpop.f32.mrb[0].mxu0
  %v3995 = vadd.f32 0.0, %v3994
  %v3996 = vpop.f32.mrb[0].mxu0
  %v3997 = vadd.f32 0.0, %v3996
  %3998 = vmatprep.mubr.f32.mxu0 0.0
  %3999 = vmatmul.mubr.f32.gmra.mrb[0].mxu0 %v3595
  %v4000 = vpop.f32.mrb[0].mxu0
  %v4001 = vadd.f32 0.0, %v4000
  %v4002 = vpop.f32.mrb[0].mxu0
  %v4003 = vadd.f32 0.0, %v4002
  %4004 = vmatprep.mubr.f32.mxu0 0.0
  %4005 = vmatmul.mubr.f32.gmra.mrb[0].mxu0 %v3598
  %v4006 = vpop.f32.mrb[0].mxu0
  %v4007 = vadd.f32 0.0, %v4006
  %v4008 = vpop.f32.mrb[0].mxu0
  %v4009 = vadd.f32 0.0, %v4008
  %4010 = vmatprep.mubr.f32.mxu0 0.0
  %4011 = vmatmul.mubr.f32.gmra.mrb[0].mxu0 %v3601
  %v4012 = vpop.f32.mrb[0].mxu0
  %v4013 = vadd.f32 0.0, %v4012
  %v4014 = vpop.f32.mrb[0].mxu0
  %v4015 = vadd.f32 0.0, %v4014
  %4016 = vmatprep.mubr.f32.mxu0 0.0
  %4017 = vmatmul.mubr.f32.gmra.mrb[0].mxu0 %v3604
  %v4018 = vpop.f32.mrb[0].mxu0
  %v4019 = vadd.f32 0.0, %v4018
  %v4020 = vpop.f32.mrb[0].mxu0
  %v4021 = vadd.f32 0.0, %v4020
  %4022 = vmatprep.mubr.f32.mxu0 0.0
  %4023 = vmatmul.mubr.f32.gmra.mrb[0].mxu0 %v3607
  %v4024 = vpop.f32.mrb[0].mxu0
  %v4025 = vadd.f32 0.0, %v4024
  %v4026 = vpop.f32.mrb[0].mxu0
  %v4027 = vadd.f32 0.0, %v4026
  %4028 = vmatprep.mubr.f32.mxu0 0.0
  %4029 = vmatmul.mubr.f32.gmra.mrb[0].mxu0 %v3610
  %v4030 = vpop.f32.mrb[0].mxu0
  %v4031 = vadd.f32 0.0, %v4030
  %v4032 = vpop.f32.mrb[0].mxu0
  %v4033 = vadd.f32 0.0, %v4032
  %4034 = vmatprep.mubr.f32.mxu0 0.0
  %4035 = vmatmul.mubr.f32.gmra.mrb[0].mxu0 %v3613
  %v4036 = vpop.f32.mrb[0].mxu0
  %v4037 = vadd.f32 0.0, %v4036
  %v4038 = vpop.f32.mrb[0].mxu0
  %v4039 = vadd.f32 0.0, %v4038
  %4040 = vmatprep.mubr.f32.mxu0 0.0
  %4041 = vmatmul.mubr.f32.gmra.mrb[0].mxu0 %v3616
  %v4042 = vpop.f32.mrb[0].mxu0
  %v4043 = vadd.f32 0.0, %v4042
  %v4044 = vpop.f32.mrb[0].mxu0
  %v4045 = vadd.f32 0.0, %v4044
  %4046 = vmatprep.mubr.f32.mxu0 0.0
  %4047 = vmatmul.mubr.f32.gmra.mrb[0].mxu0 %v3619
  %v4048 = vpop.f32.mrb[0].mxu0
  %v4049 = vadd.f32 0.0, %v4048
  %v4050 = vpop.f32.mrb[0].mxu0
  %v4051 = vadd.f32 0.0, %v4050
  %4052 = vmatprep.mubr.f32.mxu0 0.0
  %4053 = vmatmul.mubr.f32.gmra.mrb[0].mxu0 %v3622
  %v4054 = vpop.f32.mrb[0].mxu0
  %v4055 = vadd.f32 0.0, %v4054
  %v4056 = vpop.f32.mrb[0].mxu0
  %v4057 = vadd.f32 0.0, %v4056
  %4058 = vmatprep.mubr.f32.mxu0 0.0
  %4059 = vmatmul.mubr.f32.gmra.mrb[0].mxu0 %v3625
  %v4060 = vpop.f32.mrb[0].mxu0
  %v4061 = vadd.f32 0.0, %v4060
  %v4062 = vpop.f32.mrb[0].mxu0
  %v4063 = vadd.f32 0.0, %v4062
  %4064 = vmatprep.mubr.f32.mxu0 0.0
  %4065 = vmatmul.mubr.f32.gmra.mrb[0].mxu0 %v3628
  %v4066 = vpop.f32.mrb[0].mxu0
  %v4067 = vadd.f32 0.0, %v4066
  %v4068 = vpop.f32.mrb[0].mxu0
  %v4069 = vadd.f32 0.0, %v4068
  %4070 = vmatprep.mubr.f32.mxu0 0.0
  %4071 = vmatmul.mubr.f32.gmra.mrb[0].mxu0 %v3631
  %v4072 = vpop.f32.mrb[0].mxu0
  %v4073 = vadd.f32 0.0, %v4072
  %v4074 = vpop.f32.mrb[0].mxu0
  %v4075 = vadd.f32 0.0, %v4074
  %4076 = vmatprep.mubr.f32.mxu0 0.0
  %4077 = vmatmul.mubr.f32.gmra.mrb[0].mxu0 %v3634
  %v4078 = vpop.f32.mrb[0].mxu0
  %v4079 = vadd.f32 0.0, %v4078
  %v4080 = vpop.f32.mrb[0].mxu0
  %v4081 = vadd.f32 0.0, %v4080
  %4082 = vmatprep.mubr.f32.mxu0 0.0
  %4083 = vmatmul.mubr.f32.gmra.mrb[0].mxu0 %v3637
  %v4084 = vpop.f32.mrb[0].mxu0
  %v4085 = vadd.f32 0.0, %v4084
  %v4086 = vpop.f32.mrb[0].mxu0
  %v4087 = vadd.f32 0.0, %v4086
  %4088 = vmatprep.mubr.f32.mxu0 0.0
  %4089 = vmatmul.mubr.f32.gmra.mrb[0].mxu0 %v3640
  %v4090 = vpop.f32.mrb[0].mxu0
  %v4091 = vadd.f32 0.0, %v4090
  %v4092 = vpop.f32.mrb[0].mxu0
  %v4093 = vadd.f32 0.0, %v4092
  %4094 = vmatprep.mubr.f32.mxu0 0.0
  %4095 = vmatmul.mubr.f32.gmra.mrb[0].mxu0 %v3643
  %v4096 = vpop.f32.mrb[0].mxu0
  %v4097 = vadd.f32 0.0, %v4096
  %v4098 = vpop.f32.mrb[0].mxu0
  %v4099 = vadd.f32 0.0, %v4098
  %4100 = vdwg.mxu0
  %v4101 = vmul.f32 %v57, %v3719
  %v4102 = vmul.f32 %v58, %v3721
  %v4103 = vmul.f32 %v59, %v3725
  %v4104 = vmul.f32 %v60, %v3727
  %v4105 = vmul.f32 %v61, %v3731
  %v4106 = vmul.f32 %v62, %v3733
  %v4107 = vmul.f32 %v63, %v3737
  %v4108 = vmul.f32 %v64, %v3739
  %v4109 = vmul.f32 %v65, %v3743
  %v4110 = vmul.f32 %v66, %v3745
  %v4111 = vmul.f32 %v67, %v3749
  %v4112 = vmul.f32 %v68, %v3751
  %v4113 = vmul.f32 %v69, %v3755
  %v4114 = vmul.f32 %v70, %v3757
  %v4115 = vmul.f32 %v71, %v3761
  %v4116 = vmul.f32 %v72, %v3763
  %v4117 = vmul.f32 %v73, %v3767
  %v4118 = vmul.f32 %v74, %v3769
  %v4119 = vmul.f32 %v75, %v3773
  %v4120 = vmul.f32 %v76, %v3775
  %v4121 = vmul.f32 %v77, %v3779
  %v4122 = vmul.f32 %v78, %v3781
  %v4123 = vmul.f32 %v79, %v3785
  %v4124 = vmul.f32 %v80, %v3787
  %v4125 = vmul.f32 %v81, %v3791
  %v4126 = vmul.f32 %v82, %v3793
  %v4127 = vmul.f32 %v83, %v3797
  %v4128 = vmul.f32 %v84, %v3799
  %v4129 = vmul.f32 %v85, %v3803
  %v4130 = vmul.f32 %v86, %v3805
  %v4131 = vmul.f32 %v87, %v3809
  %v4132 = vmul.f32 %v88, %v3811
  %v4133 = vmul.f32 %v89, %v3815
  %v4134 = vmul.f32 %v90, %v3817
  %v4135 = vmul.f32 %v91, %v3821
  %v4136 = vmul.f32 %v92, %v3823
  %v4137 = vmul.f32 %v93, %v3827
  %v4138 = vmul.f32 %v94, %v3829
  %v4139 = vmul.f32 %v95, %v3833
  %v4140 = vmul.f32 %v96, %v3835
  %v4141 = vmul.f32 %v97, %v3839
  %v4142 = vmul.f32 %v98, %v3841
  %v4143 = vmul.f32 %v99, %v3845
  %v4144 = vmul.f32 %v100, %v3847
  %v4145 = vmul.f32 %v101, %v3851
  %v4146 = vmul.f32 %v102, %v3853
  %v4147 = vmul.f32 %v103, %v3857
  %v4148 = vmul.f32 %v104, %v3859
  %v4149 = vmul.f32 %v105, %v3863
  %v4150 = vmul.f32 %v106, %v3865
  %v4151 = vmul.f32 %v107, %v3869
  %v4152 = vmul.f32 %v108, %v3871
  %v4153 = vmul.f32 %v109, %v3875
  %v4154 = vmul.f32 %v110, %v3877
  %v4155 = vmul.f32 %v111, %v3881
  %v4156 = vmul.f32 %v112, %v3883
  %v4157 = vmul.f32 %v113, %v3887
  %v4158 = vmul.f32 %v114, %v3889
  %v4159 = vmul.f32 %v115, %v3893
  %v4160 = vmul.f32 %v116, %v3895
  %v4161 = vmul.f32 %v117, %v3899
  %v4162 = vmul.f32 %v118, %v3901
  %v4163 = vmul.f32 %v119, %v3905
  %v4164 = vmul.f32 %v120, %v3907
  %v4165 = vmul.f32 %v121, %v3911
  %v4166 = vmul.f32 %v122, %v3913
  %v4167 = vmul.f32 %v123, %v3917
  %v4168 = vmul.f32 %v124, %v3919
  %v4169 = vmul.f32 %v125, %v3923
  %v4170 = vmul.f32 %v126, %v3925
  %v4171 = vmul.f32 %v127, %v3929
  %v4172 = vmul.f32 %v128, %v3931
  %v4173 = vmul.f32 %v129, %v3935
  %v4174 = vmul.f32 %v130, %v3937
  %v4175 = vmul.f32 %v131, %v3941
  %v4176 = vmul.f32 %v132, %v3943
  %v4177 = vmul.f32 %v133, %v3947
  %v4178 = vmul.f32 %v134, %v3949
  %v4179 = vmul.f32 %v135, %v3953
  %v4180 = vmul.f32 %v136, %v3955
  %v4181 = vmul.f32 %v137, %v3959
  %v4182 = vmul.f32 %v138, %v3961
  %v4183 = vmul.f32 %v139, %v3965
  %v4184 = vmul.f32 %v140, %v3967
  %v4185 = vmul.f32 %v141, %v3971
  %v4186 = vmul.f32 %v142, %v3973
  %v4187 = vmul.f32 %v143, %v3977
  %v4188 = vmul.f32 %v144, %v3979
  %v4189 = vmul.f32 %v145, %v3983
  %v4190 = vmul.f32 %v146, %v3985
  %v4191 = vmul.f32 %v147, %v3989
  %v4192 = vmul.f32 %v148, %v3991
  %v4193 = vmul.f32 %v149, %v3995
  %v4194 = vmul.f32 %v150, %v3997
  %v4195 = vmul.f32 %v151, %v4001
  %v4196 = vmul.f32 %v152, %v4003
  %v4197 = vmul.f32 %v153, %v4007
  %v4198 = vmul.f32 %v154, %v4009
  %v4199 = vmul.f32 %v155, %v4013
  %v4200 = vmul.f32 %v156, %v4015
  %v4201 = vmul.f32 %v157, %v4019
  %v4202 = vmul.f32 %v158, %v4021
  %v4203 = vmul.f32 %v159, %v4025
  %v4204 = vmul.f32 %v160, %v4027
  %v4205 = vmul.f32 %v161, %v4031
  %v4206 = vmul.f32 %v162, %v4033
  %v4207 = vmul.f32 %v163, %v4037
  %v4208 = vmul.f32 %v164, %v4039
  %v4209 = vmul.f32 %v165, %v4043
  %v4210 = vmul.f32 %v166, %v4045
  %v4211 = vmul.f32 %v167, %v4049
  %v4212 = vmul.f32 %v168, %v4051
  %v4213 = vmul.f32 %v169, %v4055
  %v4214 = vmul.f32 %v170, %v4057
  %v4215 = vmul.f32 %v171, %v4061
  %v4216 = vmul.f32 %v172, %v4063
  %v4217 = vmul.f32 %v173, %v4067
  %v4218 = vmul.f32 %v174, %v4069
  %v4219 = vmul.f32 %v175, %v4073
  %v4220 = vmul.f32 %v176, %v4075
  %v4221 = vmul.f32 %v177, %v4079
  %v4222 = vmul.f32 %v178, %v4081
  %v4223 = vmul.f32 %v179, %v4085
  %v4224 = vmul.f32 %v180, %v4087
  %v4225 = vmul.f32 %v181, %v4091
  %v4226 = vmul.f32 %v182, %v4093
  %v4227 = vmul.f32 %v183, %v4097
  %v4228 = vmul.f32 %v184, %v4099
  %v4229 = vld [vmem:[%s9] sm:$0xff]
  %v4230 = vld [vmem:[%s9 + $0x8] sm:$0xff]
  %v4231 = vld [vmem:[%s9 + $0x10] sm:$0xff]
  %v4232 = vld [vmem:[%s9 + $0x18] sm:$0xff]
  %v4233 = vld [vmem:[%s9 + $0x20] sm:$0xff]
  %v4234 = vld [vmem:[%s9 + $0x28] sm:$0xff]
  %v4235 = vld [vmem:[%s9 + $0x30] sm:$0xff]
  %v4236 = vld [vmem:[%s9 + $0x38] sm:$0xff]
  %v4237 = vld [vmem:[%s9 + $0x40] sm:$0xff]
  %v4238 = vld [vmem:[%s9 + $0x48] sm:$0xff]
  %v4239 = vld [vmem:[%s9 + $0x50] sm:$0xff]
  %v4240 = vld [vmem:[%s9 + $0x58] sm:$0xff]
  %v4241 = vld [vmem:[%s9 + $0x60] sm:$0xff]
  %v4242 = vld [vmem:[%s9 + $0x68] sm:$0xff]
  %v4243 = vld [vmem:[%s9 + $0x70] sm:$0xff]
  %v4244 = vld [vmem:[%s9 + $0x78] sm:$0xff]
  %v4245 = vld [vmem:[%s9 + $0x80] sm:$0xff]
  %v4246 = vld [vmem:[%s9 + $0x88] sm:$0xff]
  %v4247 = vld [vmem:[%s9 + $0x90] sm:$0xff]
  %v4248 = vld [vmem:[%s9 + $0x98] sm:$0xff]
  %v4249 = vld [vmem:[%s9 + $0xa0] sm:$0xff]
  %v4250 = vld [vmem:[%s9 + $0xa8] sm:$0xff]
  %v4251 = vld [vmem:[%s9 + $0xb0] sm:$0xff]
  %v4252 = vld [vmem:[%s9 + $0xb8] sm:$0xff]
  %v4254 = vsel %vm855, %v4102, 0
  %v4257 = vsel %vm855, %v4104, 0
  %v4260 = vsel %vm855, %v4106, 0
  %v4263 = vsel %vm855, %v4108, 0
  %v4266 = vsel %vm855, %v4110, 0
  %v4269 = vsel %vm855, %v4112, 0
  %v4272 = vsel %vm855, %v4114, 0
  %v4275 = vsel %vm855, %v4116, 0
  %v4278 = vsel %vm855, %v4118, 0
  %v4281 = vsel %vm855, %v4120, 0
  %v4284 = vsel %vm855, %v4122, 0
  %v4287 = vsel %vm855, %v4124, 0
  %v4290 = vsel %vm855, %v4126, 0
  %v4293 = vsel %vm855, %v4128, 0
  %v4296 = vsel %vm855, %v4130, 0
  %v4299 = vsel %vm855, %v4132, 0
  %v4302 = vsel %vm855, %v4134, 0
  %v4305 = vsel %vm855, %v4136, 0
  %v4308 = vsel %vm855, %v4138, 0
  %v4311 = vsel %vm855, %v4140, 0
  %v4314 = vsel %vm855, %v4142, 0
  %v4317 = vsel %vm855, %v4144, 0
  %v4320 = vsel %vm855, %v4146, 0
  %v4323 = vsel %vm855, %v4148, 0
  %v4326 = vsel %vm855, %v4150, 0
  %v4329 = vsel %vm855, %v4152, 0
  %v4332 = vsel %vm855, %v4154, 0
  %v4335 = vsel %vm855, %v4156, 0
  %v4338 = vsel %vm855, %v4158, 0
  %v4341 = vsel %vm855, %v4160, 0
  %v4344 = vsel %vm855, %v4162, 0
  %v4347 = vsel %vm855, %v4164, 0
  %v4350 = vsel %vm855, %v4166, 0
  %v4353 = vsel %vm855, %v4168, 0
  %v4356 = vsel %vm855, %v4170, 0
  %v4359 = vsel %vm855, %v4172, 0
  %v4362 = vsel %vm855, %v4174, 0
  %v4365 = vsel %vm855, %v4176, 0
  %v4368 = vsel %vm855, %v4178, 0
  %v4371 = vsel %vm855, %v4180, 0
  %v4374 = vsel %vm855, %v4182, 0
  %v4377 = vsel %vm855, %v4184, 0
  %v4380 = vsel %vm855, %v4186, 0
  %v4383 = vsel %vm855, %v4188, 0
  %v4386 = vsel %vm855, %v4190, 0
  %v4389 = vsel %vm855, %v4192, 0
  %v4392 = vsel %vm855, %v4194, 0
  %v4395 = vsel %vm855, %v4196, 0
  %v4398 = vsel %vm855, %v4198, 0
  %v4401 = vsel %vm855, %v4200, 0
  %v4404 = vsel %vm855, %v4202, 0
  %v4407 = vsel %vm855, %v4204, 0
  %v4410 = vsel %vm855, %v4206, 0
  %v4413 = vsel %vm855, %v4208, 0
  %v4416 = vsel %vm855, %v4210, 0
  %v4419 = vsel %vm855, %v4212, 0
  %v4422 = vsel %vm855, %v4214, 0
  %v4425 = vsel %vm855, %v4216, 0
  %v4428 = vsel %vm855, %v4218, 0
  %v4431 = vsel %vm855, %v4220, 0
  %v4434 = vsel %vm855, %v4222, 0
  %v4437 = vsel %vm855, %v4224, 0
  %v4440 = vsel %vm855, %v4226, 0
  %v4443 = vsel %vm855, %v4228, 0
  %4445 = vmatprep.subr.mxu0 0.0
  %4446 = vmatpush1.msra.mxu0 %v4229
  %4447 = vmatprep.subr.mxu0 0.0
  %4448 = vmatpush1.msra.mxu0 %v4230
  %4449 = vmatprep.subr.mxu0 0.0
  %4450 = vmatpush1.msra.mxu0 %v4231
  %4451 = vmatprep.subr.mxu0 0.0
  %4452 = vmatpush1.msra.mxu0 %v4232
  %4453 = vmatprep.subr.mxu0 0.0
  %4454 = vmatpush1.msra.mxu0 %v4233
  %4455 = vmatprep.subr.mxu0 0.0
  %4456 = vmatpush1.msra.mxu0 %v4234
  %4457 = vmatprep.subr.mxu0 0.0
  %4458 = vmatpush1.msra.mxu0 %v4235
  %4459 = vmatprep.subr.mxu0 0.0
  %4460 = vmatpush1.msra.mxu0 %v4236
  %4461 = vmatprep.subr.mxu0 0.0
  %4462 = vmatpush1.msra.mxu0 %v4237
  %4463 = vmatprep.subr.mxu0 0.0
  %4464 = vmatpush1.msra.mxu0 %v4238
  %4465 = vmatprep.subr.mxu0 0.0
  %4466 = vmatpush1.msra.mxu0 %v4239
  %4467 = vmatprep.subr.mxu0 0.0
  %4468 = vmatpush1.msra.mxu0 %v4240
  %4469 = vmatprep.subr.mxu0 0.0
  %4470 = vmatpush1.msra.mxu0 %v4241
  %4471 = vmatprep.subr.mxu0 0.0
  %4472 = vmatpush1.msra.mxu0 %v4242
  %4473 = vmatprep.subr.mxu0 0.0
  %4474 = vmatpush1.msra.mxu0 %v4243
  %4475 = vmatprep.subr.mxu0 0.0
  %4476 = vmatpush1.msra.mxu0 %v4244
  %4477 = vmatprep.subr.mxu0 0.0
  %4478 = vmatpush1.msra.mxu0 %v4245
  %4479 = vmatprep.subr.mxu0 0.0
  %4480 = vmatpush1.msra.mxu0 %v4246
  %4481 = vmatprep.subr.mxu0 0.0
  %4482 = vmatpush1.msra.mxu0 %v4247
  %4483 = vmatprep.subr.mxu0 0.0
  %4484 = vmatpush1.msra.mxu0 %v4248
  %4485 = vmatprep.subr.mxu0 0.0
  %4486 = vmatpush1.msra.mxu0 %v4249
  %4487 = vmatprep.subr.mxu0 0.0
  %4488 = vmatpush1.msra.mxu0 %v4250
  %4489 = vmatprep.subr.mxu0 0.0
  %4490 = vmatpush1.msra.mxu0 %v4251
  %4491 = vmatprep.subr.mxu0 0.0
  %4492 = vmatpush1.msra.mxu0 %v4252
  %4493 = vmatprep.subr.mxu0 0.0
  %4494 = vmatpush1.msra.mxu0 0.0
  %4495 = vmatprep.subr.mxu0 0.0
  %4496 = vmatpush1.msra.mxu0 0.0
  %4497 = vmatprep.subr.mxu0 0.0
  %4498 = vmatpush1.msra.mxu0 0.0
  %4499 = vmatprep.subr.mxu0 0.0
  %4500 = vmatpush1.msra.mxu0 0.0
  %4501 = vmatprep.subr.mxu0 0.0
  %4502 = vmatpush1.msra.mxu0 0.0
  %4503 = vmatprep.subr.mxu0 0.0
  %4504 = vmatpush1.msra.mxu0 0.0
  %4505 = vmatprep.subr.mxu0 0.0
  %4506 = vmatpush1.msra.mxu0 0.0
  %4507 = vmatprep.subr.mxu0 0.0
  %4508 = vmatpush1.msra.mxu0 0.0
  %4509 = vmatprep.mubr.f32.mxu0 %v4254
  %4510 = vmatmul.mubr.f32.gmra.mrb[0].mxu0 %v4101
  %v4511 = vpop.f32.mrb[0].mxu0
  %v4512 = vadd.f32 0.0, %v4511
  %v4513 = vpop.f32.mrb[0].mxu0
  %4514 = vmatprep.mubr.f32.mxu0 %v4257
  %4515 = vmatmul.mubr.f32.gmra.mrb[0].mxu0 %v4103
  %v4516 = vpop.f32.mrb[0].mxu0
  %v4517 = vadd.f32 0.0, %v4516
  %v4518 = vpop.f32.mrb[0].mxu0
  %4519 = vmatprep.mubr.f32.mxu0 %v4260
  %4520 = vmatmul.mubr.f32.gmra.mrb[0].mxu0 %v4105
  %v4521 = vpop.f32.mrb[0].mxu0
  %v4522 = vadd.f32 0.0, %v4521
  %v4523 = vpop.f32.mrb[0].mxu0
  %4524 = vmatprep.mubr.f32.mxu0 %v4263
  %4525 = vmatmul.mubr.f32.gmra.mrb[0].mxu0 %v4107
  %v4526 = vpop.f32.mrb[0].mxu0
  %v4527 = vadd.f32 0.0, %v4526
  %v4528 = vpop.f32.mrb[0].mxu0
  %4529 = vmatprep.mubr.f32.mxu0 %v4266
  %4530 = vmatmul.mubr.f32.gmra.mrb[0].mxu0 %v4109
  %v4531 = vpop.f32.mrb[0].mxu0
  %v4532 = vadd.f32 0.0, %v4531
  %v4533 = vpop.f32.mrb[0].mxu0
  %4534 = vmatprep.mubr.f32.mxu0 %v4269
  %4535 = vmatmul.mubr.f32.gmra.mrb[0].mxu0 %v4111
  %v4536 = vpop.f32.mrb[0].mxu0
  %v4537 = vadd.f32 0.0, %v4536
  %v4538 = vpop.f32.mrb[0].mxu0
  %4539 = vmatprep.mubr.f32.mxu0 %v4272
  %4540 = vmatmul.mubr.f32.gmra.mrb[0].mxu0 %v4113
  %v4541 = vpop.f32.mrb[0].mxu0
  %v4542 = vadd.f32 0.0, %v4541
  %v4543 = vpop.f32.mrb[0].mxu0
  %4544 = vmatprep.mubr.f32.mxu0 %v4275
  %4545 = vmatmul.mubr.f32.gmra.mrb[0].mxu0 %v4115
  %v4546 = vpop.f32.mrb[0].mxu0
  %v4547 = vadd.f32 0.0, %v4546
  %v4548 = vpop.f32.mrb[0].mxu0
  %4549 = vmatprep.mubr.f32.mxu0 %v4278
  %4550 = vmatmul.mubr.f32.gmra.mrb[0].mxu0 %v4117
  %v4551 = vpop.f32.mrb[0].mxu0
  %v4552 = vadd.f32 0.0, %v4551
  %v4553 = vpop.f32.mrb[0].mxu0
  %4554 = vmatprep.mubr.f32.mxu0 %v4281
  %4555 = vmatmul.mubr.f32.gmra.mrb[0].mxu0 %v4119
  %v4556 = vpop.f32.mrb[0].mxu0
  %v4557 = vadd.f32 0.0, %v4556
  %v4558 = vpop.f32.mrb[0].mxu0
  %4559 = vmatprep.mubr.f32.mxu0 %v4284
  %4560 = vmatmul.mubr.f32.gmra.mrb[0].mxu0 %v4121
  %v4561 = vpop.f32.mrb[0].mxu0
  %v4562 = vadd.f32 0.0, %v4561
  %v4563 = vpop.f32.mrb[0].mxu0
  %4564 = vmatprep.mubr.f32.mxu0 %v4287
  %4565 = vmatmul.mubr.f32.gmra.mrb[0].mxu0 %v4123
  %v4566 = vpop.f32.mrb[0].mxu0
  %v4567 = vadd.f32 0.0, %v4566
  %v4568 = vpop.f32.mrb[0].mxu0
  %4569 = vmatprep.mubr.f32.mxu0 %v4290
  %4570 = vmatmul.mubr.f32.gmra.mrb[0].mxu0 %v4125
  %v4571 = vpop.f32.mrb[0].mxu0
  %v4572 = vadd.f32 0.0, %v4571
  %v4573 = vpop.f32.mrb[0].mxu0
  %4574 = vmatprep.mubr.f32.mxu0 %v4293
  %4575 = vmatmul.mubr.f32.gmra.mrb[0].mxu0 %v4127
  %v4576 = vpop.f32.mrb[0].mxu0
  %v4577 = vadd.f32 0.0, %v4576
  %v4578 = vpop.f32.mrb[0].mxu0
  %4579 = vmatprep.mubr.f32.mxu0 %v4296
  %4580 = vmatmul.mubr.f32.gmra.mrb[0].mxu0 %v4129
  %v4581 = vpop.f32.mrb[0].mxu0
  %v4582 = vadd.f32 0.0, %v4581
  %v4583 = vpop.f32.mrb[0].mxu0
  %4584 = vmatprep.mubr.f32.mxu0 %v4299
  %4585 = vmatmul.mubr.f32.gmra.mrb[0].mxu0 %v4131
  %v4586 = vpop.f32.mrb[0].mxu0
  %v4587 = vadd.f32 0.0, %v4586
  %v4588 = vpop.f32.mrb[0].mxu0
  %4589 = vmatprep.mubr.f32.mxu0 %v4302
  %4590 = vmatmul.mubr.f32.gmra.mrb[0].mxu0 %v4133
  %v4591 = vpop.f32.mrb[0].mxu0
  %v4592 = vadd.f32 0.0, %v4591
  %v4593 = vpop.f32.mrb[0].mxu0
  %4594 = vmatprep.mubr.f32.mxu0 %v4305
  %4595 = vmatmul.mubr.f32.gmra.mrb[0].mxu0 %v4135
  %v4596 = vpop.f32.mrb[0].mxu0
  %v4597 = vadd.f32 0.0, %v4596
  %v4598 = vpop.f32.mrb[0].mxu0
  %4599 = vmatprep.mubr.f32.mxu0 %v4308
  %4600 = vmatmul.mubr.f32.gmra.mrb[0].mxu0 %v4137
  %v4601 = vpop.f32.mrb[0].mxu0
  %v4602 = vadd.f32 0.0, %v4601
  %v4603 = vpop.f32.mrb[0].mxu0
  %4604 = vmatprep.mubr.f32.mxu0 %v4311
  %4605 = vmatmul.mubr.f32.gmra.mrb[0].mxu0 %v4139
  %v4606 = vpop.f32.mrb[0].mxu0
  %v4607 = vadd.f32 0.0, %v4606
  %v4608 = vpop.f32.mrb[0].mxu0
  %4609 = vmatprep.mubr.f32.mxu0 %v4314
  %4610 = vmatmul.mubr.f32.gmra.mrb[0].mxu0 %v4141
  %v4611 = vpop.f32.mrb[0].mxu0
  %v4612 = vadd.f32 0.0, %v4611
  %v4613 = vpop.f32.mrb[0].mxu0
  %4614 = vmatprep.mubr.f32.mxu0 %v4317
  %4615 = vmatmul.mubr.f32.gmra.mrb[0].mxu0 %v4143
  %v4616 = vpop.f32.mrb[0].mxu0
  %v4617 = vadd.f32 0.0, %v4616
  %v4618 = vpop.f32.mrb[0].mxu0
  %4619 = vmatprep.mubr.f32.mxu0 %v4320
  %4620 = vmatmul.mubr.f32.gmra.mrb[0].mxu0 %v4145
  %v4621 = vpop.f32.mrb[0].mxu0
  %v4622 = vadd.f32 0.0, %v4621
  %v4623 = vpop.f32.mrb[0].mxu0
  %4624 = vmatprep.mubr.f32.mxu0 %v4323
  %4625 = vmatmul.mubr.f32.gmra.mrb[0].mxu0 %v4147
  %v4626 = vpop.f32.mrb[0].mxu0
  %v4627 = vadd.f32 0.0, %v4626
  %v4628 = vpop.f32.mrb[0].mxu0
  %4629 = vmatprep.mubr.f32.mxu0 %v4326
  %4630 = vmatmul.mubr.f32.gmra.mrb[0].mxu0 %v4149
  %v4631 = vpop.f32.mrb[0].mxu0
  %v4632 = vadd.f32 0.0, %v4631
  %v4633 = vpop.f32.mrb[0].mxu0
  %4634 = vmatprep.mubr.f32.mxu0 %v4329
  %4635 = vmatmul.mubr.f32.gmra.mrb[0].mxu0 %v4151
  %v4636 = vpop.f32.mrb[0].mxu0
  %v4637 = vadd.f32 0.0, %v4636
  %v4638 = vpop.f32.mrb[0].mxu0
  %4639 = vmatprep.mubr.f32.mxu0 %v4332
  %4640 = vmatmul.mubr.f32.gmra.mrb[0].mxu0 %v4153
  %v4641 = vpop.f32.mrb[0].mxu0
  %v4642 = vadd.f32 0.0, %v4641
  %v4643 = vpop.f32.mrb[0].mxu0
  %4644 = vmatprep.mubr.f32.mxu0 %v4335
  %4645 = vmatmul.mubr.f32.gmra.mrb[0].mxu0 %v4155
  %v4646 = vpop.f32.mrb[0].mxu0
  %v4647 = vadd.f32 0.0, %v4646
  %v4648 = vpop.f32.mrb[0].mxu0
  %4649 = vmatprep.mubr.f32.mxu0 %v4338
  %4650 = vmatmul.mubr.f32.gmra.mrb[0].mxu0 %v4157
  %v4651 = vpop.f32.mrb[0].mxu0
  %v4652 = vadd.f32 0.0, %v4651
  %v4653 = vpop.f32.mrb[0].mxu0
  %4654 = vmatprep.mubr.f32.mxu0 %v4341
  %4655 = vmatmul.mubr.f32.gmra.mrb[0].mxu0 %v4159
  %v4656 = vpop.f32.mrb[0].mxu0
  %v4657 = vadd.f32 0.0, %v4656
  %v4658 = vpop.f32.mrb[0].mxu0
  %4659 = vmatprep.mubr.f32.mxu0 %v4344
  %4660 = vmatmul.mubr.f32.gmra.mrb[0].mxu0 %v4161
  %v4661 = vpop.f32.mrb[0].mxu0
  %v4662 = vadd.f32 0.0, %v4661
  %v4663 = vpop.f32.mrb[0].mxu0
  %4664 = vmatprep.mubr.f32.mxu0 %v4347
  %4665 = vmatmul.mubr.f32.gmra.mrb[0].mxu0 %v4163
  %v4666 = vpop.f32.mrb[0].mxu0
  %v4667 = vadd.f32 0.0, %v4666
  %v4668 = vpop.f32.mrb[0].mxu0
  %4669 = vmatprep.mubr.f32.mxu0 %v4350
  %4670 = vmatmul.mubr.f32.gmra.mrb[0].mxu0 %v4165
  %v4671 = vpop.f32.mrb[0].mxu0
  %v4672 = vadd.f32 0.0, %v4671
  %v4673 = vpop.f32.mrb[0].mxu0
  %4674 = vmatprep.mubr.f32.mxu0 %v4353
  %4675 = vmatmul.mubr.f32.gmra.mrb[0].mxu0 %v4167
  %v4676 = vpop.f32.mrb[0].mxu0
  %v4677 = vadd.f32 0.0, %v4676
  %v4678 = vpop.f32.mrb[0].mxu0
  %4679 = vmatprep.mubr.f32.mxu0 %v4356
  %4680 = vmatmul.mubr.f32.gmra.mrb[0].mxu0 %v4169
  %v4681 = vpop.f32.mrb[0].mxu0
  %v4682 = vadd.f32 0.0, %v4681
  %v4683 = vpop.f32.mrb[0].mxu0
  %4684 = vmatprep.mubr.f32.mxu0 %v4359
  %4685 = vmatmul.mubr.f32.gmra.mrb[0].mxu0 %v4171
  %v4686 = vpop.f32.mrb[0].mxu0
  %v4687 = vadd.f32 0.0, %v4686
  %v4688 = vpop.f32.mrb[0].mxu0
  %4689 = vmatprep.mubr.f32.mxu0 %v4362
  %4690 = vmatmul.mubr.f32.gmra.mrb[0].mxu0 %v4173
  %v4691 = vpop.f32.mrb[0].mxu0
  %v4692 = vadd.f32 0.0, %v4691
  %v4693 = vpop.f32.mrb[0].mxu0
  %4694 = vmatprep.mubr.f32.mxu0 %v4365
  %4695 = vmatmul.mubr.f32.gmra.mrb[0].mxu0 %v4175
  %v4696 = vpop.f32.mrb[0].mxu0
  %v4697 = vadd.f32 0.0, %v4696
  %v4698 = vpop.f32.mrb[0].mxu0
  %4699 = vmatprep.mubr.f32.mxu0 %v4368
  %4700 = vmatmul.mubr.f32.gmra.mrb[0].mxu0 %v4177
  %v4701 = vpop.f32.mrb[0].mxu0
  %v4702 = vadd.f32 0.0, %v4701
  %v4703 = vpop.f32.mrb[0].mxu0
  %4704 = vmatprep.mubr.f32.mxu0 %v4371
  %4705 = vmatmul.mubr.f32.gmra.mrb[0].mxu0 %v4179
  %v4706 = vpop.f32.mrb[0].mxu0
  %v4707 = vadd.f32 0.0, %v4706
  %v4708 = vpop.f32.mrb[0].mxu0
  %4709 = vmatprep.mubr.f32.mxu0 %v4374
  %4710 = vmatmul.mubr.f32.gmra.mrb[0].mxu0 %v4181
  %v4711 = vpop.f32.mrb[0].mxu0
  %v4712 = vadd.f32 0.0, %v4711
  %v4713 = vpop.f32.mrb[0].mxu0
  %4714 = vmatprep.mubr.f32.mxu0 %v4377
  %4715 = vmatmul.mubr.f32.gmra.mrb[0].mxu0 %v4183
  %v4716 = vpop.f32.mrb[0].mxu0
  %v4717 = vadd.f32 0.0, %v4716
  %v4718 = vpop.f32.mrb[0].mxu0
  %4719 = vmatprep.mubr.f32.mxu0 %v4380
  %4720 = vmatmul.mubr.f32.gmra.mrb[0].mxu0 %v4185
  %v4721 = vpop.f32.mrb[0].mxu0
  %v4722 = vadd.f32 0.0, %v4721
  %v4723 = vpop.f32.mrb[0].mxu0
  %4724 = vmatprep.mubr.f32.mxu0 %v4383
  %4725 = vmatmul.mubr.f32.gmra.mrb[0].mxu0 %v4187
  %v4726 = vpop.f32.mrb[0].mxu0
  %v4727 = vadd.f32 0.0, %v4726
  %v4728 = vpop.f32.mrb[0].mxu0
  %4729 = vmatprep.mubr.f32.mxu0 %v4386
  %4730 = vmatmul.mubr.f32.gmra.mrb[0].mxu0 %v4189
  %v4731 = vpop.f32.mrb[0].mxu0
  %v4732 = vadd.f32 0.0, %v4731
  %v4733 = vpop.f32.mrb[0].mxu0
  %4734 = vmatprep.mubr.f32.mxu0 %v4389
  %4735 = vmatmul.mubr.f32.gmra.mrb[0].mxu0 %v4191
  %v4736 = vpop.f32.mrb[0].mxu0
  %v4737 = vadd.f32 0.0, %v4736
  %v4738 = vpop.f32.mrb[0].mxu0
  %4739 = vmatprep.mubr.f32.mxu0 %v4392
  %4740 = vmatmul.mubr.f32.gmra.mrb[0].mxu0 %v4193
  %v4741 = vpop.f32.mrb[0].mxu0
  %v4742 = vadd.f32 0.0, %v4741
  %v4743 = vpop.f32.mrb[0].mxu0
  %4744 = vmatprep.mubr.f32.mxu0 %v4395
  %4745 = vmatmul.mubr.f32.gmra.mrb[0].mxu0 %v4195
  %v4746 = vpop.f32.mrb[0].mxu0
  %v4747 = vadd.f32 0.0, %v4746
  %v4748 = vpop.f32.mrb[0].mxu0
  %4749 = vmatprep.mubr.f32.mxu0 %v4398
  %4750 = vmatmul.mubr.f32.gmra.mrb[0].mxu0 %v4197
  %v4751 = vpop.f32.mrb[0].mxu0
  %v4752 = vadd.f32 0.0, %v4751
  %v4753 = vpop.f32.mrb[0].mxu0
  %4754 = vmatprep.mubr.f32.mxu0 %v4401
  %4755 = vmatmul.mubr.f32.gmra.mrb[0].mxu0 %v4199
  %v4756 = vpop.f32.mrb[0].mxu0
  %v4757 = vadd.f32 0.0, %v4756
  %v4758 = vpop.f32.mrb[0].mxu0
  %4759 = vmatprep.mubr.f32.mxu0 %v4404
  %4760 = vmatmul.mubr.f32.gmra.mrb[0].mxu0 %v4201
  %v4761 = vpop.f32.mrb[0].mxu0
  %v4762 = vadd.f32 0.0, %v4761
  %v4763 = vpop.f32.mrb[0].mxu0
  %4764 = vmatprep.mubr.f32.mxu0 %v4407
  %4765 = vmatmul.mubr.f32.gmra.mrb[0].mxu0 %v4203
  %v4766 = vpop.f32.mrb[0].mxu0
  %v4767 = vadd.f32 0.0, %v4766
  %v4768 = vpop.f32.mrb[0].mxu0
  %4769 = vmatprep.mubr.f32.mxu0 %v4410
  %4770 = vmatmul.mubr.f32.gmra.mrb[0].mxu0 %v4205
  %v4771 = vpop.f32.mrb[0].mxu0
  %v4772 = vadd.f32 0.0, %v4771
  %v4773 = vpop.f32.mrb[0].mxu0
  %4774 = vmatprep.mubr.f32.mxu0 %v4413
  %4775 = vmatmul.mubr.f32.gmra.mrb[0].mxu0 %v4207
  %v4776 = vpop.f32.mrb[0].mxu0
  %v4777 = vadd.f32 0.0, %v4776
  %v4778 = vpop.f32.mrb[0].mxu0
  %4779 = vmatprep.mubr.f32.mxu0 %v4416
  %4780 = vmatmul.mubr.f32.gmra.mrb[0].mxu0 %v4209
  %v4781 = vpop.f32.mrb[0].mxu0
  %v4782 = vadd.f32 0.0, %v4781
  %v4783 = vpop.f32.mrb[0].mxu0
  %4784 = vmatprep.mubr.f32.mxu0 %v4419
  %4785 = vmatmul.mubr.f32.gmra.mrb[0].mxu0 %v4211
  %v4786 = vpop.f32.mrb[0].mxu0
  %v4787 = vadd.f32 0.0, %v4786
  %v4788 = vpop.f32.mrb[0].mxu0
  %4789 = vmatprep.mubr.f32.mxu0 %v4422
  %4790 = vmatmul.mubr.f32.gmra.mrb[0].mxu0 %v4213
  %v4791 = vpop.f32.mrb[0].mxu0
  %v4792 = vadd.f32 0.0, %v4791
  %v4793 = vpop.f32.mrb[0].mxu0
  %4794 = vmatprep.mubr.f32.mxu0 %v4425
  %4795 = vmatmul.mubr.f32.gmra.mrb[0].mxu0 %v4215
  %v4796 = vpop.f32.mrb[0].mxu0
  %v4797 = vadd.f32 0.0, %v4796
  %v4798 = vpop.f32.mrb[0].mxu0
  %4799 = vmatprep.mubr.f32.mxu0 %v4428
  %4800 = vmatmul.mubr.f32.gmra.mrb[0].mxu0 %v4217
  %v4801 = vpop.f32.mrb[0].mxu0
  %v4802 = vadd.f32 0.0, %v4801
  %v4803 = vpop.f32.mrb[0].mxu0
  %4804 = vmatprep.mubr.f32.mxu0 %v4431
  %4805 = vmatmul.mubr.f32.gmra.mrb[0].mxu0 %v4219
  %v4806 = vpop.f32.mrb[0].mxu0
  %v4807 = vadd.f32 0.0, %v4806
  %v4808 = vpop.f32.mrb[0].mxu0
  %4809 = vmatprep.mubr.f32.mxu0 %v4434
  %4810 = vmatmul.mubr.f32.gmra.mrb[0].mxu0 %v4221
  %v4811 = vpop.f32.mrb[0].mxu0
  %v4812 = vadd.f32 0.0, %v4811
  %v4813 = vpop.f32.mrb[0].mxu0
  %4814 = vmatprep.mubr.f32.mxu0 %v4437
  %4815 = vmatmul.mubr.f32.gmra.mrb[0].mxu0 %v4223
  %v4816 = vpop.f32.mrb[0].mxu0
  %v4817 = vadd.f32 0.0, %v4816
  %v4818 = vpop.f32.mrb[0].mxu0
  %4819 = vmatprep.mubr.f32.mxu0 %v4440
  %4820 = vmatmul.mubr.f32.gmra.mrb[0].mxu0 %v4225
  %v4821 = vpop.f32.mrb[0].mxu0
  %v4822 = vadd.f32 0.0, %v4821
  %v4823 = vpop.f32.mrb[0].mxu0
  %4824 = vmatprep.mubr.f32.mxu0 %v4443
  %4825 = vmatmul.mubr.f32.gmra.mrb[0].mxu0 %v4227
  %v4826 = vpop.f32.mrb[0].mxu0
  %v4827 = vadd.f32 0.0, %v4826
  %v4828 = vpop.f32.mrb[0].mxu0
  %4829 = vdwg.mxu0
  %v4830 = vld [vmem:[%s10] sm:$0xff]
  %v4831 = vld [vmem:[%s10 + $0x8] sm:$0xff]
  %v4832 = vld [vmem:[%s10 + $0x10] sm:$0xff]
  %v4833 = vld [vmem:[%s10 + $0x18] sm:$0xff]
  %v4834 = vld [vmem:[%s11] sm:$0xff]
  %v4835 = vld [vmem:[%s11 + $0x8] sm:$0xff]
  %v4836 = vld [vmem:[%s11 + $0x10] sm:$0xff]
  %v4837 = vld [vmem:[%s11 + $0x18] sm:$0xff]
  %v4838 = vld [vmem:[%s12] sm:$0xff]
  %v4839 = vld [vmem:[%s12 + $0x8] sm:$0xff]
  %v4840 = vld [vmem:[%s12 + $0x10] sm:$0xff]
  %v4841 = vld [vmem:[%s12 + $0x18] sm:$0xff]
  %v4842 = vld [vmem:[%s13] sm:$0x1]
  %v4843 = vld [vmem:[%s14] sm:$0x1]
  %v4844 = vld [vmem:[#allocation3] sm:$0x1]
  %v4845 = vmul.f32 %v4512, %v185
  %v4846 = vmul.f32 %v4517, %v186
  %v4847 = vmul.f32 %v4522, %v187
  %v4848 = vmul.f32 %v4527, %v188
  %v4849 = vmul.f32 %v4532, %v189
  %v4850 = vmul.f32 %v4537, %v190
  %v4851 = vmul.f32 %v4542, %v191
  %v4852 = vmul.f32 %v4547, %v192
  %v4853 = vmul.f32 %v4552, %v193
  %v4854 = vmul.f32 %v4557, %v194
  %v4855 = vmul.f32 %v4562, %v195
  %v4856 = vmul.f32 %v4567, %v196
  %v4857 = vmul.f32 %v4572, %v197
  %v4858 = vmul.f32 %v4577, %v198
  %v4859 = vmul.f32 %v4582, %v199
  %v4860 = vmul.f32 %v4587, %v200
  %v4861 = vmul.f32 %v4592, %v201
  %v4862 = vmul.f32 %v4597, %v202
  %v4863 = vmul.f32 %v4602, %v203
  %v4864 = vmul.f32 %v4607, %v204
  %v4865 = vmul.f32 %v4612, %v205
  %v4866 = vmul.f32 %v4617, %v206
  %v4867 = vmul.f32 %v4622, %v207
  %v4868 = vmul.f32 %v4627, %v208
  %v4869 = vmul.f32 %v4632, %v209
  %v4870 = vmul.f32 %v4637, %v210
  %v4871 = vmul.f32 %v4642, %v211
  %v4872 = vmul.f32 %v4647, %v212
  %v4873 = vmul.f32 %v4652, %v213
  %v4874 = vmul.f32 %v4657, %v214
  %v4875 = vmul.f32 %v4662, %v215
  %v4876 = vmul.f32 %v4667, %v216
  %v4877 = vmul.f32 %v4672, %v217
  %v4878 = vmul.f32 %v4677, %v218
  %v4879 = vmul.f32 %v4682, %v219
  %v4880 = vmul.f32 %v4687, %v220
  %v4881 = vmul.f32 %v4692, %v221
  %v4882 = vmul.f32 %v4697, %v222
  %v4883 = vmul.f32 %v4702, %v223
  %v4884 = vmul.f32 %v4707, %v224
  %v4885 = vmul.f32 %v4712, %v225
  %v4886 = vmul.f32 %v4717, %v226
  %v4887 = vmul.f32 %v4722, %v227
  %v4888 = vmul.f32 %v4727, %v228
  %v4889 = vmul.f32 %v4732, %v229
  %v4890 = vmul.f32 %v4737, %v230
  %v4891 = vmul.f32 %v4742, %v231
  %v4892 = vmul.f32 %v4747, %v232
  %v4893 = vmul.f32 %v4752, %v233
  %v4894 = vmul.f32 %v4757, %v234
  %v4895 = vmul.f32 %v4762, %v235
  %v4896 = vmul.f32 %v4767, %v236
  %v4897 = vmul.f32 %v4772, %v237
  %v4898 = vmul.f32 %v4777, %v238
  %v4899 = vmul.f32 %v4782, %v239
  %v4900 = vmul.f32 %v4787, %v240
  %v4901 = vmul.f32 %v4792, %v241
  %v4902 = vmul.f32 %v4797, %v242
  %v4903 = vmul.f32 %v4802, %v243
  %v4904 = vmul.f32 %v4807, %v244
  %v4905 = vmul.f32 %v4812, %v245
  %v4906 = vmul.f32 %v4817, %v246
  %v4907 = vmul.f32 %v4822, %v247
  %v4908 = vmul.f32 %v4827, %v248
  %v4910 = vsel %vm277, %v4512, 0
  %v4913 = vsel %vm277, %v4517, 0
  %v4916 = vsel %vm277, %v4522, 0
  %v4919 = vsel %vm277, %v4527, 0
  %v4922 = vsel %vm277, %v4532, 0
  %v4925 = vsel %vm277, %v4537, 0
  %v4928 = vsel %vm277, %v4542, 0
  %v4931 = vsel %vm277, %v4547, 0
  %v4934 = vsel %vm277, %v4552, 0
  %v4937 = vsel %vm277, %v4557, 0
  %v4940 = vsel %vm277, %v4562, 0
  %v4943 = vsel %vm277, %v4567, 0
  %v4946 = vsel %vm277, %v4572, 0
  %v4949 = vsel %vm277, %v4577, 0
  %v4952 = vsel %vm277, %v4582, 0
  %v4955 = vsel %vm277, %v4587, 0
  %v4958 = vsel %vm277, %v4592, 0
  %v4961 = vsel %vm277, %v4597, 0
  %v4964 = vsel %vm277, %v4602, 0
  %v4967 = vsel %vm277, %v4607, 0
  %v4970 = vsel %vm277, %v4612, 0
  %v4973 = vsel %vm277, %v4617, 0
  %v4976 = vsel %vm277, %v4622, 0
  %v4979 = vsel %vm277, %v4627, 0
  %v4982 = vsel %vm277, %v4632, 0
  %v4985 = vsel %vm277, %v4637, 0
  %v4988 = vsel %vm277, %v4642, 0
  %v4991 = vsel %vm277, %v4647, 0
  %v4994 = vsel %vm277, %v4652, 0
  %v4997 = vsel %vm277, %v4657, 0
  %v5000 = vsel %vm277, %v4662, 0
  %v5003 = vsel %vm277, %v4667, 0
  %v5006 = vsel %vm277, %v4672, 0
  %v5009 = vsel %vm277, %v4677, 0
  %v5012 = vsel %vm277, %v4682, 0
  %v5015 = vsel %vm277, %v4687, 0
  %v5018 = vsel %vm277, %v4692, 0
  %v5021 = vsel %vm277, %v4697, 0
  %v5024 = vsel %vm277, %v4702, 0
  %v5027 = vsel %vm277, %v4707, 0
  %v5030 = vsel %vm277, %v4712, 0
  %v5033 = vsel %vm277, %v4717, 0
  %v5036 = vsel %vm277, %v4722, 0
  %v5039 = vsel %vm277, %v4727, 0
  %v5042 = vsel %vm277, %v4732, 0
  %v5045 = vsel %vm277, %v4737, 0
  %v5048 = vsel %vm277, %v4742, 0
  %v5051 = vsel %vm277, %v4747, 0
  %v5054 = vsel %vm277, %v4752, 0
  %v5057 = vsel %vm277, %v4757, 0
  %v5060 = vsel %vm277, %v4762, 0
  %v5063 = vsel %vm277, %v4767, 0
  %v5066 = vsel %vm277, %v4772, 0
  %v5069 = vsel %vm277, %v4777, 0
  %v5072 = vsel %vm277, %v4782, 0
  %v5075 = vsel %vm277, %v4787, 0
  %v5078 = vsel %vm277, %v4792, 0
  %v5081 = vsel %vm277, %v4797, 0
  %v5084 = vsel %vm277, %v4802, 0
  %v5087 = vsel %vm277, %v4807, 0
  %v5090 = vsel %vm277, %v4812, 0
  %v5093 = vsel %vm277, %v4817, 0
  %v5096 = vsel %vm277, %v4822, 0
  %v5099 = vsel %vm277, %v4827, 0
  %5101 = vmatprep.subr.mxu0 0.0
  %5102 = vmatpush1.msra.mxu0 %v4834
  %5103 = vmatprep.subr.mxu0 0.0
  %5104 = vmatpush1.msra.mxu0 %v4835
  %5105 = vmatprep.subr.mxu0 0.0
  %5106 = vmatpush1.msra.mxu0 %v4836
  %5107 = vmatprep.subr.mxu0 0.0
  %5108 = vmatpush1.msra.mxu0 %v4837
  %5109 = vmatprep.subr.mxu0 0.0
  %5110 = vmatpush1.msra.mxu0 0.0
  %5111 = vmatprep.subr.mxu0 0.0
  %5112 = vmatpush1.msra.mxu0 0.0
  %5113 = vmatprep.subr.mxu0 0.0
  %5114 = vmatpush1.msra.mxu0 0.0
  %5115 = vmatprep.subr.mxu0 0.0
  %5116 = vmatpush1.msra.mxu0 0.0
  %5117 = vmatprep.subr.mxu0 0.0
  %5118 = vmatpush1.msra.mxu0 0.0
  %5119 = vmatprep.subr.mxu0 0.0
  %5120 = vmatpush1.msra.mxu0 0.0
  %5121 = vmatprep.subr.mxu0 0.0
  %5122 = vmatpush1.msra.mxu0 0.0
  %5123 = vmatprep.subr.mxu0 0.0
  %5124 = vmatpush1.msra.mxu0 0.0
  %5125 = vmatprep.subr.mxu0 0.0
  %5126 = vmatpush1.msra.mxu0 0.0
  %5127 = vmatprep.subr.mxu0 0.0
  %5128 = vmatpush1.msra.mxu0 0.0
  %5129 = vmatprep.subr.mxu0 0.0
  %5130 = vmatpush1.msra.mxu0 0.0
  %5131 = vmatprep.subr.mxu0 0.0
  %5132 = vmatpush1.msra.mxu0 0.0
  %5133 = vmatprep.subr.mxu0 0.0
  %5134 = vmatpush1.msra.mxu0 0.0
  %5135 = vmatprep.subr.mxu0 0.0
  %5136 = vmatpush1.msra.mxu0 0.0
  %5137 = vmatprep.subr.mxu0 0.0
  %5138 = vmatpush1.msra.mxu0 0.0
  %5139 = vmatprep.subr.mxu0 0.0
  %5140 = vmatpush1.msra.mxu0 0.0
  %5141 = vmatprep.subr.mxu0 0.0
  %5142 = vmatpush1.msra.mxu0 0.0
  %5143 = vmatprep.subr.mxu0 0.0
  %5144 = vmatpush1.msra.mxu0 0.0
  %5145 = vmatprep.subr.mxu0 0.0
  %5146 = vmatpush1.msra.mxu0 0.0
  %5147 = vmatprep.subr.mxu0 0.0
  %5148 = vmatpush1.msra.mxu0 0.0
  %5149 = vmatprep.subr.mxu0 0.0
  %5150 = vmatpush1.msra.mxu0 0.0
  %5151 = vmatprep.subr.mxu0 0.0
  %5152 = vmatpush1.msra.mxu0 0.0
  %5153 = vmatprep.subr.mxu0 0.0
  %5154 = vmatpush1.msra.mxu0 0.0
  %5155 = vmatprep.subr.mxu0 0.0
  %5156 = vmatpush1.msra.mxu0 0.0
  %5157 = vmatprep.subr.mxu0 0.0
  %5158 = vmatpush1.msra.mxu0 0.0
  %5159 = vmatprep.subr.mxu0 0.0
  %5160 = vmatpush1.msra.mxu0 0.0
  %5161 = vmatprep.subr.mxu0 0.0
  %5162 = vmatpush1.msra.mxu0 0.0
  %5163 = vmatprep.subr.mxu0 0.0
  %5164 = vmatpush1.msra.mxu0 0.0
  %5165 = vmatprep.mubr.f32.mxu0 0.0
  %5166 = vmatmul.mubr.f32.gmra.mrb[0].mxu0 %v4910
  %v5167 = vpop.f32.mrb[0].mxu0
  %v5168 = vadd.f32 0.0, %v5167
  %v5169 = vpop.f32.mrb[0].mxu0
  %5170 = vmatprep.mubr.f32.mxu0 0.0
  %5171 = vmatmul.mubr.f32.gmra.mrb[0].mxu0 %v4913
  %v5172 = vpop.f32.mrb[0].mxu0
  %v5173 = vadd.f32 0.0, %v5172
  %v5174 = vpop.f32.mrb[0].mxu0
  %5175 = vmatprep.mubr.f32.mxu0 0.0
  %5176 = vmatmul.mubr.f32.gmra.mrb[0].mxu0 %v4916
  %v5177 = vpop.f32.mrb[0].mxu0
  %v5178 = vadd.f32 0.0, %v5177
  %v5179 = vpop.f32.mrb[0].mxu0
  %5180 = vmatprep.mubr.f32.mxu0 0.0
  %5181 = vmatmul.mubr.f32.gmra.mrb[0].mxu0 %v4919
  %v5182 = vpop.f32.mrb[0].mxu0
  %v5183 = vadd.f32 0.0, %v5182
  %v5184 = vpop.f32.mrb[0].mxu0
  %5185 = vmatprep.mubr.f32.mxu0 0.0
  %5186 = vmatmul.mubr.f32.gmra.mrb[0].mxu0 %v4922
  %v5187 = vpop.f32.mrb[0].mxu0
  %v5188 = vadd.f32 0.0, %v5187
  %v5189 = vpop.f32.mrb[0].mxu0
  %5190 = vmatprep.mubr.f32.mxu0 0.0
  %5191 = vmatmul.mubr.f32.gmra.mrb[0].mxu0 %v4925
  %v5192 = vpop.f32.mrb[0].mxu0
  %v5193 = vadd.f32 0.0, %v5192
  %v5194 = vpop.f32.mrb[0].mxu0
  %5195 = vmatprep.mubr.f32.mxu0 0.0
  %5196 = vmatmul.mubr.f32.gmra.mrb[0].mxu0 %v4928
  %v5197 = vpop.f32.mrb[0].mxu0
  %v5198 = vadd.f32 0.0, %v5197
  %v5199 = vpop.f32.mrb[0].mxu0
  %5200 = vmatprep.mubr.f32.mxu0 0.0
  %5201 = vmatmul.mubr.f32.gmra.mrb[0].mxu0 %v4931
  %v5202 = vpop.f32.mrb[0].mxu0
  %v5203 = vadd.f32 0.0, %v5202
  %v5204 = vpop.f32.mrb[0].mxu0
  %5205 = vmatprep.mubr.f32.mxu0 0.0
  %5206 = vmatmul.mubr.f32.gmra.mrb[0].mxu0 %v4934
  %v5207 = vpop.f32.mrb[0].mxu0
  %v5208 = vadd.f32 0.0, %v5207
  %v5209 = vpop.f32.mrb[0].mxu0
  %5210 = vmatprep.mubr.f32.mxu0 0.0
  %5211 = vmatmul.mubr.f32.gmra.mrb[0].mxu0 %v4937
  %v5212 = vpop.f32.mrb[0].mxu0
  %v5213 = vadd.f32 0.0, %v5212
  %v5214 = vpop.f32.mrb[0].mxu0
  %5215 = vmatprep.mubr.f32.mxu0 0.0
  %5216 = vmatmul.mubr.f32.gmra.mrb[0].mxu0 %v4940
  %v5217 = vpop.f32.mrb[0].mxu0
  %v5218 = vadd.f32 0.0, %v5217
  %v5219 = vpop.f32.mrb[0].mxu0
  %5220 = vmatprep.mubr.f32.mxu0 0.0
  %5221 = vmatmul.mubr.f32.gmra.mrb[0].mxu0 %v4943
  %v5222 = vpop.f32.mrb[0].mxu0
  %v5223 = vadd.f32 0.0, %v5222
  %v5224 = vpop.f32.mrb[0].mxu0
  %5225 = vmatprep.mubr.f32.mxu0 0.0
  %5226 = vmatmul.mubr.f32.gmra.mrb[0].mxu0 %v4946
  %v5227 = vpop.f32.mrb[0].mxu0
  %v5228 = vadd.f32 0.0, %v5227
  %v5229 = vpop.f32.mrb[0].mxu0
  %5230 = vmatprep.mubr.f32.mxu0 0.0
  %5231 = vmatmul.mubr.f32.gmra.mrb[0].mxu0 %v4949
  %v5232 = vpop.f32.mrb[0].mxu0
  %v5233 = vadd.f32 0.0, %v5232
  %v5234 = vpop.f32.mrb[0].mxu0
  %5235 = vmatprep.mubr.f32.mxu0 0.0
  %5236 = vmatmul.mubr.f32.gmra.mrb[0].mxu0 %v4952
  %v5237 = vpop.f32.mrb[0].mxu0
  %v5238 = vadd.f32 0.0, %v5237
  %v5239 = vpop.f32.mrb[0].mxu0
  %5240 = vmatprep.mubr.f32.mxu0 0.0
  %5241 = vmatmul.mubr.f32.gmra.mrb[0].mxu0 %v4955
  %v5242 = vpop.f32.mrb[0].mxu0
  %v5243 = vadd.f32 0.0, %v5242
  %v5244 = vpop.f32.mrb[0].mxu0
  %5245 = vmatprep.mubr.f32.mxu0 0.0
  %5246 = vmatmul.mubr.f32.gmra.mrb[0].mxu0 %v4958
  %v5247 = vpop.f32.mrb[0].mxu0
  %v5248 = vadd.f32 0.0, %v5247
  %v5249 = vpop.f32.mrb[0].mxu0
  %5250 = vmatprep.mubr.f32.mxu0 0.0
  %5251 = vmatmul.mubr.f32.gmra.mrb[0].mxu0 %v4961
  %v5252 = vpop.f32.mrb[0].mxu0
  %v5253 = vadd.f32 0.0, %v5252
  %v5254 = vpop.f32.mrb[0].mxu0
  %5255 = vmatprep.mubr.f32.mxu0 0.0
  %5256 = vmatmul.mubr.f32.gmra.mrb[0].mxu0 %v4964
  %v5257 = vpop.f32.mrb[0].mxu0
  %v5258 = vadd.f32 0.0, %v5257
  %v5259 = vpop.f32.mrb[0].mxu0
  %5260 = vmatprep.mubr.f32.mxu0 0.0
  %5261 = vmatmul.mubr.f32.gmra.mrb[0].mxu0 %v4967
  %v5262 = vpop.f32.mrb[0].mxu0
  %v5263 = vadd.f32 0.0, %v5262
  %v5264 = vpop.f32.mrb[0].mxu0
  %5265 = vmatprep.mubr.f32.mxu0 0.0
  %5266 = vmatmul.mubr.f32.gmra.mrb[0].mxu0 %v4970
  %v5267 = vpop.f32.mrb[0].mxu0
  %v5268 = vadd.f32 0.0, %v5267
  %v5269 = vpop.f32.mrb[0].mxu0
  %5270 = vmatprep.mubr.f32.mxu0 0.0
  %5271 = vmatmul.mubr.f32.gmra.mrb[0].mxu0 %v4973
  %v5272 = vpop.f32.mrb[0].mxu0
  %v5273 = vadd.f32 0.0, %v5272
  %v5274 = vpop.f32.mrb[0].mxu0
  %5275 = vmatprep.mubr.f32.mxu0 0.0
  %5276 = vmatmul.mubr.f32.gmra.mrb[0].mxu0 %v4976
  %v5277 = vpop.f32.mrb[0].mxu0
  %v5278 = vadd.f32 0.0, %v5277
  %v5279 = vpop.f32.mrb[0].mxu0
  %5280 = vmatprep.mubr.f32.mxu0 0.0
  %5281 = vmatmul.mubr.f32.gmra.mrb[0].mxu0 %v4979
  %v5282 = vpop.f32.mrb[0].mxu0
  %v5283 = vadd.f32 0.0, %v5282
  %v5284 = vpop.f32.mrb[0].mxu0
  %5285 = vmatprep.mubr.f32.mxu0 0.0
  %5286 = vmatmul.mubr.f32.gmra.mrb[0].mxu0 %v4982
  %v5287 = vpop.f32.mrb[0].mxu0
  %v5288 = vadd.f32 0.0, %v5287
  %v5289 = vpop.f32.mrb[0].mxu0
  %5290 = vmatprep.mubr.f32.mxu0 0.0
  %5291 = vmatmul.mubr.f32.gmra.mrb[0].mxu0 %v4985
  %v5292 = vpop.f32.mrb[0].mxu0
  %v5293 = vadd.f32 0.0, %v5292
  %v5294 = vpop.f32.mrb[0].mxu0
  %5295 = vmatprep.mubr.f32.mxu0 0.0
  %5296 = vmatmul.mubr.f32.gmra.mrb[0].mxu0 %v4988
  %v5297 = vpop.f32.mrb[0].mxu0
  %v5298 = vadd.f32 0.0, %v5297
  %v5299 = vpop.f32.mrb[0].mxu0
  %5300 = vmatprep.mubr.f32.mxu0 0.0
  %5301 = vmatmul.mubr.f32.gmra.mrb[0].mxu0 %v4991
  %v5302 = vpop.f32.mrb[0].mxu0
  %v5303 = vadd.f32 0.0, %v5302
  %v5304 = vpop.f32.mrb[0].mxu0
  %5305 = vmatprep.mubr.f32.mxu0 0.0
  %5306 = vmatmul.mubr.f32.gmra.mrb[0].mxu0 %v4994
  %v5307 = vpop.f32.mrb[0].mxu0
  %v5308 = vadd.f32 0.0, %v5307
  %v5309 = vpop.f32.mrb[0].mxu0
  %5310 = vmatprep.mubr.f32.mxu0 0.0
  %5311 = vmatmul.mubr.f32.gmra.mrb[0].mxu0 %v4997
  %v5312 = vpop.f32.mrb[0].mxu0
  %v5313 = vadd.f32 0.0, %v5312
  %v5314 = vpop.f32.mrb[0].mxu0
  %5315 = vmatprep.mubr.f32.mxu0 0.0
  %5316 = vmatmul.mubr.f32.gmra.mrb[0].mxu0 %v5000
  %v5317 = vpop.f32.mrb[0].mxu0
  %v5318 = vadd.f32 0.0, %v5317
  %v5319 = vpop.f32.mrb[0].mxu0
  %5320 = vmatprep.mubr.f32.mxu0 0.0
  %5321 = vmatmul.mubr.f32.gmra.mrb[0].mxu0 %v5003
  %v5322 = vpop.f32.mrb[0].mxu0
  %v5323 = vadd.f32 0.0, %v5322
  %v5324 = vpop.f32.mrb[0].mxu0
  %5325 = vmatprep.mubr.f32.mxu0 0.0
  %5326 = vmatmul.mubr.f32.gmra.mrb[0].mxu0 %v5006
  %v5327 = vpop.f32.mrb[0].mxu0
  %v5328 = vadd.f32 0.0, %v5327
  %v5329 = vpop.f32.mrb[0].mxu0
  %5330 = vmatprep.mubr.f32.mxu0 0.0
  %5331 = vmatmul.mubr.f32.gmra.mrb[0].mxu0 %v5009
  %v5332 = vpop.f32.mrb[0].mxu0
  %v5333 = vadd.f32 0.0, %v5332
  %v5334 = vpop.f32.mrb[0].mxu0
  %5335 = vmatprep.mubr.f32.mxu0 0.0
  %5336 = vmatmul.mubr.f32.gmra.mrb[0].mxu0 %v5012
  %v5337 = vpop.f32.mrb[0].mxu0
  %v5338 = vadd.f32 0.0, %v5337
  %v5339 = vpop.f32.mrb[0].mxu0
  %5340 = vmatprep.mubr.f32.mxu0 0.0
  %5341 = vmatmul.mubr.f32.gmra.mrb[0].mxu0 %v5015
  %v5342 = vpop.f32.mrb[0].mxu0
  %v5343 = vadd.f32 0.0, %v5342
  %v5344 = vpop.f32.mrb[0].mxu0
  %5345 = vmatprep.mubr.f32.mxu0 0.0
  %5346 = vmatmul.mubr.f32.gmra.mrb[0].mxu0 %v5018
  %v5347 = vpop.f32.mrb[0].mxu0
  %v5348 = vadd.f32 0.0, %v5347
  %v5349 = vpop.f32.mrb[0].mxu0
  %5350 = vmatprep.mubr.f32.mxu0 0.0
  %5351 = vmatmul.mubr.f32.gmra.mrb[0].mxu0 %v5021
  %v5352 = vpop.f32.mrb[0].mxu0
  %v5353 = vadd.f32 0.0, %v5352
  %v5354 = vpop.f32.mrb[0].mxu0
  %5355 = vmatprep.mubr.f32.mxu0 0.0
  %5356 = vmatmul.mubr.f32.gmra.mrb[0].mxu0 %v5024
  %v5357 = vpop.f32.mrb[0].mxu0
  %v5358 = vadd.f32 0.0, %v5357
  %v5359 = vpop.f32.mrb[0].mxu0
  %5360 = vmatprep.mubr.f32.mxu0 0.0
  %5361 = vmatmul.mubr.f32.gmra.mrb[0].mxu0 %v5027
  %v5362 = vpop.f32.mrb[0].mxu0
  %v5363 = vadd.f32 0.0, %v5362
  %v5364 = vpop.f32.mrb[0].mxu0
  %5365 = vmatprep.mubr.f32.mxu0 0.0
  %5366 = vmatmul.mubr.f32.gmra.mrb[0].mxu0 %v5030
  %v5367 = vpop.f32.mrb[0].mxu0
  %v5368 = vadd.f32 0.0, %v5367
  %v5369 = vpop.f32.mrb[0].mxu0
  %5370 = vmatprep.mubr.f32.mxu0 0.0
  %5371 = vmatmul.mubr.f32.gmra.mrb[0].mxu0 %v5033
  %v5372 = vpop.f32.mrb[0].mxu0
  %v5373 = vadd.f32 0.0, %v5372
  %v5374 = vpop.f32.mrb[0].mxu0
  %5375 = vmatprep.mubr.f32.mxu0 0.0
  %5376 = vmatmul.mubr.f32.gmra.mrb[0].mxu0 %v5036
  %v5377 = vpop.f32.mrb[0].mxu0
  %v5378 = vadd.f32 0.0, %v5377
  %v5379 = vpop.f32.mrb[0].mxu0
  %5380 = vmatprep.mubr.f32.mxu0 0.0
  %5381 = vmatmul.mubr.f32.gmra.mrb[0].mxu0 %v5039
  %v5382 = vpop.f32.mrb[0].mxu0
  %v5383 = vadd.f32 0.0, %v5382
  %v5384 = vpop.f32.mrb[0].mxu0
  %5385 = vmatprep.mubr.f32.mxu0 0.0
  %5386 = vmatmul.mubr.f32.gmra.mrb[0].mxu0 %v5042
  %v5387 = vpop.f32.mrb[0].mxu0
  %v5388 = vadd.f32 0.0, %v5387
  %v5389 = vpop.f32.mrb[0].mxu0
  %5390 = vmatprep.mubr.f32.mxu0 0.0
  %5391 = vmatmul.mubr.f32.gmra.mrb[0].mxu0 %v5045
  %v5392 = vpop.f32.mrb[0].mxu0
  %v5393 = vadd.f32 0.0, %v5392
  %v5394 = vpop.f32.mrb[0].mxu0
  %5395 = vmatprep.mubr.f32.mxu0 0.0
  %5396 = vmatmul.mubr.f32.gmra.mrb[0].mxu0 %v5048
  %v5397 = vpop.f32.mrb[0].mxu0
  %v5398 = vadd.f32 0.0, %v5397
  %v5399 = vpop.f32.mrb[0].mxu0
  %5400 = vmatprep.mubr.f32.mxu0 0.0
  %5401 = vmatmul.mubr.f32.gmra.mrb[0].mxu0 %v5051
  %v5402 = vpop.f32.mrb[0].mxu0
  %v5403 = vadd.f32 0.0, %v5402
  %v5404 = vpop.f32.mrb[0].mxu0
  %5405 = vmatprep.mubr.f32.mxu0 0.0
  %5406 = vmatmul.mubr.f32.gmra.mrb[0].mxu0 %v5054
  %v5407 = vpop.f32.mrb[0].mxu0
  %v5408 = vadd.f32 0.0, %v5407
  %v5409 = vpop.f32.mrb[0].mxu0
  %5410 = vmatprep.mubr.f32.mxu0 0.0
  %5411 = vmatmul.mubr.f32.gmra.mrb[0].mxu0 %v5057
  %v5412 = vpop.f32.mrb[0].mxu0
  %v5413 = vadd.f32 0.0, %v5412
  %v5414 = vpop.f32.mrb[0].mxu0
  %5415 = vmatprep.mubr.f32.mxu0 0.0
  %5416 = vmatmul.mubr.f32.gmra.mrb[0].mxu0 %v5060
  %v5417 = vpop.f32.mrb[0].mxu0
  %v5418 = vadd.f32 0.0, %v5417
  %v5419 = vpop.f32.mrb[0].mxu0
  %5420 = vmatprep.mubr.f32.mxu0 0.0
  %5421 = vmatmul.mubr.f32.gmra.mrb[0].mxu0 %v5063
  %v5422 = vpop.f32.mrb[0].mxu0
  %v5423 = vadd.f32 0.0, %v5422
  %v5424 = vpop.f32.mrb[0].mxu0
  %5425 = vmatprep.mubr.f32.mxu0 0.0
  %5426 = vmatmul.mubr.f32.gmra.mrb[0].mxu0 %v5066
  %v5427 = vpop.f32.mrb[0].mxu0
  %v5428 = vadd.f32 0.0, %v5427
  %v5429 = vpop.f32.mrb[0].mxu0
  %5430 = vmatprep.mubr.f32.mxu0 0.0
  %5431 = vmatmul.mubr.f32.gmra.mrb[0].mxu0 %v5069
  %v5432 = vpop.f32.mrb[0].mxu0
  %v5433 = vadd.f32 0.0, %v5432
  %v5434 = vpop.f32.mrb[0].mxu0
  %5435 = vmatprep.mubr.f32.mxu0 0.0
  %5436 = vmatmul.mubr.f32.gmra.mrb[0].mxu0 %v5072
  %v5437 = vpop.f32.mrb[0].mxu0
  %v5438 = vadd.f32 0.0, %v5437
  %v5439 = vpop.f32.mrb[0].mxu0
  %5440 = vmatprep.mubr.f32.mxu0 0.0
  %5441 = vmatmul.mubr.f32.gmra.mrb[0].mxu0 %v5075
  %v5442 = vpop.f32.mrb[0].mxu0
  %v5443 = vadd.f32 0.0, %v5442
  %v5444 = vpop.f32.mrb[0].mxu0
  %5445 = vmatprep.mubr.f32.mxu0 0.0
  %5446 = vmatmul.mubr.f32.gmra.mrb[0].mxu0 %v5078
  %v5447 = vpop.f32.mrb[0].mxu0
  %v5448 = vadd.f32 0.0, %v5447
  %v5449 = vpop.f32.mrb[0].mxu0
  %5450 = vmatprep.mubr.f32.mxu0 0.0
  %5451 = vmatmul.mubr.f32.gmra.mrb[0].mxu0 %v5081
  %v5452 = vpop.f32.mrb[0].mxu0
  %v5453 = vadd.f32 0.0, %v5452
  %v5454 = vpop.f32.mrb[0].mxu0
  %5455 = vmatprep.mubr.f32.mxu0 0.0
  %5456 = vmatmul.mubr.f32.gmra.mrb[0].mxu0 %v5084
  %v5457 = vpop.f32.mrb[0].mxu0
  %v5458 = vadd.f32 0.0, %v5457
  %v5459 = vpop.f32.mrb[0].mxu0
  %5460 = vmatprep.mubr.f32.mxu0 0.0
  %5461 = vmatmul.mubr.f32.gmra.mrb[0].mxu0 %v5087
  %v5462 = vpop.f32.mrb[0].mxu0
  %v5463 = vadd.f32 0.0, %v5462
  %v5464 = vpop.f32.mrb[0].mxu0
  %5465 = vmatprep.mubr.f32.mxu0 0.0
  %5466 = vmatmul.mubr.f32.gmra.mrb[0].mxu0 %v5090
  %v5467 = vpop.f32.mrb[0].mxu0
  %v5468 = vadd.f32 0.0, %v5467
  %v5469 = vpop.f32.mrb[0].mxu0
  %5470 = vmatprep.mubr.f32.mxu0 0.0
  %5471 = vmatmul.mubr.f32.gmra.mrb[0].mxu0 %v5093
  %v5472 = vpop.f32.mrb[0].mxu0
  %v5473 = vadd.f32 0.0, %v5472
  %v5474 = vpop.f32.mrb[0].mxu0
  %5475 = vmatprep.mubr.f32.mxu0 0.0
  %5476 = vmatmul.mubr.f32.gmra.mrb[0].mxu0 %v5096
  %v5477 = vpop.f32.mrb[0].mxu0
  %v5478 = vadd.f32 0.0, %v5477
  %v5479 = vpop.f32.mrb[0].mxu0
  %5480 = vmatprep.mubr.f32.mxu0 0.0
  %5481 = vmatmul.mubr.f32.gmra.mrb[0].mxu0 %v5099
  %v5482 = vpop.f32.mrb[0].mxu0
  %v5483 = vadd.f32 0.0, %v5482
  %v5484 = vpop.f32.mrb[0].mxu0
  %5485 = vdwg.mxu0
  %v5487 = vsel %vm277, %v4845, 0
  %v5490 = vsel %vm277, %v4846, 0
  %v5493 = vsel %vm277, %v4847, 0
  %v5496 = vsel %vm277, %v4848, 0
  %v5499 = vsel %vm277, %v4849, 0
  %v5502 = vsel %vm277, %v4850, 0
  %v5505 = vsel %vm277, %v4851, 0
  %v5508 = vsel %vm277, %v4852, 0
  %v5511 = vsel %vm277, %v4853, 0
  %v5514 = vsel %vm277, %v4854, 0
  %v5517 = vsel %vm277, %v4855, 0
  %v5520 = vsel %vm277, %v4856, 0
  %v5523 = vsel %vm277, %v4857, 0
  %v5526 = vsel %vm277, %v4858, 0
  %v5529 = vsel %vm277, %v4859, 0
  %v5532 = vsel %vm277, %v4860, 0
  %v5535 = vsel %vm277, %v4861, 0
  %v5538 = vsel %vm277, %v4862, 0
  %v5541 = vsel %vm277, %v4863, 0
  %v5544 = vsel %vm277, %v4864, 0
  %v5547 = vsel %vm277, %v4865, 0
  %v5550 = vsel %vm277, %v4866, 0
  %v5553 = vsel %vm277, %v4867, 0
  %v5556 = vsel %vm277, %v4868, 0
  %v5559 = vsel %vm277, %v4869, 0
  %v5562 = vsel %vm277, %v4870, 0
  %v5565 = vsel %vm277, %v4871, 0
  %v5568 = vsel %vm277, %v4872, 0
  %v5571 = vsel %vm277, %v4873, 0
  %v5574 = vsel %vm277, %v4874, 0
  %v5577 = vsel %vm277, %v4875, 0
  %v5580 = vsel %vm277, %v4876, 0
  %v5583 = vsel %vm277, %v4877, 0
  %v5586 = vsel %vm277, %v4878, 0
  %v5589 = vsel %vm277, %v4879, 0
  %v5592 = vsel %vm277, %v4880, 0
  %v5595 = vsel %vm277, %v4881, 0
  %v5598 = vsel %vm277, %v4882, 0
  %v5601 = vsel %vm277, %v4883, 0
  %v5604 = vsel %vm277, %v4884, 0
  %v5607 = vsel %vm277, %v4885, 0
  %v5610 = vsel %vm277, %v4886, 0
  %v5613 = vsel %vm277, %v4887, 0
  %v5616 = vsel %vm277, %v4888, 0
  %v5619 = vsel %vm277, %v4889, 0
  %v5622 = vsel %vm277, %v4890, 0
  %v5625 = vsel %vm277, %v4891, 0
  %v5628 = vsel %vm277, %v4892, 0
  %v5631 = vsel %vm277, %v4893, 0
  %v5634 = vsel %vm277, %v4894, 0
  %v5637 = vsel %vm277, %v4895, 0
  %v5640 = vsel %vm277, %v4896, 0
  %v5643 = vsel %vm277, %v4897, 0
  %v5646 = vsel %vm277, %v4898, 0
  %v5649 = vsel %vm277, %v4899, 0
  %v5652 = vsel %vm277, %v4900, 0
  %v5655 = vsel %vm277, %v4901, 0
  %v5658 = vsel %vm277, %v4902, 0
  %v5661 = vsel %vm277, %v4903, 0
  %v5664 = vsel %vm277, %v4904, 0
  %v5667 = vsel %vm277, %v4905, 0
  %v5670 = vsel %vm277, %v4906, 0
  %v5673 = vsel %vm277, %v4907, 0
  %v5676 = vsel %vm277, %v4908, 0
  %5678 = vmatprep.subr.mxu0 0.0
  %5679 = vmatpush1.msra.mxu0 %v4830
  %5680 = vmatprep.subr.mxu0 0.0
  %5681 = vmatpush1.msra.mxu0 %v4831
  %5682 = vmatprep.subr.mxu0 0.0
  %5683 = vmatpush1.msra.mxu0 %v4832
  %5684 = vmatprep.subr.mxu0 0.0
  %5685 = vmatpush1.msra.mxu0 %v4833
  %5686 = vmatprep.subr.mxu0 0.0
  %5687 = vmatpush1.msra.mxu0 0.0
  %5688 = vmatprep.subr.mxu0 0.0
  %5689 = vmatpush1.msra.mxu0 0.0
  %5690 = vmatprep.subr.mxu0 0.0
  %5691 = vmatpush1.msra.mxu0 0.0
  %5692 = vmatprep.subr.mxu0 0.0
  %5693 = vmatpush1.msra.mxu0 0.0
  %5694 = vmatprep.subr.mxu0 0.0
  %5695 = vmatpush1.msra.mxu0 0.0
  %5696 = vmatprep.subr.mxu0 0.0
  %5697 = vmatpush1.msra.mxu0 0.0
  %5698 = vmatprep.subr.mxu0 0.0
  %5699 = vmatpush1.msra.mxu0 0.0
  %5700 = vmatprep.subr.mxu0 0.0
  %5701 = vmatpush1.msra.mxu0 0.0
  %5702 = vmatprep.subr.mxu0 0.0
  %5703 = vmatpush1.msra.mxu0 0.0
  %5704 = vmatprep.subr.mxu0 0.0
  %5705 = vmatpush1.msra.mxu0 0.0
  %5706 = vmatprep.subr.mxu0 0.0
  %5707 = vmatpush1.msra.mxu0 0.0
  %5708 = vmatprep.subr.mxu0 0.0
  %5709 = vmatpush1.msra.mxu0 0.0
  %5710 = vmatprep.subr.mxu0 0.0
  %5711 = vmatpush1.msra.mxu0 0.0
  %5712 = vmatprep.subr.mxu0 0.0
  %5713 = vmatpush1.msra.mxu0 0.0
  %5714 = vmatprep.subr.mxu0 0.0
  %5715 = vmatpush1.msra.mxu0 0.0
  %5716 = vmatprep.subr.mxu0 0.0
  %5717 = vmatpush1.msra.mxu0 0.0
  %5718 = vmatprep.subr.mxu0 0.0
  %5719 = vmatpush1.msra.mxu0 0.0
  %5720 = vmatprep.subr.mxu0 0.0
  %5721 = vmatpush1.msra.mxu0 0.0
  %5722 = vmatprep.subr.mxu0 0.0
  %5723 = vmatpush1.msra.mxu0 0.0
  %5724 = vmatprep.subr.mxu0 0.0
  %5725 = vmatpush1.msra.mxu0 0.0
  %5726 = vmatprep.subr.mxu0 0.0
  %5727 = vmatpush1.msra.mxu0 0.0
  %5728 = vmatprep.subr.mxu0 0.0
  %5729 = vmatpush1.msra.mxu0 0.0
  %5730 = vmatprep.subr.mxu0 0.0
  %5731 = vmatpush1.msra.mxu0 0.0
  %5732 = vmatprep.subr.mxu0 0.0
  %5733 = vmatpush1.msra.mxu0 0.0
  %5734 = vmatprep.subr.mxu0 0.0
  %5735 = vmatpush1.msra.mxu0 0.0
  %5736 = vmatprep.subr.mxu0 0.0
  %5737 = vmatpush1.msra.mxu0 0.0
  %5738 = vmatprep.subr.mxu0 0.0
  %5739 = vmatpush1.msra.mxu0 0.0
  %5740 = vmatprep.subr.mxu0 0.0
  %5741 = vmatpush1.msra.mxu0 0.0
  %5742 = vmatprep.mubr.f32.mxu0 0.0
  %5743 = vmatmul.mubr.f32.gmra.mrb[0].mxu0 %v5487
  %v5744 = vpop.f32.mrb[0].mxu0
  %v5745 = vadd.f32 %v5168, %v5744
  %v5746 = vpop.f32.mrb[0].mxu0
  %5747 = vmatprep.mubr.f32.mxu0 0.0
  %5748 = vmatmul.mubr.f32.gmra.mrb[0].mxu0 %v5490
  %v5749 = vpop.f32.mrb[0].mxu0
  %v5750 = vadd.f32 %v5173, %v5749
  %v5751 = vpop.f32.mrb[0].mxu0
  %5752 = vmatprep.mubr.f32.mxu0 0.0
  %5753 = vmatmul.mubr.f32.gmra.mrb[0].mxu0 %v5493
  %v5754 = vpop.f32.mrb[0].mxu0
  %v5755 = vadd.f32 %v5178, %v5754
  %v5756 = vpop.f32.mrb[0].mxu0
  %5757 = vmatprep.mubr.f32.mxu0 0.0
  %5758 = vmatmul.mubr.f32.gmra.mrb[0].mxu0 %v5496
  %v5759 = vpop.f32.mrb[0].mxu0
  %v5760 = vadd.f32 %v5183, %v5759
  %v5761 = vpop.f32.mrb[0].mxu0
  %5762 = vmatprep.mubr.f32.mxu0 0.0
  %5763 = vmatmul.mubr.f32.gmra.mrb[0].mxu0 %v5499
  %v5764 = vpop.f32.mrb[0].mxu0
  %v5765 = vadd.f32 %v5188, %v5764
  %v5766 = vpop.f32.mrb[0].mxu0
  %5767 = vmatprep.mubr.f32.mxu0 0.0
  %5768 = vmatmul.mubr.f32.gmra.mrb[0].mxu0 %v5502
  %v5769 = vpop.f32.mrb[0].mxu0
  %v5770 = vadd.f32 %v5193, %v5769
  %v5771 = vpop.f32.mrb[0].mxu0
  %5772 = vmatprep.mubr.f32.mxu0 0.0
  %5773 = vmatmul.mubr.f32.gmra.mrb[0].mxu0 %v5505
  %v5774 = vpop.f32.mrb[0].mxu0
  %v5775 = vadd.f32 %v5198, %v5774
  %v5776 = vpop.f32.mrb[0].mxu0
  %5777 = vmatprep.mubr.f32.mxu0 0.0
  %5778 = vmatmul.mubr.f32.gmra.mrb[0].mxu0 %v5508
  %v5779 = vpop.f32.mrb[0].mxu0
  %v5780 = vadd.f32 %v5203, %v5779
  %v5781 = vpop.f32.mrb[0].mxu0
  %5782 = vmatprep.mubr.f32.mxu0 0.0
  %5783 = vmatmul.mubr.f32.gmra.mrb[0].mxu0 %v5511
  %v5784 = vpop.f32.mrb[0].mxu0
  %v5785 = vadd.f32 %v5208, %v5784
  %v5786 = vpop.f32.mrb[0].mxu0
  %5787 = vmatprep.mubr.f32.mxu0 0.0
  %5788 = vmatmul.mubr.f32.gmra.mrb[0].mxu0 %v5514
  %v5789 = vpop.f32.mrb[0].mxu0
  %v5790 = vadd.f32 %v5213, %v5789
  %v5791 = vpop.f32.mrb[0].mxu0
  %5792 = vmatprep.mubr.f32.mxu0 0.0
  %5793 = vmatmul.mubr.f32.gmra.mrb[0].mxu0 %v5517
  %v5794 = vpop.f32.mrb[0].mxu0
  %v5795 = vadd.f32 %v5218, %v5794
  %v5796 = vpop.f32.mrb[0].mxu0
  %5797 = vmatprep.mubr.f32.mxu0 0.0
  %5798 = vmatmul.mubr.f32.gmra.mrb[0].mxu0 %v5520
  %v5799 = vpop.f32.mrb[0].mxu0
  %v5800 = vadd.f32 %v5223, %v5799
  %v5801 = vpop.f32.mrb[0].mxu0
  %5802 = vmatprep.mubr.f32.mxu0 0.0
  %5803 = vmatmul.mubr.f32.gmra.mrb[0].mxu0 %v5523
  %v5804 = vpop.f32.mrb[0].mxu0
  %v5805 = vadd.f32 %v5228, %v5804
  %v5806 = vpop.f32.mrb[0].mxu0
  %5807 = vmatprep.mubr.f32.mxu0 0.0
  %5808 = vmatmul.mubr.f32.gmra.mrb[0].mxu0 %v5526
  %v5809 = vpop.f32.mrb[0].mxu0
  %v5810 = vadd.f32 %v5233, %v5809
  %v5811 = vpop.f32.mrb[0].mxu0
  %5812 = vmatprep.mubr.f32.mxu0 0.0
  %5813 = vmatmul.mubr.f32.gmra.mrb[0].mxu0 %v5529
  %v5814 = vpop.f32.mrb[0].mxu0
  %v5815 = vadd.f32 %v5238, %v5814
  %v5816 = vpop.f32.mrb[0].mxu0
  %5817 = vmatprep.mubr.f32.mxu0 0.0
  %5818 = vmatmul.mubr.f32.gmra.mrb[0].mxu0 %v5532
  %v5819 = vpop.f32.mrb[0].mxu0
  %v5820 = vadd.f32 %v5243, %v5819
  %v5821 = vpop.f32.mrb[0].mxu0
  %5822 = vmatprep.mubr.f32.mxu0 0.0
  %5823 = vmatmul.mubr.f32.gmra.mrb[0].mxu0 %v5535
  %v5824 = vpop.f32.mrb[0].mxu0
  %v5825 = vadd.f32 %v5248, %v5824
  %v5826 = vpop.f32.mrb[0].mxu0
  %5827 = vmatprep.mubr.f32.mxu0 0.0
  %5828 = vmatmul.mubr.f32.gmra.mrb[0].mxu0 %v5538
  %v5829 = vpop.f32.mrb[0].mxu0
  %v5830 = vadd.f32 %v5253, %v5829
  %v5831 = vpop.f32.mrb[0].mxu0
  %5832 = vmatprep.mubr.f32.mxu0 0.0
  %5833 = vmatmul.mubr.f32.gmra.mrb[0].mxu0 %v5541
  %v5834 = vpop.f32.mrb[0].mxu0
  %v5835 = vadd.f32 %v5258, %v5834
  %v5836 = vpop.f32.mrb[0].mxu0
  %5837 = vmatprep.mubr.f32.mxu0 0.0
  %5838 = vmatmul.mubr.f32.gmra.mrb[0].mxu0 %v5544
  %v5839 = vpop.f32.mrb[0].mxu0
  %v5840 = vadd.f32 %v5263, %v5839
  %v5841 = vpop.f32.mrb[0].mxu0
  %5842 = vmatprep.mubr.f32.mxu0 0.0
  %5843 = vmatmul.mubr.f32.gmra.mrb[0].mxu0 %v5547
  %v5844 = vpop.f32.mrb[0].mxu0
  %v5845 = vadd.f32 %v5268, %v5844
  %v5846 = vpop.f32.mrb[0].mxu0
  %5847 = vmatprep.mubr.f32.mxu0 0.0
  %5848 = vmatmul.mubr.f32.gmra.mrb[0].mxu0 %v5550
  %v5849 = vpop.f32.mrb[0].mxu0
  %v5850 = vadd.f32 %v5273, %v5849
  %v5851 = vpop.f32.mrb[0].mxu0
  %5852 = vmatprep.mubr.f32.mxu0 0.0
  %5853 = vmatmul.mubr.f32.gmra.mrb[0].mxu0 %v5553
  %v5854 = vpop.f32.mrb[0].mxu0
  %v5855 = vadd.f32 %v5278, %v5854
  %v5856 = vpop.f32.mrb[0].mxu0
  %5857 = vmatprep.mubr.f32.mxu0 0.0
  %5858 = vmatmul.mubr.f32.gmra.mrb[0].mxu0 %v5556
  %v5859 = vpop.f32.mrb[0].mxu0
  %v5860 = vadd.f32 %v5283, %v5859
  %v5861 = vpop.f32.mrb[0].mxu0
  %5862 = vmatprep.mubr.f32.mxu0 0.0
  %5863 = vmatmul.mubr.f32.gmra.mrb[0].mxu0 %v5559
  %v5864 = vpop.f32.mrb[0].mxu0
  %v5865 = vadd.f32 %v5288, %v5864
  %v5866 = vpop.f32.mrb[0].mxu0
  %5867 = vmatprep.mubr.f32.mxu0 0.0
  %5868 = vmatmul.mubr.f32.gmra.mrb[0].mxu0 %v5562
  %v5869 = vpop.f32.mrb[0].mxu0
  %v5870 = vadd.f32 %v5293, %v5869
  %v5871 = vpop.f32.mrb[0].mxu0
  %5872 = vmatprep.mubr.f32.mxu0 0.0
  %5873 = vmatmul.mubr.f32.gmra.mrb[0].mxu0 %v5565
  %v5874 = vpop.f32.mrb[0].mxu0
  %v5875 = vadd.f32 %v5298, %v5874
  %v5876 = vpop.f32.mrb[0].mxu0
  %5877 = vmatprep.mubr.f32.mxu0 0.0
  %5878 = vmatmul.mubr.f32.gmra.mrb[0].mxu0 %v5568
  %v5879 = vpop.f32.mrb[0].mxu0
  %v5880 = vadd.f32 %v5303, %v5879
  %v5881 = vpop.f32.mrb[0].mxu0
  %5882 = vmatprep.mubr.f32.mxu0 0.0
  %5883 = vmatmul.mubr.f32.gmra.mrb[0].mxu0 %v5571
  %v5884 = vpop.f32.mrb[0].mxu0
  %v5885 = vadd.f32 %v5308, %v5884
  %v5886 = vpop.f32.mrb[0].mxu0
  %5887 = vmatprep.mubr.f32.mxu0 0.0
  %5888 = vmatmul.mubr.f32.gmra.mrb[0].mxu0 %v5574
  %v5889 = vpop.f32.mrb[0].mxu0
  %v5890 = vadd.f32 %v5313, %v5889
  %v5891 = vpop.f32.mrb[0].mxu0
  %5892 = vmatprep.mubr.f32.mxu0 0.0
  %5893 = vmatmul.mubr.f32.gmra.mrb[0].mxu0 %v5577
  %v5894 = vpop.f32.mrb[0].mxu0
  %v5895 = vadd.f32 %v5318, %v5894
  %v5896 = vpop.f32.mrb[0].mxu0
  %5897 = vmatprep.mubr.f32.mxu0 0.0
  %5898 = vmatmul.mubr.f32.gmra.mrb[0].mxu0 %v5580
  %v5899 = vpop.f32.mrb[0].mxu0
  %v5900 = vadd.f32 %v5323, %v5899
  %v5901 = vpop.f32.mrb[0].mxu0
  %5902 = vmatprep.mubr.f32.mxu0 0.0
  %5903 = vmatmul.mubr.f32.gmra.mrb[0].mxu0 %v5583
  %v5904 = vpop.f32.mrb[0].mxu0
  %v5905 = vadd.f32 %v5328, %v5904
  %v5906 = vpop.f32.mrb[0].mxu0
  %5907 = vmatprep.mubr.f32.mxu0 0.0
  %5908 = vmatmul.mubr.f32.gmra.mrb[0].mxu0 %v5586
  %v5909 = vpop.f32.mrb[0].mxu0
  %v5910 = vadd.f32 %v5333, %v5909
  %v5911 = vpop.f32.mrb[0].mxu0
  %5912 = vmatprep.mubr.f32.mxu0 0.0
  %5913 = vmatmul.mubr.f32.gmra.mrb[0].mxu0 %v5589
  %v5914 = vpop.f32.mrb[0].mxu0
  %v5915 = vadd.f32 %v5338, %v5914
  %v5916 = vpop.f32.mrb[0].mxu0
  %5917 = vmatprep.mubr.f32.mxu0 0.0
  %5918 = vmatmul.mubr.f32.gmra.mrb[0].mxu0 %v5592
  %v5919 = vpop.f32.mrb[0].mxu0
  %v5920 = vadd.f32 %v5343, %v5919
  %v5921 = vpop.f32.mrb[0].mxu0
  %5922 = vmatprep.mubr.f32.mxu0 0.0
  %5923 = vmatmul.mubr.f32.gmra.mrb[0].mxu0 %v5595
  %v5924 = vpop.f32.mrb[0].mxu0
  %v5925 = vadd.f32 %v5348, %v5924
  %v5926 = vpop.f32.mrb[0].mxu0
  %5927 = vmatprep.mubr.f32.mxu0 0.0
  %5928 = vmatmul.mubr.f32.gmra.mrb[0].mxu0 %v5598
  %v5929 = vpop.f32.mrb[0].mxu0
  %v5930 = vadd.f32 %v5353, %v5929
  %v5931 = vpop.f32.mrb[0].mxu0
  %5932 = vmatprep.mubr.f32.mxu0 0.0
  %5933 = vmatmul.mubr.f32.gmra.mrb[0].mxu0 %v5601
  %v5934 = vpop.f32.mrb[0].mxu0
  %v5935 = vadd.f32 %v5358, %v5934
  %v5936 = vpop.f32.mrb[0].mxu0
  %5937 = vmatprep.mubr.f32.mxu0 0.0
  %5938 = vmatmul.mubr.f32.gmra.mrb[0].mxu0 %v5604
  %v5939 = vpop.f32.mrb[0].mxu0
  %v5940 = vadd.f32 %v5363, %v5939
  %v5941 = vpop.f32.mrb[0].mxu0
  %5942 = vmatprep.mubr.f32.mxu0 0.0
  %5943 = vmatmul.mubr.f32.gmra.mrb[0].mxu0 %v5607
  %v5944 = vpop.f32.mrb[0].mxu0
  %v5945 = vadd.f32 %v5368, %v5944
  %v5946 = vpop.f32.mrb[0].mxu0
  %5947 = vmatprep.mubr.f32.mxu0 0.0
  %5948 = vmatmul.mubr.f32.gmra.mrb[0].mxu0 %v5610
  %v5949 = vpop.f32.mrb[0].mxu0
  %v5950 = vadd.f32 %v5373, %v5949
  %v5951 = vpop.f32.mrb[0].mxu0
  %5952 = vmatprep.mubr.f32.mxu0 0.0
  %5953 = vmatmul.mubr.f32.gmra.mrb[0].mxu0 %v5613
  %v5954 = vpop.f32.mrb[0].mxu0
  %v5955 = vadd.f32 %v5378, %v5954
  %v5956 = vpop.f32.mrb[0].mxu0
  %5957 = vmatprep.mubr.f32.mxu0 0.0
  %5958 = vmatmul.mubr.f32.gmra.mrb[0].mxu0 %v5616
  %v5959 = vpop.f32.mrb[0].mxu0
  %v5960 = vadd.f32 %v5383, %v5959
  %v5961 = vpop.f32.mrb[0].mxu0
  %5962 = vmatprep.mubr.f32.mxu0 0.0
  %5963 = vmatmul.mubr.f32.gmra.mrb[0].mxu0 %v5619
  %v5964 = vpop.f32.mrb[0].mxu0
  %v5965 = vadd.f32 %v5388, %v5964
  %v5966 = vpop.f32.mrb[0].mxu0
  %5967 = vmatprep.mubr.f32.mxu0 0.0
  %5968 = vmatmul.mubr.f32.gmra.mrb[0].mxu0 %v5622
  %v5969 = vpop.f32.mrb[0].mxu0
  %v5970 = vadd.f32 %v5393, %v5969
  %v5971 = vpop.f32.mrb[0].mxu0
  %5972 = vmatprep.mubr.f32.mxu0 0.0
  %5973 = vmatmul.mubr.f32.gmra.mrb[0].mxu0 %v5625
  %v5974 = vpop.f32.mrb[0].mxu0
  %v5975 = vadd.f32 %v5398, %v5974
  %v5976 = vpop.f32.mrb[0].mxu0
  %5977 = vmatprep.mubr.f32.mxu0 0.0
  %5978 = vmatmul.mubr.f32.gmra.mrb[0].mxu0 %v5628
  %v5979 = vpop.f32.mrb[0].mxu0
  %v5980 = vadd.f32 %v5403, %v5979
  %v5981 = vpop.f32.mrb[0].mxu0
  %5982 = vmatprep.mubr.f32.mxu0 0.0
  %5983 = vmatmul.mubr.f32.gmra.mrb[0].mxu0 %v5631
  %v5984 = vpop.f32.mrb[0].mxu0
  %v5985 = vadd.f32 %v5408, %v5984
  %v5986 = vpop.f32.mrb[0].mxu0
  %5987 = vmatprep.mubr.f32.mxu0 0.0
  %5988 = vmatmul.mubr.f32.gmra.mrb[0].mxu0 %v5634
  %v5989 = vpop.f32.mrb[0].mxu0
  %v5990 = vadd.f32 %v5413, %v5989
  %v5991 = vpop.f32.mrb[0].mxu0
  %5992 = vmatprep.mubr.f32.mxu0 0.0
  %5993 = vmatmul.mubr.f32.gmra.mrb[0].mxu0 %v5637
  %v5994 = vpop.f32.mrb[0].mxu0
  %v5995 = vadd.f32 %v5418, %v5994
  %v5996 = vpop.f32.mrb[0].mxu0
  %5997 = vmatprep.mubr.f32.mxu0 0.0
  %5998 = vmatmul.mubr.f32.gmra.mrb[0].mxu0 %v5640
  %v5999 = vpop.f32.mrb[0].mxu0
  %v6000 = vadd.f32 %v5423, %v5999
  %v6001 = vpop.f32.mrb[0].mxu0
  %6002 = vmatprep.mubr.f32.mxu0 0.0
  %6003 = vmatmul.mubr.f32.gmra.mrb[0].mxu0 %v5643
  %v6004 = vpop.f32.mrb[0].mxu0
  %v6005 = vadd.f32 %v5428, %v6004
  %v6006 = vpop.f32.mrb[0].mxu0
  %6007 = vmatprep.mubr.f32.mxu0 0.0
  %6008 = vmatmul.mubr.f32.gmra.mrb[0].mxu0 %v5646
  %v6009 = vpop.f32.mrb[0].mxu0
  %v6010 = vadd.f32 %v5433, %v6009
  %v6011 = vpop.f32.mrb[0].mxu0
  %6012 = vmatprep.mubr.f32.mxu0 0.0
  %6013 = vmatmul.mubr.f32.gmra.mrb[0].mxu0 %v5649
  %v6014 = vpop.f32.mrb[0].mxu0
  %v6015 = vadd.f32 %v5438, %v6014
  %v6016 = vpop.f32.mrb[0].mxu0
  %6017 = vmatprep.mubr.f32.mxu0 0.0
  %6018 = vmatmul.mubr.f32.gmra.mrb[0].mxu0 %v5652
  %v6019 = vpop.f32.mrb[0].mxu0
  %v6020 = vadd.f32 %v5443, %v6019
  %v6021 = vpop.f32.mrb[0].mxu0
  %6022 = vmatprep.mubr.f32.mxu0 0.0
  %6023 = vmatmul.mubr.f32.gmra.mrb[0].mxu0 %v5655
  %v6024 = vpop.f32.mrb[0].mxu0
  %v6025 = vadd.f32 %v5448, %v6024
  %v6026 = vpop.f32.mrb[0].mxu0
  %6027 = vmatprep.mubr.f32.mxu0 0.0
  %6028 = vmatmul.mubr.f32.gmra.mrb[0].mxu0 %v5658
  %v6029 = vpop.f32.mrb[0].mxu0
  %v6030 = vadd.f32 %v5453, %v6029
  %v6031 = vpop.f32.mrb[0].mxu0
  %6032 = vmatprep.mubr.f32.mxu0 0.0
  %6033 = vmatmul.mubr.f32.gmra.mrb[0].mxu0 %v5661
  %v6034 = vpop.f32.mrb[0].mxu0
  %v6035 = vadd.f32 %v5458, %v6034
  %v6036 = vpop.f32.mrb[0].mxu0
  %6037 = vmatprep.mubr.f32.mxu0 0.0
  %6038 = vmatmul.mubr.f32.gmra.mrb[0].mxu0 %v5664
  %v6039 = vpop.f32.mrb[0].mxu0
  %v6040 = vadd.f32 %v5463, %v6039
  %v6041 = vpop.f32.mrb[0].mxu0
  %6042 = vmatprep.mubr.f32.mxu0 0.0
  %6043 = vmatmul.mubr.f32.gmra.mrb[0].mxu0 %v5667
  %v6044 = vpop.f32.mrb[0].mxu0
  %v6045 = vadd.f32 %v5468, %v6044
  %v6046 = vpop.f32.mrb[0].mxu0
  %6047 = vmatprep.mubr.f32.mxu0 0.0
  %6048 = vmatmul.mubr.f32.gmra.mrb[0].mxu0 %v5670
  %v6049 = vpop.f32.mrb[0].mxu0
  %v6050 = vadd.f32 %v5473, %v6049
  %v6051 = vpop.f32.mrb[0].mxu0
  %6052 = vmatprep.mubr.f32.mxu0 0.0
  %6053 = vmatmul.mubr.f32.gmra.mrb[0].mxu0 %v5673
  %v6054 = vpop.f32.mrb[0].mxu0
  %v6055 = vadd.f32 %v5478, %v6054
  %v6056 = vpop.f32.mrb[0].mxu0
  %6057 = vmatprep.mubr.f32.mxu0 0.0
  %6058 = vmatmul.mubr.f32.gmra.mrb[0].mxu0 %v5676
  %v6059 = vpop.f32.mrb[0].mxu0
  %v6060 = vadd.f32 %v5483, %v6059
  %v6061 = vpop.f32.mrb[0].mxu0
  %6062 = vdwg.mxu0
  %6063 = vmatprep.subr.mxu0 0.0
  %6064 = vmatpush1.msra.mxu0 %v4838
  %6065 = vmatprep.subr.mxu0 0.0
  %6066 = vmatpush1.msra.mxu0 %v4839
  %6067 = vmatprep.subr.mxu0 0.0
  %6068 = vmatpush1.msra.mxu0 %v4840
  %6069 = vmatprep.subr.mxu0 0.0
  %6070 = vmatpush1.msra.mxu0 %v4841
  %6071 = vmatprep.subr.mxu0 0.0
  %6072 = vmatpush1.msra.mxu0 0.0
  %6073 = vmatprep.subr.mxu0 0.0
  %6074 = vmatpush1.msra.mxu0 0.0
  %6075 = vmatprep.subr.mxu0 0.0
  %6076 = vmatpush1.msra.mxu0 0.0
  %6077 = vmatprep.subr.mxu0 0.0
  %6078 = vmatpush1.msra.mxu0 0.0
  %6079 = vmatprep.subr.mxu0 0.0
  %6080 = vmatpush1.msra.mxu0 0.0
  %6081 = vmatprep.subr.mxu0 0.0
  %6082 = vmatpush1.msra.mxu0 0.0
  %6083 = vmatprep.subr.mxu0 0.0
  %6084 = vmatpush1.msra.mxu0 0.0
  %6085 = vmatprep.subr.mxu0 0.0
  %6086 = vmatpush1.msra.mxu0 0.0
  %6087 = vmatprep.subr.mxu0 0.0
  %6088 = vmatpush1.msra.mxu0 0.0
  %6089 = vmatprep.subr.mxu0 0.0
  %6090 = vmatpush1.msra.mxu0 0.0
  %6091 = vmatprep.subr.mxu0 0.0
  %6092 = vmatpush1.msra.mxu0 0.0
  %6093 = vmatprep.subr.mxu0 0.0
  %6094 = vmatpush1.msra.mxu0 0.0
  %6095 = vmatprep.subr.mxu0 0.0
  %6096 = vmatpush1.msra.mxu0 0.0
  %6097 = vmatprep.subr.mxu0 0.0
  %6098 = vmatpush1.msra.mxu0 0.0
  %6099 = vmatprep.subr.mxu0 0.0
  %6100 = vmatpush1.msra.mxu0 0.0
  %6101 = vmatprep.subr.mxu0 0.0
  %6102 = vmatpush1.msra.mxu0 0.0
  %6103 = vmatprep.subr.mxu0 0.0
  %6104 = vmatpush1.msra.mxu0 0.0
  %6105 = vmatprep.subr.mxu0 0.0
  %6106 = vmatpush1.msra.mxu0 0.0
  %6107 = vmatprep.subr.mxu0 0.0
  %6108 = vmatpush1.msra.mxu0 0.0
  %6109 = vmatprep.subr.mxu0 0.0
  %6110 = vmatpush1.msra.mxu0 0.0
  %6111 = vmatprep.subr.mxu0 0.0
  %6112 = vmatpush1.msra.mxu0 0.0
  %6113 = vmatprep.subr.mxu0 0.0
  %6114 = vmatpush1.msra.mxu0 0.0
  %6115 = vmatprep.subr.mxu0 0.0
  %6116 = vmatpush1.msra.mxu0 0.0
  %6117 = vmatprep.subr.mxu0 0.0
  %6118 = vmatpush1.msra.mxu0 0.0
  %6119 = vmatprep.subr.mxu0 0.0
  %6120 = vmatpush1.msra.mxu0 0.0
  %6121 = vmatprep.subr.mxu0 0.0
  %6122 = vmatpush1.msra.mxu0 0.0
  %6123 = vmatprep.subr.mxu0 0.0
  %6124 = vmatpush1.msra.mxu0 0.0
  %6125 = vmatprep.subr.mxu0 0.0
  %6126 = vmatpush1.msra.mxu0 0.0
  %6127 = vmatprep.mubr.f32.mxu0 0.0
  %6128 = vmatmul.mubr.f32.gmra.mrb[0].mxu0 %v279
  %v6129 = vpop.f32.mrb[0].mxu0
  %v6130 = vadd.f32 0.0, %v6129
  %v6131 = vpop.f32.mrb[0].mxu0
  %6132 = vmatprep.mubr.f32.mxu0 0.0
  %6133 = vmatmul.mubr.f32.gmra.mrb[0].mxu0 %v282
  %v6134 = vpop.f32.mrb[0].mxu0
  %v6135 = vadd.f32 0.0, %v6134
  %v6136 = vpop.f32.mrb[0].mxu0
  %6137 = vmatprep.mubr.f32.mxu0 0.0
  %6138 = vmatmul.mubr.f32.gmra.mrb[0].mxu0 %v285
  %v6139 = vpop.f32.mrb[0].mxu0
  %v6140 = vadd.f32 0.0, %v6139
  %v6141 = vpop.f32.mrb[0].mxu0
  %6142 = vmatprep.mubr.f32.mxu0 0.0
  %6143 = vmatmul.mubr.f32.gmra.mrb[0].mxu0 %v288
  %v6144 = vpop.f32.mrb[0].mxu0
  %v6145 = vadd.f32 0.0, %v6144
  %v6146 = vpop.f32.mrb[0].mxu0
  %6147 = vmatprep.mubr.f32.mxu0 0.0
  %6148 = vmatmul.mubr.f32.gmra.mrb[0].mxu0 %v291
  %v6149 = vpop.f32.mrb[0].mxu0
  %v6150 = vadd.f32 0.0, %v6149
  %v6151 = vpop.f32.mrb[0].mxu0
  %6152 = vmatprep.mubr.f32.mxu0 0.0
  %6153 = vmatmul.mubr.f32.gmra.mrb[0].mxu0 %v294
  %v6154 = vpop.f32.mrb[0].mxu0
  %v6155 = vadd.f32 0.0, %v6154
  %v6156 = vpop.f32.mrb[0].mxu0
  %6157 = vmatprep.mubr.f32.mxu0 0.0
  %6158 = vmatmul.mubr.f32.gmra.mrb[0].mxu0 %v297
  %v6159 = vpop.f32.mrb[0].mxu0
  %v6160 = vadd.f32 0.0, %v6159
  %v6161 = vpop.f32.mrb[0].mxu0
  %6162 = vmatprep.mubr.f32.mxu0 0.0
  %6163 = vmatmul.mubr.f32.gmra.mrb[0].mxu0 %v300
  %v6164 = vpop.f32.mrb[0].mxu0
  %v6165 = vadd.f32 0.0, %v6164
  %v6166 = vpop.f32.mrb[0].mxu0
  %6167 = vmatprep.mubr.f32.mxu0 0.0
  %6168 = vmatmul.mubr.f32.gmra.mrb[0].mxu0 %v303
  %v6169 = vpop.f32.mrb[0].mxu0
  %v6170 = vadd.f32 0.0, %v6169
  %v6171 = vpop.f32.mrb[0].mxu0
  %6172 = vmatprep.mubr.f32.mxu0 0.0
  %6173 = vmatmul.mubr.f32.gmra.mrb[0].mxu0 %v306
  %v6174 = vpop.f32.mrb[0].mxu0
  %v6175 = vadd.f32 0.0, %v6174
  %v6176 = vpop.f32.mrb[0].mxu0
  %6177 = vmatprep.mubr.f32.mxu0 0.0
  %6178 = vmatmul.mubr.f32.gmra.mrb[0].mxu0 %v309
  %v6179 = vpop.f32.mrb[0].mxu0
  %v6180 = vadd.f32 0.0, %v6179
  %v6181 = vpop.f32.mrb[0].mxu0
  %6182 = vmatprep.mubr.f32.mxu0 0.0
  %6183 = vmatmul.mubr.f32.gmra.mrb[0].mxu0 %v312
  %v6184 = vpop.f32.mrb[0].mxu0
  %v6185 = vadd.f32 0.0, %v6184
  %v6186 = vpop.f32.mrb[0].mxu0
  %6187 = vmatprep.mubr.f32.mxu0 0.0
  %6188 = vmatmul.mubr.f32.gmra.mrb[0].mxu0 %v315
  %v6189 = vpop.f32.mrb[0].mxu0
  %v6190 = vadd.f32 0.0, %v6189
  %v6191 = vpop.f32.mrb[0].mxu0
  %6192 = vmatprep.mubr.f32.mxu0 0.0
  %6193 = vmatmul.mubr.f32.gmra.mrb[0].mxu0 %v318
  %v6194 = vpop.f32.mrb[0].mxu0
  %v6195 = vadd.f32 0.0, %v6194
  %v6196 = vpop.f32.mrb[0].mxu0
  %6197 = vmatprep.mubr.f32.mxu0 0.0
  %6198 = vmatmul.mubr.f32.gmra.mrb[0].mxu0 %v321
  %v6199 = vpop.f32.mrb[0].mxu0
  %v6200 = vadd.f32 0.0, %v6199
  %v6201 = vpop.f32.mrb[0].mxu0
  %6202 = vmatprep.mubr.f32.mxu0 0.0
  %6203 = vmatmul.mubr.f32.gmra.mrb[0].mxu0 %v324
  %v6204 = vpop.f32.mrb[0].mxu0
  %v6205 = vadd.f32 0.0, %v6204
  %v6206 = vpop.f32.mrb[0].mxu0
  %6207 = vmatprep.mubr.f32.mxu0 0.0
  %6208 = vmatmul.mubr.f32.gmra.mrb[0].mxu0 %v327
  %v6209 = vpop.f32.mrb[0].mxu0
  %v6210 = vadd.f32 0.0, %v6209
  %v6211 = vpop.f32.mrb[0].mxu0
  %6212 = vmatprep.mubr.f32.mxu0 0.0
  %6213 = vmatmul.mubr.f32.gmra.mrb[0].mxu0 %v330
  %v6214 = vpop.f32.mrb[0].mxu0
  %v6215 = vadd.f32 0.0, %v6214
  %v6216 = vpop.f32.mrb[0].mxu0
  %6217 = vmatprep.mubr.f32.mxu0 0.0
  %6218 = vmatmul.mubr.f32.gmra.mrb[0].mxu0 %v333
  %v6219 = vpop.f32.mrb[0].mxu0
  %v6220 = vadd.f32 0.0, %v6219
  %v6221 = vpop.f32.mrb[0].mxu0
  %6222 = vmatprep.mubr.f32.mxu0 0.0
  %6223 = vmatmul.mubr.f32.gmra.mrb[0].mxu0 %v336
  %v6224 = vpop.f32.mrb[0].mxu0
  %v6225 = vadd.f32 0.0, %v6224
  %v6226 = vpop.f32.mrb[0].mxu0
  %6227 = vmatprep.mubr.f32.mxu0 0.0
  %6228 = vmatmul.mubr.f32.gmra.mrb[0].mxu0 %v339
  %v6229 = vpop.f32.mrb[0].mxu0
  %v6230 = vadd.f32 0.0, %v6229
  %v6231 = vpop.f32.mrb[0].mxu0
  %6232 = vmatprep.mubr.f32.mxu0 0.0
  %6233 = vmatmul.mubr.f32.gmra.mrb[0].mxu0 %v342
  %v6234 = vpop.f32.mrb[0].mxu0
  %v6235 = vadd.f32 0.0, %v6234
  %v6236 = vpop.f32.mrb[0].mxu0
  %6237 = vmatprep.mubr.f32.mxu0 0.0
  %6238 = vmatmul.mubr.f32.gmra.mrb[0].mxu0 %v345
  %v6239 = vpop.f32.mrb[0].mxu0
  %v6240 = vadd.f32 0.0, %v6239
  %v6241 = vpop.f32.mrb[0].mxu0
  %6242 = vmatprep.mubr.f32.mxu0 0.0
  %6243 = vmatmul.mubr.f32.gmra.mrb[0].mxu0 %v348
  %v6244 = vpop.f32.mrb[0].mxu0
  %v6245 = vadd.f32 0.0, %v6244
  %v6246 = vpop.f32.mrb[0].mxu0
  %6247 = vmatprep.mubr.f32.mxu0 0.0
  %6248 = vmatmul.mubr.f32.gmra.mrb[0].mxu0 %v351
  %v6249 = vpop.f32.mrb[0].mxu0
  %v6250 = vadd.f32 0.0, %v6249
  %v6251 = vpop.f32.mrb[0].mxu0
  %6252 = vmatprep.mubr.f32.mxu0 0.0
  %6253 = vmatmul.mubr.f32.gmra.mrb[0].mxu0 %v354
  %v6254 = vpop.f32.mrb[0].mxu0
  %v6255 = vadd.f32 0.0, %v6254
  %v6256 = vpop.f32.mrb[0].mxu0
  %6257 = vmatprep.mubr.f32.mxu0 0.0
  %6258 = vmatmul.mubr.f32.gmra.mrb[0].mxu0 %v357
  %v6259 = vpop.f32.mrb[0].mxu0
  %v6260 = vadd.f32 0.0, %v6259
  %v6261 = vpop.f32.mrb[0].mxu0
  %6262 = vmatprep.mubr.f32.mxu0 0.0
  %6263 = vmatmul.mubr.f32.gmra.mrb[0].mxu0 %v360
  %v6264 = vpop.f32.mrb[0].mxu0
  %v6265 = vadd.f32 0.0, %v6264
  %v6266 = vpop.f32.mrb[0].mxu0
  %6267 = vmatprep.mubr.f32.mxu0 0.0
  %6268 = vmatmul.mubr.f32.gmra.mrb[0].mxu0 %v363
  %v6269 = vpop.f32.mrb[0].mxu0
  %v6270 = vadd.f32 0.0, %v6269
  %v6271 = vpop.f32.mrb[0].mxu0
  %6272 = vmatprep.mubr.f32.mxu0 0.0
  %6273 = vmatmul.mubr.f32.gmra.mrb[0].mxu0 %v366
  %v6274 = vpop.f32.mrb[0].mxu0
  %v6275 = vadd.f32 0.0, %v6274
  %v6276 = vpop.f32.mrb[0].mxu0
  %6277 = vmatprep.mubr.f32.mxu0 0.0
  %6278 = vmatmul.mubr.f32.gmra.mrb[0].mxu0 %v369
  %v6279 = vpop.f32.mrb[0].mxu0
  %v6280 = vadd.f32 0.0, %v6279
  %v6281 = vpop.f32.mrb[0].mxu0
  %6282 = vmatprep.mubr.f32.mxu0 0.0
  %6283 = vmatmul.mubr.f32.gmra.mrb[0].mxu0 %v372
  %v6284 = vpop.f32.mrb[0].mxu0
  %v6285 = vadd.f32 0.0, %v6284
  %v6286 = vpop.f32.mrb[0].mxu0
  %6287 = vmatprep.mubr.f32.mxu0 0.0
  %6288 = vmatmul.mubr.f32.gmra.mrb[0].mxu0 %v375
  %v6289 = vpop.f32.mrb[0].mxu0
  %v6290 = vadd.f32 0.0, %v6289
  %v6291 = vpop.f32.mrb[0].mxu0
  %6292 = vmatprep.mubr.f32.mxu0 0.0
  %6293 = vmatmul.mubr.f32.gmra.mrb[0].mxu0 %v378
  %v6294 = vpop.f32.mrb[0].mxu0
  %v6295 = vadd.f32 0.0, %v6294
  %v6296 = vpop.f32.mrb[0].mxu0
  %6297 = vmatprep.mubr.f32.mxu0 0.0
  %6298 = vmatmul.mubr.f32.gmra.mrb[0].mxu0 %v381
  %v6299 = vpop.f32.mrb[0].mxu0
  %v6300 = vadd.f32 0.0, %v6299
  %v6301 = vpop.f32.mrb[0].mxu0
  %6302 = vmatprep.mubr.f32.mxu0 0.0
  %6303 = vmatmul.mubr.f32.gmra.mrb[0].mxu0 %v384
  %v6304 = vpop.f32.mrb[0].mxu0
  %v6305 = vadd.f32 0.0, %v6304
  %v6306 = vpop.f32.mrb[0].mxu0
  %6307 = vmatprep.mubr.f32.mxu0 0.0
  %6308 = vmatmul.mubr.f32.gmra.mrb[0].mxu0 %v387
  %v6309 = vpop.f32.mrb[0].mxu0
  %v6310 = vadd.f32 0.0, %v6309
  %v6311 = vpop.f32.mrb[0].mxu0
  %6312 = vmatprep.mubr.f32.mxu0 0.0
  %6313 = vmatmul.mubr.f32.gmra.mrb[0].mxu0 %v390
  %v6314 = vpop.f32.mrb[0].mxu0
  %v6315 = vadd.f32 0.0, %v6314
  %v6316 = vpop.f32.mrb[0].mxu0
  %6317 = vmatprep.mubr.f32.mxu0 0.0
  %6318 = vmatmul.mubr.f32.gmra.mrb[0].mxu0 %v393
  %v6319 = vpop.f32.mrb[0].mxu0
  %v6320 = vadd.f32 0.0, %v6319
  %v6321 = vpop.f32.mrb[0].mxu0
  %6322 = vmatprep.mubr.f32.mxu0 0.0
  %6323 = vmatmul.mubr.f32.gmra.mrb[0].mxu0 %v396
  %v6324 = vpop.f32.mrb[0].mxu0
  %v6325 = vadd.f32 0.0, %v6324
  %v6326 = vpop.f32.mrb[0].mxu0
  %6327 = vmatprep.mubr.f32.mxu0 0.0
  %6328 = vmatmul.mubr.f32.gmra.mrb[0].mxu0 %v399
  %v6329 = vpop.f32.mrb[0].mxu0
  %v6330 = vadd.f32 0.0, %v6329
  %v6331 = vpop.f32.mrb[0].mxu0
  %6332 = vmatprep.mubr.f32.mxu0 0.0
  %6333 = vmatmul.mubr.f32.gmra.mrb[0].mxu0 %v402
  %v6334 = vpop.f32.mrb[0].mxu0
  %v6335 = vadd.f32 0.0, %v6334
  %v6336 = vpop.f32.mrb[0].mxu0
  %6337 = vmatprep.mubr.f32.mxu0 0.0
  %6338 = vmatmul.mubr.f32.gmra.mrb[0].mxu0 %v405
  %v6339 = vpop.f32.mrb[0].mxu0
  %v6340 = vadd.f32 0.0, %v6339
  %v6341 = vpop.f32.mrb[0].mxu0
  %6342 = vmatprep.mubr.f32.mxu0 0.0
  %6343 = vmatmul.mubr.f32.gmra.mrb[0].mxu0 %v408
  %v6344 = vpop.f32.mrb[0].mxu0
  %v6345 = vadd.f32 0.0, %v6344
  %v6346 = vpop.f32.mrb[0].mxu0
  %6347 = vmatprep.mubr.f32.mxu0 0.0
  %6348 = vmatmul.mubr.f32.gmra.mrb[0].mxu0 %v411
  %v6349 = vpop.f32.mrb[0].mxu0
  %v6350 = vadd.f32 0.0, %v6349
  %v6351 = vpop.f32.mrb[0].mxu0
  %6352 = vmatprep.mubr.f32.mxu0 0.0
  %6353 = vmatmul.mubr.f32.gmra.mrb[0].mxu0 %v414
  %v6354 = vpop.f32.mrb[0].mxu0
  %v6355 = vadd.f32 0.0, %v6354
  %v6356 = vpop.f32.mrb[0].mxu0
  %6357 = vmatprep.mubr.f32.mxu0 0.0
  %6358 = vmatmul.mubr.f32.gmra.mrb[0].mxu0 %v417
  %v6359 = vpop.f32.mrb[0].mxu0
  %v6360 = vadd.f32 0.0, %v6359
  %v6361 = vpop.f32.mrb[0].mxu0
  %6362 = vmatprep.mubr.f32.mxu0 0.0
  %6363 = vmatmul.mubr.f32.gmra.mrb[0].mxu0 %v420
  %v6364 = vpop.f32.mrb[0].mxu0
  %v6365 = vadd.f32 0.0, %v6364
  %v6366 = vpop.f32.mrb[0].mxu0
  %6367 = vmatprep.mubr.f32.mxu0 0.0
  %6368 = vmatmul.mubr.f32.gmra.mrb[0].mxu0 %v423
  %v6369 = vpop.f32.mrb[0].mxu0
  %v6370 = vadd.f32 0.0, %v6369
  %v6371 = vpop.f32.mrb[0].mxu0
  %6372 = vmatprep.mubr.f32.mxu0 0.0
  %6373 = vmatmul.mubr.f32.gmra.mrb[0].mxu0 %v426
  %v6374 = vpop.f32.mrb[0].mxu0
  %v6375 = vadd.f32 0.0, %v6374
  %v6376 = vpop.f32.mrb[0].mxu0
  %6377 = vmatprep.mubr.f32.mxu0 0.0
  %6378 = vmatmul.mubr.f32.gmra.mrb[0].mxu0 %v429
  %v6379 = vpop.f32.mrb[0].mxu0
  %v6380 = vadd.f32 0.0, %v6379
  %v6381 = vpop.f32.mrb[0].mxu0
  %6382 = vmatprep.mubr.f32.mxu0 0.0
  %6383 = vmatmul.mubr.f32.gmra.mrb[0].mxu0 %v432
  %v6384 = vpop.f32.mrb[0].mxu0
  %v6385 = vadd.f32 0.0, %v6384
  %v6386 = vpop.f32.mrb[0].mxu0
  %6387 = vmatprep.mubr.f32.mxu0 0.0
  %6388 = vmatmul.mubr.f32.gmra.mrb[0].mxu0 %v435
  %v6389 = vpop.f32.mrb[0].mxu0
  %v6390 = vadd.f32 0.0, %v6389
  %v6391 = vpop.f32.mrb[0].mxu0
  %6392 = vmatprep.mubr.f32.mxu0 0.0
  %6393 = vmatmul.mubr.f32.gmra.mrb[0].mxu0 %v438
  %v6394 = vpop.f32.mrb[0].mxu0
  %v6395 = vadd.f32 0.0, %v6394
  %v6396 = vpop.f32.mrb[0].mxu0
  %6397 = vmatprep.mubr.f32.mxu0 0.0
  %6398 = vmatmul.mubr.f32.gmra.mrb[0].mxu0 %v441
  %v6399 = vpop.f32.mrb[0].mxu0
  %v6400 = vadd.f32 0.0, %v6399
  %v6401 = vpop.f32.mrb[0].mxu0
  %6402 = vmatprep.mubr.f32.mxu0 0.0
  %6403 = vmatmul.mubr.f32.gmra.mrb[0].mxu0 %v444
  %v6404 = vpop.f32.mrb[0].mxu0
  %v6405 = vadd.f32 0.0, %v6404
  %v6406 = vpop.f32.mrb[0].mxu0
  %6407 = vmatprep.mubr.f32.mxu0 0.0
  %6408 = vmatmul.mubr.f32.gmra.mrb[0].mxu0 %v447
  %v6409 = vpop.f32.mrb[0].mxu0
  %v6410 = vadd.f32 0.0, %v6409
  %v6411 = vpop.f32.mrb[0].mxu0
  %6412 = vmatprep.mubr.f32.mxu0 0.0
  %6413 = vmatmul.mubr.f32.gmra.mrb[0].mxu0 %v450
  %v6414 = vpop.f32.mrb[0].mxu0
  %v6415 = vadd.f32 0.0, %v6414
  %v6416 = vpop.f32.mrb[0].mxu0
  %6417 = vmatprep.mubr.f32.mxu0 0.0
  %6418 = vmatmul.mubr.f32.gmra.mrb[0].mxu0 %v453
  %v6419 = vpop.f32.mrb[0].mxu0
  %v6420 = vadd.f32 0.0, %v6419
  %v6421 = vpop.f32.mrb[0].mxu0
  %6422 = vmatprep.mubr.f32.mxu0 0.0
  %6423 = vmatmul.mubr.f32.gmra.mrb[0].mxu0 %v456
  %v6424 = vpop.f32.mrb[0].mxu0
  %v6425 = vadd.f32 0.0, %v6424
  %v6426 = vpop.f32.mrb[0].mxu0
  %6427 = vmatprep.mubr.f32.mxu0 0.0
  %6428 = vmatmul.mubr.f32.gmra.mrb[0].mxu0 %v459
  %v6429 = vpop.f32.mrb[0].mxu0
  %v6430 = vadd.f32 0.0, %v6429
  %v6431 = vpop.f32.mrb[0].mxu0
  %6432 = vmatprep.mubr.f32.mxu0 0.0
  %6433 = vmatmul.mubr.f32.gmra.mrb[0].mxu0 %v462
  %v6434 = vpop.f32.mrb[0].mxu0
  %v6435 = vadd.f32 0.0, %v6434
  %v6436 = vpop.f32.mrb[0].mxu0
  %6437 = vmatprep.mubr.f32.mxu0 0.0
  %6438 = vmatmul.mubr.f32.gmra.mrb[0].mxu0 %v465
  %v6439 = vpop.f32.mrb[0].mxu0
  %v6440 = vadd.f32 0.0, %v6439
  %v6441 = vpop.f32.mrb[0].mxu0
  %6442 = vmatprep.mubr.f32.mxu0 0.0
  %6443 = vmatmul.mubr.f32.gmra.mrb[0].mxu0 %v468
  %v6444 = vpop.f32.mrb[0].mxu0
  %v6445 = vadd.f32 0.0, %v6444
  %v6446 = vpop.f32.mrb[0].mxu0
  %6447 = vdwg.mxu0
  %v6448 = vadd.f32 %v5745, %v6130
  %v6449 = vadd.f32 %v5750, %v6135
  %v6450 = vadd.f32 %v5755, %v6140
  %v6451 = vadd.f32 %v5760, %v6145
  %v6452 = vadd.f32 %v5765, %v6150
  %v6453 = vadd.f32 %v5770, %v6155
  %v6454 = vadd.f32 %v5775, %v6160
  %v6455 = vadd.f32 %v5780, %v6165
  %v6456 = vadd.f32 %v5785, %v6170
  %v6457 = vadd.f32 %v5790, %v6175
  %v6458 = vadd.f32 %v5795, %v6180
  %v6459 = vadd.f32 %v5800, %v6185
  %v6460 = vadd.f32 %v5805, %v6190
  %v6461 = vadd.f32 %v5810, %v6195
  %v6462 = vadd.f32 %v5815, %v6200
  %v6463 = vadd.f32 %v5820, %v6205
  %v6464 = vadd.f32 %v5825, %v6210
  %v6465 = vadd.f32 %v5830, %v6215
  %v6466 = vadd.f32 %v5835, %v6220
  %v6467 = vadd.f32 %v5840, %v6225
  %v6468 = vadd.f32 %v5845, %v6230
  %v6469 = vadd.f32 %v5850, %v6235
  %v6470 = vadd.f32 %v5855, %v6240
  %v6471 = vadd.f32 %v5860, %v6245
  %v6472 = vadd.f32 %v5865, %v6250
  %v6473 = vadd.f32 %v5870, %v6255
  %v6474 = vadd.f32 %v5875, %v6260
  %v6475 = vadd.f32 %v5880, %v6265
  %v6476 = vadd.f32 %v5885, %v6270
  %v6477 = vadd.f32 %v5890, %v6275
  %v6478 = vadd.f32 %v5895, %v6280
  %v6479 = vadd.f32 %v5900, %v6285
  %v6480 = vadd.f32 %v5905, %v6290
  %v6481 = vadd.f32 %v5910, %v6295
  %v6482 = vadd.f32 %v5915, %v6300
  %v6483 = vadd.f32 %v5920, %v6305
  %v6484 = vadd.f32 %v5925, %v6310
  %v6485 = vadd.f32 %v5930, %v6315
  %v6486 = vadd.f32 %v5935, %v6320
  %v6487 = vadd.f32 %v5940, %v6325
  %v6488 = vadd.f32 %v5945, %v6330
  %v6489 = vadd.f32 %v5950, %v6335
  %v6490 = vadd.f32 %v5955, %v6340
  %v6491 = vadd.f32 %v5960, %v6345
  %v6492 = vadd.f32 %v5965, %v6350
  %v6493 = vadd.f32 %v5970, %v6355
  %v6494 = vadd.f32 %v5975, %v6360
  %v6495 = vadd.f32 %v5980, %v6365
  %v6496 = vadd.f32 %v5985, %v6370
  %v6497 = vadd.f32 %v5990, %v6375
  %v6498 = vadd.f32 %v5995, %v6380
  %v6499 = vadd.f32 %v6000, %v6385
  %v6500 = vadd.f32 %v6005, %v6390
  %v6501 = vadd.f32 %v6010, %v6395
  %v6502 = vadd.f32 %v6015, %v6400
  %v6503 = vadd.f32 %v6020, %v6405
  %v6504 = vadd.f32 %v6025, %v6410
  %v6505 = vadd.f32 %v6030, %v6415
  %v6506 = vadd.f32 %v6035, %v6420
  %v6507 = vadd.f32 %v6040, %v6425
  %v6508 = vadd.f32 %v6045, %v6430
  %v6509 = vadd.f32 %v6050, %v6435
  %v6510 = vadd.f32 %v6055, %v6440
  %v6511 = vadd.f32 %v6060, %v6445
  %v6513 = vlaneseq
  %v6514 = vshrl.u32 %v6513, 7
  %v6515 = vsub.s32 0, %v6514
  %v6516 = vrot.slane %v4842, %v6515
  %v6518 = vadd.f32 %v6448, %v6516
  %v6519 = vadd.f32 %v6449, %v6516
  %v6520 = vadd.f32 %v6450, %v6516
  %v6521 = vadd.f32 %v6451, %v6516
  %v6522 = vadd.f32 %v6452, %v6516
  %v6523 = vadd.f32 %v6453, %v6516
  %v6524 = vadd.f32 %v6454, %v6516
  %v6525 = vadd.f32 %v6455, %v6516
  %v6526 = vadd.f32 %v6456, %v6516
  %v6527 = vadd.f32 %v6457, %v6516
  %v6528 = vadd.f32 %v6458, %v6516
  %v6529 = vadd.f32 %v6459, %v6516
  %v6530 = vadd.f32 %v6460, %v6516
  %v6531 = vadd.f32 %v6461, %v6516
  %v6532 = vadd.f32 %v6462, %v6516
  %v6533 = vadd.f32 %v6463, %v6516
  %v6534 = vadd.f32 %v6464, %v6516
  %v6535 = vadd.f32 %v6465, %v6516
  %v6536 = vadd.f32 %v6466, %v6516
  %v6537 = vadd.f32 %v6467, %v6516
  %v6538 = vadd.f32 %v6468, %v6516
  %v6539 = vadd.f32 %v6469, %v6516
  %v6540 = vadd.f32 %v6470, %v6516
  %v6541 = vadd.f32 %v6471, %v6516
  %v6542 = vadd.f32 %v6472, %v6516
  %v6543 = vadd.f32 %v6473, %v6516
  %v6544 = vadd.f32 %v6474, %v6516
  %v6545 = vadd.f32 %v6475, %v6516
  %v6546 = vadd.f32 %v6476, %v6516
  %v6547 = vadd.f32 %v6477, %v6516
  %v6548 = vadd.f32 %v6478, %v6516
  %v6549 = vadd.f32 %v6479, %v6516
  %v6550 = vadd.f32 %v6480, %v6516
  %v6551 = vadd.f32 %v6481, %v6516
  %v6552 = vadd.f32 %v6482, %v6516
  %v6553 = vadd.f32 %v6483, %v6516
  %v6554 = vadd.f32 %v6484, %v6516
  %v6555 = vadd.f32 %v6485, %v6516
  %v6556 = vadd.f32 %v6486, %v6516
  %v6557 = vadd.f32 %v6487, %v6516
  %v6558 = vadd.f32 %v6488, %v6516
  %v6559 = vadd.f32 %v6489, %v6516
  %v6560 = vadd.f32 %v6490, %v6516
  %v6561 = vadd.f32 %v6491, %v6516
  %v6562 = vadd.f32 %v6492, %v6516
  %v6563 = vadd.f32 %v6493, %v6516
  %v6564 = vadd.f32 %v6494, %v6516
  %v6565 = vadd.f32 %v6495, %v6516
  %v6566 = vadd.f32 %v6496, %v6516
  %v6567 = vadd.f32 %v6497, %v6516
  %v6568 = vadd.f32 %v6498, %v6516
  %v6569 = vadd.f32 %v6499, %v6516
  %v6570 = vadd.f32 %v6500, %v6516
  %v6571 = vadd.f32 %v6501, %v6516
  %v6572 = vadd.f32 %v6502, %v6516
  %v6573 = vadd.f32 %v6503, %v6516
  %v6574 = vadd.f32 %v6504, %v6516
  %v6575 = vadd.f32 %v6505, %v6516
  %v6576 = vadd.f32 %v6506, %v6516
  %v6577 = vadd.f32 %v6507, %v6516
  %v6578 = vadd.f32 %v6508, %v6516
  %v6579 = vadd.f32 %v6509, %v6516
  %v6580 = vadd.f32 %v6510, %v6516
  %v6581 = vadd.f32 %v6511, %v6516
  %v6582 = vmax.f32 %v6518, 0.0
  %v6583 = vmax.f32 %v6519, 0.0
  %v6584 = vmax.f32 %v6520, 0.0
  %v6585 = vmax.f32 %v6521, 0.0
  %v6586 = vmax.f32 %v6522, 0.0
  %v6587 = vmax.f32 %v6523, 0.0
  %v6588 = vmax.f32 %v6524, 0.0
  %v6589 = vmax.f32 %v6525, 0.0
  %v6590 = vmax.f32 %v6526, 0.0
  %v6591 = vmax.f32 %v6527, 0.0
  %v6592 = vmax.f32 %v6528, 0.0
  %v6593 = vmax.f32 %v6529, 0.0
  %v6594 = vmax.f32 %v6530, 0.0
  %v6595 = vmax.f32 %v6531, 0.0
  %v6596 = vmax.f32 %v6532, 0.0
  %v6597 = vmax.f32 %v6533, 0.0
  %v6598 = vmax.f32 %v6534, 0.0
  %v6599 = vmax.f32 %v6535, 0.0
  %v6600 = vmax.f32 %v6536, 0.0
  %v6601 = vmax.f32 %v6537, 0.0
  %v6602 = vmax.f32 %v6538, 0.0
  %v6603 = vmax.f32 %v6539, 0.0
  %v6604 = vmax.f32 %v6540, 0.0
  %v6605 = vmax.f32 %v6541, 0.0
  %v6606 = vmax.f32 %v6542, 0.0
  %v6607 = vmax.f32 %v6543, 0.0
  %v6608 = vmax.f32 %v6544, 0.0
  %v6609 = vmax.f32 %v6545, 0.0
  %v6610 = vmax.f32 %v6546, 0.0
  %v6611 = vmax.f32 %v6547, 0.0
  %v6612 = vmax.f32 %v6548, 0.0
  %v6613 = vmax.f32 %v6549, 0.0
  %v6614 = vmax.f32 %v6550, 0.0
  %v6615 = vmax.f32 %v6551, 0.0
  %v6616 = vmax.f32 %v6552, 0.0
  %v6617 = vmax.f32 %v6553, 0.0
  %v6618 = vmax.f32 %v6554, 0.0
  %v6619 = vmax.f32 %v6555, 0.0
  %v6620 = vmax.f32 %v6556, 0.0
  %v6621 = vmax.f32 %v6557, 0.0
  %v6622 = vmax.f32 %v6558, 0.0
  %v6623 = vmax.f32 %v6559, 0.0
  %v6624 = vmax.f32 %v6560, 0.0
  %v6625 = vmax.f32 %v6561, 0.0
  %v6626 = vmax.f32 %v6562, 0.0
  %v6627 = vmax.f32 %v6563, 0.0
  %v6628 = vmax.f32 %v6564, 0.0
  %v6629 = vmax.f32 %v6565, 0.0
  %v6630 = vmax.f32 %v6566, 0.0
  %v6631 = vmax.f32 %v6567, 0.0
  %v6632 = vmax.f32 %v6568, 0.0
  %v6633 = vmax.f32 %v6569, 0.0
  %v6634 = vmax.f32 %v6570, 0.0
  %v6635 = vmax.f32 %v6571, 0.0
  %v6636 = vmax.f32 %v6572, 0.0
  %v6637 = vmax.f32 %v6573, 0.0
  %v6638 = vmax.f32 %v6574, 0.0
  %v6639 = vmax.f32 %v6575, 0.0
  %v6640 = vmax.f32 %v6576, 0.0
  %v6641 = vmax.f32 %v6577, 0.0
  %v6642 = vmax.f32 %v6578, 0.0
  %v6643 = vmax.f32 %v6579, 0.0
  %v6644 = vmax.f32 %v6580, 0.0
  %v6645 = vmax.f32 %v6581, 0.0
  %6647 = vset.pattern.permute.xlu0 0
  %6648 = vperm.xlu0 %6647, %v4844
  %v6649 = vpop.permute.xlu0 %6648
  %v6651 = vlaneseq
  %v6652 = vshrl.u32 %v6651, 7
  %v6653 = vsub.s32 0, %v6652
  %v6654 = vrot.slane %v6649, %v6653
  %6655 = vmatprep.subr.mxu0 0.0
  %6656 = vmatpush1.xpose.msra.mxu0 %v6582
  %6657 = vmatprep.subr.mxu0 0.0
  %6658 = vmatpush1.xpose.msra.mxu0 %v6583
  %6659 = vmatprep.subr.mxu0 0.0
  %6660 = vmatpush1.xpose.msra.mxu0 %v6584
  %6661 = vmatprep.subr.mxu0 0.0
  %6662 = vmatpush1.xpose.msra.mxu0 %v6585
  %6663 = vmatprep.subr.mxu0 0.0
  %6664 = vmatpush1.xpose.msra.mxu0 %v6586
  %6665 = vmatprep.subr.mxu0 0.0
  %6666 = vmatpush1.xpose.msra.mxu0 %v6587
  %6667 = vmatprep.subr.mxu0 0.0
  %6668 = vmatpush1.xpose.msra.mxu0 %v6588
  %6669 = vmatprep.subr.mxu0 0.0
  %6670 = vmatpush1.xpose.msra.mxu0 %v6589
  %6671 = vmatprep.subr.mxu0 0.0
  %6672 = vmatpush1.xpose.msra.mxu0 %v6590
  %6673 = vmatprep.subr.mxu0 0.0
  %6674 = vmatpush1.xpose.msra.mxu0 %v6591
  %6675 = vmatprep.subr.mxu0 0.0
  %6676 = vmatpush1.xpose.msra.mxu0 %v6592
  %6677 = vmatprep.subr.mxu0 0.0
  %6678 = vmatpush1.xpose.msra.mxu0 %v6593
  %6679 = vmatprep.subr.mxu0 0.0
  %6680 = vmatpush1.xpose.msra.mxu0 %v6594
  %6681 = vmatprep.subr.mxu0 0.0
  %6682 = vmatpush1.xpose.msra.mxu0 %v6595
  %6683 = vmatprep.subr.mxu0 0.0
  %6684 = vmatpush1.xpose.msra.mxu0 %v6596
  %6685 = vmatprep.subr.mxu0 0.0
  %6686 = vmatpush1.xpose.msra.mxu0 %v6597
  %6687 = vmatprep.subr.mxu0 0.0
  %6688 = vmatpush1.xpose.msra.mxu0 %v6598
  %6689 = vmatprep.subr.mxu0 0.0
  %6690 = vmatpush1.xpose.msra.mxu0 %v6599
  %6691 = vmatprep.subr.mxu0 0.0
  %6692 = vmatpush1.xpose.msra.mxu0 %v6600
  %6693 = vmatprep.subr.mxu0 0.0
  %6694 = vmatpush1.xpose.msra.mxu0 %v6601
  %6695 = vmatprep.subr.mxu0 0.0
  %6696 = vmatpush1.xpose.msra.mxu0 %v6602
  %6697 = vmatprep.subr.mxu0 0.0
  %6698 = vmatpush1.xpose.msra.mxu0 %v6603
  %6699 = vmatprep.subr.mxu0 0.0
  %6700 = vmatpush1.xpose.msra.mxu0 %v6604
  %6701 = vmatprep.subr.mxu0 0.0
  %6702 = vmatpush1.xpose.msra.mxu0 %v6605
  %6703 = vmatprep.subr.mxu0 0.0
  %6704 = vmatpush1.xpose.msra.mxu0 %v6606
  %6705 = vmatprep.subr.mxu0 0.0
  %6706 = vmatpush1.xpose.msra.mxu0 %v6607
  %6707 = vmatprep.subr.mxu0 0.0
  %6708 = vmatpush1.xpose.msra.mxu0 %v6608
  %6709 = vmatprep.subr.mxu0 0.0
  %6710 = vmatpush1.xpose.msra.mxu0 %v6609
  %6711 = vmatprep.subr.mxu0 0.0
  %6712 = vmatpush1.xpose.msra.mxu0 %v6610
  %6713 = vmatprep.subr.mxu0 0.0
  %6714 = vmatpush1.xpose.msra.mxu0 %v6611
  %6715 = vmatprep.subr.mxu0 0.0
  %6716 = vmatpush1.xpose.msra.mxu0 %v6612
  %6717 = vmatprep.subr.mxu0 0.0
  %6718 = vmatpush1.xpose.msra.mxu0 %v6613
  %6719 = vmatprep.mubr.f32.mxu0 0.0
  %6720 = vmatmul.mubr.f32.gmra.mrb[0].mxu0 %v4843
  %v6721 = vpop.f32.mrb[0].mxu0
  %v6722 = vadd.f32 %v6654, %v6721
  %v6723 = vpop.f32.mrb[0].mxu0
  %v6724 = vadd.f32 %v6654, %v6723
  %6725 = vdwg.mxu0
  %6726 = vmatprep.subr.mxu0 0.0
  %6727 = vmatpush1.xpose.msra.mxu0 %v6614
  %6728 = vmatprep.subr.mxu0 0.0
  %6729 = vmatpush1.xpose.msra.mxu0 %v6615
  %6730 = vmatprep.subr.mxu0 0.0
  %6731 = vmatpush1.xpose.msra.mxu0 %v6616
  %6732 = vmatprep.subr.mxu0 0.0
  %6733 = vmatpush1.xpose.msra.mxu0 %v6617
  %6734 = vmatprep.subr.mxu0 0.0
  %6735 = vmatpush1.xpose.msra.mxu0 %v6618
  %6736 = vmatprep.subr.mxu0 0.0
  %6737 = vmatpush1.xpose.msra.mxu0 %v6619
  %6738 = vmatprep.subr.mxu0 0.0
  %6739 = vmatpush1.xpose.msra.mxu0 %v6620
  %6740 = vmatprep.subr.mxu0 0.0
  %6741 = vmatpush1.xpose.msra.mxu0 %v6621
  %6742 = vmatprep.subr.mxu0 0.0
  %6743 = vmatpush1.xpose.msra.mxu0 %v6622
  %6744 = vmatprep.subr.mxu0 0.0
  %6745 = vmatpush1.xpose.msra.mxu0 %v6623
  %6746 = vmatprep.subr.mxu0 0.0
  %6747 = vmatpush1.xpose.msra.mxu0 %v6624
  %6748 = vmatprep.subr.mxu0 0.0
  %6749 = vmatpush1.xpose.msra.mxu0 %v6625
  %6750 = vmatprep.subr.mxu0 0.0
  %6751 = vmatpush1.xpose.msra.mxu0 %v6626
  %6752 = vmatprep.subr.mxu0 0.0
  %6753 = vmatpush1.xpose.msra.mxu0 %v6627
  %6754 = vmatprep.subr.mxu0 0.0
  %6755 = vmatpush1.xpose.msra.mxu0 %v6628
  %6756 = vmatprep.subr.mxu0 0.0
  %6757 = vmatpush1.xpose.msra.mxu0 %v6629
  %6758 = vmatprep.subr.mxu0 0.0
  %6759 = vmatpush1.xpose.msra.mxu0 %v6630
  %6760 = vmatprep.subr.mxu0 0.0
  %6761 = vmatpush1.xpose.msra.mxu0 %v6631
  %6762 = vmatprep.subr.mxu0 0.0
  %6763 = vmatpush1.xpose.msra.mxu0 %v6632
  %6764 = vmatprep.subr.mxu0 0.0
  %6765 = vmatpush1.xpose.msra.mxu0 %v6633
  %6766 = vmatprep.subr.mxu0 0.0
  %6767 = vmatpush1.xpose.msra.mxu0 %v6634
  %6768 = vmatprep.subr.mxu0 0.0
  %6769 = vmatpush1.xpose.msra.mxu0 %v6635
  %6770 = vmatprep.subr.mxu0 0.0
  %6771 = vmatpush1.xpose.msra.mxu0 %v6636
  %6772 = vmatprep.subr.mxu0 0.0
  %6773 = vmatpush1.xpose.msra.mxu0 %v6637
  %6774 = vmatprep.subr.mxu0 0.0
  %6775 = vmatpush1.xpose.msra.mxu0 %v6638
  %6776 = vmatprep.subr.mxu0 0.0
  %6777 = vmatpush1.xpose.msra.mxu0 %v6639
  %6778 = vmatprep.subr.mxu0 0.0
  %6779 = vmatpush1.xpose.msra.mxu0 %v6640
  %6780 = vmatprep.subr.mxu0 0.0
  %6781 = vmatpush1.xpose.msra.mxu0 %v6641
  %6782 = vmatprep.subr.mxu0 0.0
  %6783 = vmatpush1.xpose.msra.mxu0 %v6642
  %6784 = vmatprep.subr.mxu0 0.0
  %6785 = vmatpush1.xpose.msra.mxu0 %v6643
  %6786 = vmatprep.subr.mxu0 0.0
  %6787 = vmatpush1.xpose.msra.mxu0 %v6644
  %6788 = vmatprep.subr.mxu0 0.0
  %6789 = vmatpush1.xpose.msra.mxu0 %v6645
  %6790 = vmatprep.mubr.f32.mxu0 0.0
  %6791 = vmatmul.mubr.f32.gmra.mrb[0].mxu0 %v4843
  %v6792 = vpop.f32.mrb[0].mxu0
  %v6793 = vadd.f32 %v6654, %v6792
  %v6794 = vpop.f32.mrb[0].mxu0
  %v6795 = vadd.f32 %v6654, %v6794
  %6796 = vdwg.mxu0
  %v6797 = vand.u32 2147483647, %v6722
  %v6798 = vand.u32 2147483647, %v6724
  %v6799 = vand.u32 2147483647, %v6793
  %v6800 = vand.u32 2147483647, %v6795
  %v6801 = vsub.f32 0.0, %v6797
  %v6802 = vsub.f32 0.0, %v6798
  %v6803 = vsub.f32 0.0, %v6799
  %v6804 = vsub.f32 0.0, %v6800
  %v6805 = vmul.f32 %v6801, 1.442695
  %v6806 = vpow.pop %v6805
  %v6807 = vmul.f32 %v6802, 1.442695
  %v6808 = vpow.pop %v6807
  %v6809 = vmul.f32 %v6803, 1.442695
  %v6810 = vpow.pop %v6809
  %v6811 = vmul.f32 %v6804, 1.442695
  %v6812 = vpow.pop %v6811
  %v6813 = vadd.f32 %v6806, 1.0
  %v6814 = vadd.f32 %v6808, 1.0
  %v6815 = vadd.f32 %v6810, 1.0
  %v6816 = vadd.f32 %v6812, 1.0
  %v6817 = vrcp.pop %v6813
  %v6818 = vrcp.pop %v6814
  %v6819 = vrcp.pop %v6815
  %v6820 = vrcp.pop %v6816
  %vm6821 = vcmp.ge.f32.partialorder %v6722, 0.0
  %vm6822 = vcmp.ge.f32.partialorder %v6724, 0.0
  %vm6823 = vcmp.ge.f32.partialorder %v6793, 0.0
  %vm6824 = vcmp.ge.f32.partialorder %v6795, 0.0
  %v6825 = vsub.f32 1.0, %v6817
  %v6826 = vsub.f32 1.0, %v6818
  %v6827 = vsub.f32 1.0, %v6819
  %v6828 = vsub.f32 1.0, %v6820
  %v6829 = vsel %vm6821, %v6817, %v6825
  %v6830 = vsel %vm6822, %v6818, %v6826
  %v6831 = vsel %vm6823, %v6819, %v6827
  %v6832 = vsel %vm6824, %v6820, %v6828
  %v6837 = vcombine.low %v6829, %v6830
  %v6838 = vcombine.low %v6831, %v6832
  %v6840 = vunpack.c.l.s4 1966171168
  %v6841 = vunpack.c.0.s8 %v6840
  %v6842 = vlaneseq
  %v6843 = vshrl.u32 %v6842, 7
  %v6844 = vsub.s32 %v6841, %v6843
  %v6845 = vrot.slane %v6837, %v6844
  %v6847 = vunpack.c.l.s4 1966171168
  %v6848 = vunpack.c.0.s8 %v6847
  %v6849 = vlaneseq
  %v6850 = vshrl.u32 %v6849, 7
  %v6851 = vsub.s32 %v6848, %v6850
  %v6852 = vrot.slane %v6838, %v6851
  %v6853 = vcombine.low %v6845, %v6852
  %v6855 = vunpack.c.l.s4 1966171168
  %v6856 = vunpack.c.0.s8 %v6855
  %v6857 = vlaneseq
  %v6858 = vshrl.u32 %v6857, 7
  %v6859 = vsub.s32 %v6856, %v6858
  %v6860 = vrot.slane %v6853, %v6859
  %v6862 = vlaneseq
  %vm6863 = vcmp.ge.s32.totalorder %v6862, 0
  %vm6864 = vcmp.lt.s32.totalorder %v6862, 512
  %vm6865 = vmand %vm6863, %vm6864
  %6866 = vst.msk [vmem:[%s16] sm:$0xf] %vm6865, %v6860
  // Predicated region
  $region66: #{grp_forward.1} parent=0 // pred_check
    _
  $region67: #{grp_forward.1} parent=0 // pred_check_branch
    %6868 = sbr.rel (0) target = $region69
  $region68: #{grp_forward.1} parent=0 // pred_region
    _
  $region69: #{grp_forward.1} parent=0 // pred_fallthru
    _
  // Predicated region
  $region70: #{grp_forward.1} parent=0 // pred_check
    _
  $region71: #{grp_forward.1} parent=0 // pred_check_branch
    %6870 = sbr.rel (0) target = $region73
  $region72: #{grp_forward.1} parent=0 // pred_region
    _
  $region73: #{grp_forward.1} parent=0 // pred_fallthru
    _

</llo_original>
